<compile_context>
chip_gen: v6e
topology: v6e:2x2x1
jax: 0.10.0
libtpu: 0.0.40
codegen_flags: <defaults>
</compile_context>

<pallas_src>
import jax
import jax.numpy as jnp
from jax.experimental import pallas as pl
from jax.experimental.pallas import tpu as pltpu

EPS = 1e-5


def _cparams(vmem_mb=48):
    # 48 MiB scoped VMEM: well above the 16/32 MiB defaults so the large row
    # tiles double-buffer cleanly, and still under v7x's 64 MiB physical VMEM.
    return pltpu.CompilerParams(
        dimension_semantics=("parallel",),
        vmem_limit_bytes=vmem_mb * 1024 * 1024,
    )


# --------------------------------------------------------------------------- #
# Kernels
# --------------------------------------------------------------------------- #
def _conv1x1_kernel(x_ref, w_ref, y_ref, sum_ref, sq_ref):
    """1x1 conv as an MXU matmul + per-tile BN partial stats.

    x_ref: (TM, Cin) f32   w_ref: (Cin, Cout) bf16
    y_ref: (TM, Cout) bf16 (raw conv output, pre-BN)
    sum_ref / sq_ref: (1, 1, Cout) partial sum / sum-of-squares
    """
    acc = jnp.dot(x_ref[...].astype(jnp.bfloat16), w_ref[...],
                  preferred_element_type=jnp.float32)
    yb = acc.astype(y_ref.dtype)          # bf16 value actually stored to HBM
    y_ref[...] = yb
    yf = yb.astype(jnp.float32)           # stats on the stored (rounded) value
    sum_ref[...] = jnp.sum(yf, axis=0, keepdims=True)[None]
    sq_ref[...] = jnp.sum(yf * yf, axis=0, keepdims=True)[None]


def _bn_relu_conv1x1_kernel(x_ref, scale_ref, shift_ref, w_ref,
                            y_ref, sum_ref, sq_ref):
    """Folded-BN + ReLU -> 1x1 conv (MXU) + per-tile BN partial stats."""
    x = jnp.maximum(x_ref[...].astype(jnp.float32) * scale_ref[...]
                    + shift_ref[...], 0.0)
    acc = jnp.dot(x.astype(jnp.bfloat16), w_ref[...],
                  preferred_element_type=jnp.float32)
    yb = acc.astype(y_ref.dtype)
    y_ref[...] = yb
    yf = yb.astype(jnp.float32)
    sum_ref[...] = jnp.sum(yf, axis=0, keepdims=True)[None]
    sq_ref[...] = jnp.sum(yf * yf, axis=0, keepdims=True)[None]


def _conv3x3_kernel(y1_ref, scale_ref, shift_ref, w_ref,
                    y2_ref, sum_ref, sq_ref, pad_ref):
    """BN1+ReLU -> 3x3 conv (stride=1, pad=1), one image per grid step.

    Instead of materializing a (H*W, 9*C) im2col matrix, the 9 taps are
    accumulated directly into an f32 value via 9 MXU dots of K = C.

    y1_ref:  (1, H, W, C) bf16 (raw conv1 output)
    w_ref:   (9*C, C) bf16 (HWIO reshaped, tap-major)
    y2_ref:  (1, H*W, C) bf16 (raw conv2 output, pre-BN2)
    sum_ref / sq_ref: (1, 1, C)
    pad_ref: (H+2, W+2, C) bf16 VMEM halo scratch
    """
    _, H, W, C = y1_ref.shape

    y = y1_ref[0].astype(jnp.float32)
    yn = jnp.maximum(
        y * scale_ref[...].reshape(1, 1, C) + shift_ref[...].reshape(1, 1, C),
        0.0).astype(pad_ref.dtype)

    # Zero only the 1-pixel halo; the interior is fully overwritten.
    zrow = jnp.zeros((1, W + 2, C), pad_ref.dtype)
    zcol = jnp.zeros((H, 1, C), pad_ref.dtype)
    pad_ref[0:1, :, :] = zrow
    pad_ref[H + 1:H + 2, :, :] = zrow
    pad_ref[1:H + 1, 0:1, :] = zcol
    pad_ref[1:H + 1, W + 1:W + 2, :] = zcol
    pad_ref[1:H + 1, 1:W + 1, :] = yn

    acc = jnp.zeros((H * W, C), jnp.float32)
    for ky in range(3):
        for kx in range(3):
            tap = ky * 3 + kx
            patch = pad_ref[ky:ky + H, kx:kx + W, :].reshape(H * W, C)
            acc = acc + jnp.dot(patch, w_ref[tap * C:(tap + 1) * C, :],
                                preferred_element_type=jnp.float32)

    yb = acc.astype(y2_ref.dtype)
    y2_ref[...] = yb[None]
    yf = yb.astype(jnp.float32)
    sum_ref[...] = jnp.sum(yf, axis=0, keepdims=True)[None]
    sq_ref[...] = jnp.sum(yf * yf, axis=0, keepdims=True)[None]


def _bn_residual_kernel(y_ref, scale_ref, shift_ref, x_ref, o_ref):
    """BN3 (folded affine) + identity residual add + ReLU. f32 math."""
    y = y_ref[...].astype(jnp.float32) * scale_ref[...] + shift_ref[...]
    o_ref[...] = jnp.maximum(y + x_ref[...], 0.0)


# --------------------------------------------------------------------------- #
# Host-side helpers
# --------------------------------------------------------------------------- #
def _pick_tile(m, target=1024):
    """Largest row tile <= target.

    If m <= target the whole extent is one tile (small arrays).  Otherwise the
    largest multiple-of-8 divisor of m that is <= target (falling back to the
    largest divisor <= target).  Never returns m when m > target, so big
    activations are always tiled and VMEM cannot blow up.
    """
    if m <= target:
        return m
    for t in range(target - target % 8, 7, -8):
        if m % t == 0:
            return t
    for t in range(min(target, m), 0, -1):
        if m % t == 0:
            return t
    return 1


def _fold_bn(sum_p, sq_p, count, gamma, beta):
    """Fold partial [sum, sumsq] into per-channel scale/shift (training BN)."""
    s = jnp.sum(sum_p, axis=(0, 1))                      # (C,)
    q = jnp.sum(sq_p, axis=(0, 1))                       # (C,)
    mean = s / count
    var = jnp.maximum(q / count - mean * mean, 0.0)      # biased variance
    inv = jax.lax.rsqrt(var + EPS)
    scale = gamma.reshape(-1).astype(jnp.float32) * inv
    shift = beta.reshape(-1).astype(jnp.float32) - mean * scale
    return scale.reshape(1, -1), shift.reshape(1, -1)


@jax.jit
def bottleneck_forward_nhwc(x, w1, g1, b1, w3, g2, b2, w2, g3, b3):
    """Bottleneck forward in NHWC. Returns (N, H, W, Cout) float32."""
    N, H, W, Cin = x.shape
    Cmid = w1.shape[1]
    Cout = w2.shape[1]
    assert Cin == Cout, "identity residual requires in_places == out_places*expansion"

    M = N * H * W
    TM = _pick_tile(M, 1024)       # conv stages 1 & 3
    TM4 = _pick_tile(M, 2048)      # elementwise stage 4 (smallest working set)
    G, G4 = M // TM, M // TM4

    x2d = x.reshape(M, Cin).astype(jnp.float32)
    w1b = w1.astype(jnp.bfloat16)
    w3b = w3.reshape(9 * Cmid, Cmid).astype(jnp.bfloat16)   # HWIO -> (9*Cmid, Cmid)
    w2b = w2.astype(jnp.bfloat16)

    # ---- stage 1: conv1 (1x1) + partial BN1 stats --------------------------
    y1, s1, q1 = pl.pallas_call(
        _conv1x1_kernel,
        out_shape=(jax.ShapeDtypeStruct((M, Cmid), jnp.bfloat16),
                   jax.ShapeDtypeStruct((G, 1, Cmid), jnp.float32),
                   jax.ShapeDtypeStruct((G, 1, Cmid), jnp.float32)),
        grid=(G,),
        in_specs=[pl.BlockSpec((TM, Cin), lambda i: (i, 0)),
                  pl.BlockSpec((Cin, Cmid), lambda i: (0, 0))],
        out_specs=(pl.BlockSpec((TM, Cmid), lambda i: (i, 0)),
                   pl.BlockSpec((1, 1, Cmid), lambda i: (i, 0, 0)),
                   pl.BlockSpec((1, 1, Cmid), lambda i: (i, 0, 0))),
        compiler_params=_cparams(),
    )(x2d, w1b)
    scale1, shift1 = _fold_bn(s1, q1, M, g1, b1)

    # ---- stage 2: BN1+ReLU -> 3x3 conv (per-tap MXU dots) + BN2 stats ------
    y1_4d = y1.reshape(N, H, W, Cmid)
    y2, s2, q2 = pl.pallas_call(
        _conv3x3_kernel,
        out_shape=(jax.ShapeDtypeStruct((N, H * W, Cmid), jnp.bfloat16),
                   jax.ShapeDtypeStruct((N, 1, Cmid), jnp.float32),
                   jax.ShapeDtypeStruct((N, 1, Cmid), jnp.float32)),
        grid=(N,),
        in_specs=[pl.BlockSpec((1, H, W, Cmid), lambda n: (n, 0, 0, 0)),
                  pl.BlockSpec((1, Cmid), lambda n: (0, 0)),
                  pl.BlockSpec((1, Cmid), lambda n: (0, 0)),
                  pl.BlockSpec((9 * Cmid, Cmid), lambda n: (0, 0))],
        out_specs=(pl.BlockSpec((1, H * W, Cmid), lambda n: (n, 0, 0)),
                   pl.BlockSpec((1, 1, Cmid), lambda n: (n, 0, 0)),
                   pl.BlockSpec((1, 1, Cmid), lambda n: (n, 0, 0))),
        scratch_shapes=[pltpu.VMEM((H + 2, W + 2, Cmid), jnp.bfloat16)],
        compiler_params=_cparams(),
    )(y1_4d, scale1, shift1, w3b)
    scale2, shift2 = _fold_bn(s2, q2, M, g2, b2)

    # ---- stage 3: BN2+ReLU -> conv3 (1x1 expansion) + partial BN3 stats ----
    y2_2d = y2.reshape(M, Cmid)
    y3, s3, q3 = pl.pallas_call(
        _bn_relu_conv1x1_kernel,
        out_shape=(jax.ShapeDtypeStruct((M, Cout), jnp.bfloat16),
                   jax.ShapeDtypeStruct((G, 1, Cout), jnp.float32),
                   jax.ShapeDtypeStruct((G, 1, Cout), jnp.float32)),
        grid=(G,),
        in_specs=[pl.BlockSpec((TM, Cmid), lambda i: (i, 0)),
                  pl.BlockSpec((1, Cmid), lambda i: (0, 0)),
                  pl.BlockSpec((1, Cmid), lambda i: (0, 0)),
                  pl.BlockSpec((Cmid, Cout), lambda i: (0, 0))],
        out_specs=(pl.BlockSpec((TM, Cout), lambda i: (i, 0)),
                   pl.BlockSpec((1, 1, Cout), lambda i: (i, 0, 0)),
                   pl.BlockSpec((1, 1, Cout), lambda i: (i, 0, 0))),
        compiler_params=_cparams(),
    )(y2_2d, scale2, shift2, w2b)
    scale3, shift3 = _fold_bn(s3, q3, M, g3, b3)

    # ---- stage 4: BN3 + residual add + ReLU (in place over the residual) ---
    out2d = pl.pallas_call(
        _bn_residual_kernel,
        out_shape=jax.ShapeDtypeStruct((M, Cout), jnp.float32),
        grid=(G4,),
        in_specs=[pl.BlockSpec((TM4, Cout), lambda i: (i, 0)),
                  pl.BlockSpec((1, Cout), lambda i: (0, 0)),
                  pl.BlockSpec((1, Cout), lambda i: (0, 0)),
                  pl.BlockSpec((TM4, Cout), lambda i: (i, 0))],
        out_specs=pl.BlockSpec((TM4, Cout), lambda i: (i, 0)),
        input_output_aliases={3: 0},      # reuse the residual (x2d) buffer
        compiler_params=_cparams(),
    )(y3, scale3, shift3, x2d)

    return out2d.reshape(N, H, W, Cout)


# --------------------------------------------------------------------------- #
# Pure-JAX f32 reference (lax.conv based) for the correctness check
# --------------------------------------------------------------------------- #
def reference_nhwc(x_nhwc, w1, g1, b1, w3, g2, b2, w2, g3, b3):
    def bn(y, g, b, relu=True):
        mean = jnp.mean(y, axis=(0, 1, 2), keepdims=True)
        var = jnp.mean((y - mean) ** 2, axis=(0, 1, 2), keepdims=True)
        y = (y - mean) * jax.lax.rsqrt(var + EPS) * g.reshape(1, 1, 1, -1) \
            + b.reshape(1, 1, 1, -1)
        return jnp.maximum(y, 0.0) if relu else y

    y = jnp.einsum('nhwc,cd->nhwd', x_nhwc, w1)
    y = bn(y, g1, b1)
    y = jax.lax.conv_general_dilated(
        y, w3, window_strides=(1, 1), padding='SAME',
        dimension_numbers=('NHWC', 'HWIO', 'NHWC'))
    y = bn(y, g2, b2)
    y = jnp.einsum('nhwc,cd->nhwd', y, w2)
    y = bn(y, g3, b3, relu=False)
    return jnp.maximum(y + x_nhwc, 0.0)


if __name__ == "__main__":
    key = jax.random.PRNGKey(0)
    N, H, W = 2, 16, 16
    in_places, out_places, expansion = 128, 32, 4   # identity block: Cin == Cmid*expansion
    Cin, Cmid, Cout = in_places, out_places, out_places * expansion

    ks = jax.random.split(key, 10)
    x_nchw = jax.random.normal(ks[0], (N, Cin, H, W), jnp.float32)

    # synthetic parameters with the shapes implied by the nn.Module __init__
    w1 = 0.1 * jax.random.normal(ks[1], (Cin, Cmid), jnp.float32)         # 1x1
    w3 = 0.1 * jax.random.normal(ks[2], (3, 3, Cmid, Cmid), jnp.float32)  # 3x3 HWIO
    w2 = 0.1 * jax.random.normal(ks[3], (Cmid, Cout), jnp.float32)        # 1x1 expand
    g1 = 1.0 + 0.1 * jax.random.normal(ks[4], (1, Cmid), jnp.float32)
    b1 = 0.1 * jax.random.normal(ks[5], (1, Cmid), jnp.float32)
    g2 = 1.0 + 0.1 * jax.random.normal(ks[6], (1, Cmid), jnp.float32)
    b2 = 0.1 * jax.random.normal(ks[7], (1, Cmid), jnp.float32)
    g3 = 1.0 + 0.1 * jax.random.normal(ks[8], (1, Cout), jnp.float32)
    b3 = 0.1 * jax.random.normal(ks[9], (1, Cout), jnp.float32)

    # single boundary layout change (PyTorch NCHW -> NHWC); the pipeline itself
    # stays NHWC end-to-end with no further transposes.
    x_nhwc = jnp.transpose(x_nchw, (0, 2, 3, 1))

    out = bottleneck_forward_nhwc(x_nhwc, w1, g1, b1, w3, g2, b2, w2, g3, b3)
    out = jax.block_until_ready(out)

    ref = reference_nhwc(x_nhwc, w1, g1, b1, w3, g2, b2, w2, g3, b3)

    assert out.shape == (N, H, W, Cout)
    # bf16 MXU inputs + bf16 inter-stage activations vs an f32 reference
    assert jnp.allclose(out, ref, rtol=5e-2, atol=5e-2), \
        f"max abs err = {jnp.max(jnp.abs(out - ref))}"
    print("KERNEL_OK")
</pallas_src>

<mosaic_0001>
module attributes {stable_mosaic.version = 11 : i64} {
  func.func @_bn_relu_conv1x1_kernel(%arg0: i32, %arg1: memref<512x32xbf16, #tpu.memory_space<vmem>>, %arg2: memref<1x32xf32, #tpu.memory_space<vmem>>, %arg3: memref<1x32xf32, #tpu.memory_space<vmem>>, %arg4: memref<32x128xbf16, #tpu.memory_space<vmem>>, %arg5: memref<512x128xbf16, #tpu.memory_space<vmem>>, %arg6: memref<1x1x128xf32, #tpu.memory_space<vmem>>, %arg7: memref<1x1x128xf32, #tpu.memory_space<vmem>>) attributes {dimension_semantics = [#tpu.dimension_semantics<parallel>], iteration_bounds = array<i64: 1>, scalar_prefetch = 0 : i64, scratch_operands = 0 : i64, tpu.core_type = #tpu.core_type<tc>, window_params = [{transform_indices = @transform_0, window_bounds = array<i64: 512, 32>}, {pipeline_mode = #tpu.pipeline_mode<synchronous>, transform_indices = @transform_1, window_bounds = array<i64: 1, 32>}, {pipeline_mode = #tpu.pipeline_mode<synchronous>, transform_indices = @transform_2, window_bounds = array<i64: 1, 32>}, {pipeline_mode = #tpu.pipeline_mode<synchronous>, transform_indices = @transform_3, window_bounds = array<i64: 32, 128>}, {transform_indices = @transform_4, window_bounds = array<i64: 512, 128>}, {transform_indices = @transform_5, window_bounds = array<i64: 1, 1, 128>}, {transform_indices = @transform_6, window_bounds = array<i64: 1, 1, 128>}]} {
    %c0 = arith.constant 0 : index
    %c0_0 = arith.constant 0 : index
    %0 = vector.load %arg1[%c0, %c0_0] : memref<512x32xbf16, #tpu.memory_space<vmem>>, vector<512x32xbf16>
    %1 = arith.extf %0 : vector<512x32xbf16> to vector<512x32xf32>
    %c0_1 = arith.constant 0 : index
    %c0_2 = arith.constant 0 : index
    %2 = vector.load %arg2[%c0_1, %c0_2] : memref<1x32xf32, #tpu.memory_space<vmem>>, vector<1x32xf32>
    %3 = vector.broadcast %2 : vector<1x32xf32> to vector<512x32xf32>
    %4 = arith.mulf %1, %3 : vector<512x32xf32>
    %c0_3 = arith.constant 0 : index
    %c0_4 = arith.constant 0 : index
    %5 = vector.load %arg3[%c0_3, %c0_4] : memref<1x32xf32, #tpu.memory_space<vmem>>, vector<1x32xf32>
    %6 = vector.broadcast %5 : vector<1x32xf32> to vector<512x32xf32>
    %7 = arith.addf %4, %6 : vector<512x32xf32>
    %cst = arith.constant 0.000000e+00 : f32
    %8 = vector.broadcast %cst : f32 to vector<512x32xf32>
    %9 = arith.maximumf %7, %8 : vector<512x32xf32>
    %10 = arith.truncf %9 : vector<512x32xf32> to vector<512x32xbf16>
    %c0_5 = arith.constant 0 : index
    %c0_6 = arith.constant 0 : index
    %11 = vector.load %arg4[%c0_5, %c0_6] : memref<32x128xbf16, #tpu.memory_space<vmem>>, vector<32x128xbf16>
    %cst_7 = arith.constant dense<0.000000e+00> : vector<512x128xf32>
    %12 = tpu.matmul %10, %11, %cst_7 {dimension_numbers = #tpu.dot_dimension_numbers<[1], [0], [0], [1], [0, 0, 1, 1], [], []>} : vector<512x32xbf16>, vector<32x128xbf16>, vector<512x128xf32> -> vector<512x128xf32>
    %13 = arith.truncf %12 : vector<512x128xf32> to vector<512x128xbf16>
    %c0_8 = arith.constant 0 : index
    %c0_9 = arith.constant 0 : index
    %14 = vector.load %arg5[%c0_8, %c0_9] : memref<512x128xbf16, #tpu.memory_space<vmem>>, vector<512x128xbf16>
    tpu.vector_store %arg5[%c0_8, %c0_9], %13 {strides = array<i32>} : memref<512x128xbf16, #tpu.memory_space<vmem>>, vector<512x128xbf16>,
    %15 = arith.extf %13 : vector<512x128xbf16> to vector<512x128xf32>
    %cst_10 = arith.constant dense<0.000000e+00> : vector<128xf32>
    %16 = vector.multi_reduction <add>, %15, %cst_10 [0] : vector<512x128xf32> to vector<128xf32>
    %17 = vector.shape_cast %16 : vector<128xf32> to vector<1x128xf32>
    %18 = vector.shape_cast %17 : vector<1x128xf32> to vector<1x1x128xf32>
    %c0_11 = arith.constant 0 : index
    %c0_12 = arith.constant 0 : index
    %c0_13 = arith.constant 0 : index
    %19 = vector.load %arg6[%c0_11, %c0_12, %c0_13] : memref<1x1x128xf32, #tpu.memory_space<vmem>>, vector<1x1x128xf32>
    tpu.vector_store %arg6[%c0_11, %c0_12, %c0_13], %18 {strides = array<i32>} : memref<1x1x128xf32, #tpu.memory_space<vmem>>, vector<1x1x128xf32>,
    %20 = arith.mulf %15, %15 : vector<512x128xf32>
    %cst_14 = arith.constant dense<0.000000e+00> : vector<128xf32>
    %21 = vector.multi_reduction <add>, %20, %cst_14 [0] : vector<512x128xf32> to vector<128xf32>
    %22 = vector.shape_cast %21 : vector<128xf32> to vector<1x128xf32>
    %23 = vector.shape_cast %22 : vector<1x128xf32> to vector<1x1x128xf32>
    %c0_15 = arith.constant 0 : index
    %c0_16 = arith.constant 0 : index
    %c0_17 = arith.constant 0 : index
    %24 = vector.load %arg7[%c0_15, %c0_16, %c0_17] : memref<1x1x128xf32, #tpu.memory_space<vmem>>, vector<1x1x128xf32>
    tpu.vector_store %arg7[%c0_15, %c0_16, %c0_17], %23 {strides = array<i32>} : memref<1x1x128xf32, #tpu.memory_space<vmem>>, vector<1x1x128xf32>,
    return
  }
  func.func @transform_0(%arg0: i32) -> (i32, i32) {
    %c0_i32 = arith.constant 0 : i32
    %c0_i32_0 = arith.constant 0 : i32
    return %arg0, %c0_i32 : i32, i32
  }
  func.func @transform_1(%arg0: i32) -> (i32, i32) {
    %c0_i32 = arith.constant 0 : i32
    %c0_i32_0 = arith.constant 0 : i32
    %c0_i32_1 = arith.constant 0 : i32
    return %c0_i32, %c0_i32_0 : i32, i32
  }
  func.func @transform_2(%arg0: i32) -> (i32, i32) {
    %c0_i32 = arith.constant 0 : i32
    %c0_i32_0 = arith.constant 0 : i32
    %c0_i32_1 = arith.constant 0 : i32
    return %c0_i32, %c0_i32_0 : i32, i32
  }
  func.func @transform_3(%arg0: i32) -> (i32, i32) {
    %c0_i32 = arith.constant 0 : i32
    %c0_i32_0 = arith.constant 0 : i32
    %c0_i32_1 = arith.constant 0 : i32
    return %c0_i32, %c0_i32_0 : i32, i32
  }
  func.func @transform_4(%arg0: i32) -> (i32, i32) {
    %c0_i32 = arith.constant 0 : i32
    %c0_i32_0 = arith.constant 0 : i32
    return %arg0, %c0_i32 : i32, i32
  }
  func.func @transform_5(%arg0: i32) -> (i32, i32, i32) {
    %c0_i32 = arith.constant 0 : i32
    %c0_i32_0 = arith.constant 0 : i32
    %c0_i32_1 = arith.constant 0 : i32
    return %arg0, %c0_i32, %c0_i32_0 : i32, i32, i32
  }
  func.func @transform_6(%arg0: i32) -> (i32, i32, i32) {
    %c0_i32 = arith.constant 0 : i32
    %c0_i32_0 = arith.constant 0 : i32
    %c0_i32_1 = arith.constant 0 : i32
    return %arg0, %c0_i32, %c0_i32_0 : i32, i32, i32
  }
}

module attributes {stable_mosaic.version = 11 : i64} {
  func.func @_conv1x1_kernel(%arg0: i32, %arg1: memref<512x128xf32, #tpu.memory_space<vmem>>, %arg2: memref<128x32xbf16, #tpu.memory_space<vmem>>, %arg3: memref<512x32xbf16, #tpu.memory_space<vmem>>, %arg4: memref<1x1x32xf32, #tpu.memory_space<vmem>>, %arg5: memref<1x1x32xf32, #tpu.memory_space<vmem>>) attributes {dimension_semantics = [#tpu.dimension_semantics<parallel>], iteration_bounds = array<i64: 1>, scalar_prefetch = 0 : i64, scratch_operands = 0 : i64, tpu.core_type = #tpu.core_type<tc>, window_params = [{transform_indices = @transform_0, window_bounds = array<i64: 512, 128>}, {pipeline_mode = #tpu.pipeline_mode<synchronous>, transform_indices = @transform_1, window_bounds = array<i64: 128, 32>}, {transform_indices = @transform_2, window_bounds = array<i64: 512, 32>}, {transform_indices = @transform_3, window_bounds = array<i64: 1, 1, 32>}, {transform_indices = @transform_4, window_bounds = array<i64: 1, 1, 32>}]} {
    %c0 = arith.constant 0 : index
    %c0_0 = arith.constant 0 : index
    %0 = vector.load %arg1[%c0, %c0_0] : memref<512x128xf32, #tpu.memory_space<vmem>>, vector<512x128xf32>
    %1 = arith.truncf %0 : vector<512x128xf32> to vector<512x128xbf16>
    %c0_1 = arith.constant 0 : index
    %c0_2 = arith.constant 0 : index
    %2 = vector.load %arg2[%c0_1, %c0_2] : memref<128x32xbf16, #tpu.memory_space<vmem>>, vector<128x32xbf16>
    %cst = arith.constant dense<0.000000e+00> : vector<512x32xf32>
    %3 = tpu.matmul %1, %2, %cst {dimension_numbers = #tpu.dot_dimension_numbers<[1], [0], [0], [1], [0, 0, 1, 1], [], []>} : vector<512x128xbf16>, vector<128x32xbf16>, vector<512x32xf32> -> vector<512x32xf32>
    %4 = arith.truncf %3 : vector<512x32xf32> to vector<512x32xbf16>
    %c0_3 = arith.constant 0 : index
    %c0_4 = arith.constant 0 : index
    %5 = vector.load %arg3[%c0_3, %c0_4] : memref<512x32xbf16, #tpu.memory_space<vmem>>, vector<512x32xbf16>
    tpu.vector_store %arg3[%c0_3, %c0_4], %4 {strides = array<i32>} : memref<512x32xbf16, #tpu.memory_space<vmem>>, vector<512x32xbf16>,
    %6 = arith.extf %4 : vector<512x32xbf16> to vector<512x32xf32>
    %cst_5 = arith.constant dense<0.000000e+00> : vector<32xf32>
    %7 = vector.multi_reduction <add>, %6, %cst_5 [0] : vector<512x32xf32> to vector<32xf32>
    %8 = vector.shape_cast %7 : vector<32xf32> to vector<1x32xf32>
    %9 = vector.shape_cast %8 : vector<1x32xf32> to vector<1x1x32xf32>
    %c0_6 = arith.constant 0 : index
    %c0_7 = arith.constant 0 : index
    %c0_8 = arith.constant 0 : index
    %10 = vector.load %arg4[%c0_6, %c0_7, %c0_8] : memref<1x1x32xf32, #tpu.memory_space<vmem>>, vector<1x1x32xf32>
    tpu.vector_store %arg4[%c0_6, %c0_7, %c0_8], %9 {strides = array<i32>} : memref<1x1x32xf32, #tpu.memory_space<vmem>>, vector<1x1x32xf32>,
    %11 = arith.mulf %6, %6 : vector<512x32xf32>
    %cst_9 = arith.constant dense<0.000000e+00> : vector<32xf32>
    %12 = vector.multi_reduction <add>, %11, %cst_9 [0] : vector<512x32xf32> to vector<32xf32>
    %13 = vector.shape_cast %12 : vector<32xf32> to vector<1x32xf32>
    %14 = vector.shape_cast %13 : vector<1x32xf32> to vector<1x1x32xf32>
    %c0_10 = arith.constant 0 : index
    %c0_11 = arith.constant 0 : index
    %c0_12 = arith.constant 0 : index
    %15 = vector.load %arg5[%c0_10, %c0_11, %c0_12] : memref<1x1x32xf32, #tpu.memory_space<vmem>>, vector<1x1x32xf32>
    tpu.vector_store %arg5[%c0_10, %c0_11, %c0_12], %14 {strides = array<i32>} : memref<1x1x32xf32, #tpu.memory_space<vmem>>, vector<1x1x32xf32>,
    return
  }
  func.func @transform_0(%arg0: i32) -> (i32, i32) {
    %c0_i32 = arith.constant 0 : i32
    %c0_i32_0 = arith.constant 0 : i32
    return %arg0, %c0_i32 : i32, i32
  }
  func.func @transform_1(%arg0: i32) -> (i32, i32) {
    %c0_i32 = arith.constant 0 : i32
    %c0_i32_0 = arith.constant 0 : i32
    %c0_i32_1 = arith.constant 0 : i32
    return %c0_i32, %c0_i32_0 : i32, i32
  }
  func.func @transform_2(%arg0: i32) -> (i32, i32) {
    %c0_i32 = arith.constant 0 : i32
    %c0_i32_0 = arith.constant 0 : i32
    return %arg0, %c0_i32 : i32, i32
  }
  func.func @transform_3(%arg0: i32) -> (i32, i32, i32) {
    %c0_i32 = arith.constant 0 : i32
    %c0_i32_0 = arith.constant 0 : i32
    %c0_i32_1 = arith.constant 0 : i32
    return %arg0, %c0_i32, %c0_i32_0 : i32, i32, i32
  }
  func.func @transform_4(%arg0: i32) -> (i32, i32, i32) {
    %c0_i32 = arith.constant 0 : i32
    %c0_i32_0 = arith.constant 0 : i32
    %c0_i32_1 = arith.constant 0 : i32
    return %arg0, %c0_i32, %c0_i32_0 : i32, i32, i32
  }
}

module attributes {stable_mosaic.version = 11 : i64} {
  func.func @_conv3x3_kernel(%arg0: i32, %arg1: memref<1x16x16x32xbf16, #tpu.memory_space<vmem>>, %arg2: memref<1x32xf32, #tpu.memory_space<vmem>>, %arg3: memref<1x32xf32, #tpu.memory_space<vmem>>, %arg4: memref<288x32xbf16, #tpu.memory_space<vmem>>, %arg5: memref<1x256x32xbf16, #tpu.memory_space<vmem>>, %arg6: memref<1x1x32xf32, #tpu.memory_space<vmem>>, %arg7: memref<1x1x32xf32, #tpu.memory_space<vmem>>, %arg8: memref<18x18x32xbf16, #tpu.memory_space<vmem>>) attributes {dimension_semantics = [#tpu.dimension_semantics<parallel>], iteration_bounds = array<i64: 2>, scalar_prefetch = 0 : i64, scratch_operands = 1 : i64, tpu.core_type = #tpu.core_type<tc>, window_params = [{transform_indices = @transform_0, window_bounds = array<i64: 1, 16, 16, 32>}, {pipeline_mode = #tpu.pipeline_mode<synchronous>, transform_indices = @transform_1, window_bounds = array<i64: 1, 32>}, {pipeline_mode = #tpu.pipeline_mode<synchronous>, transform_indices = @transform_2, window_bounds = array<i64: 1, 32>}, {pipeline_mode = #tpu.pipeline_mode<synchronous>, transform_indices = @transform_3, window_bounds = array<i64: 288, 32>}, {transform_indices = @transform_4, window_bounds = array<i64: 1, 256, 32>}, {transform_indices = @transform_5, window_bounds = array<i64: 1, 1, 32>}, {transform_indices = @transform_6, window_bounds = array<i64: 1, 1, 32>}]} {
    %c0 = arith.constant 0 : index
    %c0_0 = arith.constant 0 : index
    %c0_1 = arith.constant 0 : index
    %c0_2 = arith.constant 0 : index
    %0 = vector.load %arg1[%c0, %c0_0, %c0_1, %c0_2] : memref<1x16x16x32xbf16, #tpu.memory_space<vmem>>, vector<1x16x16x32xbf16>
    %1 = vector.shape_cast %0 : vector<1x16x16x32xbf16> to vector<16x16x32xbf16>
    %2 = arith.extf %1 : vector<16x16x32xbf16> to vector<16x16x32xf32>
    %c0_3 = arith.constant 0 : index
    %c0_4 = arith.constant 0 : index
    %3 = vector.load %arg2[%c0_3, %c0_4] : memref<1x32xf32, #tpu.memory_space<vmem>>, vector<1x32xf32>
    %4 = vector.shape_cast %3 : vector<1x32xf32> to vector<1x1x32xf32>
    %5 = vector.broadcast %4 : vector<1x1x32xf32> to vector<16x16x32xf32>
    %6 = arith.mulf %2, %5 : vector<16x16x32xf32>
    %c0_5 = arith.constant 0 : index
    %c0_6 = arith.constant 0 : index
    %7 = vector.load %arg3[%c0_5, %c0_6] : memref<1x32xf32, #tpu.memory_space<vmem>>, vector<1x32xf32>
    %8 = vector.shape_cast %7 : vector<1x32xf32> to vector<1x1x32xf32>
    %9 = vector.broadcast %8 : vector<1x1x32xf32> to vector<16x16x32xf32>
    %10 = arith.addf %6, %9 : vector<16x16x32xf32>
    %cst = arith.constant 0.000000e+00 : f32
    %11 = vector.broadcast %cst : f32 to vector<16x16x32xf32>
    %12 = arith.maximumf %10, %11 : vector<16x16x32xf32>
    %13 = arith.truncf %12 : vector<16x16x32xf32> to vector<16x16x32xbf16>
    %cst_7 = arith.constant 0.000000e+00 : bf16
    %14 = vector.broadcast %cst_7 : bf16 to vector<1x18x32xbf16>
    %cst_8 = arith.constant 0.000000e+00 : bf16
    %15 = vector.broadcast %cst_8 : bf16 to vector<16x1x32xbf16>
    %c0_9 = arith.constant 0 : index
    %c0_10 = arith.constant 0 : index
    %c0_11 = arith.constant 0 : index
    %16 = vector.load %arg8[%c0_9, %c0_10, %c0_11] : memref<18x18x32xbf16, #tpu.memory_space<vmem>>, vector<1x18x32xbf16>
    tpu.vector_store %arg8[%c0_9, %c0_10, %c0_11], %14 {strides = array<i32>} : memref<18x18x32xbf16, #tpu.memory_space<vmem>>, vector<1x18x32xbf16>,
    %c17 = arith.constant 17 : index
    %c0_12 = arith.constant 0 : index
    %c0_13 = arith.constant 0 : index
    %17 = vector.load %arg8[%c17, %c0_12, %c0_13] : memref<18x18x32xbf16, #tpu.memory_space<vmem>>, vector<1x18x32xbf16>
    tpu.vector_store %arg8[%c17, %c0_12, %c0_13], %14 {strides = array<i32>} : memref<18x18x32xbf16, #tpu.memory_space<vmem>>, vector<1x18x32xbf16>,
    %c1 = arith.constant 1 : index
    %c0_14 = arith.constant 0 : index
    %c0_15 = arith.constant 0 : index
    %18 = vector.load %arg8[%c1, %c0_14, %c0_15] : memref<18x18x32xbf16, #tpu.memory_space<vmem>>, vector<16x1x32xbf16>
    tpu.vector_store %arg8[%c1, %c0_14, %c0_15], %15 {strides = array<i32>} : memref<18x18x32xbf16, #tpu.memory_space<vmem>>, vector<16x1x32xbf16>,
    %c1_16 = arith.constant 1 : index
    %c17_17 = arith.constant 17 : index
    %c0_18 = arith.constant 0 : index
    %19 = vector.load %arg8[%c1_16, %c17_17, %c0_18] : memref<18x18x32xbf16, #tpu.memory_space<vmem>>, vector<16x1x32xbf16>
    tpu.vector_store %arg8[%c1_16, %c17_17, %c0_18], %15 {strides = array<i32>} : memref<18x18x32xbf16, #tpu.memory_space<vmem>>, vector<16x1x32xbf16>,
    %c1_19 = arith.constant 1 : index
    %c1_20 = arith.constant 1 : index
    %c0_21 = arith.constant 0 : index
    %20 = vector.load %arg8[%c1_19, %c1_20, %c0_21] : memref<18x18x32xbf16, #tpu.memory_space<vmem>>, vector<16x16x32xbf16>
    tpu.vector_store %arg8[%c1_19, %c1_20, %c0_21], %13 {strides = array<i32>} : memref<18x18x32xbf16, #tpu.memory_space<vmem>>, vector<16x16x32xbf16>,
    %cst_22 = arith.constant 0.000000e+00 : f32
    %21 = vector.broadcast %cst_22 : f32 to vector<256x32xf32>
    %c0_23 = arith.constant 0 : index
    %c0_24 = arith.constant 0 : index
    %c0_25 = arith.constant 0 : index
    %22 = vector.load %arg8[%c0_23, %c0_24, %c0_25] : memref<18x18x32xbf16, #tpu.memory_space<vmem>>, vector<16x16x32xbf16>
    %23 = vector.shape_cast %22 : vector<16x16x32xbf16> to vector<256x32xbf16>
    %c0_26 = arith.constant 0 : index
    %c0_27 = arith.constant 0 : index
    %24 = vector.load %arg4[%c0_26, %c0_27] : memref<288x32xbf16, #tpu.memory_space<vmem>>, vector<32x32xbf16>
    %cst_28 = arith.constant dense<0.000000e+00> : vector<256x32xf32>
    %25 = tpu.matmul %23, %24, %cst_28 {dimension_numbers = #tpu.dot_dimension_numbers<[1], [0], [0], [1], [0, 0, 1, 1], [], []>} : vector<256x32xbf16>, vector<32x32xbf16>, vector<256x32xf32> -> vector<256x32xf32>
    %26 = arith.addf %21, %25 : vector<256x32xf32>
    %c0_29 = arith.constant 0 : index
    %c1_30 = arith.constant 1 : index
    %c0_31 = arith.constant 0 : index
    %27 = vector.load %arg8[%c0_29, %c1_30, %c0_31] : memref<18x18x32xbf16, #tpu.memory_space<vmem>>, vector<16x16x32xbf16>
    %28 = vector.shape_cast %27 : vector<16x16x32xbf16> to vector<256x32xbf16>
    %c32 = arith.constant 32 : index
    %c0_32 = arith.constant 0 : index
    %29 = vector.load %arg4[%c32, %c0_32] : memref<288x32xbf16, #tpu.memory_space<vmem>>, vector<32x32xbf16>
    %cst_33 = arith.constant dense<0.000000e+00> : vector<256x32xf32>
    %30 = tpu.matmul %28, %29, %cst_33 {dimension_numbers = #tpu.dot_dimension_numbers<[1], [0], [0], [1], [0, 0, 1, 1], [], []>} : vector<256x32xbf16>, vector<32x32xbf16>, vector<256x32xf32> -> vector<256x32xf32>
    %31 = arith.addf %26, %30 : vector<256x32xf32>
    %c0_34 = arith.constant 0 : index
    %c2 = arith.constant 2 : index
    %c0_35 = arith.constant 0 : index
    %32 = vector.load %arg8[%c0_34, %c2, %c0_35] : memref<18x18x32xbf16, #tpu.memory_space<vmem>>, vector<16x16x32xbf16>
    %33 = vector.shape_cast %32 : vector<16x16x32xbf16> to vector<256x32xbf16>
    %c64 = arith.constant 64 : index
    %c0_36 = arith.constant 0 : index
    %34 = vector.load %arg4[%c64, %c0_36] : memref<288x32xbf16, #tpu.memory_space<vmem>>, vector<32x32xbf16>
    %cst_37 = arith.constant dense<0.000000e+00> : vector<256x32xf32>
    %35 = tpu.matmul %33, %34, %cst_37 {dimension_numbers = #tpu.dot_dimension_numbers<[1], [0], [0], [1], [0, 0, 1, 1], [], []>} : vector<256x32xbf16>, vector<32x32xbf16>, vector<256x32xf32> -> vector<256x32xf32>
    %36 = arith.addf %31, %35 : vector<256x32xf32>
    %c1_38 = arith.constant 1 : index
    %c0_39 = arith.constant 0 : index
    %c0_40 = arith.constant 0 : index
    %37 = vector.load %arg8[%c1_38, %c0_39, %c0_40] : memref<18x18x32xbf16, #tpu.memory_space<vmem>>, vector<16x16x32xbf16>
    %38 = vector.shape_cast %37 : vector<16x16x32xbf16> to vector<256x32xbf16>
    %c96 = arith.constant 96 : index
    %c0_41 = arith.constant 0 : index
    %39 = vector.load %arg4[%c96, %c0_41] : memref<288x32xbf16, #tpu.memory_space<vmem>>, vector<32x32xbf16>
    %cst_42 = arith.constant dense<0.000000e+00> : vector<256x32xf32>
    %40 = tpu.matmul %38, %39, %cst_42 {dimension_numbers = #tpu.dot_dimension_numbers<[1], [0], [0], [1], [0, 0, 1, 1], [], []>} : vector<256x32xbf16>, vector<32x32xbf16>, vector<256x32xf32> -> vector<256x32xf32>
    %41 = arith.addf %36, %40 : vector<256x32xf32>
    %c1_43 = arith.constant 1 : index
    %c1_44 = arith.constant 1 : index
    %c0_45 = arith.constant 0 : index
    %42 = vector.load %arg8[%c1_43, %c1_44, %c0_45] : memref<18x18x32xbf16, #tpu.memory_space<vmem>>, vector<16x16x32xbf16>
    %43 = vector.shape_cast %42 : vector<16x16x32xbf16> to vector<256x32xbf16>
    %c128 = arith.constant 128 : index
    %c0_46 = arith.constant 0 : index
    %44 = vector.load %arg4[%c128, %c0_46] : memref<288x32xbf16, #tpu.memory_space<vmem>>, vector<32x32xbf16>
    %cst_47 = arith.constant dense<0.000000e+00> : vector<256x32xf32>
    %45 = tpu.matmul %43, %44, %cst_47 {dimension_numbers = #tpu.dot_dimension_numbers<[1], [0], [0], [1], [0, 0, 1, 1], [], []>} : vector<256x32xbf16>, vector<32x32xbf16>, vector<256x32xf32> -> vector<256x32xf32>
    %46 = arith.addf %41, %45 : vector<256x32xf32>
    %c1_48 = arith.constant 1 : index
    %c2_49 = arith.constant 2 : index
    %c0_50 = arith.constant 0 : index
    %47 = vector.load %arg8[%c1_48, %c2_49, %c0_50] : memref<18x18x32xbf16, #tpu.memory_space<vmem>>, vector<16x16x32xbf16>
    %48 = vector.shape_cast %47 : vector<16x16x32xbf16> to vector<256x32xbf16>
    %c160 = arith.constant 160 : index
    %c0_51 = arith.constant 0 : index
    %49 = vector.load %arg4[%c160, %c0_51] : memref<288x32xbf16, #tpu.memory_space<vmem>>, vector<32x32xbf16>
    %cst_52 = arith.constant dense<0.000000e+00> : vector<256x32xf32>
    %50 = tpu.matmul %48, %49, %cst_52 {dimension_numbers = #tpu.dot_dimension_numbers<[1], [0], [0], [1], [0, 0, 1, 1], [], []>} : vector<256x32xbf16>, vector<32x32xbf16>, vector<256x32xf32> -> vector<256x32xf32>
    %51 = arith.addf %46, %50 : vector<256x32xf32>
    %c2_53 = arith.constant 2 : index
    %c0_54 = arith.constant 0 : index
    %c0_55 = arith.constant 0 : index
    %52 = vector.load %arg8[%c2_53, %c0_54, %c0_55] : memref<18x18x32xbf16, #tpu.memory_space<vmem>>, vector<16x16x32xbf16>
    %53 = vector.shape_cast %52 : vector<16x16x32xbf16> to vector<256x32xbf16>
    %c192 = arith.constant 192 : index
    %c0_56 = arith.constant 0 : index
    %54 = vector.load %arg4[%c192, %c0_56] : memref<288x32xbf16, #tpu.memory_space<vmem>>, vector<32x32xbf16>
    %cst_57 = arith.constant dense<0.000000e+00> : vector<256x32xf32>
    %55 = tpu.matmul %53, %54, %cst_57 {dimension_numbers = #tpu.dot_dimension_numbers<[1], [0], [0], [1], [0, 0, 1, 1], [], []>} : vector<256x32xbf16>, vector<32x32xbf16>, vector<256x32xf32> -> vector<256x32xf32>
    %56 = arith.addf %51, %55 : vector<256x32xf32>
    %c2_58 = arith.constant 2 : index
    %c1_59 = arith.constant 1 : index
    %c0_60 = arith.constant 0 : index
    %57 = vector.load %arg8[%c2_58, %c1_59, %c0_60] : memref<18x18x32xbf16, #tpu.memory_space<vmem>>, vector<16x16x32xbf16>
    %58 = vector.shape_cast %57 : vector<16x16x32xbf16> to vector<256x32xbf16>
    %c224 = arith.constant 224 : index
    %c0_61 = arith.constant 0 : index
    %59 = vector.load %arg4[%c224, %c0_61] : memref<288x32xbf16, #tpu.memory_space<vmem>>, vector<32x32xbf16>
    %cst_62 = arith.constant dense<0.000000e+00> : vector<256x32xf32>
    %60 = tpu.matmul %58, %59, %cst_62 {dimension_numbers = #tpu.dot_dimension_numbers<[1], [0], [0], [1], [0, 0, 1, 1], [], []>} : vector<256x32xbf16>, vector<32x32xbf16>, vector<256x32xf32> -> vector<256x32xf32>
    %61 = arith.addf %56, %60 : vector<256x32xf32>
    %c2_63 = arith.constant 2 : index
    %c2_64 = arith.constant 2 : index
    %c0_65 = arith.constant 0 : index
    %62 = vector.load %arg8[%c2_63, %c2_64, %c0_65] : memref<18x18x32xbf16, #tpu.memory_space<vmem>>, vector<16x16x32xbf16>
    %63 = vector.shape_cast %62 : vector<16x16x32xbf16> to vector<256x32xbf16>
    %c256 = arith.constant 256 : index
    %c0_66 = arith.constant 0 : index
    %64 = vector.load %arg4[%c256, %c0_66] : memref<288x32xbf16, #tpu.memory_space<vmem>>, vector<32x32xbf16>
    %cst_67 = arith.constant dense<0.000000e+00> : vector<256x32xf32>
    %65 = tpu.matmul %63, %64, %cst_67 {dimension_numbers = #tpu.dot_dimension_numbers<[1], [0], [0], [1], [0, 0, 1, 1], [], []>} : vector<256x32xbf16>, vector<32x32xbf16>, vector<256x32xf32> -> vector<256x32xf32>
    %66 = arith.addf %61, %65 : vector<256x32xf32>
    %67 = arith.truncf %66 : vector<256x32xf32> to vector<256x32xbf16>
    %68 = vector.shape_cast %67 : vector<256x32xbf16> to vector<1x256x32xbf16>
    %c0_68 = arith.constant 0 : index
    %c0_69 = arith.constant 0 : index
    %c0_70 = arith.constant 0 : index
    %69 = vector.load %arg5[%c0_68, %c0_69, %c0_70] : memref<1x256x32xbf16, #tpu.memory_space<vmem>>, vector<1x256x32xbf16>
    tpu.vector_store %arg5[%c0_68, %c0_69, %c0_70], %68 {strides = array<i32>} : memref<1x256x32xbf16, #tpu.memory_space<vmem>>, vector<1x256x32xbf16>,
    %70 = arith.extf %67 : vector<256x32xbf16> to vector<256x32xf32>
    %cst_71 = arith.constant dense<0.000000e+00> : vector<32xf32>
    %71 = vector.multi_reduction <add>, %70, %cst_71 [0] : vector<256x32xf32> to vector<32xf32>
    %72 = vector.shape_cast %71 : vector<32xf32> to vector<1x32xf32>
    %73 = vector.shape_cast %72 : vector<1x32xf32> to vector<1x1x32xf32>
    %c0_72 = arith.constant 0 : index
    %c0_73 = arith.constant 0 : index
    %c0_74 = arith.constant 0 : index
    %74 = vector.load %arg6[%c0_72, %c0_73, %c0_74] : memref<1x1x32xf32, #tpu.memory_space<vmem>>, vector<1x1x32xf32>
    tpu.vector_store %arg6[%c0_72, %c0_73, %c0_74], %73 {strides = array<i32>} : memref<1x1x32xf32, #tpu.memory_space<vmem>>, vector<1x1x32xf32>,
    %75 = arith.mulf %70, %70 : vector<256x32xf32>
    %cst_75 = arith.constant dense<0.000000e+00> : vector<32xf32>
    %76 = vector.multi_reduction <add>, %75, %cst_75 [0] : vector<256x32xf32> to vector<32xf32>
    %77 = vector.shape_cast %76 : vector<32xf32> to vector<1x32xf32>
    %78 = vector.shape_cast %77 : vector<1x32xf32> to vector<1x1x32xf32>
    %c0_76 = arith.constant 0 : index
    %c0_77 = arith.constant 0 : index
    %c0_78 = arith.constant 0 : index
    %79 = vector.load %arg7[%c0_76, %c0_77, %c0_78] : memref<1x1x32xf32, #tpu.memory_space<vmem>>, vector<1x1x32xf32>
    tpu.vector_store %arg7[%c0_76, %c0_77, %c0_78], %78 {strides = array<i32>} : memref<1x1x32xf32, #tpu.memory_space<vmem>>, vector<1x1x32xf32>,
    return
  }
  func.func @transform_0(%arg0: i32) -> (i32, i32, i32, i32) {
    %c0_i32 = arith.constant 0 : i32
    %c0_i32_0 = arith.constant 0 : i32
    %c0_i32_1 = arith.constant 0 : i32
    %c0_i32_2 = arith.constant 0 : i32
    return %arg0, %c0_i32, %c0_i32_0, %c0_i32_1 : i32, i32, i32, i32
  }
  func.func @transform_1(%arg0: i32) -> (i32, i32) {
    %c0_i32 = arith.constant 0 : i32
    %c0_i32_0 = arith.constant 0 : i32
    %c0_i32_1 = arith.constant 0 : i32
    return %c0_i32, %c0_i32_0 : i32, i32
  }
  func.func @transform_2(%arg0: i32) -> (i32, i32) {
    %c0_i32 = arith.constant 0 : i32
    %c0_i32_0 = arith.constant 0 : i32
    %c0_i32_1 = arith.constant 0 : i32
    return %c0_i32, %c0_i32_0 : i32, i32
  }
  func.func @transform_3(%arg0: i32) -> (i32, i32) {
    %c0_i32 = arith.constant 0 : i32
    %c0_i32_0 = arith.constant 0 : i32
    %c0_i32_1 = arith.constant 0 : i32
    return %c0_i32, %c0_i32_0 : i32, i32
  }
  func.func @transform_4(%arg0: i32) -> (i32, i32, i32) {
    %c0_i32 = arith.constant 0 : i32
    %c0_i32_0 = arith.constant 0 : i32
    %c0_i32_1 = arith.constant 0 : i32
    return %arg0, %c0_i32, %c0_i32_0 : i32, i32, i32
  }
  func.func @transform_5(%arg0: i32) -> (i32, i32, i32) {
    %c0_i32 = arith.constant 0 : i32
    %c0_i32_0 = arith.constant 0 : i32
    %c0_i32_1 = arith.constant 0 : i32
    return %arg0, %c0_i32, %c0_i32_0 : i32, i32, i32
  }
  func.func @transform_6(%arg0: i32) -> (i32, i32, i32) {
    %c0_i32 = arith.constant 0 : i32
    %c0_i32_0 = arith.constant 0 : i32
    %c0_i32_1 = arith.constant 0 : i32
    return %arg0, %c0_i32, %c0_i32_0 : i32, i32, i32
  }
}

module attributes {stable_mosaic.version = 11 : i64} {
  func.func @_bn_residual_kernel(%arg0: i32, %arg1: memref<512x128xbf16, #tpu.memory_space<vmem>>, %arg2: memref<1x128xf32, #tpu.memory_space<vmem>>, %arg3: memref<1x128xf32, #tpu.memory_space<vmem>>, %arg4: memref<512x128xf32, #tpu.memory_space<vmem>>, %arg5: memref<512x128xf32, #tpu.memory_space<vmem>>) attributes {dimension_semantics = [#tpu.dimension_semantics<parallel>], iteration_bounds = array<i64: 1>, scalar_prefetch = 0 : i64, scratch_operands = 0 : i64, tpu.core_type = #tpu.core_type<tc>, window_params = [{transform_indices = @transform_0, window_bounds = array<i64: 512, 128>}, {pipeline_mode = #tpu.pipeline_mode<synchronous>, transform_indices = @transform_1, window_bounds = array<i64: 1, 128>}, {pipeline_mode = #tpu.pipeline_mode<synchronous>, transform_indices = @transform_2, window_bounds = array<i64: 1, 128>}, {transform_indices = @transform_3, window_bounds = array<i64: 512, 128>}, {transform_indices = @transform_4, window_bounds = array<i64: 512, 128>}]} {
    %c0 = arith.constant 0 : index
    %c0_0 = arith.constant 0 : index
    %0 = vector.load %arg1[%c0, %c0_0] : memref<512x128xbf16, #tpu.memory_space<vmem>>, vector<512x128xbf16>
    %1 = arith.extf %0 : vector<512x128xbf16> to vector<512x128xf32>
    %c0_1 = arith.constant 0 : index
    %c0_2 = arith.constant 0 : index
    %2 = vector.load %arg2[%c0_1, %c0_2] : memref<1x128xf32, #tpu.memory_space<vmem>>, vector<1x128xf32>
    %3 = vector.broadcast %2 : vector<1x128xf32> to vector<512x128xf32>
    %4 = arith.mulf %1, %3 : vector<512x128xf32>
    %c0_3 = arith.constant 0 : index
    %c0_4 = arith.constant 0 : index
    %5 = vector.load %arg3[%c0_3, %c0_4] : memref<1x128xf32, #tpu.memory_space<vmem>>, vector<1x128xf32>
    %6 = vector.broadcast %5 : vector<1x128xf32> to vector<512x128xf32>
    %7 = arith.addf %4, %6 : vector<512x128xf32>
    %c0_5 = arith.constant 0 : index
    %c0_6 = arith.constant 0 : index
    %8 = vector.load %arg4[%c0_5, %c0_6] : memref<512x128xf32, #tpu.memory_space<vmem>>, vector<512x128xf32>
    %9 = arith.addf %7, %8 : vector<512x128xf32>
    %cst = arith.constant 0.000000e+00 : f32
    %10 = vector.broadcast %cst : f32 to vector<512x128xf32>
    %11 = arith.maximumf %9, %10 : vector<512x128xf32>
    %c0_7 = arith.constant 0 : index
    %c0_8 = arith.constant 0 : index
    %12 = vector.load %arg5[%c0_7, %c0_8] : memref<512x128xf32, #tpu.memory_space<vmem>>, vector<512x128xf32>
    tpu.vector_store %arg5[%c0_7, %c0_8], %11 {strides = array<i32>} : memref<512x128xf32, #tpu.memory_space<vmem>>, vector<512x128xf32>,
    return
  }
  func.func @transform_0(%arg0: i32) -> (i32, i32) {
    %c0_i32 = arith.constant 0 : i32
    %c0_i32_0 = arith.constant 0 : i32
    return %arg0, %c0_i32 : i32, i32
  }
  func.func @transform_1(%arg0: i32) -> (i32, i32) {
    %c0_i32 = arith.constant 0 : i32
    %c0_i32_0 = arith.constant 0 : i32
    %c0_i32_1 = arith.constant 0 : i32
    return %c0_i32, %c0_i32_0 : i32, i32
  }
  func.func @transform_2(%arg0: i32) -> (i32, i32) {
    %c0_i32 = arith.constant 0 : i32
    %c0_i32_0 = arith.constant 0 : i32
    %c0_i32_1 = arith.constant 0 : i32
    return %c0_i32, %c0_i32_0 : i32, i32
  }
  func.func @transform_3(%arg0: i32) -> (i32, i32) {
    %c0_i32 = arith.constant 0 : i32
    %c0_i32_0 = arith.constant 0 : i32
    return %arg0, %c0_i32 : i32, i32
  }
  func.func @transform_4(%arg0: i32) -> (i32, i32) {
    %c0_i32 = arith.constant 0 : i32
    %c0_i32_0 = arith.constant 0 : i32
    return %arg0, %c0_i32 : i32, i32
  }
}

</mosaic_0001>

<llo_original>
// kernel: bottleneck_forward_nhwc.7
$region0: #{bottleneck_forward_nhwc.7}
  #allocation0 [shape = 'u32[]', space=smem, size = 0x4, offset = 0x4, fixed_abs, tag = 'smem constant byte address 0x4 - core index']
  #allocation1 [shape = 'u32[144,128]{1,0:T(1,128)}', space=vmem, size = 0x12000, scoped, tag = 'internal scratch']
  %s0 = inlined_call_operand.vmem [shape: bf16[512,128], index: 0, kind: input, shape index: {}]
  %s1 = inlined_call_operand.vmem [shape: f32[1,128], index: 1, kind: input, shape index: {}]
  %s2 = inlined_call_operand.vmem [shape: f32[1,128], index: 2, kind: input, shape index: {}]
  %s3 = inlined_call_operand.vmem [shape: f32[512,128], index: 3, kind: input, shape index: {}, may-alias: {3,4}]
  %s4 = inlined_call_operand.vmem [shape: f32[512,128], index: 4, kind: output, shape index: {}, may-alias: {3,4}]
  %s5 = sld [smem:[#allocation0]]
  $region26: #{bottleneck_forward_nhwc.7} parent=0
    _
  %s7 = ssub.s32 1, %s5
  %s8 = scalar_select 0, %s7, %s5
  // Predicated region
  $region2: #{bottleneck_forward_nhwc.7} parent=0 // pred_check
    _
  $region3: #{bottleneck_forward_nhwc.7} parent=0 // pred_check_branch
    %10 = sbr.rel (0) target = $region5
  $region4: #{bottleneck_forward_nhwc.7} parent=0 // pred_region
    _
  $region5: #{bottleneck_forward_nhwc.7} parent=0 // pred_fallthru
    _
  // Predicated region
  $region6: #{bottleneck_forward_nhwc.7} parent=0 // pred_check
    _
  $region7: #{bottleneck_forward_nhwc.7} parent=0 // pred_check_branch
    %12 = sbr.rel (0) target = $region9
  $region8: #{bottleneck_forward_nhwc.7} parent=0 // pred_region
    _
  $region9: #{bottleneck_forward_nhwc.7} parent=0 // pred_fallthru
    _
  // Predicated region
  $region10: #{bottleneck_forward_nhwc.7} parent=0 // pred_check
    _
  $region11: #{bottleneck_forward_nhwc.7} parent=0 // pred_check_branch
    %14 = sbr.rel (0) target = $region13
  $region12: #{bottleneck_forward_nhwc.7} parent=0 // pred_region
    _
  $region13: #{bottleneck_forward_nhwc.7} parent=0 // pred_fallthru
    _
  // Predicated region
  $region14: #{bottleneck_forward_nhwc.7} parent=0 // pred_check
    _
  $region15: #{bottleneck_forward_nhwc.7} parent=0 // pred_check_branch
    %16 = sbr.rel (0) target = $region17
  $region16: #{bottleneck_forward_nhwc.7} parent=0 // pred_region
    _
  $region17: #{bottleneck_forward_nhwc.7} parent=0 // pred_fallthru
    _
  %v17 = vld [vmem:[%s0] sm:$0xf]
  %v18 = vld [vmem:[%s0 + $0x4] sm:$0xf]
  %v19 = vld [vmem:[%s0 + $0x8] sm:$0xf]
  %v20 = vld [vmem:[%s0 + $0xc] sm:$0xf]
  %v21 = vld [vmem:[%s0 + $0x10] sm:$0xf]
  %v22 = vld [vmem:[%s0 + $0x14] sm:$0xf]
  %v23 = vld [vmem:[%s0 + $0x18] sm:$0xf]
  %v24 = vld [vmem:[%s0 + $0x1c] sm:$0xf]
  %v25 = vld [vmem:[%s0 + $0x20] sm:$0xf]
  %v26 = vld [vmem:[%s0 + $0x24] sm:$0xf]
  %v27 = vld [vmem:[%s0 + $0x28] sm:$0xf]
  %v28 = vld [vmem:[%s0 + $0x2c] sm:$0xf]
  %v29 = vld [vmem:[%s0 + $0x30] sm:$0xf]
  %v30 = vld [vmem:[%s0 + $0x34] sm:$0xf]
  %v31 = vld [vmem:[%s0 + $0x38] sm:$0xf]
  %v32 = vld [vmem:[%s0 + $0x3c] sm:$0xf]
  %v33 = vld [vmem:[%s0 + $0x40] sm:$0xf]
  %v34 = vld [vmem:[%s0 + $0x44] sm:$0xf]
  %v35 = vld [vmem:[%s0 + $0x48] sm:$0xf]
  %v36 = vld [vmem:[%s0 + $0x4c] sm:$0xf]
  %v37 = vld [vmem:[%s0 + $0x50] sm:$0xf]
  %v38 = vld [vmem:[%s0 + $0x54] sm:$0xf]
  %v39 = vld [vmem:[%s0 + $0x58] sm:$0xf]
  %v40 = vld [vmem:[%s0 + $0x5c] sm:$0xf]
  %v41 = vld [vmem:[%s0 + $0x60] sm:$0xf]
  %v42 = vld [vmem:[%s0 + $0x64] sm:$0xf]
  %v43 = vld [vmem:[%s0 + $0x68] sm:$0xf]
  %v44 = vld [vmem:[%s0 + $0x6c] sm:$0xf]
  %v45 = vld [vmem:[%s0 + $0x70] sm:$0xf]
  %v46 = vld [vmem:[%s0 + $0x74] sm:$0xf]
  %v47 = vld [vmem:[%s0 + $0x78] sm:$0xf]
  %v48 = vld [vmem:[%s0 + $0x7c] sm:$0xf]
  %v49 = vld [vmem:[%s0 + $0x80] sm:$0xf]
  %v50 = vld [vmem:[%s0 + $0x84] sm:$0xf]
  %v51 = vld [vmem:[%s0 + $0x88] sm:$0xf]
  %v52 = vld [vmem:[%s0 + $0x8c] sm:$0xf]
  %v53 = vld [vmem:[%s0 + $0x90] sm:$0xf]
  %v54 = vld [vmem:[%s0 + $0x94] sm:$0xf]
  %v55 = vld [vmem:[%s0 + $0x98] sm:$0xf]
  %v56 = vld [vmem:[%s0 + $0x9c] sm:$0xf]
  %v57 = vld [vmem:[%s0 + $0xa0] sm:$0xf]
  %v58 = vld [vmem:[%s0 + $0xa4] sm:$0xf]
  %v59 = vld [vmem:[%s0 + $0xa8] sm:$0xf]
  %v60 = vld [vmem:[%s0 + $0xac] sm:$0xf]
  %v61 = vld [vmem:[%s0 + $0xb0] sm:$0xf]
  %v62 = vld [vmem:[%s0 + $0xb4] sm:$0xf]
  %v63 = vld [vmem:[%s0 + $0xb8] sm:$0xf]
  %v64 = vld [vmem:[%s0 + $0xbc] sm:$0xf]
  %v65 = vld [vmem:[%s0 + $0xc0] sm:$0xf]
  %v66 = vld [vmem:[%s0 + $0xc4] sm:$0xf]
  %v67 = vld [vmem:[%s0 + $0xc8] sm:$0xf]
  %v68 = vld [vmem:[%s0 + $0xcc] sm:$0xf]
  %v69 = vld [vmem:[%s0 + $0xd0] sm:$0xf]
  %v70 = vld [vmem:[%s0 + $0xd4] sm:$0xf]
  %v71 = vld [vmem:[%s0 + $0xd8] sm:$0xf]
  %v72 = vld [vmem:[%s0 + $0xdc] sm:$0xf]
  %v73 = vld [vmem:[%s0 + $0xe0] sm:$0xf]
  %v74 = vld [vmem:[%s0 + $0xe4] sm:$0xf]
  %v75 = vld [vmem:[%s0 + $0xe8] sm:$0xf]
  %v76 = vld [vmem:[%s0 + $0xec] sm:$0xf]
  %v77 = vld [vmem:[%s0 + $0xf0] sm:$0xf]
  %v78 = vld [vmem:[%s0 + $0xf4] sm:$0xf]
  %v79 = vld [vmem:[%s0 + $0xf8] sm:$0xf]
  %v80 = vld [vmem:[%s0 + $0xfc] sm:$0xf]
  %v81 = vunpack.c.l.bf16 %v17
  %v82 = vunpack.c.l.bf16 %v18
  %v83 = vunpack.c.l.bf16 %v19
  %v84 = vunpack.c.l.bf16 %v20
  %v85 = vunpack.c.l.bf16 %v21
  %v86 = vunpack.c.l.bf16 %v22
  %v87 = vunpack.c.l.bf16 %v23
  %v88 = vunpack.c.l.bf16 %v24
  %v89 = vunpack.c.l.bf16 %v25
  %v90 = vunpack.c.l.bf16 %v26
  %v91 = vunpack.c.l.bf16 %v27
  %v92 = vunpack.c.l.bf16 %v28
  %v93 = vunpack.c.l.bf16 %v29
  %v94 = vunpack.c.l.bf16 %v30
  %v95 = vunpack.c.l.bf16 %v31
  %v96 = vunpack.c.l.bf16 %v32
  %v97 = vunpack.c.l.bf16 %v33
  %v98 = vunpack.c.l.bf16 %v34
  %v99 = vunpack.c.l.bf16 %v35
  %v100 = vunpack.c.l.bf16 %v36
  %v101 = vunpack.c.l.bf16 %v37
  %v102 = vunpack.c.l.bf16 %v38
  %v103 = vunpack.c.l.bf16 %v39
  %v104 = vunpack.c.l.bf16 %v40
  %v105 = vunpack.c.l.bf16 %v41
  %v106 = vunpack.c.l.bf16 %v42
  %v107 = vunpack.c.l.bf16 %v43
  %v108 = vunpack.c.l.bf16 %v44
  %v109 = vunpack.c.l.bf16 %v45
  %v110 = vunpack.c.l.bf16 %v46
  %v111 = vunpack.c.l.bf16 %v47
  %v112 = vunpack.c.l.bf16 %v48
  %v113 = vunpack.c.l.bf16 %v49
  %v114 = vunpack.c.l.bf16 %v50
  %v115 = vunpack.c.l.bf16 %v51
  %v116 = vunpack.c.l.bf16 %v52
  %v117 = vunpack.c.l.bf16 %v53
  %v118 = vunpack.c.l.bf16 %v54
  %v119 = vunpack.c.l.bf16 %v55
  %v120 = vunpack.c.l.bf16 %v56
  %v121 = vunpack.c.l.bf16 %v57
  %v122 = vunpack.c.l.bf16 %v58
  %v123 = vunpack.c.l.bf16 %v59
  %v124 = vunpack.c.l.bf16 %v60
  %v125 = vunpack.c.l.bf16 %v61
  %v126 = vunpack.c.l.bf16 %v62
  %v127 = vunpack.c.l.bf16 %v63
  %v128 = vunpack.c.l.bf16 %v64
  %v129 = vunpack.c.l.bf16 %v65
  %v130 = vunpack.c.l.bf16 %v66
  %v131 = vunpack.c.l.bf16 %v67
  %v132 = vunpack.c.l.bf16 %v68
  %v133 = vunpack.c.l.bf16 %v69
  %v134 = vunpack.c.l.bf16 %v70
  %v135 = vunpack.c.l.bf16 %v71
  %v136 = vunpack.c.l.bf16 %v72
  %v137 = vunpack.c.l.bf16 %v73
  %v138 = vunpack.c.l.bf16 %v74
  %v139 = vunpack.c.l.bf16 %v75
  %v140 = vunpack.c.l.bf16 %v76
  %v141 = vunpack.c.l.bf16 %v77
  %v142 = vunpack.c.l.bf16 %v78
  %v143 = vunpack.c.l.bf16 %v79
  %v144 = vunpack.c.l.bf16 %v80
  %v145 = vld [vmem:[%s1] sm:$0x1]
  %v147 = vlaneseq
  %v148 = vshrl.u32 %v147, 7
  %v149 = vsub.s32 0, %v148
  %v150 = vrot.slane %v145, %v149
  %v152 = vmul.f32 %v81, %v150
  %v153 = vmul.f32 %v82, %v150
  %v154 = vmul.f32 %v83, %v150
  %v155 = vmul.f32 %v84, %v150
  %v156 = vmul.f32 %v85, %v150
  %v157 = vmul.f32 %v86, %v150
  %v158 = vmul.f32 %v87, %v150
  %v159 = vmul.f32 %v88, %v150
  %v160 = vmul.f32 %v89, %v150
  %v161 = vmul.f32 %v90, %v150
  %v162 = vmul.f32 %v91, %v150
  %v163 = vmul.f32 %v92, %v150
  %v164 = vmul.f32 %v93, %v150
  %v165 = vmul.f32 %v94, %v150
  %v166 = vmul.f32 %v95, %v150
  %v167 = vmul.f32 %v96, %v150
  %v168 = vmul.f32 %v97, %v150
  %v169 = vmul.f32 %v98, %v150
  %v170 = vmul.f32 %v99, %v150
  %v171 = vmul.f32 %v100, %v150
  %v172 = vmul.f32 %v101, %v150
  %v173 = vmul.f32 %v102, %v150
  %v174 = vmul.f32 %v103, %v150
  %v175 = vmul.f32 %v104, %v150
  %v176 = vmul.f32 %v105, %v150
  %v177 = vmul.f32 %v106, %v150
  %v178 = vmul.f32 %v107, %v150
  %v179 = vmul.f32 %v108, %v150
  %v180 = vmul.f32 %v109, %v150
  %v181 = vmul.f32 %v110, %v150
  %v182 = vmul.f32 %v111, %v150
  %v183 = vmul.f32 %v112, %v150
  %v184 = vmul.f32 %v113, %v150
  %v185 = vmul.f32 %v114, %v150
  %v186 = vmul.f32 %v115, %v150
  %v187 = vmul.f32 %v116, %v150
  %v188 = vmul.f32 %v117, %v150
  %v189 = vmul.f32 %v118, %v150
  %v190 = vmul.f32 %v119, %v150
  %v191 = vmul.f32 %v120, %v150
  %v192 = vmul.f32 %v121, %v150
  %v193 = vmul.f32 %v122, %v150
  %v194 = vmul.f32 %v123, %v150
  %v195 = vmul.f32 %v124, %v150
  %v196 = vmul.f32 %v125, %v150
  %v197 = vmul.f32 %v126, %v150
  %v198 = vmul.f32 %v127, %v150
  %v199 = vmul.f32 %v128, %v150
  %v200 = vmul.f32 %v129, %v150
  %v201 = vmul.f32 %v130, %v150
  %v202 = vmul.f32 %v131, %v150
  %v203 = vmul.f32 %v132, %v150
  %v204 = vmul.f32 %v133, %v150
  %v205 = vmul.f32 %v134, %v150
  %v206 = vmul.f32 %v135, %v150
  %v207 = vmul.f32 %v136, %v150
  %v208 = vmul.f32 %v137, %v150
  %v209 = vmul.f32 %v138, %v150
  %v210 = vmul.f32 %v139, %v150
  %v211 = vmul.f32 %v140, %v150
  %v212 = vmul.f32 %v141, %v150
  %v213 = vmul.f32 %v142, %v150
  %v214 = vmul.f32 %v143, %v150
  %v215 = vmul.f32 %v144, %v150
  %v216 = vld [vmem:[%s2] sm:$0x1]
  %v218 = vlaneseq
  %v219 = vshrl.u32 %v218, 7
  %v220 = vsub.s32 0, %v219
  %v221 = vrot.slane %v216, %v220
  %v223 = vadd.f32 %v152, %v221
  %v224 = vadd.f32 %v153, %v221
  %v225 = vadd.f32 %v154, %v221
  %v226 = vadd.f32 %v155, %v221
  %v227 = vadd.f32 %v156, %v221
  %v228 = vadd.f32 %v157, %v221
  %v229 = vadd.f32 %v158, %v221
  %v230 = vadd.f32 %v159, %v221
  %v231 = vadd.f32 %v160, %v221
  %v232 = vadd.f32 %v161, %v221
  %v233 = vadd.f32 %v162, %v221
  %v234 = vadd.f32 %v163, %v221
  %v235 = vadd.f32 %v164, %v221
  %v236 = vadd.f32 %v165, %v221
  %v237 = vadd.f32 %v166, %v221
  %v238 = vadd.f32 %v167, %v221
  %v239 = vadd.f32 %v168, %v221
  %v240 = vadd.f32 %v169, %v221
  %v241 = vadd.f32 %v170, %v221
  %v242 = vadd.f32 %v171, %v221
  %v243 = vadd.f32 %v172, %v221
  %v244 = vadd.f32 %v173, %v221
  %v245 = vadd.f32 %v174, %v221
  %v246 = vadd.f32 %v175, %v221
  %v247 = vadd.f32 %v176, %v221
  %v248 = vadd.f32 %v177, %v221
  %v249 = vadd.f32 %v178, %v221
  %v250 = vadd.f32 %v179, %v221
  %v251 = vadd.f32 %v180, %v221
  %v252 = vadd.f32 %v181, %v221
  %v253 = vadd.f32 %v182, %v221
  %v254 = vadd.f32 %v183, %v221
  %v255 = vadd.f32 %v184, %v221
  %v256 = vadd.f32 %v185, %v221
  %v257 = vadd.f32 %v186, %v221
  %v258 = vadd.f32 %v187, %v221
  %v259 = vadd.f32 %v188, %v221
  %v260 = vadd.f32 %v189, %v221
  %v261 = vadd.f32 %v190, %v221
  %v262 = vadd.f32 %v191, %v221
  %v263 = vadd.f32 %v192, %v221
  %v264 = vadd.f32 %v193, %v221
  %v265 = vadd.f32 %v194, %v221
  %v266 = vadd.f32 %v195, %v221
  %v267 = vadd.f32 %v196, %v221
  %v268 = vadd.f32 %v197, %v221
  %v269 = vadd.f32 %v198, %v221
  %v270 = vadd.f32 %v199, %v221
  %v271 = vadd.f32 %v200, %v221
  %v272 = vadd.f32 %v201, %v221
  %v273 = vadd.f32 %v202, %v221
  %v274 = vadd.f32 %v203, %v221
  %v275 = vadd.f32 %v204, %v221
  %v276 = vadd.f32 %v205, %v221
  %v277 = vadd.f32 %v206, %v221
  %v278 = vadd.f32 %v207, %v221
  %v279 = vadd.f32 %v208, %v221
  %v280 = vadd.f32 %v209, %v221
  %v281 = vadd.f32 %v210, %v221
  %v282 = vadd.f32 %v211, %v221
  %v283 = vadd.f32 %v212, %v221
  %v284 = vadd.f32 %v213, %v221
  %v285 = vadd.f32 %v214, %v221
  %v286 = vadd.f32 %v215, %v221
  %v287 = vld [vmem:[%s3] sm:$0xff]
  %v288 = vld [vmem:[%s3 + $0x8] sm:$0xff]
  %v289 = vld [vmem:[%s3 + $0x10] sm:$0xff]
  %v290 = vld [vmem:[%s3 + $0x18] sm:$0xff]
  %v291 = vld [vmem:[%s3 + $0x20] sm:$0xff]
  %v292 = vld [vmem:[%s3 + $0x28] sm:$0xff]
  %v293 = vld [vmem:[%s3 + $0x30] sm:$0xff]
  %v294 = vld [vmem:[%s3 + $0x38] sm:$0xff]
  %v295 = vld [vmem:[%s3 + $0x40] sm:$0xff]
  %v296 = vld [vmem:[%s3 + $0x48] sm:$0xff]
  %v297 = vld [vmem:[%s3 + $0x50] sm:$0xff]
  %v298 = vld [vmem:[%s3 + $0x58] sm:$0xff]
  %v299 = vld [vmem:[%s3 + $0x60] sm:$0xff]
  %v300 = vld [vmem:[%s3 + $0x68] sm:$0xff]
  %v301 = vld [vmem:[%s3 + $0x70] sm:$0xff]
  %v302 = vld [vmem:[%s3 + $0x78] sm:$0xff]
  %v303 = vld [vmem:[%s3 + $0x80] sm:$0xff]
  %v304 = vld [vmem:[%s3 + $0x88] sm:$0xff]
  %v305 = vld [vmem:[%s3 + $0x90] sm:$0xff]
  %v306 = vld [vmem:[%s3 + $0x98] sm:$0xff]
  %v307 = vld [vmem:[%s3 + $0xa0] sm:$0xff]
  %v308 = vld [vmem:[%s3 + $0xa8] sm:$0xff]
  %v309 = vld [vmem:[%s3 + $0xb0] sm:$0xff]
  %v310 = vld [vmem:[%s3 + $0xb8] sm:$0xff]
  %v311 = vld [vmem:[%s3 + $0xc0] sm:$0xff]
  %v312 = vld [vmem:[%s3 + $0xc8] sm:$0xff]
  %v313 = vld [vmem:[%s3 + $0xd0] sm:$0xff]
  %v314 = vld [vmem:[%s3 + $0xd8] sm:$0xff]
  %v315 = vld [vmem:[%s3 + $0xe0] sm:$0xff]
  %v316 = vld [vmem:[%s3 + $0xe8] sm:$0xff]
  %v317 = vld [vmem:[%s3 + $0xf0] sm:$0xff]
  %v318 = vld [vmem:[%s3 + $0xf8] sm:$0xff]
  %v319 = vld [vmem:[%s3 + $0x100] sm:$0xff]
  %v320 = vld [vmem:[%s3 + $0x108] sm:$0xff]
  %v321 = vld [vmem:[%s3 + $0x110] sm:$0xff]
  %v322 = vld [vmem:[%s3 + $0x118] sm:$0xff]
  %v323 = vld [vmem:[%s3 + $0x120] sm:$0xff]
  %v324 = vld [vmem:[%s3 + $0x128] sm:$0xff]
  %v325 = vld [vmem:[%s3 + $0x130] sm:$0xff]
  %v326 = vld [vmem:[%s3 + $0x138] sm:$0xff]
  %v327 = vld [vmem:[%s3 + $0x140] sm:$0xff]
  %v328 = vld [vmem:[%s3 + $0x148] sm:$0xff]
  %v329 = vld [vmem:[%s3 + $0x150] sm:$0xff]
  %v330 = vld [vmem:[%s3 + $0x158] sm:$0xff]
  %v331 = vld [vmem:[%s3 + $0x160] sm:$0xff]
  %v332 = vld [vmem:[%s3 + $0x168] sm:$0xff]
  %v333 = vld [vmem:[%s3 + $0x170] sm:$0xff]
  %v334 = vld [vmem:[%s3 + $0x178] sm:$0xff]
  %v335 = vld [vmem:[%s3 + $0x180] sm:$0xff]
  %v336 = vld [vmem:[%s3 + $0x188] sm:$0xff]
  %v337 = vld [vmem:[%s3 + $0x190] sm:$0xff]
  %v338 = vld [vmem:[%s3 + $0x198] sm:$0xff]
  %v339 = vld [vmem:[%s3 + $0x1a0] sm:$0xff]
  %v340 = vld [vmem:[%s3 + $0x1a8] sm:$0xff]
  %v341 = vld [vmem:[%s3 + $0x1b0] sm:$0xff]
  %v342 = vld [vmem:[%s3 + $0x1b8] sm:$0xff]
  %v343 = vld [vmem:[%s3 + $0x1c0] sm:$0xff]
  %v344 = vld [vmem:[%s3 + $0x1c8] sm:$0xff]
  %v345 = vld [vmem:[%s3 + $0x1d0] sm:$0xff]
  %v346 = vld [vmem:[%s3 + $0x1d8] sm:$0xff]
  %v347 = vld [vmem:[%s3 + $0x1e0] sm:$0xff]
  %v348 = vld [vmem:[%s3 + $0x1e8] sm:$0xff]
  %v349 = vld [vmem:[%s3 + $0x1f0] sm:$0xff]
  %v350 = vld [vmem:[%s3 + $0x1f8] sm:$0xff]
  %v351 = vadd.f32 %v223, %v287
  %v352 = vadd.f32 %v224, %v288
  %v353 = vadd.f32 %v225, %v289
  %v354 = vadd.f32 %v226, %v290
  %v355 = vadd.f32 %v227, %v291
  %v356 = vadd.f32 %v228, %v292
  %v357 = vadd.f32 %v229, %v293
  %v358 = vadd.f32 %v230, %v294
  %v359 = vadd.f32 %v231, %v295
  %v360 = vadd.f32 %v232, %v296
  %v361 = vadd.f32 %v233, %v297
  %v362 = vadd.f32 %v234, %v298
  %v363 = vadd.f32 %v235, %v299
  %v364 = vadd.f32 %v236, %v300
  %v365 = vadd.f32 %v237, %v301
  %v366 = vadd.f32 %v238, %v302
  %v367 = vadd.f32 %v239, %v303
  %v368 = vadd.f32 %v240, %v304
  %v369 = vadd.f32 %v241, %v305
  %v370 = vadd.f32 %v242, %v306
  %v371 = vadd.f32 %v243, %v307
  %v372 = vadd.f32 %v244, %v308
  %v373 = vadd.f32 %v245, %v309
  %v374 = vadd.f32 %v246, %v310
  %v375 = vadd.f32 %v247, %v311
  %v376 = vadd.f32 %v248, %v312
  %v377 = vadd.f32 %v249, %v313
  %v378 = vadd.f32 %v250, %v314
  %v379 = vadd.f32 %v251, %v315
  %v380 = vadd.f32 %v252, %v316
  %v381 = vadd.f32 %v253, %v317
  %v382 = vadd.f32 %v254, %v318
  %v383 = vadd.f32 %v255, %v319
  %v384 = vadd.f32 %v256, %v320
  %v385 = vadd.f32 %v257, %v321
  %v386 = vadd.f32 %v258, %v322
  %v387 = vadd.f32 %v259, %v323
  %v388 = vadd.f32 %v260, %v324
  %v389 = vadd.f32 %v261, %v325
  %v390 = vadd.f32 %v262, %v326
  %v391 = vadd.f32 %v263, %v327
  %v392 = vadd.f32 %v264, %v328
  %v393 = vadd.f32 %v265, %v329
  %v394 = vadd.f32 %v266, %v330
  %v395 = vadd.f32 %v267, %v331
  %v396 = vadd.f32 %v268, %v332
  %v397 = vadd.f32 %v269, %v333
  %v398 = vadd.f32 %v270, %v334
  %v399 = vadd.f32 %v271, %v335
  %v400 = vadd.f32 %v272, %v336
  %v401 = vadd.f32 %v273, %v337
  %v402 = vadd.f32 %v274, %v338
  %v403 = vadd.f32 %v275, %v339
  %v404 = vadd.f32 %v276, %v340
  %v405 = vadd.f32 %v277, %v341
  %v406 = vadd.f32 %v278, %v342
  %v407 = vadd.f32 %v279, %v343
  %v408 = vadd.f32 %v280, %v344
  %v409 = vadd.f32 %v281, %v345
  %v410 = vadd.f32 %v282, %v346
  %v411 = vadd.f32 %v283, %v347
  %v412 = vadd.f32 %v284, %v348
  %v413 = vadd.f32 %v285, %v349
  %v414 = vadd.f32 %v286, %v350
  %v415 = vmax.f32 %v351, 0.0
  %v416 = vmax.f32 %v352, 0.0
  %v417 = vmax.f32 %v353, 0.0
  %v418 = vmax.f32 %v354, 0.0
  %v419 = vmax.f32 %v355, 0.0
  %v420 = vmax.f32 %v356, 0.0
  %v421 = vmax.f32 %v357, 0.0
  %v422 = vmax.f32 %v358, 0.0
  %v423 = vmax.f32 %v359, 0.0
  %v424 = vmax.f32 %v360, 0.0
  %v425 = vmax.f32 %v361, 0.0
  %v426 = vmax.f32 %v362, 0.0
  %v427 = vmax.f32 %v363, 0.0
  %v428 = vmax.f32 %v364, 0.0
  %v429 = vmax.f32 %v365, 0.0
  %v430 = vmax.f32 %v366, 0.0
  %v431 = vmax.f32 %v367, 0.0
  %v432 = vmax.f32 %v368, 0.0
  %v433 = vmax.f32 %v369, 0.0
  %v434 = vmax.f32 %v370, 0.0
  %v435 = vmax.f32 %v371, 0.0
  %v436 = vmax.f32 %v372, 0.0
  %v437 = vmax.f32 %v373, 0.0
  %v438 = vmax.f32 %v374, 0.0
  %v439 = vmax.f32 %v375, 0.0
  %v440 = vmax.f32 %v376, 0.0
  %v441 = vmax.f32 %v377, 0.0
  %v442 = vmax.f32 %v378, 0.0
  %v443 = vmax.f32 %v379, 0.0
  %v444 = vmax.f32 %v380, 0.0
  %v445 = vmax.f32 %v381, 0.0
  %v446 = vmax.f32 %v382, 0.0
  %v447 = vmax.f32 %v383, 0.0
  %v448 = vmax.f32 %v384, 0.0
  %v449 = vmax.f32 %v385, 0.0
  %v450 = vmax.f32 %v386, 0.0
  %v451 = vmax.f32 %v387, 0.0
  %v452 = vmax.f32 %v388, 0.0
  %v453 = vmax.f32 %v389, 0.0
  %v454 = vmax.f32 %v390, 0.0
  %v455 = vmax.f32 %v391, 0.0
  %v456 = vmax.f32 %v392, 0.0
  %v457 = vmax.f32 %v393, 0.0
  %v458 = vmax.f32 %v394, 0.0
  %v459 = vmax.f32 %v395, 0.0
  %v460 = vmax.f32 %v396, 0.0
  %v461 = vmax.f32 %v397, 0.0
  %v462 = vmax.f32 %v398, 0.0
  %v463 = vmax.f32 %v399, 0.0
  %v464 = vmax.f32 %v400, 0.0
  %v465 = vmax.f32 %v401, 0.0
  %v466 = vmax.f32 %v402, 0.0
  %v467 = vmax.f32 %v403, 0.0
  %v468 = vmax.f32 %v404, 0.0
  %v469 = vmax.f32 %v405, 0.0
  %v470 = vmax.f32 %v406, 0.0
  %v471 = vmax.f32 %v407, 0.0
  %v472 = vmax.f32 %v408, 0.0
  %v473 = vmax.f32 %v409, 0.0
  %v474 = vmax.f32 %v410, 0.0
  %v475 = vmax.f32 %v411, 0.0
  %v476 = vmax.f32 %v412, 0.0
  %v477 = vmax.f32 %v413, 0.0
  %v478 = vmax.f32 %v414, 0.0
  %479 = vst [vmem:[%s4] sm:$0xff] %v415
  %480 = vst [vmem:[%s4 + $0x8] sm:$0xff] %v416
  %481 = vst [vmem:[%s4 + $0x10] sm:$0xff] %v417
  %482 = vst [vmem:[%s4 + $0x18] sm:$0xff] %v418
  %483 = vst [vmem:[%s4 + $0x20] sm:$0xff] %v419
  %484 = vst [vmem:[%s4 + $0x28] sm:$0xff] %v420
  %485 = vst [vmem:[%s4 + $0x30] sm:$0xff] %v421
  %486 = vst [vmem:[%s4 + $0x38] sm:$0xff] %v422
  %487 = vst [vmem:[%s4 + $0x40] sm:$0xff] %v423
  %488 = vst [vmem:[%s4 + $0x48] sm:$0xff] %v424
  %489 = vst [vmem:[%s4 + $0x50] sm:$0xff] %v425
  %490 = vst [vmem:[%s4 + $0x58] sm:$0xff] %v426
  %491 = vst [vmem:[%s4 + $0x60] sm:$0xff] %v427
  %492 = vst [vmem:[%s4 + $0x68] sm:$0xff] %v428
  %493 = vst [vmem:[%s4 + $0x70] sm:$0xff] %v429
  %494 = vst [vmem:[%s4 + $0x78] sm:$0xff] %v430
  %495 = vst [vmem:[%s4 + $0x80] sm:$0xff] %v431
  %496 = vst [vmem:[%s4 + $0x88] sm:$0xff] %v432
  %497 = vst [vmem:[%s4 + $0x90] sm:$0xff] %v433
  %498 = vst [vmem:[%s4 + $0x98] sm:$0xff] %v434
  %499 = vst [vmem:[%s4 + $0xa0] sm:$0xff] %v435
  %500 = vst [vmem:[%s4 + $0xa8] sm:$0xff] %v436
  %501 = vst [vmem:[%s4 + $0xb0] sm:$0xff] %v437
  %502 = vst [vmem:[%s4 + $0xb8] sm:$0xff] %v438
  %503 = vst [vmem:[%s4 + $0xc0] sm:$0xff] %v439
  %504 = vst [vmem:[%s4 + $0xc8] sm:$0xff] %v440
  %505 = vst [vmem:[%s4 + $0xd0] sm:$0xff] %v441
  %506 = vst [vmem:[%s4 + $0xd8] sm:$0xff] %v442
  %507 = vst [vmem:[%s4 + $0xe0] sm:$0xff] %v443
  %508 = vst [vmem:[%s4 + $0xe8] sm:$0xff] %v444
  %509 = vst [vmem:[%s4 + $0xf0] sm:$0xff] %v445
  %510 = vst [vmem:[%s4 + $0xf8] sm:$0xff] %v446
  %511 = vst [vmem:[%s4 + $0x100] sm:$0xff] %v447
  %512 = vst [vmem:[%s4 + $0x108] sm:$0xff] %v448
  %513 = vst [vmem:[%s4 + $0x110] sm:$0xff] %v449
  %514 = vst [vmem:[%s4 + $0x118] sm:$0xff] %v450
  %515 = vst [vmem:[%s4 + $0x120] sm:$0xff] %v451
  %516 = vst [vmem:[%s4 + $0x128] sm:$0xff] %v452
  %517 = vst [vmem:[%s4 + $0x130] sm:$0xff] %v453
  %518 = vst [vmem:[%s4 + $0x138] sm:$0xff] %v454
  %519 = vst [vmem:[%s4 + $0x140] sm:$0xff] %v455
  %520 = vst [vmem:[%s4 + $0x148] sm:$0xff] %v456
  %521 = vst [vmem:[%s4 + $0x150] sm:$0xff] %v457
  %522 = vst [vmem:[%s4 + $0x158] sm:$0xff] %v458
  %523 = vst [vmem:[%s4 + $0x160] sm:$0xff] %v459
  %524 = vst [vmem:[%s4 + $0x168] sm:$0xff] %v460
  %525 = vst [vmem:[%s4 + $0x170] sm:$0xff] %v461
  %526 = vst [vmem:[%s4 + $0x178] sm:$0xff] %v462
  %527 = vst [vmem:[%s4 + $0x180] sm:$0xff] %v463
  %528 = vst [vmem:[%s4 + $0x188] sm:$0xff] %v464
  %529 = vst [vmem:[%s4 + $0x190] sm:$0xff] %v465
  %530 = vst [vmem:[%s4 + $0x198] sm:$0xff] %v466
  %531 = vst [vmem:[%s4 + $0x1a0] sm:$0xff] %v467
  %532 = vst [vmem:[%s4 + $0x1a8] sm:$0xff] %v468
  %533 = vst [vmem:[%s4 + $0x1b0] sm:$0xff] %v469
  %534 = vst [vmem:[%s4 + $0x1b8] sm:$0xff] %v470
  %535 = vst [vmem:[%s4 + $0x1c0] sm:$0xff] %v471
  %536 = vst [vmem:[%s4 + $0x1c8] sm:$0xff] %v472
  %537 = vst [vmem:[%s4 + $0x1d0] sm:$0xff] %v473
  %538 = vst [vmem:[%s4 + $0x1d8] sm:$0xff] %v474
  %539 = vst [vmem:[%s4 + $0x1e0] sm:$0xff] %v475
  %540 = vst [vmem:[%s4 + $0x1e8] sm:$0xff] %v476
  %541 = vst [vmem:[%s4 + $0x1f0] sm:$0xff] %v477
  %542 = vst [vmem:[%s4 + $0x1f8] sm:$0xff] %v478
  // Predicated region
  $region18: #{bottleneck_forward_nhwc.7} parent=0 // pred_check
    _
  $region19: #{bottleneck_forward_nhwc.7} parent=0 // pred_check_branch
    %544 = sbr.rel (0) target = $region21
  $region20: #{bottleneck_forward_nhwc.7} parent=0 // pred_region
    _
  $region21: #{bottleneck_forward_nhwc.7} parent=0 // pred_fallthru
    _
  // Predicated region
  $region22: #{bottleneck_forward_nhwc.7} parent=0 // pred_check
    _
  $region23: #{bottleneck_forward_nhwc.7} parent=0 // pred_check_branch
    %546 = sbr.rel (0) target = $region25
  $region24: #{bottleneck_forward_nhwc.7} parent=0 // pred_region
    _
  $region25: #{bottleneck_forward_nhwc.7} parent=0 // pred_fallthru
    _

// kernel: bottleneck_forward_nhwc.4
$region0: #{bottleneck_forward_nhwc.4}
  #allocation0 [shape = 'u32[]', space=smem, size = 0x4, offset = 0x4, fixed_abs, tag = 'smem constant byte address 0x4 - core index']
  #allocation1 [shape = 'u32[144,128]{1,0:T(1,128)}', space=vmem, size = 0x12000, scoped, tag = 'internal scratch']
  %s0 = inlined_call_operand.vmem [shape: f32[512,128], index: 0, kind: input, shape index: {}]
  %s1 = inlined_call_operand.vmem [shape: bf16[128,32], index: 1, kind: input, shape index: {}]
  %s2 = inlined_call_operand.vmem [shape: bf16[512,32], index: 2, kind: output, shape index: {0}]
  %s3 = inlined_call_operand.vmem [shape: f32[1,1,32], index: 3, kind: output, shape index: {1}]
  %s4 = inlined_call_operand.vmem [shape: f32[1,1,32], index: 4, kind: output, shape index: {2}]
  %5 = xla_tuple %s2, %s3, %s4
  %s6 = sld [smem:[#allocation0]]
  $region34: #{bottleneck_forward_nhwc.4} parent=0
    _
  %s8 = ssub.s32 1, %s6
  %s9 = scalar_select 0, %s8, %s6
  // Predicated region
  $region2: #{bottleneck_forward_nhwc.4} parent=0 // pred_check
    _
  $region3: #{bottleneck_forward_nhwc.4} parent=0 // pred_check_branch
    %11 = sbr.rel (0) target = $region5
  $region4: #{bottleneck_forward_nhwc.4} parent=0 // pred_region
    _
  $region5: #{bottleneck_forward_nhwc.4} parent=0 // pred_fallthru
    _
  // Predicated region
  $region6: #{bottleneck_forward_nhwc.4} parent=0 // pred_check
    _
  $region7: #{bottleneck_forward_nhwc.4} parent=0 // pred_check_branch
    %13 = sbr.rel (0) target = $region9
  $region8: #{bottleneck_forward_nhwc.4} parent=0 // pred_region
    _
  $region9: #{bottleneck_forward_nhwc.4} parent=0 // pred_fallthru
    _
  %v15 = vld [vmem:[%s0] sm:$0xff]
  %v16 = vld [vmem:[%s0 + $0x8] sm:$0xff]
  %v17 = vld [vmem:[%s0 + $0x10] sm:$0xff]
  %v18 = vld [vmem:[%s0 + $0x18] sm:$0xff]
  %v19 = vld [vmem:[%s0 + $0x20] sm:$0xff]
  %v20 = vld [vmem:[%s0 + $0x28] sm:$0xff]
  %v21 = vld [vmem:[%s0 + $0x30] sm:$0xff]
  %v22 = vld [vmem:[%s0 + $0x38] sm:$0xff]
  %v23 = vld [vmem:[%s0 + $0x40] sm:$0xff]
  %v24 = vld [vmem:[%s0 + $0x48] sm:$0xff]
  %v25 = vld [vmem:[%s0 + $0x50] sm:$0xff]
  %v26 = vld [vmem:[%s0 + $0x58] sm:$0xff]
  %v27 = vld [vmem:[%s0 + $0x60] sm:$0xff]
  %v28 = vld [vmem:[%s0 + $0x68] sm:$0xff]
  %v29 = vld [vmem:[%s0 + $0x70] sm:$0xff]
  %v30 = vld [vmem:[%s0 + $0x78] sm:$0xff]
  %v31 = vld [vmem:[%s0 + $0x80] sm:$0xff]
  %v32 = vld [vmem:[%s0 + $0x88] sm:$0xff]
  %v33 = vld [vmem:[%s0 + $0x90] sm:$0xff]
  %v34 = vld [vmem:[%s0 + $0x98] sm:$0xff]
  %v35 = vld [vmem:[%s0 + $0xa0] sm:$0xff]
  %v36 = vld [vmem:[%s0 + $0xa8] sm:$0xff]
  %v37 = vld [vmem:[%s0 + $0xb0] sm:$0xff]
  %v38 = vld [vmem:[%s0 + $0xb8] sm:$0xff]
  %v39 = vld [vmem:[%s0 + $0xc0] sm:$0xff]
  %v40 = vld [vmem:[%s0 + $0xc8] sm:$0xff]
  %v41 = vld [vmem:[%s0 + $0xd0] sm:$0xff]
  %v42 = vld [vmem:[%s0 + $0xd8] sm:$0xff]
  %v43 = vld [vmem:[%s0 + $0xe0] sm:$0xff]
  %v44 = vld [vmem:[%s0 + $0xe8] sm:$0xff]
  %v45 = vld [vmem:[%s0 + $0xf0] sm:$0xff]
  %v46 = vld [vmem:[%s0 + $0xf8] sm:$0xff]
  %v47 = vld [vmem:[%s0 + $0x100] sm:$0xff]
  %v48 = vld [vmem:[%s0 + $0x108] sm:$0xff]
  %v49 = vld [vmem:[%s0 + $0x110] sm:$0xff]
  %v50 = vld [vmem:[%s0 + $0x118] sm:$0xff]
  %v51 = vld [vmem:[%s0 + $0x120] sm:$0xff]
  %v52 = vld [vmem:[%s0 + $0x128] sm:$0xff]
  %v53 = vld [vmem:[%s0 + $0x130] sm:$0xff]
  %v54 = vld [vmem:[%s0 + $0x138] sm:$0xff]
  %v55 = vld [vmem:[%s0 + $0x140] sm:$0xff]
  %v56 = vld [vmem:[%s0 + $0x148] sm:$0xff]
  %v57 = vld [vmem:[%s0 + $0x150] sm:$0xff]
  %v58 = vld [vmem:[%s0 + $0x158] sm:$0xff]
  %v59 = vld [vmem:[%s0 + $0x160] sm:$0xff]
  %v60 = vld [vmem:[%s0 + $0x168] sm:$0xff]
  %v61 = vld [vmem:[%s0 + $0x170] sm:$0xff]
  %v62 = vld [vmem:[%s0 + $0x178] sm:$0xff]
  %v63 = vld [vmem:[%s0 + $0x180] sm:$0xff]
  %v64 = vld [vmem:[%s0 + $0x188] sm:$0xff]
  %v65 = vld [vmem:[%s0 + $0x190] sm:$0xff]
  %v66 = vld [vmem:[%s0 + $0x198] sm:$0xff]
  %v67 = vld [vmem:[%s0 + $0x1a0] sm:$0xff]
  %v68 = vld [vmem:[%s0 + $0x1a8] sm:$0xff]
  %v69 = vld [vmem:[%s0 + $0x1b0] sm:$0xff]
  %v70 = vld [vmem:[%s0 + $0x1b8] sm:$0xff]
  %v71 = vld [vmem:[%s0 + $0x1c0] sm:$0xff]
  %v72 = vld [vmem:[%s0 + $0x1c8] sm:$0xff]
  %v73 = vld [vmem:[%s0 + $0x1d0] sm:$0xff]
  %v74 = vld [vmem:[%s0 + $0x1d8] sm:$0xff]
  %v75 = vld [vmem:[%s0 + $0x1e0] sm:$0xff]
  %v76 = vld [vmem:[%s0 + $0x1e8] sm:$0xff]
  %v77 = vld [vmem:[%s0 + $0x1f0] sm:$0xff]
  %v78 = vld [vmem:[%s0 + $0x1f8] sm:$0xff]
  %v79 = vpack.c.bf16 %v16, %v15
  %v80 = vpack.c.bf16 %v18, %v17
  %v81 = vpack.c.bf16 %v20, %v19
  %v82 = vpack.c.bf16 %v22, %v21
  %v83 = vpack.c.bf16 %v24, %v23
  %v84 = vpack.c.bf16 %v26, %v25
  %v85 = vpack.c.bf16 %v28, %v27
  %v86 = vpack.c.bf16 %v30, %v29
  %v87 = vpack.c.bf16 %v32, %v31
  %v88 = vpack.c.bf16 %v34, %v33
  %v89 = vpack.c.bf16 %v36, %v35
  %v90 = vpack.c.bf16 %v38, %v37
  %v91 = vpack.c.bf16 %v40, %v39
  %v92 = vpack.c.bf16 %v42, %v41
  %v93 = vpack.c.bf16 %v44, %v43
  %v94 = vpack.c.bf16 %v46, %v45
  %v95 = vpack.c.bf16 %v48, %v47
  %v96 = vpack.c.bf16 %v50, %v49
  %v97 = vpack.c.bf16 %v52, %v51
  %v98 = vpack.c.bf16 %v54, %v53
  %v99 = vpack.c.bf16 %v56, %v55
  %v100 = vpack.c.bf16 %v58, %v57
  %v101 = vpack.c.bf16 %v60, %v59
  %v102 = vpack.c.bf16 %v62, %v61
  %v103 = vpack.c.bf16 %v64, %v63
  %v104 = vpack.c.bf16 %v66, %v65
  %v105 = vpack.c.bf16 %v68, %v67
  %v106 = vpack.c.bf16 %v70, %v69
  %v107 = vpack.c.bf16 %v72, %v71
  %v108 = vpack.c.bf16 %v74, %v73
  %v109 = vpack.c.bf16 %v76, %v75
  %v110 = vpack.c.bf16 %v78, %v77
  %v111 = vld [vmem:[%s1] sm:$0xf]
  %v112 = vld [vmem:[%s1 + $0x4] sm:$0xf]
  %v113 = vld [vmem:[%s1 + $0x8] sm:$0xf]
  %v114 = vld [vmem:[%s1 + $0xc] sm:$0xf]
  %v115 = vld [vmem:[%s1 + $0x10] sm:$0xf]
  %v116 = vld [vmem:[%s1 + $0x14] sm:$0xf]
  %v117 = vld [vmem:[%s1 + $0x18] sm:$0xf]
  %v118 = vld [vmem:[%s1 + $0x1c] sm:$0xf]
  %v119 = vld [vmem:[%s1 + $0x20] sm:$0xf]
  %v120 = vld [vmem:[%s1 + $0x24] sm:$0xf]
  %v121 = vld [vmem:[%s1 + $0x28] sm:$0xf]
  %v122 = vld [vmem:[%s1 + $0x2c] sm:$0xf]
  %v123 = vld [vmem:[%s1 + $0x30] sm:$0xf]
  %v124 = vld [vmem:[%s1 + $0x34] sm:$0xf]
  %v125 = vld [vmem:[%s1 + $0x38] sm:$0xf]
  %v126 = vld [vmem:[%s1 + $0x3c] sm:$0xf]
  %v143 = vunpack.c.l.b16 %v111
  %v144 = vunpack.c.l.b16 %v112
  %v145 = vunpack.c.l.b16 %v113
  %v146 = vunpack.c.l.b16 %v114
  %v147 = vunpack.c.l.b16 %v115
  %v148 = vunpack.c.l.b16 %v116
  %v149 = vunpack.c.l.b16 %v117
  %v150 = vunpack.c.l.b16 %v118
  %v151 = vunpack.c.l.b16 %v119
  %v152 = vunpack.c.l.b16 %v120
  %v153 = vunpack.c.l.b16 %v121
  %v154 = vunpack.c.l.b16 %v122
  %v155 = vunpack.c.l.b16 %v123
  %v156 = vunpack.c.l.b16 %v124
  %v157 = vunpack.c.l.b16 %v125
  %v158 = vunpack.c.l.b16 %v126
  %v159 = vpack.c.b16 %v144, %v143
  %v160 = vpack.c.b16 %v146, %v145
  %v161 = vpack.c.b16 %v148, %v147
  %v162 = vpack.c.b16 %v150, %v149
  %v163 = vpack.c.b16 %v152, %v151
  %v164 = vpack.c.b16 %v154, %v153
  %v165 = vpack.c.b16 %v156, %v155
  %v166 = vpack.c.b16 %v158, %v157
  %175 = vmatprep.subr.bf16.mxu0 0
  %176 = vmatpush1.bf16.msra.mxu0 %v166
  %177 = vmatprep.subr.bf16.mxu0 0
  %178 = vmatpush1.bf16.msra.mxu0 %v165
  %179 = vmatprep.subr.bf16.mxu0 0
  %180 = vmatpush1.bf16.msra.mxu0 %v164
  %181 = vmatprep.subr.bf16.mxu0 0
  %182 = vmatpush1.bf16.msra.mxu0 %v163
  %183 = vmatprep.subr.bf16.mxu0 0
  %184 = vmatpush1.bf16.msra.mxu0 %v162
  %185 = vmatprep.subr.bf16.mxu0 0
  %186 = vmatpush1.bf16.msra.mxu0 %v161
  %187 = vmatprep.subr.bf16.mxu0 0
  %188 = vmatpush1.bf16.msra.mxu0 %v160
  %189 = vmatprep.subr.bf16.mxu0 0
  %190 = vmatpush1.bf16.msra.mxu0 %v159
  %191 = vmatprep.subr.bf16.mxu0 0
  %192 = vmatpush2.bf16.msra.mxu0 0
  %193 = vmatprep.subr.bf16.mxu0 0
  %194 = vmatpush2.bf16.msra.mxu0 0
  %195 = vmatprep.subr.bf16.mxu0 0
  %196 = vmatpush2.bf16.msra.mxu0 0
  %197 = vmatprep.subr.bf16.mxu0 0
  %198 = vmatpush2.bf16.msra.mxu0 0
  %199 = vmatprep.subr.bf16.mxu0 0
  %200 = vmatpush2.bf16.msra.mxu0 0
  %201 = vmatprep.subr.bf16.mxu0 0
  %202 = vmatpush2.bf16.msra.mxu0 0
  %203 = vmatprep.subr.bf16.mxu0 0
  %204 = vmatpush2.bf16.msra.mxu0 0
  %205 = vmatprep.subr.bf16.mxu0 0
  %206 = vmatpush2.bf16.msra.mxu0 0
  %207 = vmatprep.mubr.bf16.mxu0 0
  %208 = vmatmul.mubr.bf16.gmra.mxu0 %v79
  %v209 = vpop.f32.mrf.mxu0
  %v210 = vadd.f32 0.0, %v209
  %v211 = vpop.f32.mrf.mxu0
  %v212 = vpop.f32.mrf.mxu0
  %v213 = vadd.f32 0.0, %v212
  %v214 = vpop.f32.mrf.mxu0
  %215 = vmatprep.mubr.bf16.mxu0 0
  %216 = vmatmul.mubr.bf16.gmra.mxu0 %v80
  %v217 = vpop.f32.mrf.mxu0
  %v218 = vadd.f32 0.0, %v217
  %v219 = vpop.f32.mrf.mxu0
  %v220 = vpop.f32.mrf.mxu0
  %v221 = vadd.f32 0.0, %v220
  %v222 = vpop.f32.mrf.mxu0
  %223 = vmatprep.mubr.bf16.mxu0 0
  %224 = vmatmul.mubr.bf16.gmra.mxu0 %v81
  %v225 = vpop.f32.mrf.mxu0
  %v226 = vadd.f32 0.0, %v225
  %v227 = vpop.f32.mrf.mxu0
  %v228 = vpop.f32.mrf.mxu0
  %v229 = vadd.f32 0.0, %v228
  %v230 = vpop.f32.mrf.mxu0
  %231 = vmatprep.mubr.bf16.mxu0 0
  %232 = vmatmul.mubr.bf16.gmra.mxu0 %v82
  %v233 = vpop.f32.mrf.mxu0
  %v234 = vadd.f32 0.0, %v233
  %v235 = vpop.f32.mrf.mxu0
  %v236 = vpop.f32.mrf.mxu0
  %v237 = vadd.f32 0.0, %v236
  %v238 = vpop.f32.mrf.mxu0
  %239 = vmatprep.mubr.bf16.mxu0 0
  %240 = vmatmul.mubr.bf16.gmra.mxu0 %v83
  %v241 = vpop.f32.mrf.mxu0
  %v242 = vadd.f32 0.0, %v241
  %v243 = vpop.f32.mrf.mxu0
  %v244 = vpop.f32.mrf.mxu0
  %v245 = vadd.f32 0.0, %v244
  %v246 = vpop.f32.mrf.mxu0
  %247 = vmatprep.mubr.bf16.mxu0 0
  %248 = vmatmul.mubr.bf16.gmra.mxu0 %v84
  %v249 = vpop.f32.mrf.mxu0
  %v250 = vadd.f32 0.0, %v249
  %v251 = vpop.f32.mrf.mxu0
  %v252 = vpop.f32.mrf.mxu0
  %v253 = vadd.f32 0.0, %v252
  %v254 = vpop.f32.mrf.mxu0
  %255 = vmatprep.mubr.bf16.mxu0 0
  %256 = vmatmul.mubr.bf16.gmra.mxu0 %v85
  %v257 = vpop.f32.mrf.mxu0
  %v258 = vadd.f32 0.0, %v257
  %v259 = vpop.f32.mrf.mxu0
  %v260 = vpop.f32.mrf.mxu0
  %v261 = vadd.f32 0.0, %v260
  %v262 = vpop.f32.mrf.mxu0
  %263 = vmatprep.mubr.bf16.mxu0 0
  %264 = vmatmul.mubr.bf16.gmra.mxu0 %v86
  %v265 = vpop.f32.mrf.mxu0
  %v266 = vadd.f32 0.0, %v265
  %v267 = vpop.f32.mrf.mxu0
  %v268 = vpop.f32.mrf.mxu0
  %v269 = vadd.f32 0.0, %v268
  %v270 = vpop.f32.mrf.mxu0
  %271 = vmatprep.mubr.bf16.mxu0 0
  %272 = vmatmul.mubr.bf16.gmra.mxu0 %v87
  %v273 = vpop.f32.mrf.mxu0
  %v274 = vadd.f32 0.0, %v273
  %v275 = vpop.f32.mrf.mxu0
  %v276 = vpop.f32.mrf.mxu0
  %v277 = vadd.f32 0.0, %v276
  %v278 = vpop.f32.mrf.mxu0
  %279 = vmatprep.mubr.bf16.mxu0 0
  %280 = vmatmul.mubr.bf16.gmra.mxu0 %v88
  %v281 = vpop.f32.mrf.mxu0
  %v282 = vadd.f32 0.0, %v281
  %v283 = vpop.f32.mrf.mxu0
  %v284 = vpop.f32.mrf.mxu0
  %v285 = vadd.f32 0.0, %v284
  %v286 = vpop.f32.mrf.mxu0
  %287 = vmatprep.mubr.bf16.mxu0 0
  %288 = vmatmul.mubr.bf16.gmra.mxu0 %v89
  %v289 = vpop.f32.mrf.mxu0
  %v290 = vadd.f32 0.0, %v289
  %v291 = vpop.f32.mrf.mxu0
  %v292 = vpop.f32.mrf.mxu0
  %v293 = vadd.f32 0.0, %v292
  %v294 = vpop.f32.mrf.mxu0
  %295 = vmatprep.mubr.bf16.mxu0 0
  %296 = vmatmul.mubr.bf16.gmra.mxu0 %v90
  %v297 = vpop.f32.mrf.mxu0
  %v298 = vadd.f32 0.0, %v297
  %v299 = vpop.f32.mrf.mxu0
  %v300 = vpop.f32.mrf.mxu0
  %v301 = vadd.f32 0.0, %v300
  %v302 = vpop.f32.mrf.mxu0
  %303 = vmatprep.mubr.bf16.mxu0 0
  %304 = vmatmul.mubr.bf16.gmra.mxu0 %v91
  %v305 = vpop.f32.mrf.mxu0
  %v306 = vadd.f32 0.0, %v305
  %v307 = vpop.f32.mrf.mxu0
  %v308 = vpop.f32.mrf.mxu0
  %v309 = vadd.f32 0.0, %v308
  %v310 = vpop.f32.mrf.mxu0
  %311 = vmatprep.mubr.bf16.mxu0 0
  %312 = vmatmul.mubr.bf16.gmra.mxu0 %v92
  %v313 = vpop.f32.mrf.mxu0
  %v314 = vadd.f32 0.0, %v313
  %v315 = vpop.f32.mrf.mxu0
  %v316 = vpop.f32.mrf.mxu0
  %v317 = vadd.f32 0.0, %v316
  %v318 = vpop.f32.mrf.mxu0
  %319 = vmatprep.mubr.bf16.mxu0 0
  %320 = vmatmul.mubr.bf16.gmra.mxu0 %v93
  %v321 = vpop.f32.mrf.mxu0
  %v322 = vadd.f32 0.0, %v321
  %v323 = vpop.f32.mrf.mxu0
  %v324 = vpop.f32.mrf.mxu0
  %v325 = vadd.f32 0.0, %v324
  %v326 = vpop.f32.mrf.mxu0
  %327 = vmatprep.mubr.bf16.mxu0 0
  %328 = vmatmul.mubr.bf16.gmra.mxu0 %v94
  %v329 = vpop.f32.mrf.mxu0
  %v330 = vadd.f32 0.0, %v329
  %v331 = vpop.f32.mrf.mxu0
  %v332 = vpop.f32.mrf.mxu0
  %v333 = vadd.f32 0.0, %v332
  %v334 = vpop.f32.mrf.mxu0
  %335 = vmatprep.mubr.bf16.mxu0 0
  %336 = vmatmul.mubr.bf16.gmra.mxu0 %v95
  %v337 = vpop.f32.mrf.mxu0
  %v338 = vadd.f32 0.0, %v337
  %v339 = vpop.f32.mrf.mxu0
  %v340 = vpop.f32.mrf.mxu0
  %v341 = vadd.f32 0.0, %v340
  %v342 = vpop.f32.mrf.mxu0
  %343 = vmatprep.mubr.bf16.mxu0 0
  %344 = vmatmul.mubr.bf16.gmra.mxu0 %v96
  %v345 = vpop.f32.mrf.mxu0
  %v346 = vadd.f32 0.0, %v345
  %v347 = vpop.f32.mrf.mxu0
  %v348 = vpop.f32.mrf.mxu0
  %v349 = vadd.f32 0.0, %v348
  %v350 = vpop.f32.mrf.mxu0
  %351 = vmatprep.mubr.bf16.mxu0 0
  %352 = vmatmul.mubr.bf16.gmra.mxu0 %v97
  %v353 = vpop.f32.mrf.mxu0
  %v354 = vadd.f32 0.0, %v353
  %v355 = vpop.f32.mrf.mxu0
  %v356 = vpop.f32.mrf.mxu0
  %v357 = vadd.f32 0.0, %v356
  %v358 = vpop.f32.mrf.mxu0
  %359 = vmatprep.mubr.bf16.mxu0 0
  %360 = vmatmul.mubr.bf16.gmra.mxu0 %v98
  %v361 = vpop.f32.mrf.mxu0
  %v362 = vadd.f32 0.0, %v361
  %v363 = vpop.f32.mrf.mxu0
  %v364 = vpop.f32.mrf.mxu0
  %v365 = vadd.f32 0.0, %v364
  %v366 = vpop.f32.mrf.mxu0
  %367 = vmatprep.mubr.bf16.mxu0 0
  %368 = vmatmul.mubr.bf16.gmra.mxu0 %v99
  %v369 = vpop.f32.mrf.mxu0
  %v370 = vadd.f32 0.0, %v369
  %v371 = vpop.f32.mrf.mxu0
  %v372 = vpop.f32.mrf.mxu0
  %v373 = vadd.f32 0.0, %v372
  %v374 = vpop.f32.mrf.mxu0
  %375 = vmatprep.mubr.bf16.mxu0 0
  %376 = vmatmul.mubr.bf16.gmra.mxu0 %v100
  %v377 = vpop.f32.mrf.mxu0
  %v378 = vadd.f32 0.0, %v377
  %v379 = vpop.f32.mrf.mxu0
  %v380 = vpop.f32.mrf.mxu0
  %v381 = vadd.f32 0.0, %v380
  %v382 = vpop.f32.mrf.mxu0
  %383 = vmatprep.mubr.bf16.mxu0 0
  %384 = vmatmul.mubr.bf16.gmra.mxu0 %v101
  %v385 = vpop.f32.mrf.mxu0
  %v386 = vadd.f32 0.0, %v385
  %v387 = vpop.f32.mrf.mxu0
  %v388 = vpop.f32.mrf.mxu0
  %v389 = vadd.f32 0.0, %v388
  %v390 = vpop.f32.mrf.mxu0
  %391 = vmatprep.mubr.bf16.mxu0 0
  %392 = vmatmul.mubr.bf16.gmra.mxu0 %v102
  %v393 = vpop.f32.mrf.mxu0
  %v394 = vadd.f32 0.0, %v393
  %v395 = vpop.f32.mrf.mxu0
  %v396 = vpop.f32.mrf.mxu0
  %v397 = vadd.f32 0.0, %v396
  %v398 = vpop.f32.mrf.mxu0
  %399 = vmatprep.mubr.bf16.mxu0 0
  %400 = vmatmul.mubr.bf16.gmra.mxu0 %v103
  %v401 = vpop.f32.mrf.mxu0
  %v402 = vadd.f32 0.0, %v401
  %v403 = vpop.f32.mrf.mxu0
  %v404 = vpop.f32.mrf.mxu0
  %v405 = vadd.f32 0.0, %v404
  %v406 = vpop.f32.mrf.mxu0
  %407 = vmatprep.mubr.bf16.mxu0 0
  %408 = vmatmul.mubr.bf16.gmra.mxu0 %v104
  %v409 = vpop.f32.mrf.mxu0
  %v410 = vadd.f32 0.0, %v409
  %v411 = vpop.f32.mrf.mxu0
  %v412 = vpop.f32.mrf.mxu0
  %v413 = vadd.f32 0.0, %v412
  %v414 = vpop.f32.mrf.mxu0
  %415 = vmatprep.mubr.bf16.mxu0 0
  %416 = vmatmul.mubr.bf16.gmra.mxu0 %v105
  %v417 = vpop.f32.mrf.mxu0
  %v418 = vadd.f32 0.0, %v417
  %v419 = vpop.f32.mrf.mxu0
  %v420 = vpop.f32.mrf.mxu0
  %v421 = vadd.f32 0.0, %v420
  %v422 = vpop.f32.mrf.mxu0
  %423 = vmatprep.mubr.bf16.mxu0 0
  %424 = vmatmul.mubr.bf16.gmra.mxu0 %v106
  %v425 = vpop.f32.mrf.mxu0
  %v426 = vadd.f32 0.0, %v425
  %v427 = vpop.f32.mrf.mxu0
  %v428 = vpop.f32.mrf.mxu0
  %v429 = vadd.f32 0.0, %v428
  %v430 = vpop.f32.mrf.mxu0
  %431 = vmatprep.mubr.bf16.mxu0 0
  %432 = vmatmul.mubr.bf16.gmra.mxu0 %v107
  %v433 = vpop.f32.mrf.mxu0
  %v434 = vadd.f32 0.0, %v433
  %v435 = vpop.f32.mrf.mxu0
  %v436 = vpop.f32.mrf.mxu0
  %v437 = vadd.f32 0.0, %v436
  %v438 = vpop.f32.mrf.mxu0
  %439 = vmatprep.mubr.bf16.mxu0 0
  %440 = vmatmul.mubr.bf16.gmra.mxu0 %v108
  %v441 = vpop.f32.mrf.mxu0
  %v442 = vadd.f32 0.0, %v441
  %v443 = vpop.f32.mrf.mxu0
  %v444 = vpop.f32.mrf.mxu0
  %v445 = vadd.f32 0.0, %v444
  %v446 = vpop.f32.mrf.mxu0
  %447 = vmatprep.mubr.bf16.mxu0 0
  %448 = vmatmul.mubr.bf16.gmra.mxu0 %v109
  %v449 = vpop.f32.mrf.mxu0
  %v450 = vadd.f32 0.0, %v449
  %v451 = vpop.f32.mrf.mxu0
  %v452 = vpop.f32.mrf.mxu0
  %v453 = vadd.f32 0.0, %v452
  %v454 = vpop.f32.mrf.mxu0
  %455 = vmatprep.mubr.bf16.mxu0 0
  %456 = vmatmul.mubr.bf16.gmra.mxu0 %v110
  %v457 = vpop.f32.mrf.mxu0
  %v458 = vadd.f32 0.0, %v457
  %v459 = vpop.f32.mrf.mxu0
  %v460 = vpop.f32.mrf.mxu0
  %v461 = vadd.f32 0.0, %v460
  %v462 = vpop.f32.mrf.mxu0
  %463 = vdwg.mxu0
  %v464 = vpack.c.bf16 %v213, %v210
  %v465 = vpack.c.bf16 %v221, %v218
  %v466 = vpack.c.bf16 %v229, %v226
  %v467 = vpack.c.bf16 %v237, %v234
  %v468 = vpack.c.bf16 %v245, %v242
  %v469 = vpack.c.bf16 %v253, %v250
  %v470 = vpack.c.bf16 %v261, %v258
  %v471 = vpack.c.bf16 %v269, %v266
  %v472 = vpack.c.bf16 %v277, %v274
  %v473 = vpack.c.bf16 %v285, %v282
  %v474 = vpack.c.bf16 %v293, %v290
  %v475 = vpack.c.bf16 %v301, %v298
  %v476 = vpack.c.bf16 %v309, %v306
  %v477 = vpack.c.bf16 %v317, %v314
  %v478 = vpack.c.bf16 %v325, %v322
  %v479 = vpack.c.bf16 %v333, %v330
  %v480 = vpack.c.bf16 %v341, %v338
  %v481 = vpack.c.bf16 %v349, %v346
  %v482 = vpack.c.bf16 %v357, %v354
  %v483 = vpack.c.bf16 %v365, %v362
  %v484 = vpack.c.bf16 %v373, %v370
  %v485 = vpack.c.bf16 %v381, %v378
  %v486 = vpack.c.bf16 %v389, %v386
  %v487 = vpack.c.bf16 %v397, %v394
  %v488 = vpack.c.bf16 %v405, %v402
  %v489 = vpack.c.bf16 %v413, %v410
  %v490 = vpack.c.bf16 %v421, %v418
  %v491 = vpack.c.bf16 %v429, %v426
  %v492 = vpack.c.bf16 %v437, %v434
  %v493 = vpack.c.bf16 %v445, %v442
  %v494 = vpack.c.bf16 %v453, %v450
  %v495 = vpack.c.bf16 %v461, %v458
  %v528 = vunpack.c.l.b16 %v464
  %v529 = vunpack.c.h.b16 %v464
  %v530 = vunpack.c.l.b16 %v465
  %v531 = vunpack.c.h.b16 %v465
  %v532 = vunpack.c.l.b16 %v466
  %v533 = vunpack.c.h.b16 %v466
  %v534 = vunpack.c.l.b16 %v467
  %v535 = vunpack.c.h.b16 %v467
  %v536 = vunpack.c.l.b16 %v468
  %v537 = vunpack.c.h.b16 %v468
  %v538 = vunpack.c.l.b16 %v469
  %v539 = vunpack.c.h.b16 %v469
  %v540 = vunpack.c.l.b16 %v470
  %v541 = vunpack.c.h.b16 %v470
  %v542 = vunpack.c.l.b16 %v471
  %v543 = vunpack.c.h.b16 %v471
  %v544 = vunpack.c.l.b16 %v472
  %v545 = vunpack.c.h.b16 %v472
  %v546 = vunpack.c.l.b16 %v473
  %v547 = vunpack.c.h.b16 %v473
  %v548 = vunpack.c.l.b16 %v474
  %v549 = vunpack.c.h.b16 %v474
  %v550 = vunpack.c.l.b16 %v475
  %v551 = vunpack.c.h.b16 %v475
  %v552 = vunpack.c.l.b16 %v476
  %v553 = vunpack.c.h.b16 %v476
  %v554 = vunpack.c.l.b16 %v477
  %v555 = vunpack.c.h.b16 %v477
  %v556 = vunpack.c.l.b16 %v478
  %v557 = vunpack.c.h.b16 %v478
  %v558 = vunpack.c.l.b16 %v479
  %v559 = vunpack.c.h.b16 %v479
  %v560 = vunpack.c.l.b16 %v480
  %v561 = vunpack.c.h.b16 %v480
  %v562 = vunpack.c.l.b16 %v481
  %v563 = vunpack.c.h.b16 %v481
  %v564 = vunpack.c.l.b16 %v482
  %v565 = vunpack.c.h.b16 %v482
  %v566 = vunpack.c.l.b16 %v483
  %v567 = vunpack.c.h.b16 %v483
  %v568 = vunpack.c.l.b16 %v484
  %v569 = vunpack.c.h.b16 %v484
  %v570 = vunpack.c.l.b16 %v485
  %v571 = vunpack.c.h.b16 %v485
  %v572 = vunpack.c.l.b16 %v486
  %v573 = vunpack.c.h.b16 %v486
  %v574 = vunpack.c.l.b16 %v487
  %v575 = vunpack.c.h.b16 %v487
  %v576 = vunpack.c.l.b16 %v488
  %v577 = vunpack.c.h.b16 %v488
  %v578 = vunpack.c.l.b16 %v489
  %v579 = vunpack.c.h.b16 %v489
  %v580 = vunpack.c.l.b16 %v490
  %v581 = vunpack.c.h.b16 %v490
  %v582 = vunpack.c.l.b16 %v491
  %v583 = vunpack.c.h.b16 %v491
  %v584 = vunpack.c.l.b16 %v492
  %v585 = vunpack.c.h.b16 %v492
  %v586 = vunpack.c.l.b16 %v493
  %v587 = vunpack.c.h.b16 %v493
  %v588 = vunpack.c.l.b16 %v494
  %v589 = vunpack.c.h.b16 %v494
  %v590 = vunpack.c.l.b16 %v495
  %v591 = vunpack.c.h.b16 %v495
  %v592 = vpack.c.b16 %v528, %v528
  %v593 = vpack.c.b16 %v529, %v529
  %v594 = vpack.c.b16 %v530, %v530
  %v595 = vpack.c.b16 %v531, %v531
  %v596 = vpack.c.b16 %v532, %v532
  %v597 = vpack.c.b16 %v533, %v533
  %v598 = vpack.c.b16 %v534, %v534
  %v599 = vpack.c.b16 %v535, %v535
  %v600 = vpack.c.b16 %v536, %v536
  %v601 = vpack.c.b16 %v537, %v537
  %v602 = vpack.c.b16 %v538, %v538
  %v603 = vpack.c.b16 %v539, %v539
  %v604 = vpack.c.b16 %v540, %v540
  %v605 = vpack.c.b16 %v541, %v541
  %v606 = vpack.c.b16 %v542, %v542
  %v607 = vpack.c.b16 %v543, %v543
  %v608 = vpack.c.b16 %v544, %v544
  %v609 = vpack.c.b16 %v545, %v545
  %v610 = vpack.c.b16 %v546, %v546
  %v611 = vpack.c.b16 %v547, %v547
  %v612 = vpack.c.b16 %v548, %v548
  %v613 = vpack.c.b16 %v549, %v549
  %v614 = vpack.c.b16 %v550, %v550
  %v615 = vpack.c.b16 %v551, %v551
  %v616 = vpack.c.b16 %v552, %v552
  %v617 = vpack.c.b16 %v553, %v553
  %v618 = vpack.c.b16 %v554, %v554
  %v619 = vpack.c.b16 %v555, %v555
  %v620 = vpack.c.b16 %v556, %v556
  %v621 = vpack.c.b16 %v557, %v557
  %v622 = vpack.c.b16 %v558, %v558
  %v623 = vpack.c.b16 %v559, %v559
  %v624 = vpack.c.b16 %v560, %v560
  %v625 = vpack.c.b16 %v561, %v561
  %v626 = vpack.c.b16 %v562, %v562
  %v627 = vpack.c.b16 %v563, %v563
  %v628 = vpack.c.b16 %v564, %v564
  %v629 = vpack.c.b16 %v565, %v565
  %v630 = vpack.c.b16 %v566, %v566
  %v631 = vpack.c.b16 %v567, %v567
  %v632 = vpack.c.b16 %v568, %v568
  %v633 = vpack.c.b16 %v569, %v569
  %v634 = vpack.c.b16 %v570, %v570
  %v635 = vpack.c.b16 %v571, %v571
  %v636 = vpack.c.b16 %v572, %v572
  %v637 = vpack.c.b16 %v573, %v573
  %v638 = vpack.c.b16 %v574, %v574
  %v639 = vpack.c.b16 %v575, %v575
  %v640 = vpack.c.b16 %v576, %v576
  %v641 = vpack.c.b16 %v577, %v577
  %v642 = vpack.c.b16 %v578, %v578
  %v643 = vpack.c.b16 %v579, %v579
  %v644 = vpack.c.b16 %v580, %v580
  %v645 = vpack.c.b16 %v581, %v581
  %v646 = vpack.c.b16 %v582, %v582
  %v647 = vpack.c.b16 %v583, %v583
  %v648 = vpack.c.b16 %v584, %v584
  %v649 = vpack.c.b16 %v585, %v585
  %v650 = vpack.c.b16 %v586, %v586
  %v651 = vpack.c.b16 %v587, %v587
  %v652 = vpack.c.b16 %v588, %v588
  %v653 = vpack.c.b16 %v589, %v589
  %v654 = vpack.c.b16 %v590, %v590
  %v655 = vpack.c.b16 %v591, %v591
  %vm720 = vcmask 257024
  %721 = vst.msk [vmem:[%s2] sm:$0xf] %vm720, %v592
  %722 = vst.msk [vmem:[%s2 + $0x4] sm:$0xf] %vm720, %v593
  %723 = vst.msk [vmem:[%s2 + $0x8] sm:$0xf] %vm720, %v594
  %724 = vst.msk [vmem:[%s2 + $0xc] sm:$0xf] %vm720, %v595
  %725 = vst.msk [vmem:[%s2 + $0x10] sm:$0xf] %vm720, %v596
  %726 = vst.msk [vmem:[%s2 + $0x14] sm:$0xf] %vm720, %v597
  %727 = vst.msk [vmem:[%s2 + $0x18] sm:$0xf] %vm720, %v598
  %728 = vst.msk [vmem:[%s2 + $0x1c] sm:$0xf] %vm720, %v599
  %729 = vst.msk [vmem:[%s2 + $0x20] sm:$0xf] %vm720, %v600
  %730 = vst.msk [vmem:[%s2 + $0x24] sm:$0xf] %vm720, %v601
  %731 = vst.msk [vmem:[%s2 + $0x28] sm:$0xf] %vm720, %v602
  %732 = vst.msk [vmem:[%s2 + $0x2c] sm:$0xf] %vm720, %v603
  %733 = vst.msk [vmem:[%s2 + $0x30] sm:$0xf] %vm720, %v604
  %734 = vst.msk [vmem:[%s2 + $0x34] sm:$0xf] %vm720, %v605
  %735 = vst.msk [vmem:[%s2 + $0x38] sm:$0xf] %vm720, %v606
  %736 = vst.msk [vmem:[%s2 + $0x3c] sm:$0xf] %vm720, %v607
  %737 = vst.msk [vmem:[%s2 + $0x40] sm:$0xf] %vm720, %v608
  %738 = vst.msk [vmem:[%s2 + $0x44] sm:$0xf] %vm720, %v609
  %739 = vst.msk [vmem:[%s2 + $0x48] sm:$0xf] %vm720, %v610
  %740 = vst.msk [vmem:[%s2 + $0x4c] sm:$0xf] %vm720, %v611
  %741 = vst.msk [vmem:[%s2 + $0x50] sm:$0xf] %vm720, %v612
  %742 = vst.msk [vmem:[%s2 + $0x54] sm:$0xf] %vm720, %v613
  %743 = vst.msk [vmem:[%s2 + $0x58] sm:$0xf] %vm720, %v614
  %744 = vst.msk [vmem:[%s2 + $0x5c] sm:$0xf] %vm720, %v615
  %745 = vst.msk [vmem:[%s2 + $0x60] sm:$0xf] %vm720, %v616
  %746 = vst.msk [vmem:[%s2 + $0x64] sm:$0xf] %vm720, %v617
  %747 = vst.msk [vmem:[%s2 + $0x68] sm:$0xf] %vm720, %v618
  %748 = vst.msk [vmem:[%s2 + $0x6c] sm:$0xf] %vm720, %v619
  %749 = vst.msk [vmem:[%s2 + $0x70] sm:$0xf] %vm720, %v620
  %750 = vst.msk [vmem:[%s2 + $0x74] sm:$0xf] %vm720, %v621
  %751 = vst.msk [vmem:[%s2 + $0x78] sm:$0xf] %vm720, %v622
  %752 = vst.msk [vmem:[%s2 + $0x7c] sm:$0xf] %vm720, %v623
  %753 = vst.msk [vmem:[%s2 + $0x80] sm:$0xf] %vm720, %v624
  %754 = vst.msk [vmem:[%s2 + $0x84] sm:$0xf] %vm720, %v625
  %755 = vst.msk [vmem:[%s2 + $0x88] sm:$0xf] %vm720, %v626
  %756 = vst.msk [vmem:[%s2 + $0x8c] sm:$0xf] %vm720, %v627
  %757 = vst.msk [vmem:[%s2 + $0x90] sm:$0xf] %vm720, %v628
  %758 = vst.msk [vmem:[%s2 + $0x94] sm:$0xf] %vm720, %v629
  %759 = vst.msk [vmem:[%s2 + $0x98] sm:$0xf] %vm720, %v630
  %760 = vst.msk [vmem:[%s2 + $0x9c] sm:$0xf] %vm720, %v631
  %761 = vst.msk [vmem:[%s2 + $0xa0] sm:$0xf] %vm720, %v632
  %762 = vst.msk [vmem:[%s2 + $0xa4] sm:$0xf] %vm720, %v633
  %763 = vst.msk [vmem:[%s2 + $0xa8] sm:$0xf] %vm720, %v634
  %764 = vst.msk [vmem:[%s2 + $0xac] sm:$0xf] %vm720, %v635
  %765 = vst.msk [vmem:[%s2 + $0xb0] sm:$0xf] %vm720, %v636
  %766 = vst.msk [vmem:[%s2 + $0xb4] sm:$0xf] %vm720, %v637
  %767 = vst.msk [vmem:[%s2 + $0xb8] sm:$0xf] %vm720, %v638
  %768 = vst.msk [vmem:[%s2 + $0xbc] sm:$0xf] %vm720, %v639
  %769 = vst.msk [vmem:[%s2 + $0xc0] sm:$0xf] %vm720, %v640
  %770 = vst.msk [vmem:[%s2 + $0xc4] sm:$0xf] %vm720, %v641
  %771 = vst.msk [vmem:[%s2 + $0xc8] sm:$0xf] %vm720, %v642
  %772 = vst.msk [vmem:[%s2 + $0xcc] sm:$0xf] %vm720, %v643
  %773 = vst.msk [vmem:[%s2 + $0xd0] sm:$0xf] %vm720, %v644
  %774 = vst.msk [vmem:[%s2 + $0xd4] sm:$0xf] %vm720, %v645
  %775 = vst.msk [vmem:[%s2 + $0xd8] sm:$0xf] %vm720, %v646
  %776 = vst.msk [vmem:[%s2 + $0xdc] sm:$0xf] %vm720, %v647
  %777 = vst.msk [vmem:[%s2 + $0xe0] sm:$0xf] %vm720, %v648
  %778 = vst.msk [vmem:[%s2 + $0xe4] sm:$0xf] %vm720, %v649
  %779 = vst.msk [vmem:[%s2 + $0xe8] sm:$0xf] %vm720, %v650
  %780 = vst.msk [vmem:[%s2 + $0xec] sm:$0xf] %vm720, %v651
  %781 = vst.msk [vmem:[%s2 + $0xf0] sm:$0xf] %vm720, %v652
  %782 = vst.msk [vmem:[%s2 + $0xf4] sm:$0xf] %vm720, %v653
  %783 = vst.msk [vmem:[%s2 + $0xf8] sm:$0xf] %vm720, %v654
  %784 = vst.msk [vmem:[%s2 + $0xfc] sm:$0xf] %vm720, %v655
  %v785 = vunpack.c.l.bf16 %v464
  %v786 = vunpack.c.h.bf16 %v464
  %v787 = vunpack.c.l.bf16 %v465
  %v788 = vunpack.c.h.bf16 %v465
  %v789 = vunpack.c.l.bf16 %v466
  %v790 = vunpack.c.h.bf16 %v466
  %v791 = vunpack.c.l.bf16 %v467
  %v792 = vunpack.c.h.bf16 %v467
  %v793 = vunpack.c.l.bf16 %v468
  %v794 = vunpack.c.h.bf16 %v468
  %v795 = vunpack.c.l.bf16 %v469
  %v796 = vunpack.c.h.bf16 %v469
  %v797 = vunpack.c.l.bf16 %v470
  %v798 = vunpack.c.h.bf16 %v470
  %v799 = vunpack.c.l.bf16 %v471
  %v800 = vunpack.c.h.bf16 %v471
  %v801 = vunpack.c.l.bf16 %v472
  %v802 = vunpack.c.h.bf16 %v472
  %v803 = vunpack.c.l.bf16 %v473
  %v804 = vunpack.c.h.bf16 %v473
  %v805 = vunpack.c.l.bf16 %v474
  %v806 = vunpack.c.h.bf16 %v474
  %v807 = vunpack.c.l.bf16 %v475
  %v808 = vunpack.c.h.bf16 %v475
  %v809 = vunpack.c.l.bf16 %v476
  %v810 = vunpack.c.h.bf16 %v476
  %v811 = vunpack.c.l.bf16 %v477
  %v812 = vunpack.c.h.bf16 %v477
  %v813 = vunpack.c.l.bf16 %v478
  %v814 = vunpack.c.h.bf16 %v478
  %v815 = vunpack.c.l.bf16 %v479
  %v816 = vunpack.c.h.bf16 %v479
  %v817 = vunpack.c.l.bf16 %v480
  %v818 = vunpack.c.h.bf16 %v480
  %v819 = vunpack.c.l.bf16 %v481
  %v820 = vunpack.c.h.bf16 %v481
  %v821 = vunpack.c.l.bf16 %v482
  %v822 = vunpack.c.h.bf16 %v482
  %v823 = vunpack.c.l.bf16 %v483
  %v824 = vunpack.c.h.bf16 %v483
  %v825 = vunpack.c.l.bf16 %v484
  %v826 = vunpack.c.h.bf16 %v484
  %v827 = vunpack.c.l.bf16 %v485
  %v828 = vunpack.c.h.bf16 %v485
  %v829 = vunpack.c.l.bf16 %v486
  %v830 = vunpack.c.h.bf16 %v486
  %v831 = vunpack.c.l.bf16 %v487
  %v832 = vunpack.c.h.bf16 %v487
  %v833 = vunpack.c.l.bf16 %v488
  %v834 = vunpack.c.h.bf16 %v488
  %v835 = vunpack.c.l.bf16 %v489
  %v836 = vunpack.c.h.bf16 %v489
  %v837 = vunpack.c.l.bf16 %v490
  %v838 = vunpack.c.h.bf16 %v490
  %v839 = vunpack.c.l.bf16 %v491
  %v840 = vunpack.c.h.bf16 %v491
  %v841 = vunpack.c.l.bf16 %v492
  %v842 = vunpack.c.h.bf16 %v492
  %v843 = vunpack.c.l.bf16 %v493
  %v844 = vunpack.c.h.bf16 %v493
  %v845 = vunpack.c.l.bf16 %v494
  %v846 = vunpack.c.h.bf16 %v494
  %v847 = vunpack.c.l.bf16 %v495
  %v848 = vunpack.c.h.bf16 %v495
  %vm849 = vcmask 261120
  %v850 = vsel %vm849, %v785, 0.0
  %v851 = vsel %vm849, %v786, 0.0
  %v852 = vadd.f32 %v850, %v851
  %v853 = vsel %vm849, %v787, 0.0
  %v854 = vadd.f32 %v852, %v853
  %v855 = vsel %vm849, %v788, 0.0
  %v856 = vadd.f32 %v854, %v855
  %v857 = vsel %vm849, %v789, 0.0
  %v858 = vadd.f32 %v856, %v857
  %v859 = vsel %vm849, %v790, 0.0
  %v860 = vadd.f32 %v858, %v859
  %v861 = vsel %vm849, %v791, 0.0
  %v862 = vadd.f32 %v860, %v861
  %v863 = vsel %vm849, %v792, 0.0
  %v864 = vadd.f32 %v862, %v863
  %v865 = vsel %vm849, %v793, 0.0
  %v866 = vadd.f32 %v864, %v865
  %v867 = vsel %vm849, %v794, 0.0
  %v868 = vadd.f32 %v866, %v867
  %v869 = vsel %vm849, %v795, 0.0
  %v870 = vadd.f32 %v868, %v869
  %v871 = vsel %vm849, %v796, 0.0
  %v872 = vadd.f32 %v870, %v871
  %v873 = vsel %vm849, %v797, 0.0
  %v874 = vadd.f32 %v872, %v873
  %v875 = vsel %vm849, %v798, 0.0
  %v876 = vadd.f32 %v874, %v875
  %v877 = vsel %vm849, %v799, 0.0
  %v878 = vadd.f32 %v876, %v877
  %v879 = vsel %vm849, %v800, 0.0
  %v880 = vadd.f32 %v878, %v879
  %v881 = vsel %vm849, %v801, 0.0
  %v882 = vadd.f32 %v880, %v881
  %v883 = vsel %vm849, %v802, 0.0
  %v884 = vadd.f32 %v882, %v883
  %v885 = vsel %vm849, %v803, 0.0
  %v886 = vadd.f32 %v884, %v885
  %v887 = vsel %vm849, %v804, 0.0
  %v888 = vadd.f32 %v886, %v887
  %v889 = vsel %vm849, %v805, 0.0
  %v890 = vadd.f32 %v888, %v889
  %v891 = vsel %vm849, %v806, 0.0
  %v892 = vadd.f32 %v890, %v891
  %v893 = vsel %vm849, %v807, 0.0
  %v894 = vadd.f32 %v892, %v893
  %v895 = vsel %vm849, %v808, 0.0
  %v896 = vadd.f32 %v894, %v895
  %v897 = vsel %vm849, %v809, 0.0
  %v898 = vadd.f32 %v896, %v897
  %v899 = vsel %vm849, %v810, 0.0
  %v900 = vadd.f32 %v898, %v899
  %v901 = vsel %vm849, %v811, 0.0
  %v902 = vadd.f32 %v900, %v901
  %v903 = vsel %vm849, %v812, 0.0
  %v904 = vadd.f32 %v902, %v903
  %v905 = vsel %vm849, %v813, 0.0
  %v906 = vadd.f32 %v904, %v905
  %v907 = vsel %vm849, %v814, 0.0
  %v908 = vadd.f32 %v906, %v907
  %v909 = vsel %vm849, %v815, 0.0
  %v910 = vadd.f32 %v908, %v909
  %v911 = vsel %vm849, %v816, 0.0
  %v912 = vadd.f32 %v910, %v911
  %v913 = vsel %vm849, %v817, 0.0
  %v914 = vadd.f32 %v912, %v913
  %v915 = vsel %vm849, %v818, 0.0
  %v916 = vadd.f32 %v914, %v915
  %v917 = vsel %vm849, %v819, 0.0
  %v918 = vadd.f32 %v916, %v917
  %v919 = vsel %vm849, %v820, 0.0
  %v920 = vadd.f32 %v918, %v919
  %v921 = vsel %vm849, %v821, 0.0
  %v922 = vadd.f32 %v920, %v921
  %v923 = vsel %vm849, %v822, 0.0
  %v924 = vadd.f32 %v922, %v923
  %v925 = vsel %vm849, %v823, 0.0
  %v926 = vadd.f32 %v924, %v925
  %v927 = vsel %vm849, %v824, 0.0
  %v928 = vadd.f32 %v926, %v927
  %v929 = vsel %vm849, %v825, 0.0
  %v930 = vadd.f32 %v928, %v929
  %v931 = vsel %vm849, %v826, 0.0
  %v932 = vadd.f32 %v930, %v931
  %v933 = vsel %vm849, %v827, 0.0
  %v934 = vadd.f32 %v932, %v933
  %v935 = vsel %vm849, %v828, 0.0
  %v936 = vadd.f32 %v934, %v935
  %v937 = vsel %vm849, %v829, 0.0
  %v938 = vadd.f32 %v936, %v937
  %v939 = vsel %vm849, %v830, 0.0
  %v940 = vadd.f32 %v938, %v939
  %v941 = vsel %vm849, %v831, 0.0
  %v942 = vadd.f32 %v940, %v941
  %v943 = vsel %vm849, %v832, 0.0
  %v944 = vadd.f32 %v942, %v943
  %v945 = vsel %vm849, %v833, 0.0
  %v946 = vadd.f32 %v944, %v945
  %v947 = vsel %vm849, %v834, 0.0
  %v948 = vadd.f32 %v946, %v947
  %v949 = vsel %vm849, %v835, 0.0
  %v950 = vadd.f32 %v948, %v949
  %v951 = vsel %vm849, %v836, 0.0
  %v952 = vadd.f32 %v950, %v951
  %v953 = vsel %vm849, %v837, 0.0
  %v954 = vadd.f32 %v952, %v953
  %v955 = vsel %vm849, %v838, 0.0
  %v956 = vadd.f32 %v954, %v955
  %v957 = vsel %vm849, %v839, 0.0
  %v958 = vadd.f32 %v956, %v957
  %v959 = vsel %vm849, %v840, 0.0
  %v960 = vadd.f32 %v958, %v959
  %v961 = vsel %vm849, %v841, 0.0
  %v962 = vadd.f32 %v960, %v961
  %v963 = vsel %vm849, %v842, 0.0
  %v964 = vadd.f32 %v962, %v963
  %v965 = vsel %vm849, %v843, 0.0
  %v966 = vadd.f32 %v964, %v965
  %v967 = vsel %vm849, %v844, 0.0
  %v968 = vadd.f32 %v966, %v967
  %v969 = vsel %vm849, %v845, 0.0
  %v970 = vadd.f32 %v968, %v969
  %v971 = vsel %vm849, %v846, 0.0
  %v972 = vadd.f32 %v970, %v971
  %v973 = vsel %vm849, %v847, 0.0
  %v974 = vadd.f32 %v972, %v973
  %v975 = vsel %vm849, %v848, 0.0
  %v976 = vadd.f32 %v974, %v975
  %v977 = vrot.slane %v976, 4
  %v978 = vadd.f32 %v976, %v977
  %v979 = vrot.slane %v978, 2
  %v980 = vadd.f32 %v978, %v979
  %v981 = vrot.slane %v980, 1
  %v982 = vadd.f32 %v980, %v981
  %vm983 = vcmask 253952
  %984 = vst.msk [vmem:[%s3] sm:$0x1] %vm983, %v982
  %v985 = vmul.f32 %v785, %v785
  %v986 = vmul.f32 %v786, %v786
  %v987 = vmul.f32 %v787, %v787
  %v988 = vmul.f32 %v788, %v788
  %v989 = vmul.f32 %v789, %v789
  %v990 = vmul.f32 %v790, %v790
  %v991 = vmul.f32 %v791, %v791
  %v992 = vmul.f32 %v792, %v792
  %v993 = vmul.f32 %v793, %v793
  %v994 = vmul.f32 %v794, %v794
  %v995 = vmul.f32 %v795, %v795
  %v996 = vmul.f32 %v796, %v796
  %v997 = vmul.f32 %v797, %v797
  %v998 = vmul.f32 %v798, %v798
  %v999 = vmul.f32 %v799, %v799
  %v1000 = vmul.f32 %v800, %v800
  %v1001 = vmul.f32 %v801, %v801
  %v1002 = vmul.f32 %v802, %v802
  %v1003 = vmul.f32 %v803, %v803
  %v1004 = vmul.f32 %v804, %v804
  %v1005 = vmul.f32 %v805, %v805
  %v1006 = vmul.f32 %v806, %v806
  %v1007 = vmul.f32 %v807, %v807
  %v1008 = vmul.f32 %v808, %v808
  %v1009 = vmul.f32 %v809, %v809
  %v1010 = vmul.f32 %v810, %v810
  %v1011 = vmul.f32 %v811, %v811
  %v1012 = vmul.f32 %v812, %v812
  %v1013 = vmul.f32 %v813, %v813
  %v1014 = vmul.f32 %v814, %v814
  %v1015 = vmul.f32 %v815, %v815
  %v1016 = vmul.f32 %v816, %v816
  %v1017 = vmul.f32 %v817, %v817
  %v1018 = vmul.f32 %v818, %v818
  %v1019 = vmul.f32 %v819, %v819
  %v1020 = vmul.f32 %v820, %v820
  %v1021 = vmul.f32 %v821, %v821
  %v1022 = vmul.f32 %v822, %v822
  %v1023 = vmul.f32 %v823, %v823
  %v1024 = vmul.f32 %v824, %v824
  %v1025 = vmul.f32 %v825, %v825
  %v1026 = vmul.f32 %v826, %v826
  %v1027 = vmul.f32 %v827, %v827
  %v1028 = vmul.f32 %v828, %v828
  %v1029 = vmul.f32 %v829, %v829
  %v1030 = vmul.f32 %v830, %v830
  %v1031 = vmul.f32 %v831, %v831
  %v1032 = vmul.f32 %v832, %v832
  %v1033 = vmul.f32 %v833, %v833
  %v1034 = vmul.f32 %v834, %v834
  %v1035 = vmul.f32 %v835, %v835
  %v1036 = vmul.f32 %v836, %v836
  %v1037 = vmul.f32 %v837, %v837
  %v1038 = vmul.f32 %v838, %v838
  %v1039 = vmul.f32 %v839, %v839
  %v1040 = vmul.f32 %v840, %v840
  %v1041 = vmul.f32 %v841, %v841
  %v1042 = vmul.f32 %v842, %v842
  %v1043 = vmul.f32 %v843, %v843
  %v1044 = vmul.f32 %v844, %v844
  %v1045 = vmul.f32 %v845, %v845
  %v1046 = vmul.f32 %v846, %v846
  %v1047 = vmul.f32 %v847, %v847
  %v1048 = vmul.f32 %v848, %v848
  %v1049 = vsel %vm849, %v985, 0.0
  %v1050 = vsel %vm849, %v986, 0.0
  %v1051 = vadd.f32 %v1049, %v1050
  %v1052 = vsel %vm849, %v987, 0.0
  %v1053 = vadd.f32 %v1051, %v1052
  %v1054 = vsel %vm849, %v988, 0.0
  %v1055 = vadd.f32 %v1053, %v1054
  %v1056 = vsel %vm849, %v989, 0.0
  %v1057 = vadd.f32 %v1055, %v1056
  %v1058 = vsel %vm849, %v990, 0.0
  %v1059 = vadd.f32 %v1057, %v1058
  %v1060 = vsel %vm849, %v991, 0.0
  %v1061 = vadd.f32 %v1059, %v1060
  %v1062 = vsel %vm849, %v992, 0.0
  %v1063 = vadd.f32 %v1061, %v1062
  %v1064 = vsel %vm849, %v993, 0.0
  %v1065 = vadd.f32 %v1063, %v1064
  %v1066 = vsel %vm849, %v994, 0.0
  %v1067 = vadd.f32 %v1065, %v1066
  %v1068 = vsel %vm849, %v995, 0.0
  %v1069 = vadd.f32 %v1067, %v1068
  %v1070 = vsel %vm849, %v996, 0.0
  %v1071 = vadd.f32 %v1069, %v1070
  %v1072 = vsel %vm849, %v997, 0.0
  %v1073 = vadd.f32 %v1071, %v1072
  %v1074 = vsel %vm849, %v998, 0.0
  %v1075 = vadd.f32 %v1073, %v1074
  %v1076 = vsel %vm849, %v999, 0.0
  %v1077 = vadd.f32 %v1075, %v1076
  %v1078 = vsel %vm849, %v1000, 0.0
  %v1079 = vadd.f32 %v1077, %v1078
  %v1080 = vsel %vm849, %v1001, 0.0
  %v1081 = vadd.f32 %v1079, %v1080
  %v1082 = vsel %vm849, %v1002, 0.0
  %v1083 = vadd.f32 %v1081, %v1082
  %v1084 = vsel %vm849, %v1003, 0.0
  %v1085 = vadd.f32 %v1083, %v1084
  %v1086 = vsel %vm849, %v1004, 0.0
  %v1087 = vadd.f32 %v1085, %v1086
  %v1088 = vsel %vm849, %v1005, 0.0
  %v1089 = vadd.f32 %v1087, %v1088
  %v1090 = vsel %vm849, %v1006, 0.0
  %v1091 = vadd.f32 %v1089, %v1090
  %v1092 = vsel %vm849, %v1007, 0.0
  %v1093 = vadd.f32 %v1091, %v1092
  %v1094 = vsel %vm849, %v1008, 0.0
  %v1095 = vadd.f32 %v1093, %v1094
  %v1096 = vsel %vm849, %v1009, 0.0
  %v1097 = vadd.f32 %v1095, %v1096
  %v1098 = vsel %vm849, %v1010, 0.0
  %v1099 = vadd.f32 %v1097, %v1098
  %v1100 = vsel %vm849, %v1011, 0.0
  %v1101 = vadd.f32 %v1099, %v1100
  %v1102 = vsel %vm849, %v1012, 0.0
  %v1103 = vadd.f32 %v1101, %v1102
  %v1104 = vsel %vm849, %v1013, 0.0
  %v1105 = vadd.f32 %v1103, %v1104
  %v1106 = vsel %vm849, %v1014, 0.0
  %v1107 = vadd.f32 %v1105, %v1106
  %v1108 = vsel %vm849, %v1015, 0.0
  %v1109 = vadd.f32 %v1107, %v1108
  %v1110 = vsel %vm849, %v1016, 0.0
  %v1111 = vadd.f32 %v1109, %v1110
  %v1112 = vsel %vm849, %v1017, 0.0
  %v1113 = vadd.f32 %v1111, %v1112
  %v1114 = vsel %vm849, %v1018, 0.0
  %v1115 = vadd.f32 %v1113, %v1114
  %v1116 = vsel %vm849, %v1019, 0.0
  %v1117 = vadd.f32 %v1115, %v1116
  %v1118 = vsel %vm849, %v1020, 0.0
  %v1119 = vadd.f32 %v1117, %v1118
  %v1120 = vsel %vm849, %v1021, 0.0
  %v1121 = vadd.f32 %v1119, %v1120
  %v1122 = vsel %vm849, %v1022, 0.0
  %v1123 = vadd.f32 %v1121, %v1122
  %v1124 = vsel %vm849, %v1023, 0.0
  %v1125 = vadd.f32 %v1123, %v1124
  %v1126 = vsel %vm849, %v1024, 0.0
  %v1127 = vadd.f32 %v1125, %v1126
  %v1128 = vsel %vm849, %v1025, 0.0
  %v1129 = vadd.f32 %v1127, %v1128
  %v1130 = vsel %vm849, %v1026, 0.0
  %v1131 = vadd.f32 %v1129, %v1130
  %v1132 = vsel %vm849, %v1027, 0.0
  %v1133 = vadd.f32 %v1131, %v1132
  %v1134 = vsel %vm849, %v1028, 0.0
  %v1135 = vadd.f32 %v1133, %v1134
  %v1136 = vsel %vm849, %v1029, 0.0
  %v1137 = vadd.f32 %v1135, %v1136
  %v1138 = vsel %vm849, %v1030, 0.0
  %v1139 = vadd.f32 %v1137, %v1138
  %v1140 = vsel %vm849, %v1031, 0.0
  %v1141 = vadd.f32 %v1139, %v1140
  %v1142 = vsel %vm849, %v1032, 0.0
  %v1143 = vadd.f32 %v1141, %v1142
  %v1144 = vsel %vm849, %v1033, 0.0
  %v1145 = vadd.f32 %v1143, %v1144
  %v1146 = vsel %vm849, %v1034, 0.0
  %v1147 = vadd.f32 %v1145, %v1146
  %v1148 = vsel %vm849, %v1035, 0.0
  %v1149 = vadd.f32 %v1147, %v1148
  %v1150 = vsel %vm849, %v1036, 0.0
  %v1151 = vadd.f32 %v1149, %v1150
  %v1152 = vsel %vm849, %v1037, 0.0
  %v1153 = vadd.f32 %v1151, %v1152
  %v1154 = vsel %vm849, %v1038, 0.0
  %v1155 = vadd.f32 %v1153, %v1154
  %v1156 = vsel %vm849, %v1039, 0.0
  %v1157 = vadd.f32 %v1155, %v1156
  %v1158 = vsel %vm849, %v1040, 0.0
  %v1159 = vadd.f32 %v1157, %v1158
  %v1160 = vsel %vm849, %v1041, 0.0
  %v1161 = vadd.f32 %v1159, %v1160
  %v1162 = vsel %vm849, %v1042, 0.0
  %v1163 = vadd.f32 %v1161, %v1162
  %v1164 = vsel %vm849, %v1043, 0.0
  %v1165 = vadd.f32 %v1163, %v1164
  %v1166 = vsel %vm849, %v1044, 0.0
  %v1167 = vadd.f32 %v1165, %v1166
  %v1168 = vsel %vm849, %v1045, 0.0
  %v1169 = vadd.f32 %v1167, %v1168
  %v1170 = vsel %vm849, %v1046, 0.0
  %v1171 = vadd.f32 %v1169, %v1170
  %v1172 = vsel %vm849, %v1047, 0.0
  %v1173 = vadd.f32 %v1171, %v1172
  %v1174 = vsel %vm849, %v1048, 0.0
  %v1175 = vadd.f32 %v1173, %v1174
  %v1176 = vrot.slane %v1175, 4
  %v1177 = vadd.f32 %v1175, %v1176
  %v1178 = vrot.slane %v1177, 2
  %v1179 = vadd.f32 %v1177, %v1178
  %v1180 = vrot.slane %v1179, 1
  %v1181 = vadd.f32 %v1179, %v1180
  %1182 = vst.msk [vmem:[%s4] sm:$0x1] %vm983, %v1181
  // Predicated region
  $region10: #{bottleneck_forward_nhwc.4} parent=0 // pred_check
    _
  $region11: #{bottleneck_forward_nhwc.4} parent=0 // pred_check_branch
    %1184 = sbr.rel (0) target = $region13
  $region12: #{bottleneck_forward_nhwc.4} parent=0 // pred_region
    _
  $region13: #{bottleneck_forward_nhwc.4} parent=0 // pred_fallthru
    _
  // Predicated region
  $region14: #{bottleneck_forward_nhwc.4} parent=0 // pred_check
    _
  $region15: #{bottleneck_forward_nhwc.4} parent=0 // pred_check_branch
    %1186 = sbr.rel (0) target = $region17
  $region16: #{bottleneck_forward_nhwc.4} parent=0 // pred_region
    _
  $region17: #{bottleneck_forward_nhwc.4} parent=0 // pred_fallthru
    _
  // Predicated region
  $region18: #{bottleneck_forward_nhwc.4} parent=0 // pred_check
    _
  $region19: #{bottleneck_forward_nhwc.4} parent=0 // pred_check_branch
    %1188 = sbr.rel (0) target = $region21
  $region20: #{bottleneck_forward_nhwc.4} parent=0 // pred_region
    _
  $region21: #{bottleneck_forward_nhwc.4} parent=0 // pred_fallthru
    _
  // Predicated region
  $region22: #{bottleneck_forward_nhwc.4} parent=0 // pred_check
    _
  $region23: #{bottleneck_forward_nhwc.4} parent=0 // pred_check_branch
    %1190 = sbr.rel (0) target = $region25
  $region24: #{bottleneck_forward_nhwc.4} parent=0 // pred_region
    _
  $region25: #{bottleneck_forward_nhwc.4} parent=0 // pred_fallthru
    _
  // Predicated region
  $region26: #{bottleneck_forward_nhwc.4} parent=0 // pred_check
    _
  $region27: #{bottleneck_forward_nhwc.4} parent=0 // pred_check_branch
    %1192 = sbr.rel (0) target = $region29
  $region28: #{bottleneck_forward_nhwc.4} parent=0 // pred_region
    _
  $region29: #{bottleneck_forward_nhwc.4} parent=0 // pred_fallthru
    _
  // Predicated region
  $region30: #{bottleneck_forward_nhwc.4} parent=0 // pred_check
    _
  $region31: #{bottleneck_forward_nhwc.4} parent=0 // pred_check_branch
    %1194 = sbr.rel (0) target = $region33
  $region32: #{bottleneck_forward_nhwc.4} parent=0 // pred_region
    _
  $region33: #{bottleneck_forward_nhwc.4} parent=0 // pred_fallthru
    _

// kernel: bottleneck_forward_nhwc.6
$region0: #{bottleneck_forward_nhwc.6}
  #allocation0 [shape = 'u32[]', space=smem, size = 0x4, offset = 0x4, fixed_abs, tag = 'smem constant byte address 0x4 - core index']
  #allocation1 [shape = 'u32[144,128]{1,0:T(1,128)}', space=vmem, size = 0x12000, scoped, tag = 'internal scratch']
  %s0 = inlined_call_operand.vmem [shape: bf16[512,32], index: 0, kind: input, shape index: {}]
  %s1 = inlined_call_operand.vmem [shape: f32[1,32], index: 1, kind: input, shape index: {}]
  %s2 = inlined_call_operand.vmem [shape: f32[1,32], index: 2, kind: input, shape index: {}]
  %s3 = inlined_call_operand.vmem [shape: bf16[32,128], index: 3, kind: input, shape index: {}]
  %s4 = inlined_call_operand.vmem [shape: bf16[512,128], index: 4, kind: output, shape index: {0}]
  %s5 = inlined_call_operand.vmem [shape: f32[1,1,128], index: 5, kind: output, shape index: {1}]
  %s6 = inlined_call_operand.vmem [shape: f32[1,1,128], index: 6, kind: output, shape index: {2}]
  %7 = xla_tuple %s4, %s5, %s6
  %s8 = sld [smem:[#allocation0]]
  $region42: #{bottleneck_forward_nhwc.6} parent=0
    _
  %s10 = ssub.s32 1, %s8
  %s11 = scalar_select 0, %s10, %s8
  // Predicated region
  $region2: #{bottleneck_forward_nhwc.6} parent=0 // pred_check
    _
  $region3: #{bottleneck_forward_nhwc.6} parent=0 // pred_check_branch
    %13 = sbr.rel (0) target = $region5
  $region4: #{bottleneck_forward_nhwc.6} parent=0 // pred_region
    _
  $region5: #{bottleneck_forward_nhwc.6} parent=0 // pred_fallthru
    _
  // Predicated region
  $region6: #{bottleneck_forward_nhwc.6} parent=0 // pred_check
    _
  $region7: #{bottleneck_forward_nhwc.6} parent=0 // pred_check_branch
    %15 = sbr.rel (0) target = $region9
  $region8: #{bottleneck_forward_nhwc.6} parent=0 // pred_region
    _
  $region9: #{bottleneck_forward_nhwc.6} parent=0 // pred_fallthru
    _
  // Predicated region
  $region10: #{bottleneck_forward_nhwc.6} parent=0 // pred_check
    _
  $region11: #{bottleneck_forward_nhwc.6} parent=0 // pred_check_branch
    %17 = sbr.rel (0) target = $region13
  $region12: #{bottleneck_forward_nhwc.6} parent=0 // pred_region
    _
  $region13: #{bottleneck_forward_nhwc.6} parent=0 // pred_fallthru
    _
  // Predicated region
  $region14: #{bottleneck_forward_nhwc.6} parent=0 // pred_check
    _
  $region15: #{bottleneck_forward_nhwc.6} parent=0 // pred_check_branch
    %19 = sbr.rel (0) target = $region17
  $region16: #{bottleneck_forward_nhwc.6} parent=0 // pred_region
    _
  $region17: #{bottleneck_forward_nhwc.6} parent=0 // pred_fallthru
    _
  %v21 = vld [vmem:[%s0] sm:$0xf]
  %v22 = vld [vmem:[%s0 + $0x4] sm:$0xf]
  %v23 = vld [vmem:[%s0 + $0x8] sm:$0xf]
  %v24 = vld [vmem:[%s0 + $0xc] sm:$0xf]
  %v25 = vld [vmem:[%s0 + $0x10] sm:$0xf]
  %v26 = vld [vmem:[%s0 + $0x14] sm:$0xf]
  %v27 = vld [vmem:[%s0 + $0x18] sm:$0xf]
  %v28 = vld [vmem:[%s0 + $0x1c] sm:$0xf]
  %v29 = vld [vmem:[%s0 + $0x20] sm:$0xf]
  %v30 = vld [vmem:[%s0 + $0x24] sm:$0xf]
  %v31 = vld [vmem:[%s0 + $0x28] sm:$0xf]
  %v32 = vld [vmem:[%s0 + $0x2c] sm:$0xf]
  %v33 = vld [vmem:[%s0 + $0x30] sm:$0xf]
  %v34 = vld [vmem:[%s0 + $0x34] sm:$0xf]
  %v35 = vld [vmem:[%s0 + $0x38] sm:$0xf]
  %v36 = vld [vmem:[%s0 + $0x3c] sm:$0xf]
  %v37 = vld [vmem:[%s0 + $0x40] sm:$0xf]
  %v38 = vld [vmem:[%s0 + $0x44] sm:$0xf]
  %v39 = vld [vmem:[%s0 + $0x48] sm:$0xf]
  %v40 = vld [vmem:[%s0 + $0x4c] sm:$0xf]
  %v41 = vld [vmem:[%s0 + $0x50] sm:$0xf]
  %v42 = vld [vmem:[%s0 + $0x54] sm:$0xf]
  %v43 = vld [vmem:[%s0 + $0x58] sm:$0xf]
  %v44 = vld [vmem:[%s0 + $0x5c] sm:$0xf]
  %v45 = vld [vmem:[%s0 + $0x60] sm:$0xf]
  %v46 = vld [vmem:[%s0 + $0x64] sm:$0xf]
  %v47 = vld [vmem:[%s0 + $0x68] sm:$0xf]
  %v48 = vld [vmem:[%s0 + $0x6c] sm:$0xf]
  %v49 = vld [vmem:[%s0 + $0x70] sm:$0xf]
  %v50 = vld [vmem:[%s0 + $0x74] sm:$0xf]
  %v51 = vld [vmem:[%s0 + $0x78] sm:$0xf]
  %v52 = vld [vmem:[%s0 + $0x7c] sm:$0xf]
  %v53 = vld [vmem:[%s0 + $0x80] sm:$0xf]
  %v54 = vld [vmem:[%s0 + $0x84] sm:$0xf]
  %v55 = vld [vmem:[%s0 + $0x88] sm:$0xf]
  %v56 = vld [vmem:[%s0 + $0x8c] sm:$0xf]
  %v57 = vld [vmem:[%s0 + $0x90] sm:$0xf]
  %v58 = vld [vmem:[%s0 + $0x94] sm:$0xf]
  %v59 = vld [vmem:[%s0 + $0x98] sm:$0xf]
  %v60 = vld [vmem:[%s0 + $0x9c] sm:$0xf]
  %v61 = vld [vmem:[%s0 + $0xa0] sm:$0xf]
  %v62 = vld [vmem:[%s0 + $0xa4] sm:$0xf]
  %v63 = vld [vmem:[%s0 + $0xa8] sm:$0xf]
  %v64 = vld [vmem:[%s0 + $0xac] sm:$0xf]
  %v65 = vld [vmem:[%s0 + $0xb0] sm:$0xf]
  %v66 = vld [vmem:[%s0 + $0xb4] sm:$0xf]
  %v67 = vld [vmem:[%s0 + $0xb8] sm:$0xf]
  %v68 = vld [vmem:[%s0 + $0xbc] sm:$0xf]
  %v69 = vld [vmem:[%s0 + $0xc0] sm:$0xf]
  %v70 = vld [vmem:[%s0 + $0xc4] sm:$0xf]
  %v71 = vld [vmem:[%s0 + $0xc8] sm:$0xf]
  %v72 = vld [vmem:[%s0 + $0xcc] sm:$0xf]
  %v73 = vld [vmem:[%s0 + $0xd0] sm:$0xf]
  %v74 = vld [vmem:[%s0 + $0xd4] sm:$0xf]
  %v75 = vld [vmem:[%s0 + $0xd8] sm:$0xf]
  %v76 = vld [vmem:[%s0 + $0xdc] sm:$0xf]
  %v77 = vld [vmem:[%s0 + $0xe0] sm:$0xf]
  %v78 = vld [vmem:[%s0 + $0xe4] sm:$0xf]
  %v79 = vld [vmem:[%s0 + $0xe8] sm:$0xf]
  %v80 = vld [vmem:[%s0 + $0xec] sm:$0xf]
  %v81 = vld [vmem:[%s0 + $0xf0] sm:$0xf]
  %v82 = vld [vmem:[%s0 + $0xf4] sm:$0xf]
  %v83 = vld [vmem:[%s0 + $0xf8] sm:$0xf]
  %v84 = vld [vmem:[%s0 + $0xfc] sm:$0xf]
  %v85 = vunpack.c.l.bf16 %v21
  %v86 = vunpack.c.l.bf16 %v22
  %v87 = vunpack.c.l.bf16 %v23
  %v88 = vunpack.c.l.bf16 %v24
  %v89 = vunpack.c.l.bf16 %v25
  %v90 = vunpack.c.l.bf16 %v26
  %v91 = vunpack.c.l.bf16 %v27
  %v92 = vunpack.c.l.bf16 %v28
  %v93 = vunpack.c.l.bf16 %v29
  %v94 = vunpack.c.l.bf16 %v30
  %v95 = vunpack.c.l.bf16 %v31
  %v96 = vunpack.c.l.bf16 %v32
  %v97 = vunpack.c.l.bf16 %v33
  %v98 = vunpack.c.l.bf16 %v34
  %v99 = vunpack.c.l.bf16 %v35
  %v100 = vunpack.c.l.bf16 %v36
  %v101 = vunpack.c.l.bf16 %v37
  %v102 = vunpack.c.l.bf16 %v38
  %v103 = vunpack.c.l.bf16 %v39
  %v104 = vunpack.c.l.bf16 %v40
  %v105 = vunpack.c.l.bf16 %v41
  %v106 = vunpack.c.l.bf16 %v42
  %v107 = vunpack.c.l.bf16 %v43
  %v108 = vunpack.c.l.bf16 %v44
  %v109 = vunpack.c.l.bf16 %v45
  %v110 = vunpack.c.l.bf16 %v46
  %v111 = vunpack.c.l.bf16 %v47
  %v112 = vunpack.c.l.bf16 %v48
  %v113 = vunpack.c.l.bf16 %v49
  %v114 = vunpack.c.l.bf16 %v50
  %v115 = vunpack.c.l.bf16 %v51
  %v116 = vunpack.c.l.bf16 %v52
  %v117 = vunpack.c.l.bf16 %v53
  %v118 = vunpack.c.l.bf16 %v54
  %v119 = vunpack.c.l.bf16 %v55
  %v120 = vunpack.c.l.bf16 %v56
  %v121 = vunpack.c.l.bf16 %v57
  %v122 = vunpack.c.l.bf16 %v58
  %v123 = vunpack.c.l.bf16 %v59
  %v124 = vunpack.c.l.bf16 %v60
  %v125 = vunpack.c.l.bf16 %v61
  %v126 = vunpack.c.l.bf16 %v62
  %v127 = vunpack.c.l.bf16 %v63
  %v128 = vunpack.c.l.bf16 %v64
  %v129 = vunpack.c.l.bf16 %v65
  %v130 = vunpack.c.l.bf16 %v66
  %v131 = vunpack.c.l.bf16 %v67
  %v132 = vunpack.c.l.bf16 %v68
  %v133 = vunpack.c.l.bf16 %v69
  %v134 = vunpack.c.l.bf16 %v70
  %v135 = vunpack.c.l.bf16 %v71
  %v136 = vunpack.c.l.bf16 %v72
  %v137 = vunpack.c.l.bf16 %v73
  %v138 = vunpack.c.l.bf16 %v74
  %v139 = vunpack.c.l.bf16 %v75
  %v140 = vunpack.c.l.bf16 %v76
  %v141 = vunpack.c.l.bf16 %v77
  %v142 = vunpack.c.l.bf16 %v78
  %v143 = vunpack.c.l.bf16 %v79
  %v144 = vunpack.c.l.bf16 %v80
  %v145 = vunpack.c.l.bf16 %v81
  %v146 = vunpack.c.l.bf16 %v82
  %v147 = vunpack.c.l.bf16 %v83
  %v148 = vunpack.c.l.bf16 %v84
  %v149 = vld [vmem:[%s1] sm:$0x1]
  %v151 = vlaneseq
  %v152 = vshrl.u32 %v151, 7
  %v153 = vsub.s32 0, %v152
  %v154 = vrot.slane %v149, %v153
  %v156 = vmul.f32 %v85, %v154
  %v157 = vmul.f32 %v86, %v154
  %v158 = vmul.f32 %v87, %v154
  %v159 = vmul.f32 %v88, %v154
  %v160 = vmul.f32 %v89, %v154
  %v161 = vmul.f32 %v90, %v154
  %v162 = vmul.f32 %v91, %v154
  %v163 = vmul.f32 %v92, %v154
  %v164 = vmul.f32 %v93, %v154
  %v165 = vmul.f32 %v94, %v154
  %v166 = vmul.f32 %v95, %v154
  %v167 = vmul.f32 %v96, %v154
  %v168 = vmul.f32 %v97, %v154
  %v169 = vmul.f32 %v98, %v154
  %v170 = vmul.f32 %v99, %v154
  %v171 = vmul.f32 %v100, %v154
  %v172 = vmul.f32 %v101, %v154
  %v173 = vmul.f32 %v102, %v154
  %v174 = vmul.f32 %v103, %v154
  %v175 = vmul.f32 %v104, %v154
  %v176 = vmul.f32 %v105, %v154
  %v177 = vmul.f32 %v106, %v154
  %v178 = vmul.f32 %v107, %v154
  %v179 = vmul.f32 %v108, %v154
  %v180 = vmul.f32 %v109, %v154
  %v181 = vmul.f32 %v110, %v154
  %v182 = vmul.f32 %v111, %v154
  %v183 = vmul.f32 %v112, %v154
  %v184 = vmul.f32 %v113, %v154
  %v185 = vmul.f32 %v114, %v154
  %v186 = vmul.f32 %v115, %v154
  %v187 = vmul.f32 %v116, %v154
  %v188 = vmul.f32 %v117, %v154
  %v189 = vmul.f32 %v118, %v154
  %v190 = vmul.f32 %v119, %v154
  %v191 = vmul.f32 %v120, %v154
  %v192 = vmul.f32 %v121, %v154
  %v193 = vmul.f32 %v122, %v154
  %v194 = vmul.f32 %v123, %v154
  %v195 = vmul.f32 %v124, %v154
  %v196 = vmul.f32 %v125, %v154
  %v197 = vmul.f32 %v126, %v154
  %v198 = vmul.f32 %v127, %v154
  %v199 = vmul.f32 %v128, %v154
  %v200 = vmul.f32 %v129, %v154
  %v201 = vmul.f32 %v130, %v154
  %v202 = vmul.f32 %v131, %v154
  %v203 = vmul.f32 %v132, %v154
  %v204 = vmul.f32 %v133, %v154
  %v205 = vmul.f32 %v134, %v154
  %v206 = vmul.f32 %v135, %v154
  %v207 = vmul.f32 %v136, %v154
  %v208 = vmul.f32 %v137, %v154
  %v209 = vmul.f32 %v138, %v154
  %v210 = vmul.f32 %v139, %v154
  %v211 = vmul.f32 %v140, %v154
  %v212 = vmul.f32 %v141, %v154
  %v213 = vmul.f32 %v142, %v154
  %v214 = vmul.f32 %v143, %v154
  %v215 = vmul.f32 %v144, %v154
  %v216 = vmul.f32 %v145, %v154
  %v217 = vmul.f32 %v146, %v154
  %v218 = vmul.f32 %v147, %v154
  %v219 = vmul.f32 %v148, %v154
  %v220 = vld [vmem:[%s2] sm:$0x1]
  %v222 = vlaneseq
  %v223 = vshrl.u32 %v222, 7
  %v224 = vsub.s32 0, %v223
  %v225 = vrot.slane %v220, %v224
  %v227 = vadd.f32 %v156, %v225
  %v228 = vadd.f32 %v157, %v225
  %v229 = vadd.f32 %v158, %v225
  %v230 = vadd.f32 %v159, %v225
  %v231 = vadd.f32 %v160, %v225
  %v232 = vadd.f32 %v161, %v225
  %v233 = vadd.f32 %v162, %v225
  %v234 = vadd.f32 %v163, %v225
  %v235 = vadd.f32 %v164, %v225
  %v236 = vadd.f32 %v165, %v225
  %v237 = vadd.f32 %v166, %v225
  %v238 = vadd.f32 %v167, %v225
  %v239 = vadd.f32 %v168, %v225
  %v240 = vadd.f32 %v169, %v225
  %v241 = vadd.f32 %v170, %v225
  %v242 = vadd.f32 %v171, %v225
  %v243 = vadd.f32 %v172, %v225
  %v244 = vadd.f32 %v173, %v225
  %v245 = vadd.f32 %v174, %v225
  %v246 = vadd.f32 %v175, %v225
  %v247 = vadd.f32 %v176, %v225
  %v248 = vadd.f32 %v177, %v225
  %v249 = vadd.f32 %v178, %v225
  %v250 = vadd.f32 %v179, %v225
  %v251 = vadd.f32 %v180, %v225
  %v252 = vadd.f32 %v181, %v225
  %v253 = vadd.f32 %v182, %v225
  %v254 = vadd.f32 %v183, %v225
  %v255 = vadd.f32 %v184, %v225
  %v256 = vadd.f32 %v185, %v225
  %v257 = vadd.f32 %v186, %v225
  %v258 = vadd.f32 %v187, %v225
  %v259 = vadd.f32 %v188, %v225
  %v260 = vadd.f32 %v189, %v225
  %v261 = vadd.f32 %v190, %v225
  %v262 = vadd.f32 %v191, %v225
  %v263 = vadd.f32 %v192, %v225
  %v264 = vadd.f32 %v193, %v225
  %v265 = vadd.f32 %v194, %v225
  %v266 = vadd.f32 %v195, %v225
  %v267 = vadd.f32 %v196, %v225
  %v268 = vadd.f32 %v197, %v225
  %v269 = vadd.f32 %v198, %v225
  %v270 = vadd.f32 %v199, %v225
  %v271 = vadd.f32 %v200, %v225
  %v272 = vadd.f32 %v201, %v225
  %v273 = vadd.f32 %v202, %v225
  %v274 = vadd.f32 %v203, %v225
  %v275 = vadd.f32 %v204, %v225
  %v276 = vadd.f32 %v205, %v225
  %v277 = vadd.f32 %v206, %v225
  %v278 = vadd.f32 %v207, %v225
  %v279 = vadd.f32 %v208, %v225
  %v280 = vadd.f32 %v209, %v225
  %v281 = vadd.f32 %v210, %v225
  %v282 = vadd.f32 %v211, %v225
  %v283 = vadd.f32 %v212, %v225
  %v284 = vadd.f32 %v213, %v225
  %v285 = vadd.f32 %v214, %v225
  %v286 = vadd.f32 %v215, %v225
  %v287 = vadd.f32 %v216, %v225
  %v288 = vadd.f32 %v217, %v225
  %v289 = vadd.f32 %v218, %v225
  %v290 = vadd.f32 %v219, %v225
  %v291 = vmax.f32 %v227, 0.0
  %v292 = vmax.f32 %v228, 0.0
  %v293 = vmax.f32 %v229, 0.0
  %v294 = vmax.f32 %v230, 0.0
  %v295 = vmax.f32 %v231, 0.0
  %v296 = vmax.f32 %v232, 0.0
  %v297 = vmax.f32 %v233, 0.0
  %v298 = vmax.f32 %v234, 0.0
  %v299 = vmax.f32 %v235, 0.0
  %v300 = vmax.f32 %v236, 0.0
  %v301 = vmax.f32 %v237, 0.0
  %v302 = vmax.f32 %v238, 0.0
  %v303 = vmax.f32 %v239, 0.0
  %v304 = vmax.f32 %v240, 0.0
  %v305 = vmax.f32 %v241, 0.0
  %v306 = vmax.f32 %v242, 0.0
  %v307 = vmax.f32 %v243, 0.0
  %v308 = vmax.f32 %v244, 0.0
  %v309 = vmax.f32 %v245, 0.0
  %v310 = vmax.f32 %v246, 0.0
  %v311 = vmax.f32 %v247, 0.0
  %v312 = vmax.f32 %v248, 0.0
  %v313 = vmax.f32 %v249, 0.0
  %v314 = vmax.f32 %v250, 0.0
  %v315 = vmax.f32 %v251, 0.0
  %v316 = vmax.f32 %v252, 0.0
  %v317 = vmax.f32 %v253, 0.0
  %v318 = vmax.f32 %v254, 0.0
  %v319 = vmax.f32 %v255, 0.0
  %v320 = vmax.f32 %v256, 0.0
  %v321 = vmax.f32 %v257, 0.0
  %v322 = vmax.f32 %v258, 0.0
  %v323 = vmax.f32 %v259, 0.0
  %v324 = vmax.f32 %v260, 0.0
  %v325 = vmax.f32 %v261, 0.0
  %v326 = vmax.f32 %v262, 0.0
  %v327 = vmax.f32 %v263, 0.0
  %v328 = vmax.f32 %v264, 0.0
  %v329 = vmax.f32 %v265, 0.0
  %v330 = vmax.f32 %v266, 0.0
  %v331 = vmax.f32 %v267, 0.0
  %v332 = vmax.f32 %v268, 0.0
  %v333 = vmax.f32 %v269, 0.0
  %v334 = vmax.f32 %v270, 0.0
  %v335 = vmax.f32 %v271, 0.0
  %v336 = vmax.f32 %v272, 0.0
  %v337 = vmax.f32 %v273, 0.0
  %v338 = vmax.f32 %v274, 0.0
  %v339 = vmax.f32 %v275, 0.0
  %v340 = vmax.f32 %v276, 0.0
  %v341 = vmax.f32 %v277, 0.0
  %v342 = vmax.f32 %v278, 0.0
  %v343 = vmax.f32 %v279, 0.0
  %v344 = vmax.f32 %v280, 0.0
  %v345 = vmax.f32 %v281, 0.0
  %v346 = vmax.f32 %v282, 0.0
  %v347 = vmax.f32 %v283, 0.0
  %v348 = vmax.f32 %v284, 0.0
  %v349 = vmax.f32 %v285, 0.0
  %v350 = vmax.f32 %v286, 0.0
  %v351 = vmax.f32 %v287, 0.0
  %v352 = vmax.f32 %v288, 0.0
  %v353 = vmax.f32 %v289, 0.0
  %v354 = vmax.f32 %v290, 0.0
  %v355 = vpack.c.bf16 %v292, %v291
  %v356 = vpack.c.bf16 %v294, %v293
  %v357 = vpack.c.bf16 %v296, %v295
  %v358 = vpack.c.bf16 %v298, %v297
  %v359 = vpack.c.bf16 %v300, %v299
  %v360 = vpack.c.bf16 %v302, %v301
  %v361 = vpack.c.bf16 %v304, %v303
  %v362 = vpack.c.bf16 %v306, %v305
  %v363 = vpack.c.bf16 %v308, %v307
  %v364 = vpack.c.bf16 %v310, %v309
  %v365 = vpack.c.bf16 %v312, %v311
  %v366 = vpack.c.bf16 %v314, %v313
  %v367 = vpack.c.bf16 %v316, %v315
  %v368 = vpack.c.bf16 %v318, %v317
  %v369 = vpack.c.bf16 %v320, %v319
  %v370 = vpack.c.bf16 %v322, %v321
  %v371 = vpack.c.bf16 %v324, %v323
  %v372 = vpack.c.bf16 %v326, %v325
  %v373 = vpack.c.bf16 %v328, %v327
  %v374 = vpack.c.bf16 %v330, %v329
  %v375 = vpack.c.bf16 %v332, %v331
  %v376 = vpack.c.bf16 %v334, %v333
  %v377 = vpack.c.bf16 %v336, %v335
  %v378 = vpack.c.bf16 %v338, %v337
  %v379 = vpack.c.bf16 %v340, %v339
  %v380 = vpack.c.bf16 %v342, %v341
  %v381 = vpack.c.bf16 %v344, %v343
  %v382 = vpack.c.bf16 %v346, %v345
  %v383 = vpack.c.bf16 %v348, %v347
  %v384 = vpack.c.bf16 %v350, %v349
  %v385 = vpack.c.bf16 %v352, %v351
  %v386 = vpack.c.bf16 %v354, %v353
  %v387 = vld [vmem:[%s3] sm:$0xf]
  %v388 = vld [vmem:[%s3 + $0x4] sm:$0xf]
  %v389 = vld [vmem:[%s3 + $0x8] sm:$0xf]
  %v390 = vld [vmem:[%s3 + $0xc] sm:$0xf]
  %v395 = vunpack.c.l.b16 %v387
  %v396 = vunpack.c.l.b16 %v388
  %v397 = vunpack.c.l.b16 %v389
  %v398 = vunpack.c.l.b16 %v390
  %v399 = vpack.c.b16 %v396, %v395
  %v400 = vpack.c.b16 %v398, %v397
  %vm403 = vcmask 261120
  %v405 = vsel %vm403, %v355, 0
  %v408 = vsel %vm403, %v356, 0
  %v411 = vsel %vm403, %v357, 0
  %v414 = vsel %vm403, %v358, 0
  %v417 = vsel %vm403, %v359, 0
  %v420 = vsel %vm403, %v360, 0
  %v423 = vsel %vm403, %v361, 0
  %v426 = vsel %vm403, %v362, 0
  %v429 = vsel %vm403, %v363, 0
  %v432 = vsel %vm403, %v364, 0
  %v435 = vsel %vm403, %v365, 0
  %v438 = vsel %vm403, %v366, 0
  %v441 = vsel %vm403, %v367, 0
  %v444 = vsel %vm403, %v368, 0
  %v447 = vsel %vm403, %v369, 0
  %v450 = vsel %vm403, %v370, 0
  %v453 = vsel %vm403, %v371, 0
  %v456 = vsel %vm403, %v372, 0
  %v459 = vsel %vm403, %v373, 0
  %v462 = vsel %vm403, %v374, 0
  %v465 = vsel %vm403, %v375, 0
  %v468 = vsel %vm403, %v376, 0
  %v471 = vsel %vm403, %v377, 0
  %v474 = vsel %vm403, %v378, 0
  %v477 = vsel %vm403, %v379, 0
  %v480 = vsel %vm403, %v380, 0
  %v483 = vsel %vm403, %v381, 0
  %v486 = vsel %vm403, %v382, 0
  %v489 = vsel %vm403, %v383, 0
  %v492 = vsel %vm403, %v384, 0
  %v495 = vsel %vm403, %v385, 0
  %v498 = vsel %vm403, %v386, 0
  %500 = vmatprep.subr.bf16.mxu0 0
  %501 = vmatpush1.bf16.msra.mxu0 0
  %502 = vmatprep.subr.bf16.mxu0 0
  %503 = vmatpush1.bf16.msra.mxu0 0
  %504 = vmatprep.subr.bf16.mxu0 0
  %505 = vmatpush1.bf16.msra.mxu0 0
  %506 = vmatprep.subr.bf16.mxu0 0
  %507 = vmatpush1.bf16.msra.mxu0 0
  %508 = vmatprep.subr.bf16.mxu0 0
  %509 = vmatpush1.bf16.msra.mxu0 0
  %510 = vmatprep.subr.bf16.mxu0 0
  %511 = vmatpush1.bf16.msra.mxu0 0
  %512 = vmatprep.subr.bf16.mxu0 0
  %513 = vmatpush1.bf16.msra.mxu0 %v400
  %514 = vmatprep.subr.bf16.mxu0 0
  %515 = vmatpush1.bf16.msra.mxu0 %v399
  %516 = vmatprep.subr.bf16.mxu0 0
  %517 = vmatpush2.bf16.msra.mxu0 0
  %518 = vmatprep.subr.bf16.mxu0 0
  %519 = vmatpush2.bf16.msra.mxu0 0
  %520 = vmatprep.subr.bf16.mxu0 0
  %521 = vmatpush2.bf16.msra.mxu0 0
  %522 = vmatprep.subr.bf16.mxu0 0
  %523 = vmatpush2.bf16.msra.mxu0 0
  %524 = vmatprep.subr.bf16.mxu0 0
  %525 = vmatpush2.bf16.msra.mxu0 0
  %526 = vmatprep.subr.bf16.mxu0 0
  %527 = vmatpush2.bf16.msra.mxu0 0
  %528 = vmatprep.subr.bf16.mxu0 0
  %529 = vmatpush2.bf16.msra.mxu0 0
  %530 = vmatprep.subr.bf16.mxu0 0
  %531 = vmatpush2.bf16.msra.mxu0 0
  %532 = vmatprep.mubr.bf16.mxu0 0
  %533 = vmatmul.mubr.bf16.gmra.mxu0 %v405
  %v534 = vpop.f32.mrf.mxu0
  %v535 = vadd.f32 0.0, %v534
  %v536 = vpop.f32.mrf.mxu0
  %v537 = vpop.f32.mrf.mxu0
  %v538 = vadd.f32 0.0, %v537
  %v539 = vpop.f32.mrf.mxu0
  %540 = vmatprep.mubr.bf16.mxu0 0
  %541 = vmatmul.mubr.bf16.gmra.mxu0 %v408
  %v542 = vpop.f32.mrf.mxu0
  %v543 = vadd.f32 0.0, %v542
  %v544 = vpop.f32.mrf.mxu0
  %v545 = vpop.f32.mrf.mxu0
  %v546 = vadd.f32 0.0, %v545
  %v547 = vpop.f32.mrf.mxu0
  %548 = vmatprep.mubr.bf16.mxu0 0
  %549 = vmatmul.mubr.bf16.gmra.mxu0 %v411
  %v550 = vpop.f32.mrf.mxu0
  %v551 = vadd.f32 0.0, %v550
  %v552 = vpop.f32.mrf.mxu0
  %v553 = vpop.f32.mrf.mxu0
  %v554 = vadd.f32 0.0, %v553
  %v555 = vpop.f32.mrf.mxu0
  %556 = vmatprep.mubr.bf16.mxu0 0
  %557 = vmatmul.mubr.bf16.gmra.mxu0 %v414
  %v558 = vpop.f32.mrf.mxu0
  %v559 = vadd.f32 0.0, %v558
  %v560 = vpop.f32.mrf.mxu0
  %v561 = vpop.f32.mrf.mxu0
  %v562 = vadd.f32 0.0, %v561
  %v563 = vpop.f32.mrf.mxu0
  %564 = vmatprep.mubr.bf16.mxu0 0
  %565 = vmatmul.mubr.bf16.gmra.mxu0 %v417
  %v566 = vpop.f32.mrf.mxu0
  %v567 = vadd.f32 0.0, %v566
  %v568 = vpop.f32.mrf.mxu0
  %v569 = vpop.f32.mrf.mxu0
  %v570 = vadd.f32 0.0, %v569
  %v571 = vpop.f32.mrf.mxu0
  %572 = vmatprep.mubr.bf16.mxu0 0
  %573 = vmatmul.mubr.bf16.gmra.mxu0 %v420
  %v574 = vpop.f32.mrf.mxu0
  %v575 = vadd.f32 0.0, %v574
  %v576 = vpop.f32.mrf.mxu0
  %v577 = vpop.f32.mrf.mxu0
  %v578 = vadd.f32 0.0, %v577
  %v579 = vpop.f32.mrf.mxu0
  %580 = vmatprep.mubr.bf16.mxu0 0
  %581 = vmatmul.mubr.bf16.gmra.mxu0 %v423
  %v582 = vpop.f32.mrf.mxu0
  %v583 = vadd.f32 0.0, %v582
  %v584 = vpop.f32.mrf.mxu0
  %v585 = vpop.f32.mrf.mxu0
  %v586 = vadd.f32 0.0, %v585
  %v587 = vpop.f32.mrf.mxu0
  %588 = vmatprep.mubr.bf16.mxu0 0
  %589 = vmatmul.mubr.bf16.gmra.mxu0 %v426
  %v590 = vpop.f32.mrf.mxu0
  %v591 = vadd.f32 0.0, %v590
  %v592 = vpop.f32.mrf.mxu0
  %v593 = vpop.f32.mrf.mxu0
  %v594 = vadd.f32 0.0, %v593
  %v595 = vpop.f32.mrf.mxu0
  %596 = vmatprep.mubr.bf16.mxu0 0
  %597 = vmatmul.mubr.bf16.gmra.mxu0 %v429
  %v598 = vpop.f32.mrf.mxu0
  %v599 = vadd.f32 0.0, %v598
  %v600 = vpop.f32.mrf.mxu0
  %v601 = vpop.f32.mrf.mxu0
  %v602 = vadd.f32 0.0, %v601
  %v603 = vpop.f32.mrf.mxu0
  %604 = vmatprep.mubr.bf16.mxu0 0
  %605 = vmatmul.mubr.bf16.gmra.mxu0 %v432
  %v606 = vpop.f32.mrf.mxu0
  %v607 = vadd.f32 0.0, %v606
  %v608 = vpop.f32.mrf.mxu0
  %v609 = vpop.f32.mrf.mxu0
  %v610 = vadd.f32 0.0, %v609
  %v611 = vpop.f32.mrf.mxu0
  %612 = vmatprep.mubr.bf16.mxu0 0
  %613 = vmatmul.mubr.bf16.gmra.mxu0 %v435
  %v614 = vpop.f32.mrf.mxu0
  %v615 = vadd.f32 0.0, %v614
  %v616 = vpop.f32.mrf.mxu0
  %v617 = vpop.f32.mrf.mxu0
  %v618 = vadd.f32 0.0, %v617
  %v619 = vpop.f32.mrf.mxu0
  %620 = vmatprep.mubr.bf16.mxu0 0
  %621 = vmatmul.mubr.bf16.gmra.mxu0 %v438
  %v622 = vpop.f32.mrf.mxu0
  %v623 = vadd.f32 0.0, %v622
  %v624 = vpop.f32.mrf.mxu0
  %v625 = vpop.f32.mrf.mxu0
  %v626 = vadd.f32 0.0, %v625
  %v627 = vpop.f32.mrf.mxu0
  %628 = vmatprep.mubr.bf16.mxu0 0
  %629 = vmatmul.mubr.bf16.gmra.mxu0 %v441
  %v630 = vpop.f32.mrf.mxu0
  %v631 = vadd.f32 0.0, %v630
  %v632 = vpop.f32.mrf.mxu0
  %v633 = vpop.f32.mrf.mxu0
  %v634 = vadd.f32 0.0, %v633
  %v635 = vpop.f32.mrf.mxu0
  %636 = vmatprep.mubr.bf16.mxu0 0
  %637 = vmatmul.mubr.bf16.gmra.mxu0 %v444
  %v638 = vpop.f32.mrf.mxu0
  %v639 = vadd.f32 0.0, %v638
  %v640 = vpop.f32.mrf.mxu0
  %v641 = vpop.f32.mrf.mxu0
  %v642 = vadd.f32 0.0, %v641
  %v643 = vpop.f32.mrf.mxu0
  %644 = vmatprep.mubr.bf16.mxu0 0
  %645 = vmatmul.mubr.bf16.gmra.mxu0 %v447
  %v646 = vpop.f32.mrf.mxu0
  %v647 = vadd.f32 0.0, %v646
  %v648 = vpop.f32.mrf.mxu0
  %v649 = vpop.f32.mrf.mxu0
  %v650 = vadd.f32 0.0, %v649
  %v651 = vpop.f32.mrf.mxu0
  %652 = vmatprep.mubr.bf16.mxu0 0
  %653 = vmatmul.mubr.bf16.gmra.mxu0 %v450
  %v654 = vpop.f32.mrf.mxu0
  %v655 = vadd.f32 0.0, %v654
  %v656 = vpop.f32.mrf.mxu0
  %v657 = vpop.f32.mrf.mxu0
  %v658 = vadd.f32 0.0, %v657
  %v659 = vpop.f32.mrf.mxu0
  %660 = vmatprep.mubr.bf16.mxu0 0
  %661 = vmatmul.mubr.bf16.gmra.mxu0 %v453
  %v662 = vpop.f32.mrf.mxu0
  %v663 = vadd.f32 0.0, %v662
  %v664 = vpop.f32.mrf.mxu0
  %v665 = vpop.f32.mrf.mxu0
  %v666 = vadd.f32 0.0, %v665
  %v667 = vpop.f32.mrf.mxu0
  %668 = vmatprep.mubr.bf16.mxu0 0
  %669 = vmatmul.mubr.bf16.gmra.mxu0 %v456
  %v670 = vpop.f32.mrf.mxu0
  %v671 = vadd.f32 0.0, %v670
  %v672 = vpop.f32.mrf.mxu0
  %v673 = vpop.f32.mrf.mxu0
  %v674 = vadd.f32 0.0, %v673
  %v675 = vpop.f32.mrf.mxu0
  %676 = vmatprep.mubr.bf16.mxu0 0
  %677 = vmatmul.mubr.bf16.gmra.mxu0 %v459
  %v678 = vpop.f32.mrf.mxu0
  %v679 = vadd.f32 0.0, %v678
  %v680 = vpop.f32.mrf.mxu0
  %v681 = vpop.f32.mrf.mxu0
  %v682 = vadd.f32 0.0, %v681
  %v683 = vpop.f32.mrf.mxu0
  %684 = vmatprep.mubr.bf16.mxu0 0
  %685 = vmatmul.mubr.bf16.gmra.mxu0 %v462
  %v686 = vpop.f32.mrf.mxu0
  %v687 = vadd.f32 0.0, %v686
  %v688 = vpop.f32.mrf.mxu0
  %v689 = vpop.f32.mrf.mxu0
  %v690 = vadd.f32 0.0, %v689
  %v691 = vpop.f32.mrf.mxu0
  %692 = vmatprep.mubr.bf16.mxu0 0
  %693 = vmatmul.mubr.bf16.gmra.mxu0 %v465
  %v694 = vpop.f32.mrf.mxu0
  %v695 = vadd.f32 0.0, %v694
  %v696 = vpop.f32.mrf.mxu0
  %v697 = vpop.f32.mrf.mxu0
  %v698 = vadd.f32 0.0, %v697
  %v699 = vpop.f32.mrf.mxu0
  %700 = vmatprep.mubr.bf16.mxu0 0
  %701 = vmatmul.mubr.bf16.gmra.mxu0 %v468
  %v702 = vpop.f32.mrf.mxu0
  %v703 = vadd.f32 0.0, %v702
  %v704 = vpop.f32.mrf.mxu0
  %v705 = vpop.f32.mrf.mxu0
  %v706 = vadd.f32 0.0, %v705
  %v707 = vpop.f32.mrf.mxu0
  %708 = vmatprep.mubr.bf16.mxu0 0
  %709 = vmatmul.mubr.bf16.gmra.mxu0 %v471
  %v710 = vpop.f32.mrf.mxu0
  %v711 = vadd.f32 0.0, %v710
  %v712 = vpop.f32.mrf.mxu0
  %v713 = vpop.f32.mrf.mxu0
  %v714 = vadd.f32 0.0, %v713
  %v715 = vpop.f32.mrf.mxu0
  %716 = vmatprep.mubr.bf16.mxu0 0
  %717 = vmatmul.mubr.bf16.gmra.mxu0 %v474
  %v718 = vpop.f32.mrf.mxu0
  %v719 = vadd.f32 0.0, %v718
  %v720 = vpop.f32.mrf.mxu0
  %v721 = vpop.f32.mrf.mxu0
  %v722 = vadd.f32 0.0, %v721
  %v723 = vpop.f32.mrf.mxu0
  %724 = vmatprep.mubr.bf16.mxu0 0
  %725 = vmatmul.mubr.bf16.gmra.mxu0 %v477
  %v726 = vpop.f32.mrf.mxu0
  %v727 = vadd.f32 0.0, %v726
  %v728 = vpop.f32.mrf.mxu0
  %v729 = vpop.f32.mrf.mxu0
  %v730 = vadd.f32 0.0, %v729
  %v731 = vpop.f32.mrf.mxu0
  %732 = vmatprep.mubr.bf16.mxu0 0
  %733 = vmatmul.mubr.bf16.gmra.mxu0 %v480
  %v734 = vpop.f32.mrf.mxu0
  %v735 = vadd.f32 0.0, %v734
  %v736 = vpop.f32.mrf.mxu0
  %v737 = vpop.f32.mrf.mxu0
  %v738 = vadd.f32 0.0, %v737
  %v739 = vpop.f32.mrf.mxu0
  %740 = vmatprep.mubr.bf16.mxu0 0
  %741 = vmatmul.mubr.bf16.gmra.mxu0 %v483
  %v742 = vpop.f32.mrf.mxu0
  %v743 = vadd.f32 0.0, %v742
  %v744 = vpop.f32.mrf.mxu0
  %v745 = vpop.f32.mrf.mxu0
  %v746 = vadd.f32 0.0, %v745
  %v747 = vpop.f32.mrf.mxu0
  %748 = vmatprep.mubr.bf16.mxu0 0
  %749 = vmatmul.mubr.bf16.gmra.mxu0 %v486
  %v750 = vpop.f32.mrf.mxu0
  %v751 = vadd.f32 0.0, %v750
  %v752 = vpop.f32.mrf.mxu0
  %v753 = vpop.f32.mrf.mxu0
  %v754 = vadd.f32 0.0, %v753
  %v755 = vpop.f32.mrf.mxu0
  %756 = vmatprep.mubr.bf16.mxu0 0
  %757 = vmatmul.mubr.bf16.gmra.mxu0 %v489
  %v758 = vpop.f32.mrf.mxu0
  %v759 = vadd.f32 0.0, %v758
  %v760 = vpop.f32.mrf.mxu0
  %v761 = vpop.f32.mrf.mxu0
  %v762 = vadd.f32 0.0, %v761
  %v763 = vpop.f32.mrf.mxu0
  %764 = vmatprep.mubr.bf16.mxu0 0
  %765 = vmatmul.mubr.bf16.gmra.mxu0 %v492
  %v766 = vpop.f32.mrf.mxu0
  %v767 = vadd.f32 0.0, %v766
  %v768 = vpop.f32.mrf.mxu0
  %v769 = vpop.f32.mrf.mxu0
  %v770 = vadd.f32 0.0, %v769
  %v771 = vpop.f32.mrf.mxu0
  %772 = vmatprep.mubr.bf16.mxu0 0
  %773 = vmatmul.mubr.bf16.gmra.mxu0 %v495
  %v774 = vpop.f32.mrf.mxu0
  %v775 = vadd.f32 0.0, %v774
  %v776 = vpop.f32.mrf.mxu0
  %v777 = vpop.f32.mrf.mxu0
  %v778 = vadd.f32 0.0, %v777
  %v779 = vpop.f32.mrf.mxu0
  %780 = vmatprep.mubr.bf16.mxu0 0
  %781 = vmatmul.mubr.bf16.gmra.mxu0 %v498
  %v782 = vpop.f32.mrf.mxu0
  %v783 = vadd.f32 0.0, %v782
  %v784 = vpop.f32.mrf.mxu0
  %v785 = vpop.f32.mrf.mxu0
  %v786 = vadd.f32 0.0, %v785
  %v787 = vpop.f32.mrf.mxu0
  %788 = vdwg.mxu0
  %v789 = vpack.c.bf16 %v538, %v535
  %v790 = vpack.c.bf16 %v546, %v543
  %v791 = vpack.c.bf16 %v554, %v551
  %v792 = vpack.c.bf16 %v562, %v559
  %v793 = vpack.c.bf16 %v570, %v567
  %v794 = vpack.c.bf16 %v578, %v575
  %v795 = vpack.c.bf16 %v586, %v583
  %v796 = vpack.c.bf16 %v594, %v591
  %v797 = vpack.c.bf16 %v602, %v599
  %v798 = vpack.c.bf16 %v610, %v607
  %v799 = vpack.c.bf16 %v618, %v615
  %v800 = vpack.c.bf16 %v626, %v623
  %v801 = vpack.c.bf16 %v634, %v631
  %v802 = vpack.c.bf16 %v642, %v639
  %v803 = vpack.c.bf16 %v650, %v647
  %v804 = vpack.c.bf16 %v658, %v655
  %v805 = vpack.c.bf16 %v666, %v663
  %v806 = vpack.c.bf16 %v674, %v671
  %v807 = vpack.c.bf16 %v682, %v679
  %v808 = vpack.c.bf16 %v690, %v687
  %v809 = vpack.c.bf16 %v698, %v695
  %v810 = vpack.c.bf16 %v706, %v703
  %v811 = vpack.c.bf16 %v714, %v711
  %v812 = vpack.c.bf16 %v722, %v719
  %v813 = vpack.c.bf16 %v730, %v727
  %v814 = vpack.c.bf16 %v738, %v735
  %v815 = vpack.c.bf16 %v746, %v743
  %v816 = vpack.c.bf16 %v754, %v751
  %v817 = vpack.c.bf16 %v762, %v759
  %v818 = vpack.c.bf16 %v770, %v767
  %v819 = vpack.c.bf16 %v778, %v775
  %v820 = vpack.c.bf16 %v786, %v783
  %v853 = vunpack.c.l.b16 %v789
  %v854 = vunpack.c.h.b16 %v789
  %v855 = vunpack.c.l.b16 %v790
  %v856 = vunpack.c.h.b16 %v790
  %v857 = vunpack.c.l.b16 %v791
  %v858 = vunpack.c.h.b16 %v791
  %v859 = vunpack.c.l.b16 %v792
  %v860 = vunpack.c.h.b16 %v792
  %v861 = vunpack.c.l.b16 %v793
  %v862 = vunpack.c.h.b16 %v793
  %v863 = vunpack.c.l.b16 %v794
  %v864 = vunpack.c.h.b16 %v794
  %v865 = vunpack.c.l.b16 %v795
  %v866 = vunpack.c.h.b16 %v795
  %v867 = vunpack.c.l.b16 %v796
  %v868 = vunpack.c.h.b16 %v796
  %v869 = vunpack.c.l.b16 %v797
  %v870 = vunpack.c.h.b16 %v797
  %v871 = vunpack.c.l.b16 %v798
  %v872 = vunpack.c.h.b16 %v798
  %v873 = vunpack.c.l.b16 %v799
  %v874 = vunpack.c.h.b16 %v799
  %v875 = vunpack.c.l.b16 %v800
  %v876 = vunpack.c.h.b16 %v800
  %v877 = vunpack.c.l.b16 %v801
  %v878 = vunpack.c.h.b16 %v801
  %v879 = vunpack.c.l.b16 %v802
  %v880 = vunpack.c.h.b16 %v802
  %v881 = vunpack.c.l.b16 %v803
  %v882 = vunpack.c.h.b16 %v803
  %v883 = vunpack.c.l.b16 %v804
  %v884 = vunpack.c.h.b16 %v804
  %v885 = vunpack.c.l.b16 %v805
  %v886 = vunpack.c.h.b16 %v805
  %v887 = vunpack.c.l.b16 %v806
  %v888 = vunpack.c.h.b16 %v806
  %v889 = vunpack.c.l.b16 %v807
  %v890 = vunpack.c.h.b16 %v807
  %v891 = vunpack.c.l.b16 %v808
  %v892 = vunpack.c.h.b16 %v808
  %v893 = vunpack.c.l.b16 %v809
  %v894 = vunpack.c.h.b16 %v809
  %v895 = vunpack.c.l.b16 %v810
  %v896 = vunpack.c.h.b16 %v810
  %v897 = vunpack.c.l.b16 %v811
  %v898 = vunpack.c.h.b16 %v811
  %v899 = vunpack.c.l.b16 %v812
  %v900 = vunpack.c.h.b16 %v812
  %v901 = vunpack.c.l.b16 %v813
  %v902 = vunpack.c.h.b16 %v813
  %v903 = vunpack.c.l.b16 %v814
  %v904 = vunpack.c.h.b16 %v814
  %v905 = vunpack.c.l.b16 %v815
  %v906 = vunpack.c.h.b16 %v815
  %v907 = vunpack.c.l.b16 %v816
  %v908 = vunpack.c.h.b16 %v816
  %v909 = vunpack.c.l.b16 %v817
  %v910 = vunpack.c.h.b16 %v817
  %v911 = vunpack.c.l.b16 %v818
  %v912 = vunpack.c.h.b16 %v818
  %v913 = vunpack.c.l.b16 %v819
  %v914 = vunpack.c.h.b16 %v819
  %v915 = vunpack.c.l.b16 %v820
  %v916 = vunpack.c.h.b16 %v820
  %v917 = vpack.c.b16 %v853, %v853
  %v918 = vpack.c.b16 %v854, %v854
  %v919 = vpack.c.b16 %v855, %v855
  %v920 = vpack.c.b16 %v856, %v856
  %v921 = vpack.c.b16 %v857, %v857
  %v922 = vpack.c.b16 %v858, %v858
  %v923 = vpack.c.b16 %v859, %v859
  %v924 = vpack.c.b16 %v860, %v860
  %v925 = vpack.c.b16 %v861, %v861
  %v926 = vpack.c.b16 %v862, %v862
  %v927 = vpack.c.b16 %v863, %v863
  %v928 = vpack.c.b16 %v864, %v864
  %v929 = vpack.c.b16 %v865, %v865
  %v930 = vpack.c.b16 %v866, %v866
  %v931 = vpack.c.b16 %v867, %v867
  %v932 = vpack.c.b16 %v868, %v868
  %v933 = vpack.c.b16 %v869, %v869
  %v934 = vpack.c.b16 %v870, %v870
  %v935 = vpack.c.b16 %v871, %v871
  %v936 = vpack.c.b16 %v872, %v872
  %v937 = vpack.c.b16 %v873, %v873
  %v938 = vpack.c.b16 %v874, %v874
  %v939 = vpack.c.b16 %v875, %v875
  %v940 = vpack.c.b16 %v876, %v876
  %v941 = vpack.c.b16 %v877, %v877
  %v942 = vpack.c.b16 %v878, %v878
  %v943 = vpack.c.b16 %v879, %v879
  %v944 = vpack.c.b16 %v880, %v880
  %v945 = vpack.c.b16 %v881, %v881
  %v946 = vpack.c.b16 %v882, %v882
  %v947 = vpack.c.b16 %v883, %v883
  %v948 = vpack.c.b16 %v884, %v884
  %v949 = vpack.c.b16 %v885, %v885
  %v950 = vpack.c.b16 %v886, %v886
  %v951 = vpack.c.b16 %v887, %v887
  %v952 = vpack.c.b16 %v888, %v888
  %v953 = vpack.c.b16 %v889, %v889
  %v954 = vpack.c.b16 %v890, %v890
  %v955 = vpack.c.b16 %v891, %v891
  %v956 = vpack.c.b16 %v892, %v892
  %v957 = vpack.c.b16 %v893, %v893
  %v958 = vpack.c.b16 %v894, %v894
  %v959 = vpack.c.b16 %v895, %v895
  %v960 = vpack.c.b16 %v896, %v896
  %v961 = vpack.c.b16 %v897, %v897
  %v962 = vpack.c.b16 %v898, %v898
  %v963 = vpack.c.b16 %v899, %v899
  %v964 = vpack.c.b16 %v900, %v900
  %v965 = vpack.c.b16 %v901, %v901
  %v966 = vpack.c.b16 %v902, %v902
  %v967 = vpack.c.b16 %v903, %v903
  %v968 = vpack.c.b16 %v904, %v904
  %v969 = vpack.c.b16 %v905, %v905
  %v970 = vpack.c.b16 %v906, %v906
  %v971 = vpack.c.b16 %v907, %v907
  %v972 = vpack.c.b16 %v908, %v908
  %v973 = vpack.c.b16 %v909, %v909
  %v974 = vpack.c.b16 %v910, %v910
  %v975 = vpack.c.b16 %v911, %v911
  %v976 = vpack.c.b16 %v912, %v912
  %v977 = vpack.c.b16 %v913, %v913
  %v978 = vpack.c.b16 %v914, %v914
  %v979 = vpack.c.b16 %v915, %v915
  %v980 = vpack.c.b16 %v916, %v916
  %1045 = vst [vmem:[%s4] sm:$0xf] %v917
  %1046 = vst [vmem:[%s4 + $0x4] sm:$0xf] %v918
  %1047 = vst [vmem:[%s4 + $0x8] sm:$0xf] %v919
  %1048 = vst [vmem:[%s4 + $0xc] sm:$0xf] %v920
  %1049 = vst [vmem:[%s4 + $0x10] sm:$0xf] %v921
  %1050 = vst [vmem:[%s4 + $0x14] sm:$0xf] %v922
  %1051 = vst [vmem:[%s4 + $0x18] sm:$0xf] %v923
  %1052 = vst [vmem:[%s4 + $0x1c] sm:$0xf] %v924
  %1053 = vst [vmem:[%s4 + $0x20] sm:$0xf] %v925
  %1054 = vst [vmem:[%s4 + $0x24] sm:$0xf] %v926
  %1055 = vst [vmem:[%s4 + $0x28] sm:$0xf] %v927
  %1056 = vst [vmem:[%s4 + $0x2c] sm:$0xf] %v928
  %1057 = vst [vmem:[%s4 + $0x30] sm:$0xf] %v929
  %1058 = vst [vmem:[%s4 + $0x34] sm:$0xf] %v930
  %1059 = vst [vmem:[%s4 + $0x38] sm:$0xf] %v931
  %1060 = vst [vmem:[%s4 + $0x3c] sm:$0xf] %v932
  %1061 = vst [vmem:[%s4 + $0x40] sm:$0xf] %v933
  %1062 = vst [vmem:[%s4 + $0x44] sm:$0xf] %v934
  %1063 = vst [vmem:[%s4 + $0x48] sm:$0xf] %v935
  %1064 = vst [vmem:[%s4 + $0x4c] sm:$0xf] %v936
  %1065 = vst [vmem:[%s4 + $0x50] sm:$0xf] %v937
  %1066 = vst [vmem:[%s4 + $0x54] sm:$0xf] %v938
  %1067 = vst [vmem:[%s4 + $0x58] sm:$0xf] %v939
  %1068 = vst [vmem:[%s4 + $0x5c] sm:$0xf] %v940
  %1069 = vst [vmem:[%s4 + $0x60] sm:$0xf] %v941
  %1070 = vst [vmem:[%s4 + $0x64] sm:$0xf] %v942
  %1071 = vst [vmem:[%s4 + $0x68] sm:$0xf] %v943
  %1072 = vst [vmem:[%s4 + $0x6c] sm:$0xf] %v944
  %1073 = vst [vmem:[%s4 + $0x70] sm:$0xf] %v945
  %1074 = vst [vmem:[%s4 + $0x74] sm:$0xf] %v946
  %1075 = vst [vmem:[%s4 + $0x78] sm:$0xf] %v947
  %1076 = vst [vmem:[%s4 + $0x7c] sm:$0xf] %v948
  %1077 = vst [vmem:[%s4 + $0x80] sm:$0xf] %v949
  %1078 = vst [vmem:[%s4 + $0x84] sm:$0xf] %v950
  %1079 = vst [vmem:[%s4 + $0x88] sm:$0xf] %v951
  %1080 = vst [vmem:[%s4 + $0x8c] sm:$0xf] %v952
  %1081 = vst [vmem:[%s4 + $0x90] sm:$0xf] %v953
  %1082 = vst [vmem:[%s4 + $0x94] sm:$0xf] %v954
  %1083 = vst [vmem:[%s4 + $0x98] sm:$0xf] %v955
  %1084 = vst [vmem:[%s4 + $0x9c] sm:$0xf] %v956
  %1085 = vst [vmem:[%s4 + $0xa0] sm:$0xf] %v957
  %1086 = vst [vmem:[%s4 + $0xa4] sm:$0xf] %v958
  %1087 = vst [vmem:[%s4 + $0xa8] sm:$0xf] %v959
  %1088 = vst [vmem:[%s4 + $0xac] sm:$0xf] %v960
  %1089 = vst [vmem:[%s4 + $0xb0] sm:$0xf] %v961
  %1090 = vst [vmem:[%s4 + $0xb4] sm:$0xf] %v962
  %1091 = vst [vmem:[%s4 + $0xb8] sm:$0xf] %v963
  %1092 = vst [vmem:[%s4 + $0xbc] sm:$0xf] %v964
  %1093 = vst [vmem:[%s4 + $0xc0] sm:$0xf] %v965
  %1094 = vst [vmem:[%s4 + $0xc4] sm:$0xf] %v966
  %1095 = vst [vmem:[%s4 + $0xc8] sm:$0xf] %v967
  %1096 = vst [vmem:[%s4 + $0xcc] sm:$0xf] %v968
  %1097 = vst [vmem:[%s4 + $0xd0] sm:$0xf] %v969
  %1098 = vst [vmem:[%s4 + $0xd4] sm:$0xf] %v970
  %1099 = vst [vmem:[%s4 + $0xd8] sm:$0xf] %v971
  %1100 = vst [vmem:[%s4 + $0xdc] sm:$0xf] %v972
  %1101 = vst [vmem:[%s4 + $0xe0] sm:$0xf] %v973
  %1102 = vst [vmem:[%s4 + $0xe4] sm:$0xf] %v974
  %1103 = vst [vmem:[%s4 + $0xe8] sm:$0xf] %v975
  %1104 = vst [vmem:[%s4 + $0xec] sm:$0xf] %v976
  %1105 = vst [vmem:[%s4 + $0xf0] sm:$0xf] %v977
  %1106 = vst [vmem:[%s4 + $0xf4] sm:$0xf] %v978
  %1107 = vst [vmem:[%s4 + $0xf8] sm:$0xf] %v979
  %1108 = vst [vmem:[%s4 + $0xfc] sm:$0xf] %v980
  %v1109 = vunpack.c.l.bf16 %v789
  %v1110 = vunpack.c.h.bf16 %v789
  %v1111 = vunpack.c.l.bf16 %v790
  %v1112 = vunpack.c.h.bf16 %v790
  %v1113 = vunpack.c.l.bf16 %v791
  %v1114 = vunpack.c.h.bf16 %v791
  %v1115 = vunpack.c.l.bf16 %v792
  %v1116 = vunpack.c.h.bf16 %v792
  %v1117 = vunpack.c.l.bf16 %v793
  %v1118 = vunpack.c.h.bf16 %v793
  %v1119 = vunpack.c.l.bf16 %v794
  %v1120 = vunpack.c.h.bf16 %v794
  %v1121 = vunpack.c.l.bf16 %v795
  %v1122 = vunpack.c.h.bf16 %v795
  %v1123 = vunpack.c.l.bf16 %v796
  %v1124 = vunpack.c.h.bf16 %v796
  %v1125 = vunpack.c.l.bf16 %v797
  %v1126 = vunpack.c.h.bf16 %v797
  %v1127 = vunpack.c.l.bf16 %v798
  %v1128 = vunpack.c.h.bf16 %v798
  %v1129 = vunpack.c.l.bf16 %v799
  %v1130 = vunpack.c.h.bf16 %v799
  %v1131 = vunpack.c.l.bf16 %v800
  %v1132 = vunpack.c.h.bf16 %v800
  %v1133 = vunpack.c.l.bf16 %v801
  %v1134 = vunpack.c.h.bf16 %v801
  %v1135 = vunpack.c.l.bf16 %v802
  %v1136 = vunpack.c.h.bf16 %v802
  %v1137 = vunpack.c.l.bf16 %v803
  %v1138 = vunpack.c.h.bf16 %v803
  %v1139 = vunpack.c.l.bf16 %v804
  %v1140 = vunpack.c.h.bf16 %v804
  %v1141 = vunpack.c.l.bf16 %v805
  %v1142 = vunpack.c.h.bf16 %v805
  %v1143 = vunpack.c.l.bf16 %v806
  %v1144 = vunpack.c.h.bf16 %v806
  %v1145 = vunpack.c.l.bf16 %v807
  %v1146 = vunpack.c.h.bf16 %v807
  %v1147 = vunpack.c.l.bf16 %v808
  %v1148 = vunpack.c.h.bf16 %v808
  %v1149 = vunpack.c.l.bf16 %v809
  %v1150 = vunpack.c.h.bf16 %v809
  %v1151 = vunpack.c.l.bf16 %v810
  %v1152 = vunpack.c.h.bf16 %v810
  %v1153 = vunpack.c.l.bf16 %v811
  %v1154 = vunpack.c.h.bf16 %v811
  %v1155 = vunpack.c.l.bf16 %v812
  %v1156 = vunpack.c.h.bf16 %v812
  %v1157 = vunpack.c.l.bf16 %v813
  %v1158 = vunpack.c.h.bf16 %v813
  %v1159 = vunpack.c.l.bf16 %v814
  %v1160 = vunpack.c.h.bf16 %v814
  %v1161 = vunpack.c.l.bf16 %v815
  %v1162 = vunpack.c.h.bf16 %v815
  %v1163 = vunpack.c.l.bf16 %v816
  %v1164 = vunpack.c.h.bf16 %v816
  %v1165 = vunpack.c.l.bf16 %v817
  %v1166 = vunpack.c.h.bf16 %v817
  %v1167 = vunpack.c.l.bf16 %v818
  %v1168 = vunpack.c.h.bf16 %v818
  %v1169 = vunpack.c.l.bf16 %v819
  %v1170 = vunpack.c.h.bf16 %v819
  %v1171 = vunpack.c.l.bf16 %v820
  %v1172 = vunpack.c.h.bf16 %v820
  %v1173 = vadd.f32 %v1109, %v1110
  %v1174 = vadd.f32 %v1173, %v1111
  %v1175 = vadd.f32 %v1174, %v1112
  %v1176 = vadd.f32 %v1175, %v1113
  %v1177 = vadd.f32 %v1176, %v1114
  %v1178 = vadd.f32 %v1177, %v1115
  %v1179 = vadd.f32 %v1178, %v1116
  %v1180 = vadd.f32 %v1179, %v1117
  %v1181 = vadd.f32 %v1180, %v1118
  %v1182 = vadd.f32 %v1181, %v1119
  %v1183 = vadd.f32 %v1182, %v1120
  %v1184 = vadd.f32 %v1183, %v1121
  %v1185 = vadd.f32 %v1184, %v1122
  %v1186 = vadd.f32 %v1185, %v1123
  %v1187 = vadd.f32 %v1186, %v1124
  %v1188 = vadd.f32 %v1187, %v1125
  %v1189 = vadd.f32 %v1188, %v1126
  %v1190 = vadd.f32 %v1189, %v1127
  %v1191 = vadd.f32 %v1190, %v1128
  %v1192 = vadd.f32 %v1191, %v1129
  %v1193 = vadd.f32 %v1192, %v1130
  %v1194 = vadd.f32 %v1193, %v1131
  %v1195 = vadd.f32 %v1194, %v1132
  %v1196 = vadd.f32 %v1195, %v1133
  %v1197 = vadd.f32 %v1196, %v1134
  %v1198 = vadd.f32 %v1197, %v1135
  %v1199 = vadd.f32 %v1198, %v1136
  %v1200 = vadd.f32 %v1199, %v1137
  %v1201 = vadd.f32 %v1200, %v1138
  %v1202 = vadd.f32 %v1201, %v1139
  %v1203 = vadd.f32 %v1202, %v1140
  %v1204 = vadd.f32 %v1203, %v1141
  %v1205 = vadd.f32 %v1204, %v1142
  %v1206 = vadd.f32 %v1205, %v1143
  %v1207 = vadd.f32 %v1206, %v1144
  %v1208 = vadd.f32 %v1207, %v1145
  %v1209 = vadd.f32 %v1208, %v1146
  %v1210 = vadd.f32 %v1209, %v1147
  %v1211 = vadd.f32 %v1210, %v1148
  %v1212 = vadd.f32 %v1211, %v1149
  %v1213 = vadd.f32 %v1212, %v1150
  %v1214 = vadd.f32 %v1213, %v1151
  %v1215 = vadd.f32 %v1214, %v1152
  %v1216 = vadd.f32 %v1215, %v1153
  %v1217 = vadd.f32 %v1216, %v1154
  %v1218 = vadd.f32 %v1217, %v1155
  %v1219 = vadd.f32 %v1218, %v1156
  %v1220 = vadd.f32 %v1219, %v1157
  %v1221 = vadd.f32 %v1220, %v1158
  %v1222 = vadd.f32 %v1221, %v1159
  %v1223 = vadd.f32 %v1222, %v1160
  %v1224 = vadd.f32 %v1223, %v1161
  %v1225 = vadd.f32 %v1224, %v1162
  %v1226 = vadd.f32 %v1225, %v1163
  %v1227 = vadd.f32 %v1226, %v1164
  %v1228 = vadd.f32 %v1227, %v1165
  %v1229 = vadd.f32 %v1228, %v1166
  %v1230 = vadd.f32 %v1229, %v1167
  %v1231 = vadd.f32 %v1230, %v1168
  %v1232 = vadd.f32 %v1231, %v1169
  %v1233 = vadd.f32 %v1232, %v1170
  %v1234 = vadd.f32 %v1233, %v1171
  %v1235 = vadd.f32 %v1234, %v1172
  %v1236 = vrot.slane %v1235, 4
  %v1237 = vadd.f32 %v1235, %v1236
  %v1238 = vrot.slane %v1237, 2
  %v1239 = vadd.f32 %v1237, %v1238
  %v1240 = vrot.slane %v1239, 1
  %v1241 = vadd.f32 %v1239, %v1240
  %1242 = vst [vmem:[%s5] sm:$0x1] %v1241
  %v1243 = vmul.f32 %v1109, %v1109
  %v1244 = vmul.f32 %v1110, %v1110
  %v1245 = vmul.f32 %v1111, %v1111
  %v1246 = vmul.f32 %v1112, %v1112
  %v1247 = vmul.f32 %v1113, %v1113
  %v1248 = vmul.f32 %v1114, %v1114
  %v1249 = vmul.f32 %v1115, %v1115
  %v1250 = vmul.f32 %v1116, %v1116
  %v1251 = vmul.f32 %v1117, %v1117
  %v1252 = vmul.f32 %v1118, %v1118
  %v1253 = vmul.f32 %v1119, %v1119
  %v1254 = vmul.f32 %v1120, %v1120
  %v1255 = vmul.f32 %v1121, %v1121
  %v1256 = vmul.f32 %v1122, %v1122
  %v1257 = vmul.f32 %v1123, %v1123
  %v1258 = vmul.f32 %v1124, %v1124
  %v1259 = vmul.f32 %v1125, %v1125
  %v1260 = vmul.f32 %v1126, %v1126
  %v1261 = vmul.f32 %v1127, %v1127
  %v1262 = vmul.f32 %v1128, %v1128
  %v1263 = vmul.f32 %v1129, %v1129
  %v1264 = vmul.f32 %v1130, %v1130
  %v1265 = vmul.f32 %v1131, %v1131
  %v1266 = vmul.f32 %v1132, %v1132
  %v1267 = vmul.f32 %v1133, %v1133
  %v1268 = vmul.f32 %v1134, %v1134
  %v1269 = vmul.f32 %v1135, %v1135
  %v1270 = vmul.f32 %v1136, %v1136
  %v1271 = vmul.f32 %v1137, %v1137
  %v1272 = vmul.f32 %v1138, %v1138
  %v1273 = vmul.f32 %v1139, %v1139
  %v1274 = vmul.f32 %v1140, %v1140
  %v1275 = vmul.f32 %v1141, %v1141
  %v1276 = vmul.f32 %v1142, %v1142
  %v1277 = vmul.f32 %v1143, %v1143
  %v1278 = vmul.f32 %v1144, %v1144
  %v1279 = vmul.f32 %v1145, %v1145
  %v1280 = vmul.f32 %v1146, %v1146
  %v1281 = vmul.f32 %v1147, %v1147
  %v1282 = vmul.f32 %v1148, %v1148
  %v1283 = vmul.f32 %v1149, %v1149
  %v1284 = vmul.f32 %v1150, %v1150
  %v1285 = vmul.f32 %v1151, %v1151
  %v1286 = vmul.f32 %v1152, %v1152
  %v1287 = vmul.f32 %v1153, %v1153
  %v1288 = vmul.f32 %v1154, %v1154
  %v1289 = vmul.f32 %v1155, %v1155
  %v1290 = vmul.f32 %v1156, %v1156
  %v1291 = vmul.f32 %v1157, %v1157
  %v1292 = vmul.f32 %v1158, %v1158
  %v1293 = vmul.f32 %v1159, %v1159
  %v1294 = vmul.f32 %v1160, %v1160
  %v1295 = vmul.f32 %v1161, %v1161
  %v1296 = vmul.f32 %v1162, %v1162
  %v1297 = vmul.f32 %v1163, %v1163
  %v1298 = vmul.f32 %v1164, %v1164
  %v1299 = vmul.f32 %v1165, %v1165
  %v1300 = vmul.f32 %v1166, %v1166
  %v1301 = vmul.f32 %v1167, %v1167
  %v1302 = vmul.f32 %v1168, %v1168
  %v1303 = vmul.f32 %v1169, %v1169
  %v1304 = vmul.f32 %v1170, %v1170
  %v1305 = vmul.f32 %v1171, %v1171
  %v1306 = vmul.f32 %v1172, %v1172
  %v1307 = vadd.f32 %v1243, %v1244
  %v1308 = vadd.f32 %v1307, %v1245
  %v1309 = vadd.f32 %v1308, %v1246
  %v1310 = vadd.f32 %v1309, %v1247
  %v1311 = vadd.f32 %v1310, %v1248
  %v1312 = vadd.f32 %v1311, %v1249
  %v1313 = vadd.f32 %v1312, %v1250
  %v1314 = vadd.f32 %v1313, %v1251
  %v1315 = vadd.f32 %v1314, %v1252
  %v1316 = vadd.f32 %v1315, %v1253
  %v1317 = vadd.f32 %v1316, %v1254
  %v1318 = vadd.f32 %v1317, %v1255
  %v1319 = vadd.f32 %v1318, %v1256
  %v1320 = vadd.f32 %v1319, %v1257
  %v1321 = vadd.f32 %v1320, %v1258
  %v1322 = vadd.f32 %v1321, %v1259
  %v1323 = vadd.f32 %v1322, %v1260
  %v1324 = vadd.f32 %v1323, %v1261
  %v1325 = vadd.f32 %v1324, %v1262
  %v1326 = vadd.f32 %v1325, %v1263
  %v1327 = vadd.f32 %v1326, %v1264
  %v1328 = vadd.f32 %v1327, %v1265
  %v1329 = vadd.f32 %v1328, %v1266
  %v1330 = vadd.f32 %v1329, %v1267
  %v1331 = vadd.f32 %v1330, %v1268
  %v1332 = vadd.f32 %v1331, %v1269
  %v1333 = vadd.f32 %v1332, %v1270
  %v1334 = vadd.f32 %v1333, %v1271
  %v1335 = vadd.f32 %v1334, %v1272
  %v1336 = vadd.f32 %v1335, %v1273
  %v1337 = vadd.f32 %v1336, %v1274
  %v1338 = vadd.f32 %v1337, %v1275
  %v1339 = vadd.f32 %v1338, %v1276
  %v1340 = vadd.f32 %v1339, %v1277
  %v1341 = vadd.f32 %v1340, %v1278
  %v1342 = vadd.f32 %v1341, %v1279
  %v1343 = vadd.f32 %v1342, %v1280
  %v1344 = vadd.f32 %v1343, %v1281
  %v1345 = vadd.f32 %v1344, %v1282
  %v1346 = vadd.f32 %v1345, %v1283
  %v1347 = vadd.f32 %v1346, %v1284
  %v1348 = vadd.f32 %v1347, %v1285
  %v1349 = vadd.f32 %v1348, %v1286
  %v1350 = vadd.f32 %v1349, %v1287
  %v1351 = vadd.f32 %v1350, %v1288
  %v1352 = vadd.f32 %v1351, %v1289
  %v1353 = vadd.f32 %v1352, %v1290
  %v1354 = vadd.f32 %v1353, %v1291
  %v1355 = vadd.f32 %v1354, %v1292
  %v1356 = vadd.f32 %v1355, %v1293
  %v1357 = vadd.f32 %v1356, %v1294
  %v1358 = vadd.f32 %v1357, %v1295
  %v1359 = vadd.f32 %v1358, %v1296
  %v1360 = vadd.f32 %v1359, %v1297
  %v1361 = vadd.f32 %v1360, %v1298
  %v1362 = vadd.f32 %v1361, %v1299
  %v1363 = vadd.f32 %v1362, %v1300
  %v1364 = vadd.f32 %v1363, %v1301
  %v1365 = vadd.f32 %v1364, %v1302
  %v1366 = vadd.f32 %v1365, %v1303
  %v1367 = vadd.f32 %v1366, %v1304
  %v1368 = vadd.f32 %v1367, %v1305
  %v1369 = vadd.f32 %v1368, %v1306
  %v1370 = vrot.slane %v1369, 4
  %v1371 = vadd.f32 %v1369, %v1370
  %v1372 = vrot.slane %v1371, 2
  %v1373 = vadd.f32 %v1371, %v1372
  %v1374 = vrot.slane %v1373, 1
  %v1375 = vadd.f32 %v1373, %v1374
  %1376 = vst [vmem:[%s6] sm:$0x1] %v1375
  // Predicated region
  $region18: #{bottleneck_forward_nhwc.6} parent=0 // pred_check
    _
  $region19: #{bottleneck_forward_nhwc.6} parent=0 // pred_check_branch
    %1378 = sbr.rel (0) target = $region21
  $region20: #{bottleneck_forward_nhwc.6} parent=0 // pred_region
    _
  $region21: #{bottleneck_forward_nhwc.6} parent=0 // pred_fallthru
    _
  // Predicated region
  $region22: #{bottleneck_forward_nhwc.6} parent=0 // pred_check
    _
  $region23: #{bottleneck_forward_nhwc.6} parent=0 // pred_check_branch
    %1380 = sbr.rel (0) target = $region25
  $region24: #{bottleneck_forward_nhwc.6} parent=0 // pred_region
    _
  $region25: #{bottleneck_forward_nhwc.6} parent=0 // pred_fallthru
    _
  // Predicated region
  $region26: #{bottleneck_forward_nhwc.6} parent=0 // pred_check
    _
  $region27: #{bottleneck_forward_nhwc.6} parent=0 // pred_check_branch
    %1382 = sbr.rel (0) target = $region29
  $region28: #{bottleneck_forward_nhwc.6} parent=0 // pred_region
    _
  $region29: #{bottleneck_forward_nhwc.6} parent=0 // pred_fallthru
    _
  // Predicated region
  $region30: #{bottleneck_forward_nhwc.6} parent=0 // pred_check
    _
  $region31: #{bottleneck_forward_nhwc.6} parent=0 // pred_check_branch
    %1384 = sbr.rel (0) target = $region33
  $region32: #{bottleneck_forward_nhwc.6} parent=0 // pred_region
    _
  $region33: #{bottleneck_forward_nhwc.6} parent=0 // pred_fallthru
    _
  // Predicated region
  $region34: #{bottleneck_forward_nhwc.6} parent=0 // pred_check
    _
  $region35: #{bottleneck_forward_nhwc.6} parent=0 // pred_check_branch
    %1386 = sbr.rel (0) target = $region37
  $region36: #{bottleneck_forward_nhwc.6} parent=0 // pred_region
    _
  $region37: #{bottleneck_forward_nhwc.6} parent=0 // pred_fallthru
    _
  // Predicated region
  $region38: #{bottleneck_forward_nhwc.6} parent=0 // pred_check
    _
  $region39: #{bottleneck_forward_nhwc.6} parent=0 // pred_check_branch
    %1388 = sbr.rel (0) target = $region41
  $region40: #{bottleneck_forward_nhwc.6} parent=0 // pred_region
    _
  $region41: #{bottleneck_forward_nhwc.6} parent=0 // pred_fallthru
    _

// kernel: bottleneck_forward_nhwc.5
$region0: #{bottleneck_forward_nhwc.5}
  #allocation0 [shape = 'u32[]', space=smem, size = 0x4, offset = 0x4, fixed_abs, tag = 'smem constant byte address 0x4 - core index']
  #allocation1 [shape = 'u32[144,128]{1,0:T(1,128)}', space=vmem, size = 0x12000, scoped, tag = 'internal scratch']
  #allocation2 [shape = 'bf16[18,18,32]{2,1,0:T(8,128)(2,1)}', space=vmem, size = 0x1b000, scoped, tag = 'scratch operand']
  %s0 = inlined_call_operand.vmem [shape: bf16[2,16,16,32], index: 0, kind: input, shape index: {}]
  %s1 = inlined_call_operand.vmem [shape: f32[1,32], index: 1, kind: input, shape index: {}]
  %s2 = inlined_call_operand.vmem [shape: f32[1,32], index: 2, kind: input, shape index: {}]
  %s3 = inlined_call_operand.vmem [shape: bf16[288,32], index: 3, kind: input, shape index: {}]
  %s4 = inlined_call_operand.vmem [shape: bf16[2,256,32], index: 4, kind: output, shape index: {0}]
  %s5 = inlined_call_operand.vmem [shape: f32[2,1,32], index: 5, kind: output, shape index: {1}]
  %s6 = inlined_call_operand.vmem [shape: f32[2,1,32], index: 6, kind: output, shape index: {2}]
  %7 = xla_tuple %s4, %s5, %s6
  %s8 = sld [smem:[#allocation0]]
  $region65: #{bottleneck_forward_nhwc.5} parent=0
    _
  %s10 = ssub.s32 1, %s8
  %s11 = scalar_select 0, %s10, %s8
  loop: start=0, step=1, limit=4
  $region2: #{bottleneck_forward_nhwc.5} parent=0 // loop_pre_header
    _
  $region3: #{bottleneck_forward_nhwc.5} parent=0 // loop_header
    %s13 = sphi 0, %s17
    %p14 = scmp.ge.s32.totalorder %s13, 4
    %s23 = sphi 0, %s25
    %s26 = sphi 0, %s23
    %s27 = sphi 0, %s26
    %s43 = sphi 0, %s27
    %s47 = sphi 0, %s47
    %s49 = sphi 0, %s47
    %s50 = sphi 0, %s49
    %s64 = sphi 0, %s50
    %s68 = sphi 0, %s68
    %s70 = sphi 0, %s68
    %s71 = sphi 0, %s70
    %s85 = sphi 0, %s71
    %s89 = sphi 0, %s89
    %s91 = sphi 0, %s89
    %s92 = sphi 0, %s91
    %s106 = sphi 0, %s92
    %s112 = sphi 0, %s114
    %s115 = sphi 0, %s112
    %s116 = sphi 0, %s115
    %s132 = sphi 0, %s116
    %s138 = sphi 0, %s140
    %s141 = sphi 0, %s138
    %s142 = sphi 0, %s141
    %s158 = sphi 0, %s142
    %s164 = sphi 0, %s166
    %s167 = sphi 0, %s164
    %s168 = sphi 0, %s167
    %s184 = sphi 0, %s168
  $region4: #{bottleneck_forward_nhwc.5} parent=0 // loop_header_branch
    %16 = sbr.rel (%p14) target = $region8
  $region5: #{bottleneck_forward_nhwc.5} parent=0 // loop_body
    %s18 = ssub.s32 %s13, 1
    %s19 = ssub.s32 %s13, 2
    %s20 = sadd.s32 %s13, 1
    %s21 = ssub.s32 %s13, %s20
    %p22 = scmp.eq.s32.totalorder %s21, 0
    %s24 = sadd.s32 %s23, 1
    %s25 = scalar_select %p22, %s23, %s24
    %p28 = pneg %p22
    %p29 = scmp.eq.s32.totalorder %s13, 1
    %p30 = por %p28, %p29
    %p31 = scmp.ne.s32.totalorder %s23, %s26
    %p32 = scmp.eq.s32.totalorder %s13, 0
    %p33 = por %p31, %p32
    %p34 = scmp.ne.s32.totalorder %s23, %s26
    %p35 = scmp.eq.s32.totalorder %s18, 1
    %p36 = por %p34, %p35
    %p37 = scmp.ne.s32.totalorder %s26, %s27
    %p38 = scmp.eq.s32.totalorder %s18, 0
    %p39 = por %p37, %p38
    %p40 = scmp.ne.s32.totalorder %s26, %s27
    %p41 = scmp.eq.s32.totalorder %s19, 1
    %p42 = por %p40, %p41
    %p44 = scmp.ne.s32.totalorder %s27, %s43
    %p45 = scmp.eq.s32.totalorder %s19, 0
    %p46 = por %p44, %p45
    %s48 = sadd.s32 %s47, 1
    %p51 = scmp.eq.s32.totalorder %s13, 1
    %p52 = scmp.ne.s32.totalorder %s47, %s49
    %p53 = scmp.eq.s32.totalorder %s13, 0
    %p54 = por %p52, %p53
    %p55 = scmp.ne.s32.totalorder %s47, %s49
    %p56 = scmp.eq.s32.totalorder %s18, 1
    %p57 = por %p55, %p56
    %p58 = scmp.ne.s32.totalorder %s49, %s50
    %p59 = scmp.eq.s32.totalorder %s18, 0
    %p60 = por %p58, %p59
    %p61 = scmp.ne.s32.totalorder %s49, %s50
    %p62 = scmp.eq.s32.totalorder %s19, 1
    %p63 = por %p61, %p62
    %p65 = scmp.ne.s32.totalorder %s50, %s64
    %p66 = scmp.eq.s32.totalorder %s19, 0
    %p67 = por %p65, %p66
    %s69 = sadd.s32 %s68, 1
    %p72 = scmp.eq.s32.totalorder %s13, 1
    %p73 = scmp.ne.s32.totalorder %s68, %s70
    %p74 = scmp.eq.s32.totalorder %s13, 0
    %p75 = por %p73, %p74
    %p76 = scmp.ne.s32.totalorder %s68, %s70
    %p77 = scmp.eq.s32.totalorder %s18, 1
    %p78 = por %p76, %p77
    %p79 = scmp.ne.s32.totalorder %s70, %s71
    %p80 = scmp.eq.s32.totalorder %s18, 0
    %p81 = por %p79, %p80
    %p82 = scmp.ne.s32.totalorder %s70, %s71
    %p83 = scmp.eq.s32.totalorder %s19, 1
    %p84 = por %p82, %p83
    %p86 = scmp.ne.s32.totalorder %s71, %s85
    %p87 = scmp.eq.s32.totalorder %s19, 0
    %p88 = por %p86, %p87
    %s90 = sadd.s32 %s89, 1
    %p93 = scmp.eq.s32.totalorder %s13, 1
    %p94 = scmp.ne.s32.totalorder %s89, %s91
    %p95 = scmp.eq.s32.totalorder %s13, 0
    %p96 = por %p94, %p95
    %p97 = scmp.ne.s32.totalorder %s89, %s91
    %p98 = scmp.eq.s32.totalorder %s18, 1
    %p99 = por %p97, %p98
    %p100 = scmp.ne.s32.totalorder %s91, %s92
    %p101 = scmp.eq.s32.totalorder %s18, 0
    %p102 = por %p100, %p101
    %p103 = scmp.ne.s32.totalorder %s91, %s92
    %p104 = scmp.eq.s32.totalorder %s19, 1
    %p105 = por %p103, %p104
    %p107 = scmp.ne.s32.totalorder %s92, %s106
    %p108 = scmp.eq.s32.totalorder %s19, 0
    %p109 = por %p107, %p108
    %s110 = ssub.s32 %s13, %s20
    %p111 = scmp.eq.s32.totalorder %s110, 0
    %s113 = sadd.s32 %s112, 1
    %s114 = scalar_select %p111, %s112, %s113
    %p117 = pneg %p111
    %p118 = scmp.eq.s32.totalorder %s13, 1
    %p119 = por %p117, %p118
    %p120 = scmp.ne.s32.totalorder %s112, %s115
    %p121 = scmp.eq.s32.totalorder %s13, 0
    %p122 = por %p120, %p121
    %p123 = scmp.ne.s32.totalorder %s112, %s115
    %p124 = scmp.eq.s32.totalorder %s18, 1
    %p125 = por %p123, %p124
    %p126 = scmp.ne.s32.totalorder %s115, %s116
    %p127 = scmp.eq.s32.totalorder %s18, 0
    %p128 = por %p126, %p127
    %p129 = scmp.ne.s32.totalorder %s115, %s116
    %p130 = scmp.eq.s32.totalorder %s19, 1
    %p131 = por %p129, %p130
    %p133 = scmp.ne.s32.totalorder %s116, %s132
    %p134 = scmp.eq.s32.totalorder %s19, 0
    %p135 = por %p133, %p134
    %s136 = ssub.s32 %s13, %s20
    %p137 = scmp.eq.s32.totalorder %s136, 0
    %s139 = sadd.s32 %s138, 1
    %s140 = scalar_select %p137, %s138, %s139
    %p143 = pneg %p137
    %p144 = scmp.eq.s32.totalorder %s13, 1
    %p145 = por %p143, %p144
    %p146 = scmp.ne.s32.totalorder %s138, %s141
    %p147 = scmp.eq.s32.totalorder %s13, 0
    %p148 = por %p146, %p147
    %p149 = scmp.ne.s32.totalorder %s138, %s141
    %p150 = scmp.eq.s32.totalorder %s18, 1
    %p151 = por %p149, %p150
    %p152 = scmp.ne.s32.totalorder %s141, %s142
    %p153 = scmp.eq.s32.totalorder %s18, 0
    %p154 = por %p152, %p153
    %p155 = scmp.ne.s32.totalorder %s141, %s142
    %p156 = scmp.eq.s32.totalorder %s19, 1
    %p157 = por %p155, %p156
    %p159 = scmp.ne.s32.totalorder %s142, %s158
    %p160 = scmp.eq.s32.totalorder %s19, 0
    %p161 = por %p159, %p160
    %s162 = ssub.s32 %s13, %s20
    %p163 = scmp.eq.s32.totalorder %s162, 0
    %s165 = sadd.s32 %s164, 1
    %s166 = scalar_select %p163, %s164, %s165
    %p169 = pneg %p163
    %p170 = scmp.eq.s32.totalorder %s13, 1
    %p171 = por %p169, %p170
    %p172 = scmp.ne.s32.totalorder %s164, %s167
    %p173 = scmp.eq.s32.totalorder %s13, 0
    %p174 = por %p172, %p173
    %p175 = scmp.ne.s32.totalorder %s164, %s167
    %p176 = scmp.eq.s32.totalorder %s18, 1
    %p177 = por %p175, %p176
    %p178 = scmp.ne.s32.totalorder %s167, %s168
    %p179 = scmp.eq.s32.totalorder %s18, 0
    %p180 = por %p178, %p179
    %p181 = scmp.ne.s32.totalorder %s167, %s168
    %p182 = scmp.eq.s32.totalorder %s19, 1
    %p183 = por %p181, %p182
    %p185 = scmp.ne.s32.totalorder %s168, %s184
    %p186 = scmp.eq.s32.totalorder %s19, 0
    %p187 = por %p185, %p186
    %p188 = scmp.le.s32.totalorder 1, %s13
    %p189 = scmp.lt.s32.totalorder %s13, 3
    %p190 = pnand %p188, %p189
    %p191 = pneg %p190
    // Predicated region
    $region9: #{bottleneck_forward_nhwc.5} parent=5 // pred_check
      _
    $region10: #{bottleneck_forward_nhwc.5} parent=5 // pred_check_branch
      %193 = sbr.rel (%p190) target = $region12
    $region11: #{bottleneck_forward_nhwc.5} parent=5 // pred_region
      %s194 = ssub.s32 %s13, 1
      // Predicated region
      $region13: #{bottleneck_forward_nhwc.5} parent=11 // pred_check
        %p195 = pneg %p60
      $region14: #{bottleneck_forward_nhwc.5} parent=11 // pred_check_branch
        %197 = sbr.rel (%p195) target = $region16
      $region15: #{bottleneck_forward_nhwc.5} parent=11 // pred_region
        _
      $region16: #{bottleneck_forward_nhwc.5} parent=11 // pred_fallthru
        _
      // Predicated region
      $region17: #{bottleneck_forward_nhwc.5} parent=11 // pred_check
        %p198 = pneg %p81
      $region18: #{bottleneck_forward_nhwc.5} parent=11 // pred_check_branch
        %200 = sbr.rel (%p198) target = $region20
      $region19: #{bottleneck_forward_nhwc.5} parent=11 // pred_region
        _
      $region20: #{bottleneck_forward_nhwc.5} parent=11 // pred_fallthru
        _
      // Predicated region
      $region21: #{bottleneck_forward_nhwc.5} parent=11 // pred_check
        %p201 = pneg %p102
      $region22: #{bottleneck_forward_nhwc.5} parent=11 // pred_check_branch
        %203 = sbr.rel (%p201) target = $region24
      $region23: #{bottleneck_forward_nhwc.5} parent=11 // pred_region
        _
      $region24: #{bottleneck_forward_nhwc.5} parent=11 // pred_fallthru
        _
    $region12: #{bottleneck_forward_nhwc.5} parent=5 // pred_fallthru
      _
    %p204 = scmp.lt.s32.totalorder %s13, 2
    // Predicated region
    $region25: #{bottleneck_forward_nhwc.5} parent=5 // pred_check
      %p205 = pneg %p204
    $region26: #{bottleneck_forward_nhwc.5} parent=5 // pred_check_branch
      %207 = sbr.rel (%p205) target = $region28
    $region27: #{bottleneck_forward_nhwc.5} parent=5 // pred_region
      // Predicated region
      $region29: #{bottleneck_forward_nhwc.5} parent=27 // pred_check
        %p208 = pneg %p33
      $region30: #{bottleneck_forward_nhwc.5} parent=27 // pred_check_branch
        %210 = sbr.rel (%p208) target = $region32
      $region31: #{bottleneck_forward_nhwc.5} parent=27 // pred_region
        %p211 = scmp.lt.s32.totalorder %s13, 1
        %s212 = scalar_select %p211, %s13, 1
        %s213 = smul.addr %s212, 32
        %s214 = smul.addr %s213, 4
        %s215 = scalar_lea.vmem %s0, %s214
      $region32: #{bottleneck_forward_nhwc.5} parent=27 // pred_fallthru
        _
    $region28: #{bottleneck_forward_nhwc.5} parent=5 // pred_fallthru
      _
    %p216 = scmp.le.s32.totalorder 1, %s13
    %p217 = scmp.lt.s32.totalorder %s13, 3
    %p218 = pnand %p216, %p217
    %p219 = pneg %p218
    // Predicated region
    $region33: #{bottleneck_forward_nhwc.5} parent=5 // pred_check
      _
    $region34: #{bottleneck_forward_nhwc.5} parent=5 // pred_check_branch
      %221 = sbr.rel (%p218) target = $region36
    $region35: #{bottleneck_forward_nhwc.5} parent=5 // pred_region
      %s222 = ssub.s32 %s13, 1
      %p223 = scmp.lt.s32.totalorder %s18, 1
      %s224 = scalar_select %p223, %s18, 1
      %s225 = smul.addr %s224, 32
      %s226 = smul.addr %s225, 4
      %s227 = scalar_lea.vmem %s0, %s226
      %p228 = pneg %p39
      %p229 = pneg %p36
      %p230 = pneg %p60
      %p231 = pneg %p57
      %p232 = pneg %p81
      %p233 = pneg %p78
      %p234 = pneg %p102
      %p235 = pneg %p99
      %p236 = pneg %p128
      %p237 = pneg %p125
      %p238 = scmp.lt.s32.totalorder %s18, 1
      %s239 = scalar_select %p238, %s18, 1
      %s240 = smul.addr %s239, 32
      %s241 = smul.addr %s240, 4
      %s242 = scalar_lea.vmem %s4, %s241
      %p243 = pneg %p154
      %p244 = pneg %p151
      %p245 = scmp.lt.s32.totalorder %s18, 1
      %s246 = scalar_select %p245, %s18, 1
      %s247 = scalar_lea.vmem %s5, %s246
      %p248 = pneg %p180
      %p249 = pneg %p177
      %p250 = scmp.lt.s32.totalorder %s18, 1
      %s251 = scalar_select %p250, %s18, 1
      %s252 = scalar_lea.vmem %s6, %s251
      %p253 = scmp.lt.s32.totalorder %s18, 1
      %s254 = scalar_select %p253, %s18, 1
      %s255 = smul.addr %s254, 32
      %s256 = smul.addr %s255, 4
      %s257 = scalar_lea.vmem %s0, %s256
      %p258 = scmp.lt.s32.totalorder %s18, 1
      %s259 = scalar_select %p258, %s18, 1
      %s260 = smul.addr %s259, 32
      %s261 = smul.addr %s260, 4
      %s262 = scalar_lea.vmem %s4, %s261
      %p263 = scmp.lt.s32.totalorder %s18, 1
      %s264 = scalar_select %p263, %s18, 1
      %s265 = scalar_lea.vmem %s5, %s264
      %p266 = scmp.lt.s32.totalorder %s18, 1
      %s267 = scalar_select %p266, %s18, 1
      %s268 = scalar_lea.vmem %s6, %s267
      %v270 = vld [vmem:[%s257] sm:$0xf]
      %v271 = vld [vmem:[%s257 + $0x4] sm:$0xf]
      %v272 = vld [vmem:[%s257 + $0x8] sm:$0xf]
      %v273 = vld [vmem:[%s257 + $0xc] sm:$0xf]
      %v274 = vld [vmem:[%s257 + $0x10] sm:$0xf]
      %v275 = vld [vmem:[%s257 + $0x14] sm:$0xf]
      %v276 = vld [vmem:[%s257 + $0x18] sm:$0xf]
      %v277 = vld [vmem:[%s257 + $0x1c] sm:$0xf]
      %v278 = vld [vmem:[%s257 + $0x20] sm:$0xf]
      %v279 = vld [vmem:[%s257 + $0x24] sm:$0xf]
      %v280 = vld [vmem:[%s257 + $0x28] sm:$0xf]
      %v281 = vld [vmem:[%s257 + $0x2c] sm:$0xf]
      %v282 = vld [vmem:[%s257 + $0x30] sm:$0xf]
      %v283 = vld [vmem:[%s257 + $0x34] sm:$0xf]
      %v284 = vld [vmem:[%s257 + $0x38] sm:$0xf]
      %v285 = vld [vmem:[%s257 + $0x3c] sm:$0xf]
      %v286 = vld [vmem:[%s257 + $0x40] sm:$0xf]
      %v287 = vld [vmem:[%s257 + $0x44] sm:$0xf]
      %v288 = vld [vmem:[%s257 + $0x48] sm:$0xf]
      %v289 = vld [vmem:[%s257 + $0x4c] sm:$0xf]
      %v290 = vld [vmem:[%s257 + $0x50] sm:$0xf]
      %v291 = vld [vmem:[%s257 + $0x54] sm:$0xf]
      %v292 = vld [vmem:[%s257 + $0x58] sm:$0xf]
      %v293 = vld [vmem:[%s257 + $0x5c] sm:$0xf]
      %v294 = vld [vmem:[%s257 + $0x60] sm:$0xf]
      %v295 = vld [vmem:[%s257 + $0x64] sm:$0xf]
      %v296 = vld [vmem:[%s257 + $0x68] sm:$0xf]
      %v297 = vld [vmem:[%s257 + $0x6c] sm:$0xf]
      %v298 = vld [vmem:[%s257 + $0x70] sm:$0xf]
      %v299 = vld [vmem:[%s257 + $0x74] sm:$0xf]
      %v300 = vld [vmem:[%s257 + $0x78] sm:$0xf]
      %v301 = vld [vmem:[%s257 + $0x7c] sm:$0xf]
      %v302 = vunpack.c.l.bf16 %v270
      %v303 = vunpack.c.l.bf16 %v271
      %v304 = vunpack.c.l.bf16 %v272
      %v305 = vunpack.c.l.bf16 %v273
      %v306 = vunpack.c.l.bf16 %v274
      %v307 = vunpack.c.l.bf16 %v275
      %v308 = vunpack.c.l.bf16 %v276
      %v309 = vunpack.c.l.bf16 %v277
      %v310 = vunpack.c.l.bf16 %v278
      %v311 = vunpack.c.l.bf16 %v279
      %v312 = vunpack.c.l.bf16 %v280
      %v313 = vunpack.c.l.bf16 %v281
      %v314 = vunpack.c.l.bf16 %v282
      %v315 = vunpack.c.l.bf16 %v283
      %v316 = vunpack.c.l.bf16 %v284
      %v317 = vunpack.c.l.bf16 %v285
      %v318 = vunpack.c.l.bf16 %v286
      %v319 = vunpack.c.l.bf16 %v287
      %v320 = vunpack.c.l.bf16 %v288
      %v321 = vunpack.c.l.bf16 %v289
      %v322 = vunpack.c.l.bf16 %v290
      %v323 = vunpack.c.l.bf16 %v291
      %v324 = vunpack.c.l.bf16 %v292
      %v325 = vunpack.c.l.bf16 %v293
      %v326 = vunpack.c.l.bf16 %v294
      %v327 = vunpack.c.l.bf16 %v295
      %v328 = vunpack.c.l.bf16 %v296
      %v329 = vunpack.c.l.bf16 %v297
      %v330 = vunpack.c.l.bf16 %v298
      %v331 = vunpack.c.l.bf16 %v299
      %v332 = vunpack.c.l.bf16 %v300
      %v333 = vunpack.c.l.bf16 %v301
      %v334 = vld [vmem:[%s1] sm:$0x1]
      %v336 = vlaneseq
      %v337 = vshrl.u32 %v336, 7
      %v338 = vsub.s32 0, %v337
      %v339 = vrot.slane %v334, %v338
      %v341 = vmul.f32 %v302, %v339
      %v342 = vmul.f32 %v303, %v339
      %v343 = vmul.f32 %v304, %v339
      %v344 = vmul.f32 %v305, %v339
      %v345 = vmul.f32 %v306, %v339
      %v346 = vmul.f32 %v307, %v339
      %v347 = vmul.f32 %v308, %v339
      %v348 = vmul.f32 %v309, %v339
      %v349 = vmul.f32 %v310, %v339
      %v350 = vmul.f32 %v311, %v339
      %v351 = vmul.f32 %v312, %v339
      %v352 = vmul.f32 %v313, %v339
      %v353 = vmul.f32 %v314, %v339
      %v354 = vmul.f32 %v315, %v339
      %v355 = vmul.f32 %v316, %v339
      %v356 = vmul.f32 %v317, %v339
      %v357 = vmul.f32 %v318, %v339
      %v358 = vmul.f32 %v319, %v339
      %v359 = vmul.f32 %v320, %v339
      %v360 = vmul.f32 %v321, %v339
      %v361 = vmul.f32 %v322, %v339
      %v362 = vmul.f32 %v323, %v339
      %v363 = vmul.f32 %v324, %v339
      %v364 = vmul.f32 %v325, %v339
      %v365 = vmul.f32 %v326, %v339
      %v366 = vmul.f32 %v327, %v339
      %v367 = vmul.f32 %v328, %v339
      %v368 = vmul.f32 %v329, %v339
      %v369 = vmul.f32 %v330, %v339
      %v370 = vmul.f32 %v331, %v339
      %v371 = vmul.f32 %v332, %v339
      %v372 = vmul.f32 %v333, %v339
      %v373 = vld [vmem:[%s2] sm:$0x1]
      %v375 = vlaneseq
      %v376 = vshrl.u32 %v375, 7
      %v377 = vsub.s32 0, %v376
      %v378 = vrot.slane %v373, %v377
      %v380 = vadd.f32 %v341, %v378
      %v381 = vadd.f32 %v342, %v378
      %v382 = vadd.f32 %v343, %v378
      %v383 = vadd.f32 %v344, %v378
      %v384 = vadd.f32 %v345, %v378
      %v385 = vadd.f32 %v346, %v378
      %v386 = vadd.f32 %v347, %v378
      %v387 = vadd.f32 %v348, %v378
      %v388 = vadd.f32 %v349, %v378
      %v389 = vadd.f32 %v350, %v378
      %v390 = vadd.f32 %v351, %v378
      %v391 = vadd.f32 %v352, %v378
      %v392 = vadd.f32 %v353, %v378
      %v393 = vadd.f32 %v354, %v378
      %v394 = vadd.f32 %v355, %v378
      %v395 = vadd.f32 %v356, %v378
      %v396 = vadd.f32 %v357, %v378
      %v397 = vadd.f32 %v358, %v378
      %v398 = vadd.f32 %v359, %v378
      %v399 = vadd.f32 %v360, %v378
      %v400 = vadd.f32 %v361, %v378
      %v401 = vadd.f32 %v362, %v378
      %v402 = vadd.f32 %v363, %v378
      %v403 = vadd.f32 %v364, %v378
      %v404 = vadd.f32 %v365, %v378
      %v405 = vadd.f32 %v366, %v378
      %v406 = vadd.f32 %v367, %v378
      %v407 = vadd.f32 %v368, %v378
      %v408 = vadd.f32 %v369, %v378
      %v409 = vadd.f32 %v370, %v378
      %v410 = vadd.f32 %v371, %v378
      %v411 = vadd.f32 %v372, %v378
      %v412 = vmax.f32 %v380, 0.0
      %v413 = vmax.f32 %v381, 0.0
      %v414 = vmax.f32 %v382, 0.0
      %v415 = vmax.f32 %v383, 0.0
      %v416 = vmax.f32 %v384, 0.0
      %v417 = vmax.f32 %v385, 0.0
      %v418 = vmax.f32 %v386, 0.0
      %v419 = vmax.f32 %v387, 0.0
      %v420 = vmax.f32 %v388, 0.0
      %v421 = vmax.f32 %v389, 0.0
      %v422 = vmax.f32 %v390, 0.0
      %v423 = vmax.f32 %v391, 0.0
      %v424 = vmax.f32 %v392, 0.0
      %v425 = vmax.f32 %v393, 0.0
      %v426 = vmax.f32 %v394, 0.0
      %v427 = vmax.f32 %v395, 0.0
      %v428 = vmax.f32 %v396, 0.0
      %v429 = vmax.f32 %v397, 0.0
      %v430 = vmax.f32 %v398, 0.0
      %v431 = vmax.f32 %v399, 0.0
      %v432 = vmax.f32 %v400, 0.0
      %v433 = vmax.f32 %v401, 0.0
      %v434 = vmax.f32 %v402, 0.0
      %v435 = vmax.f32 %v403, 0.0
      %v436 = vmax.f32 %v404, 0.0
      %v437 = vmax.f32 %v405, 0.0
      %v438 = vmax.f32 %v406, 0.0
      %v439 = vmax.f32 %v407, 0.0
      %v440 = vmax.f32 %v408, 0.0
      %v441 = vmax.f32 %v409, 0.0
      %v442 = vmax.f32 %v410, 0.0
      %v443 = vmax.f32 %v411, 0.0
      %v444 = vpack.c.bf16 %v413, %v412
      %v445 = vpack.c.bf16 %v415, %v414
      %v446 = vpack.c.bf16 %v417, %v416
      %v447 = vpack.c.bf16 %v419, %v418
      %v448 = vpack.c.bf16 %v421, %v420
      %v449 = vpack.c.bf16 %v423, %v422
      %v450 = vpack.c.bf16 %v425, %v424
      %v451 = vpack.c.bf16 %v427, %v426
      %v452 = vpack.c.bf16 %v429, %v428
      %v453 = vpack.c.bf16 %v431, %v430
      %v454 = vpack.c.bf16 %v433, %v432
      %v455 = vpack.c.bf16 %v435, %v434
      %v456 = vpack.c.bf16 %v437, %v436
      %v457 = vpack.c.bf16 %v439, %v438
      %v458 = vpack.c.bf16 %v441, %v440
      %v459 = vpack.c.bf16 %v443, %v442
      %vm460 = vcmask 257024
      %461 = vst.msk [vmem:[#allocation2] sm:$0xf] %vm460, 0
      %462 = vst.msk [vmem:[#allocation2 + $0x4] sm:$0xf] %vm460, 0
      %vm463 = vcmask 253952
      %464 = vst.msk [vmem:[#allocation2 + $0x8] sm:$0x1] %vm463, 0
      %s465 = scalar_lea.vmem [#allocation2], 204
      %466 = vst.msk [vmem:[%s465] sm:$0xf] %vm460, 0
      %467 = vst.msk [vmem:[%s465 + $0x4] sm:$0xf] %vm460, 0
      %468 = vst.msk [vmem:[%s465 + $0x8] sm:$0x1] %vm463, 0
      %s469 = scalar_lea.vmem [#allocation2], 12
      %vm470 = vcmask 253952
      %vm471 = vsmask.f32 256
      %vm472 = vmand %vm470, %vm471
      %v473 = vld [vmem:[%s469] sm:$0x1]
      %v474 = vsel %vm472, 0, %v473
      %475 = vst [vmem:[%s469] sm:$0x1] %v474
      %v476 = vld [vmem:[%s469 + $0xc] sm:$0x1]
      %v477 = vsel %vm472, 0, %v476
      %478 = vst [vmem:[%s469 + $0xc] sm:$0x1] %v477
      %v479 = vld [vmem:[%s469 + $0x18] sm:$0x1]
      %v480 = vsel %vm472, 0, %v479
      %481 = vst [vmem:[%s469 + $0x18] sm:$0x1] %v480
      %v482 = vld [vmem:[%s469 + $0x24] sm:$0x1]
      %v483 = vsel %vm472, 0, %v482
      %484 = vst [vmem:[%s469 + $0x24] sm:$0x1] %v483
      %v485 = vld [vmem:[%s469 + $0x30] sm:$0x1]
      %v486 = vsel %vm472, 0, %v485
      %487 = vst [vmem:[%s469 + $0x30] sm:$0x1] %v486
      %v488 = vld [vmem:[%s469 + $0x3c] sm:$0x1]
      %v489 = vsel %vm472, 0, %v488
      %490 = vst [vmem:[%s469 + $0x3c] sm:$0x1] %v489
      %v491 = vld [vmem:[%s469 + $0x48] sm:$0x1]
      %v492 = vsel %vm472, 0, %v491
      %493 = vst [vmem:[%s469 + $0x48] sm:$0x1] %v492
      %v494 = vld [vmem:[%s469 + $0x54] sm:$0x1]
      %v495 = vsel %vm472, 0, %v494
      %496 = vst [vmem:[%s469 + $0x54] sm:$0x1] %v495
      %v497 = vld [vmem:[%s469 + $0x60] sm:$0x1]
      %v498 = vsel %vm472, 0, %v497
      %499 = vst [vmem:[%s469 + $0x60] sm:$0x1] %v498
      %v500 = vld [vmem:[%s469 + $0x6c] sm:$0x1]
      %v501 = vsel %vm472, 0, %v500
      %502 = vst [vmem:[%s469 + $0x6c] sm:$0x1] %v501
      %v503 = vld [vmem:[%s469 + $0x78] sm:$0x1]
      %v504 = vsel %vm472, 0, %v503
      %505 = vst [vmem:[%s469 + $0x78] sm:$0x1] %v504
      %v506 = vld [vmem:[%s469 + $0x84] sm:$0x1]
      %v507 = vsel %vm472, 0, %v506
      %508 = vst [vmem:[%s469 + $0x84] sm:$0x1] %v507
      %v509 = vld [vmem:[%s469 + $0x90] sm:$0x1]
      %v510 = vsel %vm472, 0, %v509
      %511 = vst [vmem:[%s469 + $0x90] sm:$0x1] %v510
      %v512 = vld [vmem:[%s469 + $0x9c] sm:$0x1]
      %v513 = vsel %vm472, 0, %v512
      %514 = vst [vmem:[%s469 + $0x9c] sm:$0x1] %v513
      %v515 = vld [vmem:[%s469 + $0xa8] sm:$0x1]
      %v516 = vsel %vm472, 0, %v515
      %517 = vst [vmem:[%s469 + $0xa8] sm:$0x1] %v516
      %v518 = vld [vmem:[%s469 + $0xb4] sm:$0x1]
      %v519 = vsel %vm472, 0, %v518
      %520 = vst [vmem:[%s469 + $0xb4] sm:$0x1] %v519
      %vm521 = vsmask.f32 7938
      %vm522 = vmand %vm470, %vm521
      %v523 = vld [vmem:[%s469 + $0x8] sm:$0x1]
      %v524 = vsel %vm522, 0, %v523
      %525 = vst [vmem:[%s469 + $0x8] sm:$0x1] %v524
      %v526 = vld [vmem:[%s469 + $0x14] sm:$0x1]
      %v527 = vsel %vm522, 0, %v526
      %528 = vst [vmem:[%s469 + $0x14] sm:$0x1] %v527
      %v529 = vld [vmem:[%s469 + $0x20] sm:$0x1]
      %v530 = vsel %vm522, 0, %v529
      %531 = vst [vmem:[%s469 + $0x20] sm:$0x1] %v530
      %v532 = vld [vmem:[%s469 + $0x2c] sm:$0x1]
      %v533 = vsel %vm522, 0, %v532
      %534 = vst [vmem:[%s469 + $0x2c] sm:$0x1] %v533
      %v535 = vld [vmem:[%s469 + $0x38] sm:$0x1]
      %v536 = vsel %vm522, 0, %v535
      %537 = vst [vmem:[%s469 + $0x38] sm:$0x1] %v536
      %v538 = vld [vmem:[%s469 + $0x44] sm:$0x1]
      %v539 = vsel %vm522, 0, %v538
      %540 = vst [vmem:[%s469 + $0x44] sm:$0x1] %v539
      %v541 = vld [vmem:[%s469 + $0x50] sm:$0x1]
      %v542 = vsel %vm522, 0, %v541
      %543 = vst [vmem:[%s469 + $0x50] sm:$0x1] %v542
      %v544 = vld [vmem:[%s469 + $0x5c] sm:$0x1]
      %v545 = vsel %vm522, 0, %v544
      %546 = vst [vmem:[%s469 + $0x5c] sm:$0x1] %v545
      %v547 = vld [vmem:[%s469 + $0x68] sm:$0x1]
      %v548 = vsel %vm522, 0, %v547
      %549 = vst [vmem:[%s469 + $0x68] sm:$0x1] %v548
      %v550 = vld [vmem:[%s469 + $0x74] sm:$0x1]
      %v551 = vsel %vm522, 0, %v550
      %552 = vst [vmem:[%s469 + $0x74] sm:$0x1] %v551
      %v553 = vld [vmem:[%s469 + $0x80] sm:$0x1]
      %v554 = vsel %vm522, 0, %v553
      %555 = vst [vmem:[%s469 + $0x80] sm:$0x1] %v554
      %v556 = vld [vmem:[%s469 + $0x8c] sm:$0x1]
      %v557 = vsel %vm522, 0, %v556
      %558 = vst [vmem:[%s469 + $0x8c] sm:$0x1] %v557
      %v559 = vld [vmem:[%s469 + $0x98] sm:$0x1]
      %v560 = vsel %vm522, 0, %v559
      %561 = vst [vmem:[%s469 + $0x98] sm:$0x1] %v560
      %v562 = vld [vmem:[%s469 + $0xa4] sm:$0x1]
      %v563 = vsel %vm522, 0, %v562
      %564 = vst [vmem:[%s469 + $0xa4] sm:$0x1] %v563
      %v565 = vld [vmem:[%s469 + $0xb0] sm:$0x1]
      %v566 = vsel %vm522, 0, %v565
      %567 = vst [vmem:[%s469 + $0xb0] sm:$0x1] %v566
      %v568 = vld [vmem:[%s469 + $0xbc] sm:$0x1]
      %v569 = vsel %vm522, 0, %v568
      %570 = vst [vmem:[%s469 + $0xbc] sm:$0x1] %v569
      %v587 = vunpack.c.l.b16 %v444
      %v588 = vunpack.c.h.b16 %v444
      %v589 = vunpack.c.l.b16 %v445
      %v590 = vunpack.c.h.b16 %v445
      %v591 = vunpack.c.l.b16 %v446
      %v592 = vunpack.c.h.b16 %v446
      %v593 = vunpack.c.l.b16 %v447
      %v594 = vunpack.c.h.b16 %v447
      %v595 = vunpack.c.l.b16 %v448
      %v596 = vunpack.c.h.b16 %v448
      %v597 = vunpack.c.l.b16 %v449
      %v598 = vunpack.c.h.b16 %v449
      %v599 = vunpack.c.l.b16 %v450
      %v600 = vunpack.c.h.b16 %v450
      %v601 = vunpack.c.l.b16 %v451
      %v602 = vunpack.c.h.b16 %v451
      %v603 = vunpack.c.l.b16 %v452
      %v604 = vunpack.c.h.b16 %v452
      %v605 = vunpack.c.l.b16 %v453
      %v606 = vunpack.c.h.b16 %v453
      %v607 = vunpack.c.l.b16 %v454
      %v608 = vunpack.c.h.b16 %v454
      %v609 = vunpack.c.l.b16 %v455
      %v610 = vunpack.c.h.b16 %v455
      %v611 = vunpack.c.l.b16 %v456
      %v612 = vunpack.c.h.b16 %v456
      %v613 = vunpack.c.l.b16 %v457
      %v614 = vunpack.c.h.b16 %v457
      %v615 = vunpack.c.l.b16 %v458
      %v616 = vunpack.c.h.b16 %v458
      %v617 = vunpack.c.l.b16 %v459
      %v618 = vunpack.c.h.b16 %v459
      %v619 = vpack.c.b16 %v587, %v587
      %v620 = vpack.c.b16 %v588, %v588
      %v621 = vpack.c.b16 %v589, %v589
      %v622 = vpack.c.b16 %v590, %v590
      %v623 = vpack.c.b16 %v591, %v591
      %v624 = vpack.c.b16 %v592, %v592
      %v625 = vpack.c.b16 %v593, %v593
      %v626 = vpack.c.b16 %v594, %v594
      %v627 = vpack.c.b16 %v595, %v595
      %v628 = vpack.c.b16 %v596, %v596
      %v629 = vpack.c.b16 %v597, %v597
      %v630 = vpack.c.b16 %v598, %v598
      %v631 = vpack.c.b16 %v599, %v599
      %v632 = vpack.c.b16 %v600, %v600
      %v633 = vpack.c.b16 %v601, %v601
      %v634 = vpack.c.b16 %v602, %v602
      %v635 = vpack.c.b16 %v603, %v603
      %v636 = vpack.c.b16 %v604, %v604
      %v637 = vpack.c.b16 %v605, %v605
      %v638 = vpack.c.b16 %v606, %v606
      %v639 = vpack.c.b16 %v607, %v607
      %v640 = vpack.c.b16 %v608, %v608
      %v641 = vpack.c.b16 %v609, %v609
      %v642 = vpack.c.b16 %v610, %v610
      %v643 = vpack.c.b16 %v611, %v611
      %v644 = vpack.c.b16 %v612, %v612
      %v645 = vpack.c.b16 %v613, %v613
      %v646 = vpack.c.b16 %v614, %v614
      %v647 = vpack.c.b16 %v615, %v615
      %v648 = vpack.c.b16 %v616, %v616
      %v649 = vpack.c.b16 %v617, %v617
      %v650 = vpack.c.b16 %v618, %v618
      %vm651 = vsmask.f32 4368
      %vm652 = vmor %vm471, %vm651
      %v654 = vshrl.u32 %v619, 16
      %v656 = vrot.slane %v654, 7
      %v657 = vshll.u32 %v619, 16
      %v659 = vor.u32 %v656, %v657
      %v660 = vrot.slane %v656, 4
      %v662 = vshrl.u32 %v620, 16
      %v664 = vrot.slane %v662, 7
      %v665 = vshll.u32 %v620, 16
      %v667 = vor.u32 %v664, %v665
      %v668 = vsel %vm652, %v660, %v667
      %v669 = vrot.slane %v664, 4
      %v671 = vshrl.u32 %v621, 16
      %v673 = vrot.slane %v671, 7
      %v674 = vshll.u32 %v621, 16
      %v676 = vor.u32 %v673, %v674
      %v677 = vrot.slane %v673, 4
      %v679 = vshrl.u32 %v622, 16
      %v681 = vrot.slane %v679, 7
      %v682 = vshll.u32 %v622, 16
      %v684 = vor.u32 %v681, %v682
      %v685 = vsel %vm652, %v677, %v684
      %v686 = vrot.slane %v681, 4
      %v688 = vshrl.u32 %v623, 16
      %v690 = vrot.slane %v688, 7
      %v691 = vshll.u32 %v623, 16
      %v693 = vor.u32 %v690, %v691
      %v694 = vrot.slane %v690, 4
      %v696 = vshrl.u32 %v624, 16
      %v698 = vrot.slane %v696, 7
      %v699 = vshll.u32 %v624, 16
      %v701 = vor.u32 %v698, %v699
      %v702 = vsel %vm652, %v694, %v701
      %v703 = vrot.slane %v698, 4
      %v705 = vshrl.u32 %v625, 16
      %v707 = vrot.slane %v705, 7
      %v708 = vshll.u32 %v625, 16
      %v710 = vor.u32 %v707, %v708
      %v711 = vrot.slane %v707, 4
      %v713 = vshrl.u32 %v626, 16
      %v715 = vrot.slane %v713, 7
      %v716 = vshll.u32 %v626, 16
      %v718 = vor.u32 %v715, %v716
      %v719 = vsel %vm652, %v711, %v718
      %v720 = vrot.slane %v715, 4
      %v722 = vshrl.u32 %v627, 16
      %v724 = vrot.slane %v722, 7
      %v725 = vshll.u32 %v627, 16
      %v727 = vor.u32 %v724, %v725
      %v728 = vrot.slane %v724, 4
      %v730 = vshrl.u32 %v628, 16
      %v732 = vrot.slane %v730, 7
      %v733 = vshll.u32 %v628, 16
      %v735 = vor.u32 %v732, %v733
      %v736 = vsel %vm652, %v728, %v735
      %v737 = vrot.slane %v732, 4
      %v739 = vshrl.u32 %v629, 16
      %v741 = vrot.slane %v739, 7
      %v742 = vshll.u32 %v629, 16
      %v744 = vor.u32 %v741, %v742
      %v745 = vrot.slane %v741, 4
      %v747 = vshrl.u32 %v630, 16
      %v749 = vrot.slane %v747, 7
      %v750 = vshll.u32 %v630, 16
      %v752 = vor.u32 %v749, %v750
      %v753 = vsel %vm652, %v745, %v752
      %v754 = vrot.slane %v749, 4
      %v756 = vshrl.u32 %v631, 16
      %v758 = vrot.slane %v756, 7
      %v759 = vshll.u32 %v631, 16
      %v761 = vor.u32 %v758, %v759
      %v762 = vrot.slane %v758, 4
      %v764 = vshrl.u32 %v632, 16
      %v766 = vrot.slane %v764, 7
      %v767 = vshll.u32 %v632, 16
      %v769 = vor.u32 %v766, %v767
      %v770 = vsel %vm652, %v762, %v769
      %v771 = vrot.slane %v766, 4
      %v773 = vshrl.u32 %v633, 16
      %v775 = vrot.slane %v773, 7
      %v776 = vshll.u32 %v633, 16
      %v778 = vor.u32 %v775, %v776
      %v779 = vrot.slane %v775, 4
      %v781 = vshrl.u32 %v634, 16
      %v783 = vrot.slane %v781, 7
      %v784 = vshll.u32 %v634, 16
      %v786 = vor.u32 %v783, %v784
      %v787 = vsel %vm652, %v779, %v786
      %v788 = vrot.slane %v783, 4
      %v790 = vshrl.u32 %v635, 16
      %v792 = vrot.slane %v790, 7
      %v793 = vshll.u32 %v635, 16
      %v795 = vor.u32 %v792, %v793
      %v796 = vrot.slane %v792, 4
      %v798 = vshrl.u32 %v636, 16
      %v800 = vrot.slane %v798, 7
      %v801 = vshll.u32 %v636, 16
      %v803 = vor.u32 %v800, %v801
      %v804 = vsel %vm652, %v796, %v803
      %v805 = vrot.slane %v800, 4
      %v807 = vshrl.u32 %v637, 16
      %v809 = vrot.slane %v807, 7
      %v810 = vshll.u32 %v637, 16
      %v812 = vor.u32 %v809, %v810
      %v813 = vrot.slane %v809, 4
      %v815 = vshrl.u32 %v638, 16
      %v817 = vrot.slane %v815, 7
      %v818 = vshll.u32 %v638, 16
      %v820 = vor.u32 %v817, %v818
      %v821 = vsel %vm652, %v813, %v820
      %v822 = vrot.slane %v817, 4
      %v824 = vshrl.u32 %v639, 16
      %v826 = vrot.slane %v824, 7
      %v827 = vshll.u32 %v639, 16
      %v829 = vor.u32 %v826, %v827
      %v830 = vrot.slane %v826, 4
      %v832 = vshrl.u32 %v640, 16
      %v834 = vrot.slane %v832, 7
      %v835 = vshll.u32 %v640, 16
      %v837 = vor.u32 %v834, %v835
      %v838 = vsel %vm652, %v830, %v837
      %v839 = vrot.slane %v834, 4
      %v841 = vshrl.u32 %v641, 16
      %v843 = vrot.slane %v841, 7
      %v844 = vshll.u32 %v641, 16
      %v846 = vor.u32 %v843, %v844
      %v847 = vrot.slane %v843, 4
      %v849 = vshrl.u32 %v642, 16
      %v851 = vrot.slane %v849, 7
      %v852 = vshll.u32 %v642, 16
      %v854 = vor.u32 %v851, %v852
      %v855 = vsel %vm652, %v847, %v854
      %v856 = vrot.slane %v851, 4
      %v858 = vshrl.u32 %v643, 16
      %v860 = vrot.slane %v858, 7
      %v861 = vshll.u32 %v643, 16
      %v863 = vor.u32 %v860, %v861
      %v864 = vrot.slane %v860, 4
      %v866 = vshrl.u32 %v644, 16
      %v868 = vrot.slane %v866, 7
      %v869 = vshll.u32 %v644, 16
      %v871 = vor.u32 %v868, %v869
      %v872 = vsel %vm652, %v864, %v871
      %v873 = vrot.slane %v868, 4
      %v875 = vshrl.u32 %v645, 16
      %v877 = vrot.slane %v875, 7
      %v878 = vshll.u32 %v645, 16
      %v880 = vor.u32 %v877, %v878
      %v881 = vrot.slane %v877, 4
      %v883 = vshrl.u32 %v646, 16
      %v885 = vrot.slane %v883, 7
      %v886 = vshll.u32 %v646, 16
      %v888 = vor.u32 %v885, %v886
      %v889 = vsel %vm652, %v881, %v888
      %v890 = vrot.slane %v885, 4
      %v892 = vshrl.u32 %v647, 16
      %v894 = vrot.slane %v892, 7
      %v895 = vshll.u32 %v647, 16
      %v897 = vor.u32 %v894, %v895
      %v898 = vrot.slane %v894, 4
      %v900 = vshrl.u32 %v648, 16
      %v902 = vrot.slane %v900, 7
      %v903 = vshll.u32 %v648, 16
      %v905 = vor.u32 %v902, %v903
      %v906 = vsel %vm652, %v898, %v905
      %v907 = vrot.slane %v902, 4
      %v909 = vshrl.u32 %v649, 16
      %v911 = vrot.slane %v909, 7
      %v912 = vshll.u32 %v649, 16
      %v914 = vor.u32 %v911, %v912
      %v915 = vrot.slane %v911, 4
      %v917 = vshrl.u32 %v650, 16
      %v919 = vrot.slane %v917, 7
      %v920 = vshll.u32 %v650, 16
      %v922 = vor.u32 %v919, %v920
      %v923 = vsel %vm652, %v915, %v922
      %v924 = vrot.slane %v919, 4
      %vm973 = vcmask 257024
      %vm974 = vmand %vm973, %vm521
      %v975 = vld [vmem:[%s469] sm:$0xf]
      %v976 = vsel %vm974, %v659, %v975
      %977 = vst [vmem:[%s469] sm:$0xf] %v976
      %978 = vst.msk [vmem:[%s469 + $0x4] sm:$0xf] %vm460, %v668
      %v979 = vld [vmem:[%s469 + $0x8] sm:$0x1]
      %v980 = vsel %vm472, %v669, %v979
      %981 = vst [vmem:[%s469 + $0x8] sm:$0x1] %v980
      %v982 = vld [vmem:[%s469 + $0xc] sm:$0xf]
      %v983 = vsel %vm974, %v676, %v982
      %984 = vst [vmem:[%s469 + $0xc] sm:$0xf] %v983
      %985 = vst.msk [vmem:[%s469 + $0x10] sm:$0xf] %vm460, %v685
      %v986 = vld [vmem:[%s469 + $0x14] sm:$0x1]
      %v987 = vsel %vm472, %v686, %v986
      %988 = vst [vmem:[%s469 + $0x14] sm:$0x1] %v987
      %v989 = vld [vmem:[%s469 + $0x18] sm:$0xf]
      %v990 = vsel %vm974, %v693, %v989
      %991 = vst [vmem:[%s469 + $0x18] sm:$0xf] %v990
      %992 = vst.msk [vmem:[%s469 + $0x1c] sm:$0xf] %vm460, %v702
      %v993 = vld [vmem:[%s469 + $0x20] sm:$0x1]
      %v994 = vsel %vm472, %v703, %v993
      %995 = vst [vmem:[%s469 + $0x20] sm:$0x1] %v994
      %v996 = vld [vmem:[%s469 + $0x24] sm:$0xf]
      %v997 = vsel %vm974, %v710, %v996
      %998 = vst [vmem:[%s469 + $0x24] sm:$0xf] %v997
      %999 = vst.msk [vmem:[%s469 + $0x28] sm:$0xf] %vm460, %v719
      %v1000 = vld [vmem:[%s469 + $0x2c] sm:$0x1]
      %v1001 = vsel %vm472, %v720, %v1000
      %1002 = vst [vmem:[%s469 + $0x2c] sm:$0x1] %v1001
      %v1003 = vld [vmem:[%s469 + $0x30] sm:$0xf]
      %v1004 = vsel %vm974, %v727, %v1003
      %1005 = vst [vmem:[%s469 + $0x30] sm:$0xf] %v1004
      %1006 = vst.msk [vmem:[%s469 + $0x34] sm:$0xf] %vm460, %v736
      %v1007 = vld [vmem:[%s469 + $0x38] sm:$0x1]
      %v1008 = vsel %vm472, %v737, %v1007
      %1009 = vst [vmem:[%s469 + $0x38] sm:$0x1] %v1008
      %v1010 = vld [vmem:[%s469 + $0x3c] sm:$0xf]
      %v1011 = vsel %vm974, %v744, %v1010
      %1012 = vst [vmem:[%s469 + $0x3c] sm:$0xf] %v1011
      %1013 = vst.msk [vmem:[%s469 + $0x40] sm:$0xf] %vm460, %v753
      %v1014 = vld [vmem:[%s469 + $0x44] sm:$0x1]
      %v1015 = vsel %vm472, %v754, %v1014
      %1016 = vst [vmem:[%s469 + $0x44] sm:$0x1] %v1015
      %v1017 = vld [vmem:[%s469 + $0x48] sm:$0xf]
      %v1018 = vsel %vm974, %v761, %v1017
      %1019 = vst [vmem:[%s469 + $0x48] sm:$0xf] %v1018
      %1020 = vst.msk [vmem:[%s469 + $0x4c] sm:$0xf] %vm460, %v770
      %v1021 = vld [vmem:[%s469 + $0x50] sm:$0x1]
      %v1022 = vsel %vm472, %v771, %v1021
      %1023 = vst [vmem:[%s469 + $0x50] sm:$0x1] %v1022
      %v1024 = vld [vmem:[%s469 + $0x54] sm:$0xf]
      %v1025 = vsel %vm974, %v778, %v1024
      %1026 = vst [vmem:[%s469 + $0x54] sm:$0xf] %v1025
      %1027 = vst.msk [vmem:[%s469 + $0x58] sm:$0xf] %vm460, %v787
      %v1028 = vld [vmem:[%s469 + $0x5c] sm:$0x1]
      %v1029 = vsel %vm472, %v788, %v1028
      %1030 = vst [vmem:[%s469 + $0x5c] sm:$0x1] %v1029
      %v1031 = vld [vmem:[%s469 + $0x60] sm:$0xf]
      %v1032 = vsel %vm974, %v795, %v1031
      %1033 = vst [vmem:[%s469 + $0x60] sm:$0xf] %v1032
      %1034 = vst.msk [vmem:[%s469 + $0x64] sm:$0xf] %vm460, %v804
      %v1035 = vld [vmem:[%s469 + $0x68] sm:$0x1]
      %v1036 = vsel %vm472, %v805, %v1035
      %1037 = vst [vmem:[%s469 + $0x68] sm:$0x1] %v1036
      %v1038 = vld [vmem:[%s469 + $0x6c] sm:$0xf]
      %v1039 = vsel %vm974, %v812, %v1038
      %1040 = vst [vmem:[%s469 + $0x6c] sm:$0xf] %v1039
      %1041 = vst.msk [vmem:[%s469 + $0x70] sm:$0xf] %vm460, %v821
      %v1042 = vld [vmem:[%s469 + $0x74] sm:$0x1]
      %v1043 = vsel %vm472, %v822, %v1042
      %1044 = vst [vmem:[%s469 + $0x74] sm:$0x1] %v1043
      %v1045 = vld [vmem:[%s469 + $0x78] sm:$0xf]
      %v1046 = vsel %vm974, %v829, %v1045
      %1047 = vst [vmem:[%s469 + $0x78] sm:$0xf] %v1046
      %1048 = vst.msk [vmem:[%s469 + $0x7c] sm:$0xf] %vm460, %v838
      %v1049 = vld [vmem:[%s469 + $0x80] sm:$0x1]
      %v1050 = vsel %vm472, %v839, %v1049
      %1051 = vst [vmem:[%s469 + $0x80] sm:$0x1] %v1050
      %v1052 = vld [vmem:[%s469 + $0x84] sm:$0xf]
      %v1053 = vsel %vm974, %v846, %v1052
      %1054 = vst [vmem:[%s469 + $0x84] sm:$0xf] %v1053
      %1055 = vst.msk [vmem:[%s469 + $0x88] sm:$0xf] %vm460, %v855
      %v1056 = vld [vmem:[%s469 + $0x8c] sm:$0x1]
      %v1057 = vsel %vm472, %v856, %v1056
      %1058 = vst [vmem:[%s469 + $0x8c] sm:$0x1] %v1057
      %v1059 = vld [vmem:[%s469 + $0x90] sm:$0xf]
      %v1060 = vsel %vm974, %v863, %v1059
      %1061 = vst [vmem:[%s469 + $0x90] sm:$0xf] %v1060
      %1062 = vst.msk [vmem:[%s469 + $0x94] sm:$0xf] %vm460, %v872
      %v1063 = vld [vmem:[%s469 + $0x98] sm:$0x1]
      %v1064 = vsel %vm472, %v873, %v1063
      %1065 = vst [vmem:[%s469 + $0x98] sm:$0x1] %v1064
      %v1066 = vld [vmem:[%s469 + $0x9c] sm:$0xf]
      %v1067 = vsel %vm974, %v880, %v1066
      %1068 = vst [vmem:[%s469 + $0x9c] sm:$0xf] %v1067
      %1069 = vst.msk [vmem:[%s469 + $0xa0] sm:$0xf] %vm460, %v889
      %v1070 = vld [vmem:[%s469 + $0xa4] sm:$0x1]
      %v1071 = vsel %vm472, %v890, %v1070
      %1072 = vst [vmem:[%s469 + $0xa4] sm:$0x1] %v1071
      %v1073 = vld [vmem:[%s469 + $0xa8] sm:$0xf]
      %v1074 = vsel %vm974, %v897, %v1073
      %1075 = vst [vmem:[%s469 + $0xa8] sm:$0xf] %v1074
      %1076 = vst.msk [vmem:[%s469 + $0xac] sm:$0xf] %vm460, %v906
      %v1077 = vld [vmem:[%s469 + $0xb0] sm:$0x1]
      %v1078 = vsel %vm472, %v907, %v1077
      %1079 = vst [vmem:[%s469 + $0xb0] sm:$0x1] %v1078
      %v1080 = vld [vmem:[%s469 + $0xb4] sm:$0xf]
      %v1081 = vsel %vm974, %v914, %v1080
      %1082 = vst [vmem:[%s469 + $0xb4] sm:$0xf] %v1081
      %1083 = vst.msk [vmem:[%s469 + $0xb8] sm:$0xf] %vm460, %v923
      %v1084 = vld [vmem:[%s469 + $0xbc] sm:$0x1]
      %v1085 = vsel %vm472, %v924, %v1084
      %1086 = vst [vmem:[%s469 + $0xbc] sm:$0x1] %v1085
      %v1087 = vld [vmem:[#allocation2] sm:$0xf]
      %v1088 = vld [vmem:[#allocation2 + $0x4] sm:$0xf]
      %v1089 = vld [vmem:[#allocation2 + $0xc] sm:$0xf]
      %v1090 = vld [vmem:[#allocation2 + $0x10] sm:$0xf]
      %v1091 = vld [vmem:[#allocation2 + $0x18] sm:$0xf]
      %v1092 = vld [vmem:[#allocation2 + $0x1c] sm:$0xf]
      %v1093 = vld [vmem:[#allocation2 + $0x24] sm:$0xf]
      %v1094 = vld [vmem:[#allocation2 + $0x28] sm:$0xf]
      %v1095 = vld [vmem:[#allocation2 + $0x30] sm:$0xf]
      %v1096 = vld [vmem:[#allocation2 + $0x34] sm:$0xf]
      %v1097 = vld [vmem:[#allocation2 + $0x3c] sm:$0xf]
      %v1098 = vld [vmem:[#allocation2 + $0x40] sm:$0xf]
      %v1099 = vld [vmem:[#allocation2 + $0x48] sm:$0xf]
      %v1100 = vld [vmem:[#allocation2 + $0x4c] sm:$0xf]
      %v1101 = vld [vmem:[#allocation2 + $0x54] sm:$0xf]
      %v1102 = vld [vmem:[#allocation2 + $0x58] sm:$0xf]
      %v1103 = vld [vmem:[#allocation2 + $0x60] sm:$0xf]
      %v1104 = vld [vmem:[#allocation2 + $0x64] sm:$0xf]
      %v1105 = vld [vmem:[#allocation2 + $0x6c] sm:$0xf]
      %v1106 = vld [vmem:[#allocation2 + $0x70] sm:$0xf]
      %v1107 = vld [vmem:[#allocation2 + $0x78] sm:$0xf]
      %v1108 = vld [vmem:[#allocation2 + $0x7c] sm:$0xf]
      %v1109 = vld [vmem:[#allocation2 + $0x84] sm:$0xf]
      %v1110 = vld [vmem:[#allocation2 + $0x88] sm:$0xf]
      %v1111 = vld [vmem:[#allocation2 + $0x90] sm:$0xf]
      %v1112 = vld [vmem:[#allocation2 + $0x94] sm:$0xf]
      %v1113 = vld [vmem:[#allocation2 + $0x9c] sm:$0xf]
      %v1114 = vld [vmem:[#allocation2 + $0xa0] sm:$0xf]
      %v1115 = vld [vmem:[#allocation2 + $0xa8] sm:$0xf]
      %v1116 = vld [vmem:[#allocation2 + $0xac] sm:$0xf]
      %v1117 = vld [vmem:[#allocation2 + $0xb4] sm:$0xf]
      %v1118 = vld [vmem:[#allocation2 + $0xb8] sm:$0xf]
      %v1119 = vld [vmem:[%s3] sm:$0xf]
      %v1120 = vld [vmem:[%s3 + $0x4] sm:$0xf]
      %v1121 = vld [vmem:[%s3 + $0x8] sm:$0xf]
      %v1122 = vld [vmem:[%s3 + $0xc] sm:$0xf]
      %v1123 = vld [vmem:[#allocation2 + $0x8] sm:$0x1]
      %v1124 = vld [vmem:[#allocation2 + $0x14] sm:$0x1]
      %v1125 = vld [vmem:[#allocation2 + $0x20] sm:$0x1]
      %v1126 = vld [vmem:[#allocation2 + $0x2c] sm:$0x1]
      %v1127 = vld [vmem:[#allocation2 + $0x38] sm:$0x1]
      %v1128 = vld [vmem:[#allocation2 + $0x44] sm:$0x1]
      %v1129 = vld [vmem:[#allocation2 + $0x50] sm:$0x1]
      %v1130 = vld [vmem:[#allocation2 + $0x5c] sm:$0x1]
      %v1131 = vld [vmem:[#allocation2 + $0x68] sm:$0x1]
      %v1132 = vld [vmem:[#allocation2 + $0x74] sm:$0x1]
      %v1133 = vld [vmem:[#allocation2 + $0x80] sm:$0x1]
      %v1134 = vld [vmem:[#allocation2 + $0x8c] sm:$0x1]
      %v1135 = vld [vmem:[#allocation2 + $0x98] sm:$0x1]
      %v1136 = vld [vmem:[#allocation2 + $0xa4] sm:$0x1]
      %v1137 = vld [vmem:[#allocation2 + $0xb0] sm:$0x1]
      %v1138 = vld [vmem:[#allocation2 + $0xbc] sm:$0x1]
      %vm1139 = vsmask.f32 3328
      %vm1140 = vsmask.f32 7440
      %vm1141 = vmor %vm1139, %vm1140
      %v1143 = vshrl.u32 %v1087, 16
      %v1145 = vrot.slane %v1143, 4
      %v1146 = vshll.u32 %v1087, 16
      %v1148 = vrot.slane %v1146, 5
      %v1149 = vor.u32 %v1145, %v1148
      %v1150 = vrot.slane %v1149, 4
      %v1152 = vshll.u32 %v1088, 16
      %v1154 = vrot.slane %v1152, 5
      %v1155 = vsel %vm1141, %v1150, %v1154
      %v1156 = vshrl.u32 %v1088, 16
      %v1158 = vrot.slane %v1156, 4
      %v1159 = vor.u32 %v1158, %v1154
      %v1160 = vrot.slane %v1159, 4
      %v1162 = vshll.u32 %v1123, 16
      %v1164 = vrot.slane %v1162, 5
      %v1165 = vsel %vm1141, %v1160, %v1164
      %v1167 = vshrl.u32 %v1089, 16
      %v1169 = vrot.slane %v1167, 4
      %v1170 = vshll.u32 %v1089, 16
      %v1172 = vrot.slane %v1170, 5
      %v1173 = vor.u32 %v1169, %v1172
      %v1174 = vrot.slane %v1173, 4
      %v1176 = vshll.u32 %v1090, 16
      %v1178 = vrot.slane %v1176, 5
      %v1179 = vsel %vm1141, %v1174, %v1178
      %v1180 = vshrl.u32 %v1090, 16
      %v1182 = vrot.slane %v1180, 4
      %v1183 = vor.u32 %v1182, %v1178
      %v1184 = vrot.slane %v1183, 4
      %v1186 = vshll.u32 %v1124, 16
      %v1188 = vrot.slane %v1186, 5
      %v1189 = vsel %vm1141, %v1184, %v1188
      %v1191 = vshrl.u32 %v1091, 16
      %v1193 = vrot.slane %v1191, 4
      %v1194 = vshll.u32 %v1091, 16
      %v1196 = vrot.slane %v1194, 5
      %v1197 = vor.u32 %v1193, %v1196
      %v1198 = vrot.slane %v1197, 4
      %v1200 = vshll.u32 %v1092, 16
      %v1202 = vrot.slane %v1200, 5
      %v1203 = vsel %vm1141, %v1198, %v1202
      %v1204 = vshrl.u32 %v1092, 16
      %v1206 = vrot.slane %v1204, 4
      %v1207 = vor.u32 %v1206, %v1202
      %v1208 = vrot.slane %v1207, 4
      %v1210 = vshll.u32 %v1125, 16
      %v1212 = vrot.slane %v1210, 5
      %v1213 = vsel %vm1141, %v1208, %v1212
      %v1215 = vshrl.u32 %v1093, 16
      %v1217 = vrot.slane %v1215, 4
      %v1218 = vshll.u32 %v1093, 16
      %v1220 = vrot.slane %v1218, 5
      %v1221 = vor.u32 %v1217, %v1220
      %v1222 = vrot.slane %v1221, 4
      %v1224 = vshll.u32 %v1094, 16
      %v1226 = vrot.slane %v1224, 5
      %v1227 = vsel %vm1141, %v1222, %v1226
      %v1228 = vshrl.u32 %v1094, 16
      %v1230 = vrot.slane %v1228, 4
      %v1231 = vor.u32 %v1230, %v1226
      %v1232 = vrot.slane %v1231, 4
      %v1234 = vshll.u32 %v1126, 16
      %v1236 = vrot.slane %v1234, 5
      %v1237 = vsel %vm1141, %v1232, %v1236
      %v1239 = vshrl.u32 %v1095, 16
      %v1241 = vrot.slane %v1239, 4
      %v1242 = vshll.u32 %v1095, 16
      %v1244 = vrot.slane %v1242, 5
      %v1245 = vor.u32 %v1241, %v1244
      %v1246 = vrot.slane %v1245, 4
      %v1248 = vshll.u32 %v1096, 16
      %v1250 = vrot.slane %v1248, 5
      %v1251 = vsel %vm1141, %v1246, %v1250
      %v1252 = vshrl.u32 %v1096, 16
      %v1254 = vrot.slane %v1252, 4
      %v1255 = vor.u32 %v1254, %v1250
      %v1256 = vrot.slane %v1255, 4
      %v1258 = vshll.u32 %v1127, 16
      %v1260 = vrot.slane %v1258, 5
      %v1261 = vsel %vm1141, %v1256, %v1260
      %v1263 = vshrl.u32 %v1097, 16
      %v1265 = vrot.slane %v1263, 4
      %v1266 = vshll.u32 %v1097, 16
      %v1268 = vrot.slane %v1266, 5
      %v1269 = vor.u32 %v1265, %v1268
      %v1270 = vrot.slane %v1269, 4
      %v1272 = vshll.u32 %v1098, 16
      %v1274 = vrot.slane %v1272, 5
      %v1275 = vsel %vm1141, %v1270, %v1274
      %v1276 = vshrl.u32 %v1098, 16
      %v1278 = vrot.slane %v1276, 4
      %v1279 = vor.u32 %v1278, %v1274
      %v1280 = vrot.slane %v1279, 4
      %v1282 = vshll.u32 %v1128, 16
      %v1284 = vrot.slane %v1282, 5
      %v1285 = vsel %vm1141, %v1280, %v1284
      %v1287 = vshrl.u32 %v1099, 16
      %v1289 = vrot.slane %v1287, 4
      %v1290 = vshll.u32 %v1099, 16
      %v1292 = vrot.slane %v1290, 5
      %v1293 = vor.u32 %v1289, %v1292
      %v1294 = vrot.slane %v1293, 4
      %v1296 = vshll.u32 %v1100, 16
      %v1298 = vrot.slane %v1296, 5
      %v1299 = vsel %vm1141, %v1294, %v1298
      %v1300 = vshrl.u32 %v1100, 16
      %v1302 = vrot.slane %v1300, 4
      %v1303 = vor.u32 %v1302, %v1298
      %v1304 = vrot.slane %v1303, 4
      %v1306 = vshll.u32 %v1129, 16
      %v1308 = vrot.slane %v1306, 5
      %v1309 = vsel %vm1141, %v1304, %v1308
      %v1311 = vshrl.u32 %v1101, 16
      %v1313 = vrot.slane %v1311, 4
      %v1314 = vshll.u32 %v1101, 16
      %v1316 = vrot.slane %v1314, 5
      %v1317 = vor.u32 %v1313, %v1316
      %v1318 = vrot.slane %v1317, 4
      %v1320 = vshll.u32 %v1102, 16
      %v1322 = vrot.slane %v1320, 5
      %v1323 = vsel %vm1141, %v1318, %v1322
      %v1324 = vshrl.u32 %v1102, 16
      %v1326 = vrot.slane %v1324, 4
      %v1327 = vor.u32 %v1326, %v1322
      %v1328 = vrot.slane %v1327, 4
      %v1330 = vshll.u32 %v1130, 16
      %v1332 = vrot.slane %v1330, 5
      %v1333 = vsel %vm1141, %v1328, %v1332
      %v1335 = vshrl.u32 %v1103, 16
      %v1337 = vrot.slane %v1335, 4
      %v1338 = vshll.u32 %v1103, 16
      %v1340 = vrot.slane %v1338, 5
      %v1341 = vor.u32 %v1337, %v1340
      %v1342 = vrot.slane %v1341, 4
      %v1344 = vshll.u32 %v1104, 16
      %v1346 = vrot.slane %v1344, 5
      %v1347 = vsel %vm1141, %v1342, %v1346
      %v1348 = vshrl.u32 %v1104, 16
      %v1350 = vrot.slane %v1348, 4
      %v1351 = vor.u32 %v1350, %v1346
      %v1352 = vrot.slane %v1351, 4
      %v1354 = vshll.u32 %v1131, 16
      %v1356 = vrot.slane %v1354, 5
      %v1357 = vsel %vm1141, %v1352, %v1356
      %v1359 = vshrl.u32 %v1105, 16
      %v1361 = vrot.slane %v1359, 4
      %v1362 = vshll.u32 %v1105, 16
      %v1364 = vrot.slane %v1362, 5
      %v1365 = vor.u32 %v1361, %v1364
      %v1366 = vrot.slane %v1365, 4
      %v1368 = vshll.u32 %v1106, 16
      %v1370 = vrot.slane %v1368, 5
      %v1371 = vsel %vm1141, %v1366, %v1370
      %v1372 = vshrl.u32 %v1106, 16
      %v1374 = vrot.slane %v1372, 4
      %v1375 = vor.u32 %v1374, %v1370
      %v1376 = vrot.slane %v1375, 4
      %v1378 = vshll.u32 %v1132, 16
      %v1380 = vrot.slane %v1378, 5
      %v1381 = vsel %vm1141, %v1376, %v1380
      %v1383 = vshrl.u32 %v1107, 16
      %v1385 = vrot.slane %v1383, 4
      %v1386 = vshll.u32 %v1107, 16
      %v1388 = vrot.slane %v1386, 5
      %v1389 = vor.u32 %v1385, %v1388
      %v1390 = vrot.slane %v1389, 4
      %v1392 = vshll.u32 %v1108, 16
      %v1394 = vrot.slane %v1392, 5
      %v1395 = vsel %vm1141, %v1390, %v1394
      %v1396 = vshrl.u32 %v1108, 16
      %v1398 = vrot.slane %v1396, 4
      %v1399 = vor.u32 %v1398, %v1394
      %v1400 = vrot.slane %v1399, 4
      %v1402 = vshll.u32 %v1133, 16
      %v1404 = vrot.slane %v1402, 5
      %v1405 = vsel %vm1141, %v1400, %v1404
      %v1407 = vshrl.u32 %v1109, 16
      %v1409 = vrot.slane %v1407, 4
      %v1410 = vshll.u32 %v1109, 16
      %v1412 = vrot.slane %v1410, 5
      %v1413 = vor.u32 %v1409, %v1412
      %v1414 = vrot.slane %v1413, 4
      %v1416 = vshll.u32 %v1110, 16
      %v1418 = vrot.slane %v1416, 5
      %v1419 = vsel %vm1141, %v1414, %v1418
      %v1420 = vshrl.u32 %v1110, 16
      %v1422 = vrot.slane %v1420, 4
      %v1423 = vor.u32 %v1422, %v1418
      %v1424 = vrot.slane %v1423, 4
      %v1426 = vshll.u32 %v1134, 16
      %v1428 = vrot.slane %v1426, 5
      %v1429 = vsel %vm1141, %v1424, %v1428
      %v1431 = vshrl.u32 %v1111, 16
      %v1433 = vrot.slane %v1431, 4
      %v1434 = vshll.u32 %v1111, 16
      %v1436 = vrot.slane %v1434, 5
      %v1437 = vor.u32 %v1433, %v1436
      %v1438 = vrot.slane %v1437, 4
      %v1440 = vshll.u32 %v1112, 16
      %v1442 = vrot.slane %v1440, 5
      %v1443 = vsel %vm1141, %v1438, %v1442
      %v1444 = vshrl.u32 %v1112, 16
      %v1446 = vrot.slane %v1444, 4
      %v1447 = vor.u32 %v1446, %v1442
      %v1448 = vrot.slane %v1447, 4
      %v1450 = vshll.u32 %v1135, 16
      %v1452 = vrot.slane %v1450, 5
      %v1453 = vsel %vm1141, %v1448, %v1452
      %v1455 = vshrl.u32 %v1113, 16
      %v1457 = vrot.slane %v1455, 4
      %v1458 = vshll.u32 %v1113, 16
      %v1460 = vrot.slane %v1458, 5
      %v1461 = vor.u32 %v1457, %v1460
      %v1462 = vrot.slane %v1461, 4
      %v1464 = vshll.u32 %v1114, 16
      %v1466 = vrot.slane %v1464, 5
      %v1467 = vsel %vm1141, %v1462, %v1466
      %v1468 = vshrl.u32 %v1114, 16
      %v1470 = vrot.slane %v1468, 4
      %v1471 = vor.u32 %v1470, %v1466
      %v1472 = vrot.slane %v1471, 4
      %v1474 = vshll.u32 %v1136, 16
      %v1476 = vrot.slane %v1474, 5
      %v1477 = vsel %vm1141, %v1472, %v1476
      %v1479 = vshrl.u32 %v1115, 16
      %v1481 = vrot.slane %v1479, 4
      %v1482 = vshll.u32 %v1115, 16
      %v1484 = vrot.slane %v1482, 5
      %v1485 = vor.u32 %v1481, %v1484
      %v1486 = vrot.slane %v1485, 4
      %v1488 = vshll.u32 %v1116, 16
      %v1490 = vrot.slane %v1488, 5
      %v1491 = vsel %vm1141, %v1486, %v1490
      %v1492 = vshrl.u32 %v1116, 16
      %v1494 = vrot.slane %v1492, 4
      %v1495 = vor.u32 %v1494, %v1490
      %v1496 = vrot.slane %v1495, 4
      %v1498 = vshll.u32 %v1137, 16
      %v1500 = vrot.slane %v1498, 5
      %v1501 = vsel %vm1141, %v1496, %v1500
      %v1503 = vshrl.u32 %v1117, 16
      %v1505 = vrot.slane %v1503, 4
      %v1506 = vshll.u32 %v1117, 16
      %v1508 = vrot.slane %v1506, 5
      %v1509 = vor.u32 %v1505, %v1508
      %v1510 = vrot.slane %v1509, 4
      %v1512 = vshll.u32 %v1118, 16
      %v1514 = vrot.slane %v1512, 5
      %v1515 = vsel %vm1141, %v1510, %v1514
      %v1516 = vshrl.u32 %v1118, 16
      %v1518 = vrot.slane %v1516, 4
      %v1519 = vor.u32 %v1518, %v1514
      %v1520 = vrot.slane %v1519, 4
      %v1522 = vshll.u32 %v1138, 16
      %v1524 = vrot.slane %v1522, 5
      %v1525 = vsel %vm1141, %v1520, %v1524
      %v1526 = vld [vmem:[%s3 + $0x10] sm:$0xf]
      %v1527 = vld [vmem:[%s3 + $0x14] sm:$0xf]
      %v1528 = vld [vmem:[%s3 + $0x18] sm:$0xf]
      %v1529 = vld [vmem:[%s3 + $0x1c] sm:$0xf]
      %v1530 = vunpack.c.l.b16 %v1155
      %v1531 = vunpack.c.l.b16 %v1165
      %v1532 = vunpack.c.l.b16 %v1179
      %v1533 = vunpack.c.l.b16 %v1189
      %v1534 = vunpack.c.l.b16 %v1203
      %v1535 = vunpack.c.l.b16 %v1213
      %v1536 = vunpack.c.l.b16 %v1227
      %v1537 = vunpack.c.l.b16 %v1237
      %v1538 = vunpack.c.l.b16 %v1251
      %v1539 = vunpack.c.l.b16 %v1261
      %v1540 = vunpack.c.l.b16 %v1275
      %v1541 = vunpack.c.l.b16 %v1285
      %v1542 = vunpack.c.l.b16 %v1299
      %v1543 = vunpack.c.l.b16 %v1309
      %v1544 = vunpack.c.l.b16 %v1323
      %v1545 = vunpack.c.l.b16 %v1333
      %v1546 = vunpack.c.l.b16 %v1347
      %v1547 = vunpack.c.l.b16 %v1357
      %v1548 = vunpack.c.l.b16 %v1371
      %v1549 = vunpack.c.l.b16 %v1381
      %v1550 = vunpack.c.l.b16 %v1395
      %v1551 = vunpack.c.l.b16 %v1405
      %v1552 = vunpack.c.l.b16 %v1419
      %v1553 = vunpack.c.l.b16 %v1429
      %v1554 = vunpack.c.l.b16 %v1443
      %v1555 = vunpack.c.l.b16 %v1453
      %v1556 = vunpack.c.l.b16 %v1467
      %v1557 = vunpack.c.l.b16 %v1477
      %v1558 = vunpack.c.l.b16 %v1491
      %v1559 = vunpack.c.l.b16 %v1501
      %v1560 = vunpack.c.l.b16 %v1515
      %v1561 = vunpack.c.l.b16 %v1525
      %v1562 = vpack.c.b16 %v1531, %v1530
      %v1563 = vpack.c.b16 %v1533, %v1532
      %v1564 = vpack.c.b16 %v1535, %v1534
      %v1565 = vpack.c.b16 %v1537, %v1536
      %v1566 = vpack.c.b16 %v1539, %v1538
      %v1567 = vpack.c.b16 %v1541, %v1540
      %v1568 = vpack.c.b16 %v1543, %v1542
      %v1569 = vpack.c.b16 %v1545, %v1544
      %v1570 = vpack.c.b16 %v1547, %v1546
      %v1571 = vpack.c.b16 %v1549, %v1548
      %v1572 = vpack.c.b16 %v1551, %v1550
      %v1573 = vpack.c.b16 %v1553, %v1552
      %v1574 = vpack.c.b16 %v1555, %v1554
      %v1575 = vpack.c.b16 %v1557, %v1556
      %v1576 = vpack.c.b16 %v1559, %v1558
      %v1577 = vpack.c.b16 %v1561, %v1560
      %v1582 = vunpack.c.l.b16 %v1526
      %v1583 = vunpack.c.l.b16 %v1527
      %v1584 = vunpack.c.l.b16 %v1528
      %v1585 = vunpack.c.l.b16 %v1529
      %v1586 = vpack.c.b16 %v1583, %v1582
      %v1587 = vpack.c.b16 %v1585, %v1584
      %vm1590 = vcmask 261120
      %v1592 = vsel %vm1590, %v1562, 0
      %v1595 = vsel %vm1590, %v1563, 0
      %v1598 = vsel %vm1590, %v1564, 0
      %v1601 = vsel %vm1590, %v1565, 0
      %v1604 = vsel %vm1590, %v1566, 0
      %v1607 = vsel %vm1590, %v1567, 0
      %v1610 = vsel %vm1590, %v1568, 0
      %v1613 = vsel %vm1590, %v1569, 0
      %v1616 = vsel %vm1590, %v1570, 0
      %v1619 = vsel %vm1590, %v1571, 0
      %v1622 = vsel %vm1590, %v1572, 0
      %v1625 = vsel %vm1590, %v1573, 0
      %v1628 = vsel %vm1590, %v1574, 0
      %v1631 = vsel %vm1590, %v1575, 0
      %v1634 = vsel %vm1590, %v1576, 0
      %v1637 = vsel %vm1590, %v1577, 0
      %1639 = vmatprep.subr.bf16.mxu0 0
      %1640 = vmatpush1.bf16.msra.mxu0 0
      %1641 = vmatprep.subr.bf16.mxu0 0
      %1642 = vmatpush1.bf16.msra.mxu0 0
      %1643 = vmatprep.subr.bf16.mxu0 0
      %1644 = vmatpush1.bf16.msra.mxu0 0
      %1645 = vmatprep.subr.bf16.mxu0 0
      %1646 = vmatpush1.bf16.msra.mxu0 0
      %1647 = vmatprep.subr.bf16.mxu0 0
      %1648 = vmatpush1.bf16.msra.mxu0 0
      %1649 = vmatprep.subr.bf16.mxu0 0
      %1650 = vmatpush1.bf16.msra.mxu0 0
      %1651 = vmatprep.subr.bf16.mxu0 0
      %1652 = vmatpush1.bf16.msra.mxu0 %v1587
      %1653 = vmatprep.subr.bf16.mxu0 0
      %1654 = vmatpush1.bf16.msra.mxu0 %v1586
      %1655 = vmatprep.subr.bf16.mxu0 0
      %1656 = vmatpush2.bf16.msra.mxu0 0
      %1657 = vmatprep.subr.bf16.mxu0 0
      %1658 = vmatpush2.bf16.msra.mxu0 0
      %1659 = vmatprep.subr.bf16.mxu0 0
      %1660 = vmatpush2.bf16.msra.mxu0 0
      %1661 = vmatprep.subr.bf16.mxu0 0
      %1662 = vmatpush2.bf16.msra.mxu0 0
      %1663 = vmatprep.subr.bf16.mxu0 0
      %1664 = vmatpush2.bf16.msra.mxu0 0
      %1665 = vmatprep.subr.bf16.mxu0 0
      %1666 = vmatpush2.bf16.msra.mxu0 0
      %1667 = vmatprep.subr.bf16.mxu0 0
      %1668 = vmatpush2.bf16.msra.mxu0 0
      %1669 = vmatprep.subr.bf16.mxu0 0
      %1670 = vmatpush2.bf16.msra.mxu0 0
      %1671 = vmatprep.mubr.bf16.mxu0 0
      %1672 = vmatmul.mubr.bf16.gmra.mxu0 %v1592
      %v1673 = vpop.f32.mrf.mxu0
      %v1674 = vadd.f32 0.0, %v1673
      %v1675 = vpop.f32.mrf.mxu0
      %v1676 = vpop.f32.mrf.mxu0
      %v1677 = vadd.f32 0.0, %v1676
      %v1678 = vpop.f32.mrf.mxu0
      %1679 = vmatprep.mubr.bf16.mxu0 0
      %1680 = vmatmul.mubr.bf16.gmra.mxu0 %v1595
      %v1681 = vpop.f32.mrf.mxu0
      %v1682 = vadd.f32 0.0, %v1681
      %v1683 = vpop.f32.mrf.mxu0
      %v1684 = vpop.f32.mrf.mxu0
      %v1685 = vadd.f32 0.0, %v1684
      %v1686 = vpop.f32.mrf.mxu0
      %1687 = vmatprep.mubr.bf16.mxu0 0
      %1688 = vmatmul.mubr.bf16.gmra.mxu0 %v1598
      %v1689 = vpop.f32.mrf.mxu0
      %v1690 = vadd.f32 0.0, %v1689
      %v1691 = vpop.f32.mrf.mxu0
      %v1692 = vpop.f32.mrf.mxu0
      %v1693 = vadd.f32 0.0, %v1692
      %v1694 = vpop.f32.mrf.mxu0
      %1695 = vmatprep.mubr.bf16.mxu0 0
      %1696 = vmatmul.mubr.bf16.gmra.mxu0 %v1601
      %v1697 = vpop.f32.mrf.mxu0
      %v1698 = vadd.f32 0.0, %v1697
      %v1699 = vpop.f32.mrf.mxu0
      %v1700 = vpop.f32.mrf.mxu0
      %v1701 = vadd.f32 0.0, %v1700
      %v1702 = vpop.f32.mrf.mxu0
      %1703 = vmatprep.mubr.bf16.mxu0 0
      %1704 = vmatmul.mubr.bf16.gmra.mxu0 %v1604
      %v1705 = vpop.f32.mrf.mxu0
      %v1706 = vadd.f32 0.0, %v1705
      %v1707 = vpop.f32.mrf.mxu0
      %v1708 = vpop.f32.mrf.mxu0
      %v1709 = vadd.f32 0.0, %v1708
      %v1710 = vpop.f32.mrf.mxu0
      %1711 = vmatprep.mubr.bf16.mxu0 0
      %1712 = vmatmul.mubr.bf16.gmra.mxu0 %v1607
      %v1713 = vpop.f32.mrf.mxu0
      %v1714 = vadd.f32 0.0, %v1713
      %v1715 = vpop.f32.mrf.mxu0
      %v1716 = vpop.f32.mrf.mxu0
      %v1717 = vadd.f32 0.0, %v1716
      %v1718 = vpop.f32.mrf.mxu0
      %1719 = vmatprep.mubr.bf16.mxu0 0
      %1720 = vmatmul.mubr.bf16.gmra.mxu0 %v1610
      %v1721 = vpop.f32.mrf.mxu0
      %v1722 = vadd.f32 0.0, %v1721
      %v1723 = vpop.f32.mrf.mxu0
      %v1724 = vpop.f32.mrf.mxu0
      %v1725 = vadd.f32 0.0, %v1724
      %v1726 = vpop.f32.mrf.mxu0
      %1727 = vmatprep.mubr.bf16.mxu0 0
      %1728 = vmatmul.mubr.bf16.gmra.mxu0 %v1613
      %v1729 = vpop.f32.mrf.mxu0
      %v1730 = vadd.f32 0.0, %v1729
      %v1731 = vpop.f32.mrf.mxu0
      %v1732 = vpop.f32.mrf.mxu0
      %v1733 = vadd.f32 0.0, %v1732
      %v1734 = vpop.f32.mrf.mxu0
      %1735 = vmatprep.mubr.bf16.mxu0 0
      %1736 = vmatmul.mubr.bf16.gmra.mxu0 %v1616
      %v1737 = vpop.f32.mrf.mxu0
      %v1738 = vadd.f32 0.0, %v1737
      %v1739 = vpop.f32.mrf.mxu0
      %v1740 = vpop.f32.mrf.mxu0
      %v1741 = vadd.f32 0.0, %v1740
      %v1742 = vpop.f32.mrf.mxu0
      %1743 = vmatprep.mubr.bf16.mxu0 0
      %1744 = vmatmul.mubr.bf16.gmra.mxu0 %v1619
      %v1745 = vpop.f32.mrf.mxu0
      %v1746 = vadd.f32 0.0, %v1745
      %v1747 = vpop.f32.mrf.mxu0
      %v1748 = vpop.f32.mrf.mxu0
      %v1749 = vadd.f32 0.0, %v1748
      %v1750 = vpop.f32.mrf.mxu0
      %1751 = vmatprep.mubr.bf16.mxu0 0
      %1752 = vmatmul.mubr.bf16.gmra.mxu0 %v1622
      %v1753 = vpop.f32.mrf.mxu0
      %v1754 = vadd.f32 0.0, %v1753
      %v1755 = vpop.f32.mrf.mxu0
      %v1756 = vpop.f32.mrf.mxu0
      %v1757 = vadd.f32 0.0, %v1756
      %v1758 = vpop.f32.mrf.mxu0
      %1759 = vmatprep.mubr.bf16.mxu0 0
      %1760 = vmatmul.mubr.bf16.gmra.mxu0 %v1625
      %v1761 = vpop.f32.mrf.mxu0
      %v1762 = vadd.f32 0.0, %v1761
      %v1763 = vpop.f32.mrf.mxu0
      %v1764 = vpop.f32.mrf.mxu0
      %v1765 = vadd.f32 0.0, %v1764
      %v1766 = vpop.f32.mrf.mxu0
      %1767 = vmatprep.mubr.bf16.mxu0 0
      %1768 = vmatmul.mubr.bf16.gmra.mxu0 %v1628
      %v1769 = vpop.f32.mrf.mxu0
      %v1770 = vadd.f32 0.0, %v1769
      %v1771 = vpop.f32.mrf.mxu0
      %v1772 = vpop.f32.mrf.mxu0
      %v1773 = vadd.f32 0.0, %v1772
      %v1774 = vpop.f32.mrf.mxu0
      %1775 = vmatprep.mubr.bf16.mxu0 0
      %1776 = vmatmul.mubr.bf16.gmra.mxu0 %v1631
      %v1777 = vpop.f32.mrf.mxu0
      %v1778 = vadd.f32 0.0, %v1777
      %v1779 = vpop.f32.mrf.mxu0
      %v1780 = vpop.f32.mrf.mxu0
      %v1781 = vadd.f32 0.0, %v1780
      %v1782 = vpop.f32.mrf.mxu0
      %1783 = vmatprep.mubr.bf16.mxu0 0
      %1784 = vmatmul.mubr.bf16.gmra.mxu0 %v1634
      %v1785 = vpop.f32.mrf.mxu0
      %v1786 = vadd.f32 0.0, %v1785
      %v1787 = vpop.f32.mrf.mxu0
      %v1788 = vpop.f32.mrf.mxu0
      %v1789 = vadd.f32 0.0, %v1788
      %v1790 = vpop.f32.mrf.mxu0
      %1791 = vmatprep.mubr.bf16.mxu0 0
      %1792 = vmatmul.mubr.bf16.gmra.mxu0 %v1637
      %v1793 = vpop.f32.mrf.mxu0
      %v1794 = vadd.f32 0.0, %v1793
      %v1795 = vpop.f32.mrf.mxu0
      %v1796 = vpop.f32.mrf.mxu0
      %v1797 = vadd.f32 0.0, %v1796
      %v1798 = vpop.f32.mrf.mxu0
      %1799 = vdwg.mxu0
      %v1832 = vunpack.c.l.b16 %v1087
      %v1833 = vunpack.c.l.b16 %v1088
      %v1834 = vunpack.c.l.b16 %v1089
      %v1835 = vunpack.c.l.b16 %v1090
      %v1836 = vunpack.c.l.b16 %v1091
      %v1837 = vunpack.c.l.b16 %v1092
      %v1838 = vunpack.c.l.b16 %v1093
      %v1839 = vunpack.c.l.b16 %v1094
      %v1840 = vunpack.c.l.b16 %v1095
      %v1841 = vunpack.c.l.b16 %v1096
      %v1842 = vunpack.c.l.b16 %v1097
      %v1843 = vunpack.c.l.b16 %v1098
      %v1844 = vunpack.c.l.b16 %v1099
      %v1845 = vunpack.c.l.b16 %v1100
      %v1846 = vunpack.c.l.b16 %v1101
      %v1847 = vunpack.c.l.b16 %v1102
      %v1848 = vunpack.c.l.b16 %v1103
      %v1849 = vunpack.c.l.b16 %v1104
      %v1850 = vunpack.c.l.b16 %v1105
      %v1851 = vunpack.c.l.b16 %v1106
      %v1852 = vunpack.c.l.b16 %v1107
      %v1853 = vunpack.c.l.b16 %v1108
      %v1854 = vunpack.c.l.b16 %v1109
      %v1855 = vunpack.c.l.b16 %v1110
      %v1856 = vunpack.c.l.b16 %v1111
      %v1857 = vunpack.c.l.b16 %v1112
      %v1858 = vunpack.c.l.b16 %v1113
      %v1859 = vunpack.c.l.b16 %v1114
      %v1860 = vunpack.c.l.b16 %v1115
      %v1861 = vunpack.c.l.b16 %v1116
      %v1862 = vunpack.c.l.b16 %v1117
      %v1863 = vunpack.c.l.b16 %v1118
      %v1864 = vpack.c.b16 %v1833, %v1832
      %v1865 = vpack.c.b16 %v1835, %v1834
      %v1866 = vpack.c.b16 %v1837, %v1836
      %v1867 = vpack.c.b16 %v1839, %v1838
      %v1868 = vpack.c.b16 %v1841, %v1840
      %v1869 = vpack.c.b16 %v1843, %v1842
      %v1870 = vpack.c.b16 %v1845, %v1844
      %v1871 = vpack.c.b16 %v1847, %v1846
      %v1872 = vpack.c.b16 %v1849, %v1848
      %v1873 = vpack.c.b16 %v1851, %v1850
      %v1874 = vpack.c.b16 %v1853, %v1852
      %v1875 = vpack.c.b16 %v1855, %v1854
      %v1876 = vpack.c.b16 %v1857, %v1856
      %v1877 = vpack.c.b16 %v1859, %v1858
      %v1878 = vpack.c.b16 %v1861, %v1860
      %v1879 = vpack.c.b16 %v1863, %v1862
      %v1884 = vunpack.c.l.b16 %v1119
      %v1885 = vunpack.c.l.b16 %v1120
      %v1886 = vunpack.c.l.b16 %v1121
      %v1887 = vunpack.c.l.b16 %v1122
      %v1888 = vpack.c.b16 %v1885, %v1884
      %v1889 = vpack.c.b16 %v1887, %v1886
      %v1893 = vsel %vm1590, %v1864, 0
      %v1896 = vsel %vm1590, %v1865, 0
      %v1899 = vsel %vm1590, %v1866, 0
      %v1902 = vsel %vm1590, %v1867, 0
      %v1905 = vsel %vm1590, %v1868, 0
      %v1908 = vsel %vm1590, %v1869, 0
      %v1911 = vsel %vm1590, %v1870, 0
      %v1914 = vsel %vm1590, %v1871, 0
      %v1917 = vsel %vm1590, %v1872, 0
      %v1920 = vsel %vm1590, %v1873, 0
      %v1923 = vsel %vm1590, %v1874, 0
      %v1926 = vsel %vm1590, %v1875, 0
      %v1929 = vsel %vm1590, %v1876, 0
      %v1932 = vsel %vm1590, %v1877, 0
      %v1935 = vsel %vm1590, %v1878, 0
      %v1938 = vsel %vm1590, %v1879, 0
      %1940 = vmatprep.subr.bf16.mxu0 0
      %1941 = vmatpush1.bf16.msra.mxu0 0
      %1942 = vmatprep.subr.bf16.mxu0 0
      %1943 = vmatpush1.bf16.msra.mxu0 0
      %1944 = vmatprep.subr.bf16.mxu0 0
      %1945 = vmatpush1.bf16.msra.mxu0 0
      %1946 = vmatprep.subr.bf16.mxu0 0
      %1947 = vmatpush1.bf16.msra.mxu0 0
      %1948 = vmatprep.subr.bf16.mxu0 0
      %1949 = vmatpush1.bf16.msra.mxu0 0
      %1950 = vmatprep.subr.bf16.mxu0 0
      %1951 = vmatpush1.bf16.msra.mxu0 0
      %1952 = vmatprep.subr.bf16.mxu0 0
      %1953 = vmatpush1.bf16.msra.mxu0 %v1889
      %1954 = vmatprep.subr.bf16.mxu0 0
      %1955 = vmatpush1.bf16.msra.mxu0 %v1888
      %1956 = vmatprep.subr.bf16.mxu0 0
      %1957 = vmatpush2.bf16.msra.mxu0 0
      %1958 = vmatprep.subr.bf16.mxu0 0
      %1959 = vmatpush2.bf16.msra.mxu0 0
      %1960 = vmatprep.subr.bf16.mxu0 0
      %1961 = vmatpush2.bf16.msra.mxu0 0
      %1962 = vmatprep.subr.bf16.mxu0 0
      %1963 = vmatpush2.bf16.msra.mxu0 0
      %1964 = vmatprep.subr.bf16.mxu0 0
      %1965 = vmatpush2.bf16.msra.mxu0 0
      %1966 = vmatprep.subr.bf16.mxu0 0
      %1967 = vmatpush2.bf16.msra.mxu0 0
      %1968 = vmatprep.subr.bf16.mxu0 0
      %1969 = vmatpush2.bf16.msra.mxu0 0
      %1970 = vmatprep.subr.bf16.mxu0 0
      %1971 = vmatpush2.bf16.msra.mxu0 0
      %1972 = vmatprep.mubr.bf16.mxu0 0
      %1973 = vmatmul.mubr.bf16.gmra.mxu0 %v1893
      %v1974 = vpop.f32.mrf.mxu0
      %v1975 = vadd.f32 %v1674, %v1974
      %v1976 = vpop.f32.mrf.mxu0
      %v1977 = vpop.f32.mrf.mxu0
      %v1978 = vadd.f32 %v1677, %v1977
      %v1979 = vpop.f32.mrf.mxu0
      %1980 = vmatprep.mubr.bf16.mxu0 0
      %1981 = vmatmul.mubr.bf16.gmra.mxu0 %v1896
      %v1982 = vpop.f32.mrf.mxu0
      %v1983 = vadd.f32 %v1682, %v1982
      %v1984 = vpop.f32.mrf.mxu0
      %v1985 = vpop.f32.mrf.mxu0
      %v1986 = vadd.f32 %v1685, %v1985
      %v1987 = vpop.f32.mrf.mxu0
      %1988 = vmatprep.mubr.bf16.mxu0 0
      %1989 = vmatmul.mubr.bf16.gmra.mxu0 %v1899
      %v1990 = vpop.f32.mrf.mxu0
      %v1991 = vadd.f32 %v1690, %v1990
      %v1992 = vpop.f32.mrf.mxu0
      %v1993 = vpop.f32.mrf.mxu0
      %v1994 = vadd.f32 %v1693, %v1993
      %v1995 = vpop.f32.mrf.mxu0
      %1996 = vmatprep.mubr.bf16.mxu0 0
      %1997 = vmatmul.mubr.bf16.gmra.mxu0 %v1902
      %v1998 = vpop.f32.mrf.mxu0
      %v1999 = vadd.f32 %v1698, %v1998
      %v2000 = vpop.f32.mrf.mxu0
      %v2001 = vpop.f32.mrf.mxu0
      %v2002 = vadd.f32 %v1701, %v2001
      %v2003 = vpop.f32.mrf.mxu0
      %2004 = vmatprep.mubr.bf16.mxu0 0
      %2005 = vmatmul.mubr.bf16.gmra.mxu0 %v1905
      %v2006 = vpop.f32.mrf.mxu0
      %v2007 = vadd.f32 %v1706, %v2006
      %v2008 = vpop.f32.mrf.mxu0
      %v2009 = vpop.f32.mrf.mxu0
      %v2010 = vadd.f32 %v1709, %v2009
      %v2011 = vpop.f32.mrf.mxu0
      %2012 = vmatprep.mubr.bf16.mxu0 0
      %2013 = vmatmul.mubr.bf16.gmra.mxu0 %v1908
      %v2014 = vpop.f32.mrf.mxu0
      %v2015 = vadd.f32 %v1714, %v2014
      %v2016 = vpop.f32.mrf.mxu0
      %v2017 = vpop.f32.mrf.mxu0
      %v2018 = vadd.f32 %v1717, %v2017
      %v2019 = vpop.f32.mrf.mxu0
      %2020 = vmatprep.mubr.bf16.mxu0 0
      %2021 = vmatmul.mubr.bf16.gmra.mxu0 %v1911
      %v2022 = vpop.f32.mrf.mxu0
      %v2023 = vadd.f32 %v1722, %v2022
      %v2024 = vpop.f32.mrf.mxu0
      %v2025 = vpop.f32.mrf.mxu0
      %v2026 = vadd.f32 %v1725, %v2025
      %v2027 = vpop.f32.mrf.mxu0
      %2028 = vmatprep.mubr.bf16.mxu0 0
      %2029 = vmatmul.mubr.bf16.gmra.mxu0 %v1914
      %v2030 = vpop.f32.mrf.mxu0
      %v2031 = vadd.f32 %v1730, %v2030
      %v2032 = vpop.f32.mrf.mxu0
      %v2033 = vpop.f32.mrf.mxu0
      %v2034 = vadd.f32 %v1733, %v2033
      %v2035 = vpop.f32.mrf.mxu0
      %2036 = vmatprep.mubr.bf16.mxu0 0
      %2037 = vmatmul.mubr.bf16.gmra.mxu0 %v1917
      %v2038 = vpop.f32.mrf.mxu0
      %v2039 = vadd.f32 %v1738, %v2038
      %v2040 = vpop.f32.mrf.mxu0
      %v2041 = vpop.f32.mrf.mxu0
      %v2042 = vadd.f32 %v1741, %v2041
      %v2043 = vpop.f32.mrf.mxu0
      %2044 = vmatprep.mubr.bf16.mxu0 0
      %2045 = vmatmul.mubr.bf16.gmra.mxu0 %v1920
      %v2046 = vpop.f32.mrf.mxu0
      %v2047 = vadd.f32 %v1746, %v2046
      %v2048 = vpop.f32.mrf.mxu0
      %v2049 = vpop.f32.mrf.mxu0
      %v2050 = vadd.f32 %v1749, %v2049
      %v2051 = vpop.f32.mrf.mxu0
      %2052 = vmatprep.mubr.bf16.mxu0 0
      %2053 = vmatmul.mubr.bf16.gmra.mxu0 %v1923
      %v2054 = vpop.f32.mrf.mxu0
      %v2055 = vadd.f32 %v1754, %v2054
      %v2056 = vpop.f32.mrf.mxu0
      %v2057 = vpop.f32.mrf.mxu0
      %v2058 = vadd.f32 %v1757, %v2057
      %v2059 = vpop.f32.mrf.mxu0
      %2060 = vmatprep.mubr.bf16.mxu0 0
      %2061 = vmatmul.mubr.bf16.gmra.mxu0 %v1926
      %v2062 = vpop.f32.mrf.mxu0
      %v2063 = vadd.f32 %v1762, %v2062
      %v2064 = vpop.f32.mrf.mxu0
      %v2065 = vpop.f32.mrf.mxu0
      %v2066 = vadd.f32 %v1765, %v2065
      %v2067 = vpop.f32.mrf.mxu0
      %2068 = vmatprep.mubr.bf16.mxu0 0
      %2069 = vmatmul.mubr.bf16.gmra.mxu0 %v1929
      %v2070 = vpop.f32.mrf.mxu0
      %v2071 = vadd.f32 %v1770, %v2070
      %v2072 = vpop.f32.mrf.mxu0
      %v2073 = vpop.f32.mrf.mxu0
      %v2074 = vadd.f32 %v1773, %v2073
      %v2075 = vpop.f32.mrf.mxu0
      %2076 = vmatprep.mubr.bf16.mxu0 0
      %2077 = vmatmul.mubr.bf16.gmra.mxu0 %v1932
      %v2078 = vpop.f32.mrf.mxu0
      %v2079 = vadd.f32 %v1778, %v2078
      %v2080 = vpop.f32.mrf.mxu0
      %v2081 = vpop.f32.mrf.mxu0
      %v2082 = vadd.f32 %v1781, %v2081
      %v2083 = vpop.f32.mrf.mxu0
      %2084 = vmatprep.mubr.bf16.mxu0 0
      %2085 = vmatmul.mubr.bf16.gmra.mxu0 %v1935
      %v2086 = vpop.f32.mrf.mxu0
      %v2087 = vadd.f32 %v1786, %v2086
      %v2088 = vpop.f32.mrf.mxu0
      %v2089 = vpop.f32.mrf.mxu0
      %v2090 = vadd.f32 %v1789, %v2089
      %v2091 = vpop.f32.mrf.mxu0
      %2092 = vmatprep.mubr.bf16.mxu0 0
      %2093 = vmatmul.mubr.bf16.gmra.mxu0 %v1938
      %v2094 = vpop.f32.mrf.mxu0
      %v2095 = vadd.f32 %v1794, %v2094
      %v2096 = vpop.f32.mrf.mxu0
      %v2097 = vpop.f32.mrf.mxu0
      %v2098 = vadd.f32 %v1797, %v2097
      %v2099 = vpop.f32.mrf.mxu0
      %2100 = vdwg.mxu0
      %v2101 = vld [vmem:[#allocation2] sm:$0xe]
      %v2102 = vld [vmem:[#allocation2 + $0xc] sm:$0xe]
      %v2103 = vld [vmem:[#allocation2 + $0x18] sm:$0xe]
      %v2104 = vld [vmem:[#allocation2 + $0x24] sm:$0xe]
      %v2105 = vld [vmem:[#allocation2 + $0x30] sm:$0xe]
      %v2106 = vld [vmem:[#allocation2 + $0x3c] sm:$0xe]
      %v2107 = vld [vmem:[#allocation2 + $0x48] sm:$0xe]
      %v2108 = vld [vmem:[#allocation2 + $0x54] sm:$0xe]
      %v2109 = vld [vmem:[#allocation2 + $0x60] sm:$0xe]
      %v2110 = vld [vmem:[#allocation2 + $0x6c] sm:$0xe]
      %v2111 = vld [vmem:[#allocation2 + $0x78] sm:$0xe]
      %v2112 = vld [vmem:[#allocation2 + $0x84] sm:$0xe]
      %v2113 = vld [vmem:[#allocation2 + $0x90] sm:$0xe]
      %v2114 = vld [vmem:[#allocation2 + $0x9c] sm:$0xe]
      %v2115 = vld [vmem:[#allocation2 + $0xa8] sm:$0xe]
      %v2116 = vld [vmem:[#allocation2 + $0xb4] sm:$0xe]
      %vm2149 = vcmask 1042432
      %vm2150 = vcmask 1046532
      %vm2151 = vmor %vm2149, %vm2150
      %v2152 = vrot.slane %v2101, 5
      %v2153 = vrot.slane %v2152, 4
      %v2154 = vrot.slane %v1088, 5
      %v2155 = vsel %vm2151, %v2153, %v2154
      %v2156 = vrot.slane %v2154, 4
      %v2157 = vrot.slane %v1123, 5
      %v2158 = vsel %vm2151, %v2156, %v2157
      %v2159 = vrot.slane %v2102, 5
      %v2160 = vrot.slane %v2159, 4
      %v2161 = vrot.slane %v1090, 5
      %v2162 = vsel %vm2151, %v2160, %v2161
      %v2163 = vrot.slane %v2161, 4
      %v2164 = vrot.slane %v1124, 5
      %v2165 = vsel %vm2151, %v2163, %v2164
      %v2166 = vrot.slane %v2103, 5
      %v2167 = vrot.slane %v2166, 4
      %v2168 = vrot.slane %v1092, 5
      %v2169 = vsel %vm2151, %v2167, %v2168
      %v2170 = vrot.slane %v2168, 4
      %v2171 = vrot.slane %v1125, 5
      %v2172 = vsel %vm2151, %v2170, %v2171
      %v2173 = vrot.slane %v2104, 5
      %v2174 = vrot.slane %v2173, 4
      %v2175 = vrot.slane %v1094, 5
      %v2176 = vsel %vm2151, %v2174, %v2175
      %v2177 = vrot.slane %v2175, 4
      %v2178 = vrot.slane %v1126, 5
      %v2179 = vsel %vm2151, %v2177, %v2178
      %v2180 = vrot.slane %v2105, 5
      %v2181 = vrot.slane %v2180, 4
      %v2182 = vrot.slane %v1096, 5
      %v2183 = vsel %vm2151, %v2181, %v2182
      %v2184 = vrot.slane %v2182, 4
      %v2185 = vrot.slane %v1127, 5
      %v2186 = vsel %vm2151, %v2184, %v2185
      %v2187 = vrot.slane %v2106, 5
      %v2188 = vrot.slane %v2187, 4
      %v2189 = vrot.slane %v1098, 5
      %v2190 = vsel %vm2151, %v2188, %v2189
      %v2191 = vrot.slane %v2189, 4
      %v2192 = vrot.slane %v1128, 5
      %v2193 = vsel %vm2151, %v2191, %v2192
      %v2194 = vrot.slane %v2107, 5
      %v2195 = vrot.slane %v2194, 4
      %v2196 = vrot.slane %v1100, 5
      %v2197 = vsel %vm2151, %v2195, %v2196
      %v2198 = vrot.slane %v2196, 4
      %v2199 = vrot.slane %v1129, 5
      %v2200 = vsel %vm2151, %v2198, %v2199
      %v2201 = vrot.slane %v2108, 5
      %v2202 = vrot.slane %v2201, 4
      %v2203 = vrot.slane %v1102, 5
      %v2204 = vsel %vm2151, %v2202, %v2203
      %v2205 = vrot.slane %v2203, 4
      %v2206 = vrot.slane %v1130, 5
      %v2207 = vsel %vm2151, %v2205, %v2206
      %v2208 = vrot.slane %v2109, 5
      %v2209 = vrot.slane %v2208, 4
      %v2210 = vrot.slane %v1104, 5
      %v2211 = vsel %vm2151, %v2209, %v2210
      %v2212 = vrot.slane %v2210, 4
      %v2213 = vrot.slane %v1131, 5
      %v2214 = vsel %vm2151, %v2212, %v2213
      %v2215 = vrot.slane %v2110, 5
      %v2216 = vrot.slane %v2215, 4
      %v2217 = vrot.slane %v1106, 5
      %v2218 = vsel %vm2151, %v2216, %v2217
      %v2219 = vrot.slane %v2217, 4
      %v2220 = vrot.slane %v1132, 5
      %v2221 = vsel %vm2151, %v2219, %v2220
      %v2222 = vrot.slane %v2111, 5
      %v2223 = vrot.slane %v2222, 4
      %v2224 = vrot.slane %v1108, 5
      %v2225 = vsel %vm2151, %v2223, %v2224
      %v2226 = vrot.slane %v2224, 4
      %v2227 = vrot.slane %v1133, 5
      %v2228 = vsel %vm2151, %v2226, %v2227
      %v2229 = vrot.slane %v2112, 5
      %v2230 = vrot.slane %v2229, 4
      %v2231 = vrot.slane %v1110, 5
      %v2232 = vsel %vm2151, %v2230, %v2231
      %v2233 = vrot.slane %v2231, 4
      %v2234 = vrot.slane %v1134, 5
      %v2235 = vsel %vm2151, %v2233, %v2234
      %v2236 = vrot.slane %v2113, 5
      %v2237 = vrot.slane %v2236, 4
      %v2238 = vrot.slane %v1112, 5
      %v2239 = vsel %vm2151, %v2237, %v2238
      %v2240 = vrot.slane %v2238, 4
      %v2241 = vrot.slane %v1135, 5
      %v2242 = vsel %vm2151, %v2240, %v2241
      %v2243 = vrot.slane %v2114, 5
      %v2244 = vrot.slane %v2243, 4
      %v2245 = vrot.slane %v1114, 5
      %v2246 = vsel %vm2151, %v2244, %v2245
      %v2247 = vrot.slane %v2245, 4
      %v2248 = vrot.slane %v1136, 5
      %v2249 = vsel %vm2151, %v2247, %v2248
      %v2250 = vrot.slane %v2115, 5
      %v2251 = vrot.slane %v2250, 4
      %v2252 = vrot.slane %v1116, 5
      %v2253 = vsel %vm2151, %v2251, %v2252
      %v2254 = vrot.slane %v2252, 4
      %v2255 = vrot.slane %v1137, 5
      %v2256 = vsel %vm2151, %v2254, %v2255
      %v2257 = vrot.slane %v2116, 5
      %v2258 = vrot.slane %v2257, 4
      %v2259 = vrot.slane %v1118, 5
      %v2260 = vsel %vm2151, %v2258, %v2259
      %v2261 = vrot.slane %v2259, 4
      %v2262 = vrot.slane %v1138, 5
      %v2263 = vsel %vm2151, %v2261, %v2262
      %v2264 = vld [vmem:[%s3 + $0x20] sm:$0xf]
      %v2265 = vld [vmem:[%s3 + $0x24] sm:$0xf]
      %v2266 = vld [vmem:[%s3 + $0x28] sm:$0xf]
      %v2267 = vld [vmem:[%s3 + $0x2c] sm:$0xf]
      %v2268 = vunpack.c.l.b16 %v2155
      %v2269 = vunpack.c.l.b16 %v2158
      %v2270 = vunpack.c.l.b16 %v2162
      %v2271 = vunpack.c.l.b16 %v2165
      %v2272 = vunpack.c.l.b16 %v2169
      %v2273 = vunpack.c.l.b16 %v2172
      %v2274 = vunpack.c.l.b16 %v2176
      %v2275 = vunpack.c.l.b16 %v2179
      %v2276 = vunpack.c.l.b16 %v2183
      %v2277 = vunpack.c.l.b16 %v2186
      %v2278 = vunpack.c.l.b16 %v2190
      %v2279 = vunpack.c.l.b16 %v2193
      %v2280 = vunpack.c.l.b16 %v2197
      %v2281 = vunpack.c.l.b16 %v2200
      %v2282 = vunpack.c.l.b16 %v2204
      %v2283 = vunpack.c.l.b16 %v2207
      %v2284 = vunpack.c.l.b16 %v2211
      %v2285 = vunpack.c.l.b16 %v2214
      %v2286 = vunpack.c.l.b16 %v2218
      %v2287 = vunpack.c.l.b16 %v2221
      %v2288 = vunpack.c.l.b16 %v2225
      %v2289 = vunpack.c.l.b16 %v2228
      %v2290 = vunpack.c.l.b16 %v2232
      %v2291 = vunpack.c.l.b16 %v2235
      %v2292 = vunpack.c.l.b16 %v2239
      %v2293 = vunpack.c.l.b16 %v2242
      %v2294 = vunpack.c.l.b16 %v2246
      %v2295 = vunpack.c.l.b16 %v2249
      %v2296 = vunpack.c.l.b16 %v2253
      %v2297 = vunpack.c.l.b16 %v2256
      %v2298 = vunpack.c.l.b16 %v2260
      %v2299 = vunpack.c.l.b16 %v2263
      %v2300 = vpack.c.b16 %v2269, %v2268
      %v2301 = vpack.c.b16 %v2271, %v2270
      %v2302 = vpack.c.b16 %v2273, %v2272
      %v2303 = vpack.c.b16 %v2275, %v2274
      %v2304 = vpack.c.b16 %v2277, %v2276
      %v2305 = vpack.c.b16 %v2279, %v2278
      %v2306 = vpack.c.b16 %v2281, %v2280
      %v2307 = vpack.c.b16 %v2283, %v2282
      %v2308 = vpack.c.b16 %v2285, %v2284
      %v2309 = vpack.c.b16 %v2287, %v2286
      %v2310 = vpack.c.b16 %v2289, %v2288
      %v2311 = vpack.c.b16 %v2291, %v2290
      %v2312 = vpack.c.b16 %v2293, %v2292
      %v2313 = vpack.c.b16 %v2295, %v2294
      %v2314 = vpack.c.b16 %v2297, %v2296
      %v2315 = vpack.c.b16 %v2299, %v2298
      %v2320 = vunpack.c.l.b16 %v2264
      %v2321 = vunpack.c.l.b16 %v2265
      %v2322 = vunpack.c.l.b16 %v2266
      %v2323 = vunpack.c.l.b16 %v2267
      %v2324 = vpack.c.b16 %v2321, %v2320
      %v2325 = vpack.c.b16 %v2323, %v2322
      %v2329 = vsel %vm1590, %v2300, 0
      %v2332 = vsel %vm1590, %v2301, 0
      %v2335 = vsel %vm1590, %v2302, 0
      %v2338 = vsel %vm1590, %v2303, 0
      %v2341 = vsel %vm1590, %v2304, 0
      %v2344 = vsel %vm1590, %v2305, 0
      %v2347 = vsel %vm1590, %v2306, 0
      %v2350 = vsel %vm1590, %v2307, 0
      %v2353 = vsel %vm1590, %v2308, 0
      %v2356 = vsel %vm1590, %v2309, 0
      %v2359 = vsel %vm1590, %v2310, 0
      %v2362 = vsel %vm1590, %v2311, 0
      %v2365 = vsel %vm1590, %v2312, 0
      %v2368 = vsel %vm1590, %v2313, 0
      %v2371 = vsel %vm1590, %v2314, 0
      %v2374 = vsel %vm1590, %v2315, 0
      %2376 = vmatprep.subr.bf16.mxu0 0
      %2377 = vmatpush1.bf16.msra.mxu0 0
      %2378 = vmatprep.subr.bf16.mxu0 0
      %2379 = vmatpush1.bf16.msra.mxu0 0
      %2380 = vmatprep.subr.bf16.mxu0 0
      %2381 = vmatpush1.bf16.msra.mxu0 0
      %2382 = vmatprep.subr.bf16.mxu0 0
      %2383 = vmatpush1.bf16.msra.mxu0 0
      %2384 = vmatprep.subr.bf16.mxu0 0
      %2385 = vmatpush1.bf16.msra.mxu0 0
      %2386 = vmatprep.subr.bf16.mxu0 0
      %2387 = vmatpush1.bf16.msra.mxu0 0
      %2388 = vmatprep.subr.bf16.mxu0 0
      %2389 = vmatpush1.bf16.msra.mxu0 %v2325
      %2390 = vmatprep.subr.bf16.mxu0 0
      %2391 = vmatpush1.bf16.msra.mxu0 %v2324
      %2392 = vmatprep.subr.bf16.mxu0 0
      %2393 = vmatpush2.bf16.msra.mxu0 0
      %2394 = vmatprep.subr.bf16.mxu0 0
      %2395 = vmatpush2.bf16.msra.mxu0 0
      %2396 = vmatprep.subr.bf16.mxu0 0
      %2397 = vmatpush2.bf16.msra.mxu0 0
      %2398 = vmatprep.subr.bf16.mxu0 0
      %2399 = vmatpush2.bf16.msra.mxu0 0
      %2400 = vmatprep.subr.bf16.mxu0 0
      %2401 = vmatpush2.bf16.msra.mxu0 0
      %2402 = vmatprep.subr.bf16.mxu0 0
      %2403 = vmatpush2.bf16.msra.mxu0 0
      %2404 = vmatprep.subr.bf16.mxu0 0
      %2405 = vmatpush2.bf16.msra.mxu0 0
      %2406 = vmatprep.subr.bf16.mxu0 0
      %2407 = vmatpush2.bf16.msra.mxu0 0
      %2408 = vmatprep.mubr.bf16.mxu0 0
      %2409 = vmatmul.mubr.bf16.gmra.mxu0 %v2329
      %v2410 = vpop.f32.mrf.mxu0
      %v2411 = vadd.f32 0.0, %v2410
      %v2412 = vpop.f32.mrf.mxu0
      %v2413 = vpop.f32.mrf.mxu0
      %v2414 = vadd.f32 0.0, %v2413
      %v2415 = vpop.f32.mrf.mxu0
      %2416 = vmatprep.mubr.bf16.mxu0 0
      %2417 = vmatmul.mubr.bf16.gmra.mxu0 %v2332
      %v2418 = vpop.f32.mrf.mxu0
      %v2419 = vadd.f32 0.0, %v2418
      %v2420 = vpop.f32.mrf.mxu0
      %v2421 = vpop.f32.mrf.mxu0
      %v2422 = vadd.f32 0.0, %v2421
      %v2423 = vpop.f32.mrf.mxu0
      %2424 = vmatprep.mubr.bf16.mxu0 0
      %2425 = vmatmul.mubr.bf16.gmra.mxu0 %v2335
      %v2426 = vpop.f32.mrf.mxu0
      %v2427 = vadd.f32 0.0, %v2426
      %v2428 = vpop.f32.mrf.mxu0
      %v2429 = vpop.f32.mrf.mxu0
      %v2430 = vadd.f32 0.0, %v2429
      %v2431 = vpop.f32.mrf.mxu0
      %2432 = vmatprep.mubr.bf16.mxu0 0
      %2433 = vmatmul.mubr.bf16.gmra.mxu0 %v2338
      %v2434 = vpop.f32.mrf.mxu0
      %v2435 = vadd.f32 0.0, %v2434
      %v2436 = vpop.f32.mrf.mxu0
      %v2437 = vpop.f32.mrf.mxu0
      %v2438 = vadd.f32 0.0, %v2437
      %v2439 = vpop.f32.mrf.mxu0
      %2440 = vmatprep.mubr.bf16.mxu0 0
      %2441 = vmatmul.mubr.bf16.gmra.mxu0 %v2341
      %v2442 = vpop.f32.mrf.mxu0
      %v2443 = vadd.f32 0.0, %v2442
      %v2444 = vpop.f32.mrf.mxu0
      %v2445 = vpop.f32.mrf.mxu0
      %v2446 = vadd.f32 0.0, %v2445
      %v2447 = vpop.f32.mrf.mxu0
      %2448 = vmatprep.mubr.bf16.mxu0 0
      %2449 = vmatmul.mubr.bf16.gmra.mxu0 %v2344
      %v2450 = vpop.f32.mrf.mxu0
      %v2451 = vadd.f32 0.0, %v2450
      %v2452 = vpop.f32.mrf.mxu0
      %v2453 = vpop.f32.mrf.mxu0
      %v2454 = vadd.f32 0.0, %v2453
      %v2455 = vpop.f32.mrf.mxu0
      %2456 = vmatprep.mubr.bf16.mxu0 0
      %2457 = vmatmul.mubr.bf16.gmra.mxu0 %v2347
      %v2458 = vpop.f32.mrf.mxu0
      %v2459 = vadd.f32 0.0, %v2458
      %v2460 = vpop.f32.mrf.mxu0
      %v2461 = vpop.f32.mrf.mxu0
      %v2462 = vadd.f32 0.0, %v2461
      %v2463 = vpop.f32.mrf.mxu0
      %2464 = vmatprep.mubr.bf16.mxu0 0
      %2465 = vmatmul.mubr.bf16.gmra.mxu0 %v2350
      %v2466 = vpop.f32.mrf.mxu0
      %v2467 = vadd.f32 0.0, %v2466
      %v2468 = vpop.f32.mrf.mxu0
      %v2469 = vpop.f32.mrf.mxu0
      %v2470 = vadd.f32 0.0, %v2469
      %v2471 = vpop.f32.mrf.mxu0
      %2472 = vmatprep.mubr.bf16.mxu0 0
      %2473 = vmatmul.mubr.bf16.gmra.mxu0 %v2353
      %v2474 = vpop.f32.mrf.mxu0
      %v2475 = vadd.f32 0.0, %v2474
      %v2476 = vpop.f32.mrf.mxu0
      %v2477 = vpop.f32.mrf.mxu0
      %v2478 = vadd.f32 0.0, %v2477
      %v2479 = vpop.f32.mrf.mxu0
      %2480 = vmatprep.mubr.bf16.mxu0 0
      %2481 = vmatmul.mubr.bf16.gmra.mxu0 %v2356
      %v2482 = vpop.f32.mrf.mxu0
      %v2483 = vadd.f32 0.0, %v2482
      %v2484 = vpop.f32.mrf.mxu0
      %v2485 = vpop.f32.mrf.mxu0
      %v2486 = vadd.f32 0.0, %v2485
      %v2487 = vpop.f32.mrf.mxu0
      %2488 = vmatprep.mubr.bf16.mxu0 0
      %2489 = vmatmul.mubr.bf16.gmra.mxu0 %v2359
      %v2490 = vpop.f32.mrf.mxu0
      %v2491 = vadd.f32 0.0, %v2490
      %v2492 = vpop.f32.mrf.mxu0
      %v2493 = vpop.f32.mrf.mxu0
      %v2494 = vadd.f32 0.0, %v2493
      %v2495 = vpop.f32.mrf.mxu0
      %2496 = vmatprep.mubr.bf16.mxu0 0
      %2497 = vmatmul.mubr.bf16.gmra.mxu0 %v2362
      %v2498 = vpop.f32.mrf.mxu0
      %v2499 = vadd.f32 0.0, %v2498
      %v2500 = vpop.f32.mrf.mxu0
      %v2501 = vpop.f32.mrf.mxu0
      %v2502 = vadd.f32 0.0, %v2501
      %v2503 = vpop.f32.mrf.mxu0
      %2504 = vmatprep.mubr.bf16.mxu0 0
      %2505 = vmatmul.mubr.bf16.gmra.mxu0 %v2365
      %v2506 = vpop.f32.mrf.mxu0
      %v2507 = vadd.f32 0.0, %v2506
      %v2508 = vpop.f32.mrf.mxu0
      %v2509 = vpop.f32.mrf.mxu0
      %v2510 = vadd.f32 0.0, %v2509
      %v2511 = vpop.f32.mrf.mxu0
      %2512 = vmatprep.mubr.bf16.mxu0 0
      %2513 = vmatmul.mubr.bf16.gmra.mxu0 %v2368
      %v2514 = vpop.f32.mrf.mxu0
      %v2515 = vadd.f32 0.0, %v2514
      %v2516 = vpop.f32.mrf.mxu0
      %v2517 = vpop.f32.mrf.mxu0
      %v2518 = vadd.f32 0.0, %v2517
      %v2519 = vpop.f32.mrf.mxu0
      %2520 = vmatprep.mubr.bf16.mxu0 0
      %2521 = vmatmul.mubr.bf16.gmra.mxu0 %v2371
      %v2522 = vpop.f32.mrf.mxu0
      %v2523 = vadd.f32 0.0, %v2522
      %v2524 = vpop.f32.mrf.mxu0
      %v2525 = vpop.f32.mrf.mxu0
      %v2526 = vadd.f32 0.0, %v2525
      %v2527 = vpop.f32.mrf.mxu0
      %2528 = vmatprep.mubr.bf16.mxu0 0
      %2529 = vmatmul.mubr.bf16.gmra.mxu0 %v2374
      %v2530 = vpop.f32.mrf.mxu0
      %v2531 = vadd.f32 0.0, %v2530
      %v2532 = vpop.f32.mrf.mxu0
      %v2533 = vpop.f32.mrf.mxu0
      %v2534 = vadd.f32 0.0, %v2533
      %v2535 = vpop.f32.mrf.mxu0
      %2536 = vdwg.mxu0
      %v2537 = vadd.f32 %v1975, %v2411
      %v2538 = vadd.f32 %v1978, %v2414
      %v2539 = vadd.f32 %v1983, %v2419
      %v2540 = vadd.f32 %v1986, %v2422
      %v2541 = vadd.f32 %v1991, %v2427
      %v2542 = vadd.f32 %v1994, %v2430
      %v2543 = vadd.f32 %v1999, %v2435
      %v2544 = vadd.f32 %v2002, %v2438
      %v2545 = vadd.f32 %v2007, %v2443
      %v2546 = vadd.f32 %v2010, %v2446
      %v2547 = vadd.f32 %v2015, %v2451
      %v2548 = vadd.f32 %v2018, %v2454
      %v2549 = vadd.f32 %v2023, %v2459
      %v2550 = vadd.f32 %v2026, %v2462
      %v2551 = vadd.f32 %v2031, %v2467
      %v2552 = vadd.f32 %v2034, %v2470
      %v2553 = vadd.f32 %v2039, %v2475
      %v2554 = vadd.f32 %v2042, %v2478
      %v2555 = vadd.f32 %v2047, %v2483
      %v2556 = vadd.f32 %v2050, %v2486
      %v2557 = vadd.f32 %v2055, %v2491
      %v2558 = vadd.f32 %v2058, %v2494
      %v2559 = vadd.f32 %v2063, %v2499
      %v2560 = vadd.f32 %v2066, %v2502
      %v2561 = vadd.f32 %v2071, %v2507
      %v2562 = vadd.f32 %v2074, %v2510
      %v2563 = vadd.f32 %v2079, %v2515
      %v2564 = vadd.f32 %v2082, %v2518
      %v2565 = vadd.f32 %v2087, %v2523
      %v2566 = vadd.f32 %v2090, %v2526
      %v2567 = vadd.f32 %v2095, %v2531
      %v2568 = vadd.f32 %v2098, %v2534
      %v2569 = vld [vmem:[%s469] sm:$0xf]
      %v2570 = vld [vmem:[%s469 + $0x4] sm:$0xf]
      %v2571 = vld [vmem:[%s469 + $0xc] sm:$0xf]
      %v2572 = vld [vmem:[%s469 + $0x10] sm:$0xf]
      %v2573 = vld [vmem:[%s469 + $0x18] sm:$0xf]
      %v2574 = vld [vmem:[%s469 + $0x1c] sm:$0xf]
      %v2575 = vld [vmem:[%s469 + $0x24] sm:$0xf]
      %v2576 = vld [vmem:[%s469 + $0x28] sm:$0xf]
      %v2577 = vld [vmem:[%s469 + $0x30] sm:$0xf]
      %v2578 = vld [vmem:[%s469 + $0x34] sm:$0xf]
      %v2579 = vld [vmem:[%s469 + $0x3c] sm:$0xf]
      %v2580 = vld [vmem:[%s469 + $0x40] sm:$0xf]
      %v2581 = vld [vmem:[%s469 + $0x48] sm:$0xf]
      %v2582 = vld [vmem:[%s469 + $0x4c] sm:$0xf]
      %v2583 = vld [vmem:[%s469 + $0x54] sm:$0xf]
      %v2584 = vld [vmem:[%s469 + $0x58] sm:$0xf]
      %v2585 = vld [vmem:[%s469 + $0x60] sm:$0xf]
      %v2586 = vld [vmem:[%s469 + $0x64] sm:$0xf]
      %v2587 = vld [vmem:[%s469 + $0x6c] sm:$0xf]
      %v2588 = vld [vmem:[%s469 + $0x70] sm:$0xf]
      %v2589 = vld [vmem:[%s469 + $0x78] sm:$0xf]
      %v2590 = vld [vmem:[%s469 + $0x7c] sm:$0xf]
      %v2591 = vld [vmem:[%s469 + $0x84] sm:$0xf]
      %v2592 = vld [vmem:[%s469 + $0x88] sm:$0xf]
      %v2593 = vld [vmem:[%s469 + $0x90] sm:$0xf]
      %v2594 = vld [vmem:[%s469 + $0x94] sm:$0xf]
      %v2595 = vld [vmem:[%s469 + $0x9c] sm:$0xf]
      %v2596 = vld [vmem:[%s469 + $0xa0] sm:$0xf]
      %v2597 = vld [vmem:[%s469 + $0xa8] sm:$0xf]
      %v2598 = vld [vmem:[%s469 + $0xac] sm:$0xf]
      %v2599 = vld [vmem:[%s469 + $0xb4] sm:$0xf]
      %v2600 = vld [vmem:[%s469 + $0xb8] sm:$0xf]
      %v2601 = vld [vmem:[%s3 + $0x30] sm:$0xf]
      %v2602 = vld [vmem:[%s3 + $0x34] sm:$0xf]
      %v2603 = vld [vmem:[%s3 + $0x38] sm:$0xf]
      %v2604 = vld [vmem:[%s3 + $0x3c] sm:$0xf]
      %v2637 = vunpack.c.l.b16 %v2569
      %v2638 = vunpack.c.l.b16 %v2570
      %v2639 = vunpack.c.l.b16 %v2571
      %v2640 = vunpack.c.l.b16 %v2572
      %v2641 = vunpack.c.l.b16 %v2573
      %v2642 = vunpack.c.l.b16 %v2574
      %v2643 = vunpack.c.l.b16 %v2575
      %v2644 = vunpack.c.l.b16 %v2576
      %v2645 = vunpack.c.l.b16 %v2577
      %v2646 = vunpack.c.l.b16 %v2578
      %v2647 = vunpack.c.l.b16 %v2579
      %v2648 = vunpack.c.l.b16 %v2580
      %v2649 = vunpack.c.l.b16 %v2581
      %v2650 = vunpack.c.l.b16 %v2582
      %v2651 = vunpack.c.l.b16 %v2583
      %v2652 = vunpack.c.l.b16 %v2584
      %v2653 = vunpack.c.l.b16 %v2585
      %v2654 = vunpack.c.l.b16 %v2586
      %v2655 = vunpack.c.l.b16 %v2587
      %v2656 = vunpack.c.l.b16 %v2588
      %v2657 = vunpack.c.l.b16 %v2589
      %v2658 = vunpack.c.l.b16 %v2590
      %v2659 = vunpack.c.l.b16 %v2591
      %v2660 = vunpack.c.l.b16 %v2592
      %v2661 = vunpack.c.l.b16 %v2593
      %v2662 = vunpack.c.l.b16 %v2594
      %v2663 = vunpack.c.l.b16 %v2595
      %v2664 = vunpack.c.l.b16 %v2596
      %v2665 = vunpack.c.l.b16 %v2597
      %v2666 = vunpack.c.l.b16 %v2598
      %v2667 = vunpack.c.l.b16 %v2599
      %v2668 = vunpack.c.l.b16 %v2600
      %v2669 = vpack.c.b16 %v2638, %v2637
      %v2670 = vpack.c.b16 %v2640, %v2639
      %v2671 = vpack.c.b16 %v2642, %v2641
      %v2672 = vpack.c.b16 %v2644, %v2643
      %v2673 = vpack.c.b16 %v2646, %v2645
      %v2674 = vpack.c.b16 %v2648, %v2647
      %v2675 = vpack.c.b16 %v2650, %v2649
      %v2676 = vpack.c.b16 %v2652, %v2651
      %v2677 = vpack.c.b16 %v2654, %v2653
      %v2678 = vpack.c.b16 %v2656, %v2655
      %v2679 = vpack.c.b16 %v2658, %v2657
      %v2680 = vpack.c.b16 %v2660, %v2659
      %v2681 = vpack.c.b16 %v2662, %v2661
      %v2682 = vpack.c.b16 %v2664, %v2663
      %v2683 = vpack.c.b16 %v2666, %v2665
      %v2684 = vpack.c.b16 %v2668, %v2667
      %v2689 = vunpack.c.l.b16 %v2601
      %v2690 = vunpack.c.l.b16 %v2602
      %v2691 = vunpack.c.l.b16 %v2603
      %v2692 = vunpack.c.l.b16 %v2604
      %v2693 = vpack.c.b16 %v2690, %v2689
      %v2694 = vpack.c.b16 %v2692, %v2691
      %v2698 = vsel %vm1590, %v2669, 0
      %v2701 = vsel %vm1590, %v2670, 0
      %v2704 = vsel %vm1590, %v2671, 0
      %v2707 = vsel %vm1590, %v2672, 0
      %v2710 = vsel %vm1590, %v2673, 0
      %v2713 = vsel %vm1590, %v2674, 0
      %v2716 = vsel %vm1590, %v2675, 0
      %v2719 = vsel %vm1590, %v2676, 0
      %v2722 = vsel %vm1590, %v2677, 0
      %v2725 = vsel %vm1590, %v2678, 0
      %v2728 = vsel %vm1590, %v2679, 0
      %v2731 = vsel %vm1590, %v2680, 0
      %v2734 = vsel %vm1590, %v2681, 0
      %v2737 = vsel %vm1590, %v2682, 0
      %v2740 = vsel %vm1590, %v2683, 0
      %v2743 = vsel %vm1590, %v2684, 0
      %2745 = vmatprep.subr.bf16.mxu0 0
      %2746 = vmatpush1.bf16.msra.mxu0 0
      %2747 = vmatprep.subr.bf16.mxu0 0
      %2748 = vmatpush1.bf16.msra.mxu0 0
      %2749 = vmatprep.subr.bf16.mxu0 0
      %2750 = vmatpush1.bf16.msra.mxu0 0
      %2751 = vmatprep.subr.bf16.mxu0 0
      %2752 = vmatpush1.bf16.msra.mxu0 0
      %2753 = vmatprep.subr.bf16.mxu0 0
      %2754 = vmatpush1.bf16.msra.mxu0 0
      %2755 = vmatprep.subr.bf16.mxu0 0
      %2756 = vmatpush1.bf16.msra.mxu0 0
      %2757 = vmatprep.subr.bf16.mxu0 0
      %2758 = vmatpush1.bf16.msra.mxu0 %v2694
      %2759 = vmatprep.subr.bf16.mxu0 0
      %2760 = vmatpush1.bf16.msra.mxu0 %v2693
      %2761 = vmatprep.subr.bf16.mxu0 0
      %2762 = vmatpush2.bf16.msra.mxu0 0
      %2763 = vmatprep.subr.bf16.mxu0 0
      %2764 = vmatpush2.bf16.msra.mxu0 0
      %2765 = vmatprep.subr.bf16.mxu0 0
      %2766 = vmatpush2.bf16.msra.mxu0 0
      %2767 = vmatprep.subr.bf16.mxu0 0
      %2768 = vmatpush2.bf16.msra.mxu0 0
      %2769 = vmatprep.subr.bf16.mxu0 0
      %2770 = vmatpush2.bf16.msra.mxu0 0
      %2771 = vmatprep.subr.bf16.mxu0 0
      %2772 = vmatpush2.bf16.msra.mxu0 0
      %2773 = vmatprep.subr.bf16.mxu0 0
      %2774 = vmatpush2.bf16.msra.mxu0 0
      %2775 = vmatprep.subr.bf16.mxu0 0
      %2776 = vmatpush2.bf16.msra.mxu0 0
      %2777 = vmatprep.mubr.bf16.mxu0 0
      %2778 = vmatmul.mubr.bf16.gmra.mxu0 %v2698
      %v2779 = vpop.f32.mrf.mxu0
      %v2780 = vadd.f32 0.0, %v2779
      %v2781 = vpop.f32.mrf.mxu0
      %v2782 = vpop.f32.mrf.mxu0
      %v2783 = vadd.f32 0.0, %v2782
      %v2784 = vpop.f32.mrf.mxu0
      %2785 = vmatprep.mubr.bf16.mxu0 0
      %2786 = vmatmul.mubr.bf16.gmra.mxu0 %v2701
      %v2787 = vpop.f32.mrf.mxu0
      %v2788 = vadd.f32 0.0, %v2787
      %v2789 = vpop.f32.mrf.mxu0
      %v2790 = vpop.f32.mrf.mxu0
      %v2791 = vadd.f32 0.0, %v2790
      %v2792 = vpop.f32.mrf.mxu0
      %2793 = vmatprep.mubr.bf16.mxu0 0
      %2794 = vmatmul.mubr.bf16.gmra.mxu0 %v2704
      %v2795 = vpop.f32.mrf.mxu0
      %v2796 = vadd.f32 0.0, %v2795
      %v2797 = vpop.f32.mrf.mxu0
      %v2798 = vpop.f32.mrf.mxu0
      %v2799 = vadd.f32 0.0, %v2798
      %v2800 = vpop.f32.mrf.mxu0
      %2801 = vmatprep.mubr.bf16.mxu0 0
      %2802 = vmatmul.mubr.bf16.gmra.mxu0 %v2707
      %v2803 = vpop.f32.mrf.mxu0
      %v2804 = vadd.f32 0.0, %v2803
      %v2805 = vpop.f32.mrf.mxu0
      %v2806 = vpop.f32.mrf.mxu0
      %v2807 = vadd.f32 0.0, %v2806
      %v2808 = vpop.f32.mrf.mxu0
      %2809 = vmatprep.mubr.bf16.mxu0 0
      %2810 = vmatmul.mubr.bf16.gmra.mxu0 %v2710
      %v2811 = vpop.f32.mrf.mxu0
      %v2812 = vadd.f32 0.0, %v2811
      %v2813 = vpop.f32.mrf.mxu0
      %v2814 = vpop.f32.mrf.mxu0
      %v2815 = vadd.f32 0.0, %v2814
      %v2816 = vpop.f32.mrf.mxu0
      %2817 = vmatprep.mubr.bf16.mxu0 0
      %2818 = vmatmul.mubr.bf16.gmra.mxu0 %v2713
      %v2819 = vpop.f32.mrf.mxu0
      %v2820 = vadd.f32 0.0, %v2819
      %v2821 = vpop.f32.mrf.mxu0
      %v2822 = vpop.f32.mrf.mxu0
      %v2823 = vadd.f32 0.0, %v2822
      %v2824 = vpop.f32.mrf.mxu0
      %2825 = vmatprep.mubr.bf16.mxu0 0
      %2826 = vmatmul.mubr.bf16.gmra.mxu0 %v2716
      %v2827 = vpop.f32.mrf.mxu0
      %v2828 = vadd.f32 0.0, %v2827
      %v2829 = vpop.f32.mrf.mxu0
      %v2830 = vpop.f32.mrf.mxu0
      %v2831 = vadd.f32 0.0, %v2830
      %v2832 = vpop.f32.mrf.mxu0
      %2833 = vmatprep.mubr.bf16.mxu0 0
      %2834 = vmatmul.mubr.bf16.gmra.mxu0 %v2719
      %v2835 = vpop.f32.mrf.mxu0
      %v2836 = vadd.f32 0.0, %v2835
      %v2837 = vpop.f32.mrf.mxu0
      %v2838 = vpop.f32.mrf.mxu0
      %v2839 = vadd.f32 0.0, %v2838
      %v2840 = vpop.f32.mrf.mxu0
      %2841 = vmatprep.mubr.bf16.mxu0 0
      %2842 = vmatmul.mubr.bf16.gmra.mxu0 %v2722
      %v2843 = vpop.f32.mrf.mxu0
      %v2844 = vadd.f32 0.0, %v2843
      %v2845 = vpop.f32.mrf.mxu0
      %v2846 = vpop.f32.mrf.mxu0
      %v2847 = vadd.f32 0.0, %v2846
      %v2848 = vpop.f32.mrf.mxu0
      %2849 = vmatprep.mubr.bf16.mxu0 0
      %2850 = vmatmul.mubr.bf16.gmra.mxu0 %v2725
      %v2851 = vpop.f32.mrf.mxu0
      %v2852 = vadd.f32 0.0, %v2851
      %v2853 = vpop.f32.mrf.mxu0
      %v2854 = vpop.f32.mrf.mxu0
      %v2855 = vadd.f32 0.0, %v2854
      %v2856 = vpop.f32.mrf.mxu0
      %2857 = vmatprep.mubr.bf16.mxu0 0
      %2858 = vmatmul.mubr.bf16.gmra.mxu0 %v2728
      %v2859 = vpop.f32.mrf.mxu0
      %v2860 = vadd.f32 0.0, %v2859
      %v2861 = vpop.f32.mrf.mxu0
      %v2862 = vpop.f32.mrf.mxu0
      %v2863 = vadd.f32 0.0, %v2862
      %v2864 = vpop.f32.mrf.mxu0
      %2865 = vmatprep.mubr.bf16.mxu0 0
      %2866 = vmatmul.mubr.bf16.gmra.mxu0 %v2731
      %v2867 = vpop.f32.mrf.mxu0
      %v2868 = vadd.f32 0.0, %v2867
      %v2869 = vpop.f32.mrf.mxu0
      %v2870 = vpop.f32.mrf.mxu0
      %v2871 = vadd.f32 0.0, %v2870
      %v2872 = vpop.f32.mrf.mxu0
      %2873 = vmatprep.mubr.bf16.mxu0 0
      %2874 = vmatmul.mubr.bf16.gmra.mxu0 %v2734
      %v2875 = vpop.f32.mrf.mxu0
      %v2876 = vadd.f32 0.0, %v2875
      %v2877 = vpop.f32.mrf.mxu0
      %v2878 = vpop.f32.mrf.mxu0
      %v2879 = vadd.f32 0.0, %v2878
      %v2880 = vpop.f32.mrf.mxu0
      %2881 = vmatprep.mubr.bf16.mxu0 0
      %2882 = vmatmul.mubr.bf16.gmra.mxu0 %v2737
      %v2883 = vpop.f32.mrf.mxu0
      %v2884 = vadd.f32 0.0, %v2883
      %v2885 = vpop.f32.mrf.mxu0
      %v2886 = vpop.f32.mrf.mxu0
      %v2887 = vadd.f32 0.0, %v2886
      %v2888 = vpop.f32.mrf.mxu0
      %2889 = vmatprep.mubr.bf16.mxu0 0
      %2890 = vmatmul.mubr.bf16.gmra.mxu0 %v2740
      %v2891 = vpop.f32.mrf.mxu0
      %v2892 = vadd.f32 0.0, %v2891
      %v2893 = vpop.f32.mrf.mxu0
      %v2894 = vpop.f32.mrf.mxu0
      %v2895 = vadd.f32 0.0, %v2894
      %v2896 = vpop.f32.mrf.mxu0
      %2897 = vmatprep.mubr.bf16.mxu0 0
      %2898 = vmatmul.mubr.bf16.gmra.mxu0 %v2743
      %v2899 = vpop.f32.mrf.mxu0
      %v2900 = vadd.f32 0.0, %v2899
      %v2901 = vpop.f32.mrf.mxu0
      %v2902 = vpop.f32.mrf.mxu0
      %v2903 = vadd.f32 0.0, %v2902
      %v2904 = vpop.f32.mrf.mxu0
      %2905 = vdwg.mxu0
      %v2906 = vadd.f32 %v2537, %v2780
      %v2907 = vadd.f32 %v2538, %v2783
      %v2908 = vadd.f32 %v2539, %v2788
      %v2909 = vadd.f32 %v2540, %v2791
      %v2910 = vadd.f32 %v2541, %v2796
      %v2911 = vadd.f32 %v2542, %v2799
      %v2912 = vadd.f32 %v2543, %v2804
      %v2913 = vadd.f32 %v2544, %v2807
      %v2914 = vadd.f32 %v2545, %v2812
      %v2915 = vadd.f32 %v2546, %v2815
      %v2916 = vadd.f32 %v2547, %v2820
      %v2917 = vadd.f32 %v2548, %v2823
      %v2918 = vadd.f32 %v2549, %v2828
      %v2919 = vadd.f32 %v2550, %v2831
      %v2920 = vadd.f32 %v2551, %v2836
      %v2921 = vadd.f32 %v2552, %v2839
      %v2922 = vadd.f32 %v2553, %v2844
      %v2923 = vadd.f32 %v2554, %v2847
      %v2924 = vadd.f32 %v2555, %v2852
      %v2925 = vadd.f32 %v2556, %v2855
      %v2926 = vadd.f32 %v2557, %v2860
      %v2927 = vadd.f32 %v2558, %v2863
      %v2928 = vadd.f32 %v2559, %v2868
      %v2929 = vadd.f32 %v2560, %v2871
      %v2930 = vadd.f32 %v2561, %v2876
      %v2931 = vadd.f32 %v2562, %v2879
      %v2932 = vadd.f32 %v2563, %v2884
      %v2933 = vadd.f32 %v2564, %v2887
      %v2934 = vadd.f32 %v2565, %v2892
      %v2935 = vadd.f32 %v2566, %v2895
      %v2936 = vadd.f32 %v2567, %v2900
      %v2937 = vadd.f32 %v2568, %v2903
      %v2938 = vld [vmem:[%s469] sm:$0xf]
      %v2939 = vld [vmem:[%s469 + $0x4] sm:$0xf]
      %v2940 = vld [vmem:[%s469 + $0x8] sm:$0x1]
      %v2941 = vld [vmem:[%s469 + $0xc] sm:$0xf]
      %v2942 = vld [vmem:[%s469 + $0x10] sm:$0xf]
      %v2943 = vld [vmem:[%s469 + $0x14] sm:$0x1]
      %v2944 = vld [vmem:[%s469 + $0x18] sm:$0xf]
      %v2945 = vld [vmem:[%s469 + $0x1c] sm:$0xf]
      %v2946 = vld [vmem:[%s469 + $0x20] sm:$0x1]
      %v2947 = vld [vmem:[%s469 + $0x24] sm:$0xf]
      %v2948 = vld [vmem:[%s469 + $0x28] sm:$0xf]
      %v2949 = vld [vmem:[%s469 + $0x2c] sm:$0x1]
      %v2950 = vld [vmem:[%s469 + $0x30] sm:$0xf]
      %v2951 = vld [vmem:[%s469 + $0x34] sm:$0xf]
      %v2952 = vld [vmem:[%s469 + $0x38] sm:$0x1]
      %v2953 = vld [vmem:[%s469 + $0x3c] sm:$0xf]
      %v2954 = vld [vmem:[%s469 + $0x40] sm:$0xf]
      %v2955 = vld [vmem:[%s469 + $0x44] sm:$0x1]
      %v2956 = vld [vmem:[%s469 + $0x48] sm:$0xf]
      %v2957 = vld [vmem:[%s469 + $0x4c] sm:$0xf]
      %v2958 = vld [vmem:[%s469 + $0x50] sm:$0x1]
      %v2959 = vld [vmem:[%s469 + $0x54] sm:$0xf]
      %v2960 = vld [vmem:[%s469 + $0x58] sm:$0xf]
      %v2961 = vld [vmem:[%s469 + $0x5c] sm:$0x1]
      %v2962 = vld [vmem:[%s469 + $0x60] sm:$0xf]
      %v2963 = vld [vmem:[%s469 + $0x64] sm:$0xf]
      %v2964 = vld [vmem:[%s469 + $0x68] sm:$0x1]
      %v2965 = vld [vmem:[%s469 + $0x6c] sm:$0xf]
      %v2966 = vld [vmem:[%s469 + $0x70] sm:$0xf]
      %v2967 = vld [vmem:[%s469 + $0x74] sm:$0x1]
      %v2968 = vld [vmem:[%s469 + $0x78] sm:$0xf]
      %v2969 = vld [vmem:[%s469 + $0x7c] sm:$0xf]
      %v2970 = vld [vmem:[%s469 + $0x80] sm:$0x1]
      %v2971 = vld [vmem:[%s469 + $0x84] sm:$0xf]
      %v2972 = vld [vmem:[%s469 + $0x88] sm:$0xf]
      %v2973 = vld [vmem:[%s469 + $0x8c] sm:$0x1]
      %v2974 = vld [vmem:[%s469 + $0x90] sm:$0xf]
      %v2975 = vld [vmem:[%s469 + $0x94] sm:$0xf]
      %v2976 = vld [vmem:[%s469 + $0x98] sm:$0x1]
      %v2977 = vld [vmem:[%s469 + $0x9c] sm:$0xf]
      %v2978 = vld [vmem:[%s469 + $0xa0] sm:$0xf]
      %v2979 = vld [vmem:[%s469 + $0xa4] sm:$0x1]
      %v2980 = vld [vmem:[%s469 + $0xa8] sm:$0xf]
      %v2981 = vld [vmem:[%s469 + $0xac] sm:$0xf]
      %v2982 = vld [vmem:[%s469 + $0xb0] sm:$0x1]
      %v2983 = vld [vmem:[%s469 + $0xb4] sm:$0xf]
      %v2984 = vld [vmem:[%s469 + $0xb8] sm:$0xf]
      %v2985 = vld [vmem:[%s469 + $0xbc] sm:$0x1]
      %v2987 = vshrl.u32 %v2938, 16
      %v2989 = vrot.slane %v2987, 4
      %v2990 = vshll.u32 %v2938, 16
      %v2992 = vrot.slane %v2990, 5
      %v2993 = vor.u32 %v2989, %v2992
      %v2994 = vrot.slane %v2993, 4
      %v2996 = vshll.u32 %v2939, 16
      %v2998 = vrot.slane %v2996, 5
      %v2999 = vsel %vm1141, %v2994, %v2998
      %v3000 = vshrl.u32 %v2939, 16
      %v3002 = vrot.slane %v3000, 4
      %v3003 = vor.u32 %v3002, %v2998
      %v3004 = vrot.slane %v3003, 4
      %v3006 = vshll.u32 %v2940, 16
      %v3008 = vrot.slane %v3006, 5
      %v3009 = vsel %vm1141, %v3004, %v3008
      %v3011 = vshrl.u32 %v2941, 16
      %v3013 = vrot.slane %v3011, 4
      %v3014 = vshll.u32 %v2941, 16
      %v3016 = vrot.slane %v3014, 5
      %v3017 = vor.u32 %v3013, %v3016
      %v3018 = vrot.slane %v3017, 4
      %v3020 = vshll.u32 %v2942, 16
      %v3022 = vrot.slane %v3020, 5
      %v3023 = vsel %vm1141, %v3018, %v3022
      %v3024 = vshrl.u32 %v2942, 16
      %v3026 = vrot.slane %v3024, 4
      %v3027 = vor.u32 %v3026, %v3022
      %v3028 = vrot.slane %v3027, 4
      %v3030 = vshll.u32 %v2943, 16
      %v3032 = vrot.slane %v3030, 5
      %v3033 = vsel %vm1141, %v3028, %v3032
      %v3035 = vshrl.u32 %v2944, 16
      %v3037 = vrot.slane %v3035, 4
      %v3038 = vshll.u32 %v2944, 16
      %v3040 = vrot.slane %v3038, 5
      %v3041 = vor.u32 %v3037, %v3040
      %v3042 = vrot.slane %v3041, 4
      %v3044 = vshll.u32 %v2945, 16
      %v3046 = vrot.slane %v3044, 5
      %v3047 = vsel %vm1141, %v3042, %v3046
      %v3048 = vshrl.u32 %v2945, 16
      %v3050 = vrot.slane %v3048, 4
      %v3051 = vor.u32 %v3050, %v3046
      %v3052 = vrot.slane %v3051, 4
      %v3054 = vshll.u32 %v2946, 16
      %v3056 = vrot.slane %v3054, 5
      %v3057 = vsel %vm1141, %v3052, %v3056
      %v3059 = vshrl.u32 %v2947, 16
      %v3061 = vrot.slane %v3059, 4
      %v3062 = vshll.u32 %v2947, 16
      %v3064 = vrot.slane %v3062, 5
      %v3065 = vor.u32 %v3061, %v3064
      %v3066 = vrot.slane %v3065, 4
      %v3068 = vshll.u32 %v2948, 16
      %v3070 = vrot.slane %v3068, 5
      %v3071 = vsel %vm1141, %v3066, %v3070
      %v3072 = vshrl.u32 %v2948, 16
      %v3074 = vrot.slane %v3072, 4
      %v3075 = vor.u32 %v3074, %v3070
      %v3076 = vrot.slane %v3075, 4
      %v3078 = vshll.u32 %v2949, 16
      %v3080 = vrot.slane %v3078, 5
      %v3081 = vsel %vm1141, %v3076, %v3080
      %v3083 = vshrl.u32 %v2950, 16
      %v3085 = vrot.slane %v3083, 4
      %v3086 = vshll.u32 %v2950, 16
      %v3088 = vrot.slane %v3086, 5
      %v3089 = vor.u32 %v3085, %v3088
      %v3090 = vrot.slane %v3089, 4
      %v3092 = vshll.u32 %v2951, 16
      %v3094 = vrot.slane %v3092, 5
      %v3095 = vsel %vm1141, %v3090, %v3094
      %v3096 = vshrl.u32 %v2951, 16
      %v3098 = vrot.slane %v3096, 4
      %v3099 = vor.u32 %v3098, %v3094
      %v3100 = vrot.slane %v3099, 4
      %v3102 = vshll.u32 %v2952, 16
      %v3104 = vrot.slane %v3102, 5
      %v3105 = vsel %vm1141, %v3100, %v3104
      %v3107 = vshrl.u32 %v2953, 16
      %v3109 = vrot.slane %v3107, 4
      %v3110 = vshll.u32 %v2953, 16
      %v3112 = vrot.slane %v3110, 5
      %v3113 = vor.u32 %v3109, %v3112
      %v3114 = vrot.slane %v3113, 4
      %v3116 = vshll.u32 %v2954, 16
      %v3118 = vrot.slane %v3116, 5
      %v3119 = vsel %vm1141, %v3114, %v3118
      %v3120 = vshrl.u32 %v2954, 16
      %v3122 = vrot.slane %v3120, 4
      %v3123 = vor.u32 %v3122, %v3118
      %v3124 = vrot.slane %v3123, 4
      %v3126 = vshll.u32 %v2955, 16
      %v3128 = vrot.slane %v3126, 5
      %v3129 = vsel %vm1141, %v3124, %v3128
      %v3131 = vshrl.u32 %v2956, 16
      %v3133 = vrot.slane %v3131, 4
      %v3134 = vshll.u32 %v2956, 16
      %v3136 = vrot.slane %v3134, 5
      %v3137 = vor.u32 %v3133, %v3136
      %v3138 = vrot.slane %v3137, 4
      %v3140 = vshll.u32 %v2957, 16
      %v3142 = vrot.slane %v3140, 5
      %v3143 = vsel %vm1141, %v3138, %v3142
      %v3144 = vshrl.u32 %v2957, 16
      %v3146 = vrot.slane %v3144, 4
      %v3147 = vor.u32 %v3146, %v3142
      %v3148 = vrot.slane %v3147, 4
      %v3150 = vshll.u32 %v2958, 16
      %v3152 = vrot.slane %v3150, 5
      %v3153 = vsel %vm1141, %v3148, %v3152
      %v3155 = vshrl.u32 %v2959, 16
      %v3157 = vrot.slane %v3155, 4
      %v3158 = vshll.u32 %v2959, 16
      %v3160 = vrot.slane %v3158, 5
      %v3161 = vor.u32 %v3157, %v3160
      %v3162 = vrot.slane %v3161, 4
      %v3164 = vshll.u32 %v2960, 16
      %v3166 = vrot.slane %v3164, 5
      %v3167 = vsel %vm1141, %v3162, %v3166
      %v3168 = vshrl.u32 %v2960, 16
      %v3170 = vrot.slane %v3168, 4
      %v3171 = vor.u32 %v3170, %v3166
      %v3172 = vrot.slane %v3171, 4
      %v3174 = vshll.u32 %v2961, 16
      %v3176 = vrot.slane %v3174, 5
      %v3177 = vsel %vm1141, %v3172, %v3176
      %v3179 = vshrl.u32 %v2962, 16
      %v3181 = vrot.slane %v3179, 4
      %v3182 = vshll.u32 %v2962, 16
      %v3184 = vrot.slane %v3182, 5
      %v3185 = vor.u32 %v3181, %v3184
      %v3186 = vrot.slane %v3185, 4
      %v3188 = vshll.u32 %v2963, 16
      %v3190 = vrot.slane %v3188, 5
      %v3191 = vsel %vm1141, %v3186, %v3190
      %v3192 = vshrl.u32 %v2963, 16
      %v3194 = vrot.slane %v3192, 4
      %v3195 = vor.u32 %v3194, %v3190
      %v3196 = vrot.slane %v3195, 4
      %v3198 = vshll.u32 %v2964, 16
      %v3200 = vrot.slane %v3198, 5
      %v3201 = vsel %vm1141, %v3196, %v3200
      %v3203 = vshrl.u32 %v2965, 16
      %v3205 = vrot.slane %v3203, 4
      %v3206 = vshll.u32 %v2965, 16
      %v3208 = vrot.slane %v3206, 5
      %v3209 = vor.u32 %v3205, %v3208
      %v3210 = vrot.slane %v3209, 4
      %v3212 = vshll.u32 %v2966, 16
      %v3214 = vrot.slane %v3212, 5
      %v3215 = vsel %vm1141, %v3210, %v3214
      %v3216 = vshrl.u32 %v2966, 16
      %v3218 = vrot.slane %v3216, 4
      %v3219 = vor.u32 %v3218, %v3214
      %v3220 = vrot.slane %v3219, 4
      %v3222 = vshll.u32 %v2967, 16
      %v3224 = vrot.slane %v3222, 5
      %v3225 = vsel %vm1141, %v3220, %v3224
      %v3227 = vshrl.u32 %v2968, 16
      %v3229 = vrot.slane %v3227, 4
      %v3230 = vshll.u32 %v2968, 16
      %v3232 = vrot.slane %v3230, 5
      %v3233 = vor.u32 %v3229, %v3232
      %v3234 = vrot.slane %v3233, 4
      %v3236 = vshll.u32 %v2969, 16
      %v3238 = vrot.slane %v3236, 5
      %v3239 = vsel %vm1141, %v3234, %v3238
      %v3240 = vshrl.u32 %v2969, 16
      %v3242 = vrot.slane %v3240, 4
      %v3243 = vor.u32 %v3242, %v3238
      %v3244 = vrot.slane %v3243, 4
      %v3246 = vshll.u32 %v2970, 16
      %v3248 = vrot.slane %v3246, 5
      %v3249 = vsel %vm1141, %v3244, %v3248
      %v3251 = vshrl.u32 %v2971, 16
      %v3253 = vrot.slane %v3251, 4
      %v3254 = vshll.u32 %v2971, 16
      %v3256 = vrot.slane %v3254, 5
      %v3257 = vor.u32 %v3253, %v3256
      %v3258 = vrot.slane %v3257, 4
      %v3260 = vshll.u32 %v2972, 16
      %v3262 = vrot.slane %v3260, 5
      %v3263 = vsel %vm1141, %v3258, %v3262
      %v3264 = vshrl.u32 %v2972, 16
      %v3266 = vrot.slane %v3264, 4
      %v3267 = vor.u32 %v3266, %v3262
      %v3268 = vrot.slane %v3267, 4
      %v3270 = vshll.u32 %v2973, 16
      %v3272 = vrot.slane %v3270, 5
      %v3273 = vsel %vm1141, %v3268, %v3272
      %v3275 = vshrl.u32 %v2974, 16
      %v3277 = vrot.slane %v3275, 4
      %v3278 = vshll.u32 %v2974, 16
      %v3280 = vrot.slane %v3278, 5
      %v3281 = vor.u32 %v3277, %v3280
      %v3282 = vrot.slane %v3281, 4
      %v3284 = vshll.u32 %v2975, 16
      %v3286 = vrot.slane %v3284, 5
      %v3287 = vsel %vm1141, %v3282, %v3286
      %v3288 = vshrl.u32 %v2975, 16
      %v3290 = vrot.slane %v3288, 4
      %v3291 = vor.u32 %v3290, %v3286
      %v3292 = vrot.slane %v3291, 4
      %v3294 = vshll.u32 %v2976, 16
      %v3296 = vrot.slane %v3294, 5
      %v3297 = vsel %vm1141, %v3292, %v3296
      %v3299 = vshrl.u32 %v2977, 16
      %v3301 = vrot.slane %v3299, 4
      %v3302 = vshll.u32 %v2977, 16
      %v3304 = vrot.slane %v3302, 5
      %v3305 = vor.u32 %v3301, %v3304
      %v3306 = vrot.slane %v3305, 4
      %v3308 = vshll.u32 %v2978, 16
      %v3310 = vrot.slane %v3308, 5
      %v3311 = vsel %vm1141, %v3306, %v3310
      %v3312 = vshrl.u32 %v2978, 16
      %v3314 = vrot.slane %v3312, 4
      %v3315 = vor.u32 %v3314, %v3310
      %v3316 = vrot.slane %v3315, 4
      %v3318 = vshll.u32 %v2979, 16
      %v3320 = vrot.slane %v3318, 5
      %v3321 = vsel %vm1141, %v3316, %v3320
      %v3323 = vshrl.u32 %v2980, 16
      %v3325 = vrot.slane %v3323, 4
      %v3326 = vshll.u32 %v2980, 16
      %v3328 = vrot.slane %v3326, 5
      %v3329 = vor.u32 %v3325, %v3328
      %v3330 = vrot.slane %v3329, 4
      %v3332 = vshll.u32 %v2981, 16
      %v3334 = vrot.slane %v3332, 5
      %v3335 = vsel %vm1141, %v3330, %v3334
      %v3336 = vshrl.u32 %v2981, 16
      %v3338 = vrot.slane %v3336, 4
      %v3339 = vor.u32 %v3338, %v3334
      %v3340 = vrot.slane %v3339, 4
      %v3342 = vshll.u32 %v2982, 16
      %v3344 = vrot.slane %v3342, 5
      %v3345 = vsel %vm1141, %v3340, %v3344
      %v3347 = vshrl.u32 %v2983, 16
      %v3349 = vrot.slane %v3347, 4
      %v3350 = vshll.u32 %v2983, 16
      %v3352 = vrot.slane %v3350, 5
      %v3353 = vor.u32 %v3349, %v3352
      %v3354 = vrot.slane %v3353, 4
      %v3356 = vshll.u32 %v2984, 16
      %v3358 = vrot.slane %v3356, 5
      %v3359 = vsel %vm1141, %v3354, %v3358
      %v3360 = vshrl.u32 %v2984, 16
      %v3362 = vrot.slane %v3360, 4
      %v3363 = vor.u32 %v3362, %v3358
      %v3364 = vrot.slane %v3363, 4
      %v3366 = vshll.u32 %v2985, 16
      %v3368 = vrot.slane %v3366, 5
      %v3369 = vsel %vm1141, %v3364, %v3368
      %v3370 = vld [vmem:[%s3 + $0x40] sm:$0xf]
      %v3371 = vld [vmem:[%s3 + $0x44] sm:$0xf]
      %v3372 = vld [vmem:[%s3 + $0x48] sm:$0xf]
      %v3373 = vld [vmem:[%s3 + $0x4c] sm:$0xf]
      %v3374 = vunpack.c.l.b16 %v2999
      %v3375 = vunpack.c.l.b16 %v3009
      %v3376 = vunpack.c.l.b16 %v3023
      %v3377 = vunpack.c.l.b16 %v3033
      %v3378 = vunpack.c.l.b16 %v3047
      %v3379 = vunpack.c.l.b16 %v3057
      %v3380 = vunpack.c.l.b16 %v3071
      %v3381 = vunpack.c.l.b16 %v3081
      %v3382 = vunpack.c.l.b16 %v3095
      %v3383 = vunpack.c.l.b16 %v3105
      %v3384 = vunpack.c.l.b16 %v3119
      %v3385 = vunpack.c.l.b16 %v3129
      %v3386 = vunpack.c.l.b16 %v3143
      %v3387 = vunpack.c.l.b16 %v3153
      %v3388 = vunpack.c.l.b16 %v3167
      %v3389 = vunpack.c.l.b16 %v3177
      %v3390 = vunpack.c.l.b16 %v3191
      %v3391 = vunpack.c.l.b16 %v3201
      %v3392 = vunpack.c.l.b16 %v3215
      %v3393 = vunpack.c.l.b16 %v3225
      %v3394 = vunpack.c.l.b16 %v3239
      %v3395 = vunpack.c.l.b16 %v3249
      %v3396 = vunpack.c.l.b16 %v3263
      %v3397 = vunpack.c.l.b16 %v3273
      %v3398 = vunpack.c.l.b16 %v3287
      %v3399 = vunpack.c.l.b16 %v3297
      %v3400 = vunpack.c.l.b16 %v3311
      %v3401 = vunpack.c.l.b16 %v3321
      %v3402 = vunpack.c.l.b16 %v3335
      %v3403 = vunpack.c.l.b16 %v3345
      %v3404 = vunpack.c.l.b16 %v3359
      %v3405 = vunpack.c.l.b16 %v3369
      %v3406 = vpack.c.b16 %v3375, %v3374
      %v3407 = vpack.c.b16 %v3377, %v3376
      %v3408 = vpack.c.b16 %v3379, %v3378
      %v3409 = vpack.c.b16 %v3381, %v3380
      %v3410 = vpack.c.b16 %v3383, %v3382
      %v3411 = vpack.c.b16 %v3385, %v3384
      %v3412 = vpack.c.b16 %v3387, %v3386
      %v3413 = vpack.c.b16 %v3389, %v3388
      %v3414 = vpack.c.b16 %v3391, %v3390
      %v3415 = vpack.c.b16 %v3393, %v3392
      %v3416 = vpack.c.b16 %v3395, %v3394
      %v3417 = vpack.c.b16 %v3397, %v3396
      %v3418 = vpack.c.b16 %v3399, %v3398
      %v3419 = vpack.c.b16 %v3401, %v3400
      %v3420 = vpack.c.b16 %v3403, %v3402
      %v3421 = vpack.c.b16 %v3405, %v3404
      %v3426 = vunpack.c.l.b16 %v3370
      %v3427 = vunpack.c.l.b16 %v3371
      %v3428 = vunpack.c.l.b16 %v3372
      %v3429 = vunpack.c.l.b16 %v3373
      %v3430 = vpack.c.b16 %v3427, %v3426
      %v3431 = vpack.c.b16 %v3429, %v3428
      %v3435 = vsel %vm1590, %v3406, 0
      %v3438 = vsel %vm1590, %v3407, 0
      %v3441 = vsel %vm1590, %v3408, 0
      %v3444 = vsel %vm1590, %v3409, 0
      %v3447 = vsel %vm1590, %v3410, 0
      %v3450 = vsel %vm1590, %v3411, 0
      %v3453 = vsel %vm1590, %v3412, 0
      %v3456 = vsel %vm1590, %v3413, 0
      %v3459 = vsel %vm1590, %v3414, 0
      %v3462 = vsel %vm1590, %v3415, 0
      %v3465 = vsel %vm1590, %v3416, 0
      %v3468 = vsel %vm1590, %v3417, 0
      %v3471 = vsel %vm1590, %v3418, 0
      %v3474 = vsel %vm1590, %v3419, 0
      %v3477 = vsel %vm1590, %v3420, 0
      %v3480 = vsel %vm1590, %v3421, 0
      %3482 = vmatprep.subr.bf16.mxu0 0
      %3483 = vmatpush1.bf16.msra.mxu0 0
      %3484 = vmatprep.subr.bf16.mxu0 0
      %3485 = vmatpush1.bf16.msra.mxu0 0
      %3486 = vmatprep.subr.bf16.mxu0 0
      %3487 = vmatpush1.bf16.msra.mxu0 0
      %3488 = vmatprep.subr.bf16.mxu0 0
      %3489 = vmatpush1.bf16.msra.mxu0 0
      %3490 = vmatprep.subr.bf16.mxu0 0
      %3491 = vmatpush1.bf16.msra.mxu0 0
      %3492 = vmatprep.subr.bf16.mxu0 0
      %3493 = vmatpush1.bf16.msra.mxu0 0
      %3494 = vmatprep.subr.bf16.mxu0 0
      %3495 = vmatpush1.bf16.msra.mxu0 %v3431
      %3496 = vmatprep.subr.bf16.mxu0 0
      %3497 = vmatpush1.bf16.msra.mxu0 %v3430
      %3498 = vmatprep.subr.bf16.mxu0 0
      %3499 = vmatpush2.bf16.msra.mxu0 0
      %3500 = vmatprep.subr.bf16.mxu0 0
      %3501 = vmatpush2.bf16.msra.mxu0 0
      %3502 = vmatprep.subr.bf16.mxu0 0
      %3503 = vmatpush2.bf16.msra.mxu0 0
      %3504 = vmatprep.subr.bf16.mxu0 0
      %3505 = vmatpush2.bf16.msra.mxu0 0
      %3506 = vmatprep.subr.bf16.mxu0 0
      %3507 = vmatpush2.bf16.msra.mxu0 0
      %3508 = vmatprep.subr.bf16.mxu0 0
      %3509 = vmatpush2.bf16.msra.mxu0 0
      %3510 = vmatprep.subr.bf16.mxu0 0
      %3511 = vmatpush2.bf16.msra.mxu0 0
      %3512 = vmatprep.subr.bf16.mxu0 0
      %3513 = vmatpush2.bf16.msra.mxu0 0
      %3514 = vmatprep.mubr.bf16.mxu0 0
      %3515 = vmatmul.mubr.bf16.gmra.mxu0 %v3435
      %v3516 = vpop.f32.mrf.mxu0
      %v3517 = vadd.f32 0.0, %v3516
      %v3518 = vpop.f32.mrf.mxu0
      %v3519 = vpop.f32.mrf.mxu0
      %v3520 = vadd.f32 0.0, %v3519
      %v3521 = vpop.f32.mrf.mxu0
      %3522 = vmatprep.mubr.bf16.mxu0 0
      %3523 = vmatmul.mubr.bf16.gmra.mxu0 %v3438
      %v3524 = vpop.f32.mrf.mxu0
      %v3525 = vadd.f32 0.0, %v3524
      %v3526 = vpop.f32.mrf.mxu0
      %v3527 = vpop.f32.mrf.mxu0
      %v3528 = vadd.f32 0.0, %v3527
      %v3529 = vpop.f32.mrf.mxu0
      %3530 = vmatprep.mubr.bf16.mxu0 0
      %3531 = vmatmul.mubr.bf16.gmra.mxu0 %v3441
      %v3532 = vpop.f32.mrf.mxu0
      %v3533 = vadd.f32 0.0, %v3532
      %v3534 = vpop.f32.mrf.mxu0
      %v3535 = vpop.f32.mrf.mxu0
      %v3536 = vadd.f32 0.0, %v3535
      %v3537 = vpop.f32.mrf.mxu0
      %3538 = vmatprep.mubr.bf16.mxu0 0
      %3539 = vmatmul.mubr.bf16.gmra.mxu0 %v3444
      %v3540 = vpop.f32.mrf.mxu0
      %v3541 = vadd.f32 0.0, %v3540
      %v3542 = vpop.f32.mrf.mxu0
      %v3543 = vpop.f32.mrf.mxu0
      %v3544 = vadd.f32 0.0, %v3543
      %v3545 = vpop.f32.mrf.mxu0
      %3546 = vmatprep.mubr.bf16.mxu0 0
      %3547 = vmatmul.mubr.bf16.gmra.mxu0 %v3447
      %v3548 = vpop.f32.mrf.mxu0
      %v3549 = vadd.f32 0.0, %v3548
      %v3550 = vpop.f32.mrf.mxu0
      %v3551 = vpop.f32.mrf.mxu0
      %v3552 = vadd.f32 0.0, %v3551
      %v3553 = vpop.f32.mrf.mxu0
      %3554 = vmatprep.mubr.bf16.mxu0 0
      %3555 = vmatmul.mubr.bf16.gmra.mxu0 %v3450
      %v3556 = vpop.f32.mrf.mxu0
      %v3557 = vadd.f32 0.0, %v3556
      %v3558 = vpop.f32.mrf.mxu0
      %v3559 = vpop.f32.mrf.mxu0
      %v3560 = vadd.f32 0.0, %v3559
      %v3561 = vpop.f32.mrf.mxu0
      %3562 = vmatprep.mubr.bf16.mxu0 0
      %3563 = vmatmul.mubr.bf16.gmra.mxu0 %v3453
      %v3564 = vpop.f32.mrf.mxu0
      %v3565 = vadd.f32 0.0, %v3564
      %v3566 = vpop.f32.mrf.mxu0
      %v3567 = vpop.f32.mrf.mxu0
      %v3568 = vadd.f32 0.0, %v3567
      %v3569 = vpop.f32.mrf.mxu0
      %3570 = vmatprep.mubr.bf16.mxu0 0
      %3571 = vmatmul.mubr.bf16.gmra.mxu0 %v3456
      %v3572 = vpop.f32.mrf.mxu0
      %v3573 = vadd.f32 0.0, %v3572
      %v3574 = vpop.f32.mrf.mxu0
      %v3575 = vpop.f32.mrf.mxu0
      %v3576 = vadd.f32 0.0, %v3575
      %v3577 = vpop.f32.mrf.mxu0
      %3578 = vmatprep.mubr.bf16.mxu0 0
      %3579 = vmatmul.mubr.bf16.gmra.mxu0 %v3459
      %v3580 = vpop.f32.mrf.mxu0
      %v3581 = vadd.f32 0.0, %v3580
      %v3582 = vpop.f32.mrf.mxu0
      %v3583 = vpop.f32.mrf.mxu0
      %v3584 = vadd.f32 0.0, %v3583
      %v3585 = vpop.f32.mrf.mxu0
      %3586 = vmatprep.mubr.bf16.mxu0 0
      %3587 = vmatmul.mubr.bf16.gmra.mxu0 %v3462
      %v3588 = vpop.f32.mrf.mxu0
      %v3589 = vadd.f32 0.0, %v3588
      %v3590 = vpop.f32.mrf.mxu0
      %v3591 = vpop.f32.mrf.mxu0
      %v3592 = vadd.f32 0.0, %v3591
      %v3593 = vpop.f32.mrf.mxu0
      %3594 = vmatprep.mubr.bf16.mxu0 0
      %3595 = vmatmul.mubr.bf16.gmra.mxu0 %v3465
      %v3596 = vpop.f32.mrf.mxu0
      %v3597 = vadd.f32 0.0, %v3596
      %v3598 = vpop.f32.mrf.mxu0
      %v3599 = vpop.f32.mrf.mxu0
      %v3600 = vadd.f32 0.0, %v3599
      %v3601 = vpop.f32.mrf.mxu0
      %3602 = vmatprep.mubr.bf16.mxu0 0
      %3603 = vmatmul.mubr.bf16.gmra.mxu0 %v3468
      %v3604 = vpop.f32.mrf.mxu0
      %v3605 = vadd.f32 0.0, %v3604
      %v3606 = vpop.f32.mrf.mxu0
      %v3607 = vpop.f32.mrf.mxu0
      %v3608 = vadd.f32 0.0, %v3607
      %v3609 = vpop.f32.mrf.mxu0
      %3610 = vmatprep.mubr.bf16.mxu0 0
      %3611 = vmatmul.mubr.bf16.gmra.mxu0 %v3471
      %v3612 = vpop.f32.mrf.mxu0
      %v3613 = vadd.f32 0.0, %v3612
      %v3614 = vpop.f32.mrf.mxu0
      %v3615 = vpop.f32.mrf.mxu0
      %v3616 = vadd.f32 0.0, %v3615
      %v3617 = vpop.f32.mrf.mxu0
      %3618 = vmatprep.mubr.bf16.mxu0 0
      %3619 = vmatmul.mubr.bf16.gmra.mxu0 %v3474
      %v3620 = vpop.f32.mrf.mxu0
      %v3621 = vadd.f32 0.0, %v3620
      %v3622 = vpop.f32.mrf.mxu0
      %v3623 = vpop.f32.mrf.mxu0
      %v3624 = vadd.f32 0.0, %v3623
      %v3625 = vpop.f32.mrf.mxu0
      %3626 = vmatprep.mubr.bf16.mxu0 0
      %3627 = vmatmul.mubr.bf16.gmra.mxu0 %v3477
      %v3628 = vpop.f32.mrf.mxu0
      %v3629 = vadd.f32 0.0, %v3628
      %v3630 = vpop.f32.mrf.mxu0
      %v3631 = vpop.f32.mrf.mxu0
      %v3632 = vadd.f32 0.0, %v3631
      %v3633 = vpop.f32.mrf.mxu0
      %3634 = vmatprep.mubr.bf16.mxu0 0
      %3635 = vmatmul.mubr.bf16.gmra.mxu0 %v3480
      %v3636 = vpop.f32.mrf.mxu0
      %v3637 = vadd.f32 0.0, %v3636
      %v3638 = vpop.f32.mrf.mxu0
      %v3639 = vpop.f32.mrf.mxu0
      %v3640 = vadd.f32 0.0, %v3639
      %v3641 = vpop.f32.mrf.mxu0
      %3642 = vdwg.mxu0
      %v3643 = vadd.f32 %v2906, %v3517
      %v3644 = vadd.f32 %v2907, %v3520
      %v3645 = vadd.f32 %v2908, %v3525
      %v3646 = vadd.f32 %v2909, %v3528
      %v3647 = vadd.f32 %v2910, %v3533
      %v3648 = vadd.f32 %v2911, %v3536
      %v3649 = vadd.f32 %v2912, %v3541
      %v3650 = vadd.f32 %v2913, %v3544
      %v3651 = vadd.f32 %v2914, %v3549
      %v3652 = vadd.f32 %v2915, %v3552
      %v3653 = vadd.f32 %v2916, %v3557
      %v3654 = vadd.f32 %v2917, %v3560
      %v3655 = vadd.f32 %v2918, %v3565
      %v3656 = vadd.f32 %v2919, %v3568
      %v3657 = vadd.f32 %v2920, %v3573
      %v3658 = vadd.f32 %v2921, %v3576
      %v3659 = vadd.f32 %v2922, %v3581
      %v3660 = vadd.f32 %v2923, %v3584
      %v3661 = vadd.f32 %v2924, %v3589
      %v3662 = vadd.f32 %v2925, %v3592
      %v3663 = vadd.f32 %v2926, %v3597
      %v3664 = vadd.f32 %v2927, %v3600
      %v3665 = vadd.f32 %v2928, %v3605
      %v3666 = vadd.f32 %v2929, %v3608
      %v3667 = vadd.f32 %v2930, %v3613
      %v3668 = vadd.f32 %v2931, %v3616
      %v3669 = vadd.f32 %v2932, %v3621
      %v3670 = vadd.f32 %v2933, %v3624
      %v3671 = vadd.f32 %v2934, %v3629
      %v3672 = vadd.f32 %v2935, %v3632
      %v3673 = vadd.f32 %v2936, %v3637
      %v3674 = vadd.f32 %v2937, %v3640
      %v3675 = vld [vmem:[%s469] sm:$0xe]
      %v3676 = vld [vmem:[%s469 + $0xc] sm:$0xe]
      %v3677 = vld [vmem:[%s469 + $0x18] sm:$0xe]
      %v3678 = vld [vmem:[%s469 + $0x24] sm:$0xe]
      %v3679 = vld [vmem:[%s469 + $0x30] sm:$0xe]
      %v3680 = vld [vmem:[%s469 + $0x3c] sm:$0xe]
      %v3681 = vld [vmem:[%s469 + $0x48] sm:$0xe]
      %v3682 = vld [vmem:[%s469 + $0x54] sm:$0xe]
      %v3683 = vld [vmem:[%s469 + $0x60] sm:$0xe]
      %v3684 = vld [vmem:[%s469 + $0x6c] sm:$0xe]
      %v3685 = vld [vmem:[%s469 + $0x78] sm:$0xe]
      %v3686 = vld [vmem:[%s469 + $0x84] sm:$0xe]
      %v3687 = vld [vmem:[%s469 + $0x90] sm:$0xe]
      %v3688 = vld [vmem:[%s469 + $0x9c] sm:$0xe]
      %v3689 = vld [vmem:[%s469 + $0xa8] sm:$0xe]
      %v3690 = vld [vmem:[%s469 + $0xb4] sm:$0xe]
      %v3739 = vrot.slane %v3675, 5
      %v3740 = vrot.slane %v3739, 4
      %v3741 = vrot.slane %v2939, 5
      %v3742 = vsel %vm2151, %v3740, %v3741
      %v3743 = vrot.slane %v3741, 4
      %v3744 = vrot.slane %v2940, 5
      %v3745 = vsel %vm2151, %v3743, %v3744
      %v3746 = vrot.slane %v3676, 5
      %v3747 = vrot.slane %v3746, 4
      %v3748 = vrot.slane %v2942, 5
      %v3749 = vsel %vm2151, %v3747, %v3748
      %v3750 = vrot.slane %v3748, 4
      %v3751 = vrot.slane %v2943, 5
      %v3752 = vsel %vm2151, %v3750, %v3751
      %v3753 = vrot.slane %v3677, 5
      %v3754 = vrot.slane %v3753, 4
      %v3755 = vrot.slane %v2945, 5
      %v3756 = vsel %vm2151, %v3754, %v3755
      %v3757 = vrot.slane %v3755, 4
      %v3758 = vrot.slane %v2946, 5
      %v3759 = vsel %vm2151, %v3757, %v3758
      %v3760 = vrot.slane %v3678, 5
      %v3761 = vrot.slane %v3760, 4
      %v3762 = vrot.slane %v2948, 5
      %v3763 = vsel %vm2151, %v3761, %v3762
      %v3764 = vrot.slane %v3762, 4
      %v3765 = vrot.slane %v2949, 5
      %v3766 = vsel %vm2151, %v3764, %v3765
      %v3767 = vrot.slane %v3679, 5
      %v3768 = vrot.slane %v3767, 4
      %v3769 = vrot.slane %v2951, 5
      %v3770 = vsel %vm2151, %v3768, %v3769
      %v3771 = vrot.slane %v3769, 4
      %v3772 = vrot.slane %v2952, 5
      %v3773 = vsel %vm2151, %v3771, %v3772
      %v3774 = vrot.slane %v3680, 5
      %v3775 = vrot.slane %v3774, 4
      %v3776 = vrot.slane %v2954, 5
      %v3777 = vsel %vm2151, %v3775, %v3776
      %v3778 = vrot.slane %v3776, 4
      %v3779 = vrot.slane %v2955, 5
      %v3780 = vsel %vm2151, %v3778, %v3779
      %v3781 = vrot.slane %v3681, 5
      %v3782 = vrot.slane %v3781, 4
      %v3783 = vrot.slane %v2957, 5
      %v3784 = vsel %vm2151, %v3782, %v3783
      %v3785 = vrot.slane %v3783, 4
      %v3786 = vrot.slane %v2958, 5
      %v3787 = vsel %vm2151, %v3785, %v3786
      %v3788 = vrot.slane %v3682, 5
      %v3789 = vrot.slane %v3788, 4
      %v3790 = vrot.slane %v2960, 5
      %v3791 = vsel %vm2151, %v3789, %v3790
      %v3792 = vrot.slane %v3790, 4
      %v3793 = vrot.slane %v2961, 5
      %v3794 = vsel %vm2151, %v3792, %v3793
      %v3795 = vrot.slane %v3683, 5
      %v3796 = vrot.slane %v3795, 4
      %v3797 = vrot.slane %v2963, 5
      %v3798 = vsel %vm2151, %v3796, %v3797
      %v3799 = vrot.slane %v3797, 4
      %v3800 = vrot.slane %v2964, 5
      %v3801 = vsel %vm2151, %v3799, %v3800
      %v3802 = vrot.slane %v3684, 5
      %v3803 = vrot.slane %v3802, 4
      %v3804 = vrot.slane %v2966, 5
      %v3805 = vsel %vm2151, %v3803, %v3804
      %v3806 = vrot.slane %v3804, 4
      %v3807 = vrot.slane %v2967, 5
      %v3808 = vsel %vm2151, %v3806, %v3807
      %v3809 = vrot.slane %v3685, 5
      %v3810 = vrot.slane %v3809, 4
      %v3811 = vrot.slane %v2969, 5
      %v3812 = vsel %vm2151, %v3810, %v3811
      %v3813 = vrot.slane %v3811, 4
      %v3814 = vrot.slane %v2970, 5
      %v3815 = vsel %vm2151, %v3813, %v3814
      %v3816 = vrot.slane %v3686, 5
      %v3817 = vrot.slane %v3816, 4
      %v3818 = vrot.slane %v2972, 5
      %v3819 = vsel %vm2151, %v3817, %v3818
      %v3820 = vrot.slane %v3818, 4
      %v3821 = vrot.slane %v2973, 5
      %v3822 = vsel %vm2151, %v3820, %v3821
      %v3823 = vrot.slane %v3687, 5
      %v3824 = vrot.slane %v3823, 4
      %v3825 = vrot.slane %v2975, 5
      %v3826 = vsel %vm2151, %v3824, %v3825
      %v3827 = vrot.slane %v3825, 4
      %v3828 = vrot.slane %v2976, 5
      %v3829 = vsel %vm2151, %v3827, %v3828
      %v3830 = vrot.slane %v3688, 5
      %v3831 = vrot.slane %v3830, 4
      %v3832 = vrot.slane %v2978, 5
      %v3833 = vsel %vm2151, %v3831, %v3832
      %v3834 = vrot.slane %v3832, 4
      %v3835 = vrot.slane %v2979, 5
      %v3836 = vsel %vm2151, %v3834, %v3835
      %v3837 = vrot.slane %v3689, 5
      %v3838 = vrot.slane %v3837, 4
      %v3839 = vrot.slane %v2981, 5
      %v3840 = vsel %vm2151, %v3838, %v3839
      %v3841 = vrot.slane %v3839, 4
      %v3842 = vrot.slane %v2982, 5
      %v3843 = vsel %vm2151, %v3841, %v3842
      %v3844 = vrot.slane %v3690, 5
      %v3845 = vrot.slane %v3844, 4
      %v3846 = vrot.slane %v2984, 5
      %v3847 = vsel %vm2151, %v3845, %v3846
      %v3848 = vrot.slane %v3846, 4
      %v3849 = vrot.slane %v2985, 5
      %v3850 = vsel %vm2151, %v3848, %v3849
      %v3851 = vld [vmem:[%s3 + $0x50] sm:$0xf]
      %v3852 = vld [vmem:[%s3 + $0x54] sm:$0xf]
      %v3853 = vld [vmem:[%s3 + $0x58] sm:$0xf]
      %v3854 = vld [vmem:[%s3 + $0x5c] sm:$0xf]
      %v3855 = vunpack.c.l.b16 %v3742
      %v3856 = vunpack.c.l.b16 %v3745
      %v3857 = vunpack.c.l.b16 %v3749
      %v3858 = vunpack.c.l.b16 %v3752
      %v3859 = vunpack.c.l.b16 %v3756
      %v3860 = vunpack.c.l.b16 %v3759
      %v3861 = vunpack.c.l.b16 %v3763
      %v3862 = vunpack.c.l.b16 %v3766
      %v3863 = vunpack.c.l.b16 %v3770
      %v3864 = vunpack.c.l.b16 %v3773
      %v3865 = vunpack.c.l.b16 %v3777
      %v3866 = vunpack.c.l.b16 %v3780
      %v3867 = vunpack.c.l.b16 %v3784
      %v3868 = vunpack.c.l.b16 %v3787
      %v3869 = vunpack.c.l.b16 %v3791
      %v3870 = vunpack.c.l.b16 %v3794
      %v3871 = vunpack.c.l.b16 %v3798
      %v3872 = vunpack.c.l.b16 %v3801
      %v3873 = vunpack.c.l.b16 %v3805
      %v3874 = vunpack.c.l.b16 %v3808
      %v3875 = vunpack.c.l.b16 %v3812
      %v3876 = vunpack.c.l.b16 %v3815
      %v3877 = vunpack.c.l.b16 %v3819
      %v3878 = vunpack.c.l.b16 %v3822
      %v3879 = vunpack.c.l.b16 %v3826
      %v3880 = vunpack.c.l.b16 %v3829
      %v3881 = vunpack.c.l.b16 %v3833
      %v3882 = vunpack.c.l.b16 %v3836
      %v3883 = vunpack.c.l.b16 %v3840
      %v3884 = vunpack.c.l.b16 %v3843
      %v3885 = vunpack.c.l.b16 %v3847
      %v3886 = vunpack.c.l.b16 %v3850
      %v3887 = vpack.c.b16 %v3856, %v3855
      %v3888 = vpack.c.b16 %v3858, %v3857
      %v3889 = vpack.c.b16 %v3860, %v3859
      %v3890 = vpack.c.b16 %v3862, %v3861
      %v3891 = vpack.c.b16 %v3864, %v3863
      %v3892 = vpack.c.b16 %v3866, %v3865
      %v3893 = vpack.c.b16 %v3868, %v3867
      %v3894 = vpack.c.b16 %v3870, %v3869
      %v3895 = vpack.c.b16 %v3872, %v3871
      %v3896 = vpack.c.b16 %v3874, %v3873
      %v3897 = vpack.c.b16 %v3876, %v3875
      %v3898 = vpack.c.b16 %v3878, %v3877
      %v3899 = vpack.c.b16 %v3880, %v3879
      %v3900 = vpack.c.b16 %v3882, %v3881
      %v3901 = vpack.c.b16 %v3884, %v3883
      %v3902 = vpack.c.b16 %v3886, %v3885
      %v3907 = vunpack.c.l.b16 %v3851
      %v3908 = vunpack.c.l.b16 %v3852
      %v3909 = vunpack.c.l.b16 %v3853
      %v3910 = vunpack.c.l.b16 %v3854
      %v3911 = vpack.c.b16 %v3908, %v3907
      %v3912 = vpack.c.b16 %v3910, %v3909
      %v3916 = vsel %vm1590, %v3887, 0
      %v3919 = vsel %vm1590, %v3888, 0
      %v3922 = vsel %vm1590, %v3889, 0
      %v3925 = vsel %vm1590, %v3890, 0
      %v3928 = vsel %vm1590, %v3891, 0
      %v3931 = vsel %vm1590, %v3892, 0
      %v3934 = vsel %vm1590, %v3893, 0
      %v3937 = vsel %vm1590, %v3894, 0
      %v3940 = vsel %vm1590, %v3895, 0
      %v3943 = vsel %vm1590, %v3896, 0
      %v3946 = vsel %vm1590, %v3897, 0
      %v3949 = vsel %vm1590, %v3898, 0
      %v3952 = vsel %vm1590, %v3899, 0
      %v3955 = vsel %vm1590, %v3900, 0
      %v3958 = vsel %vm1590, %v3901, 0
      %v3961 = vsel %vm1590, %v3902, 0
      %3963 = vmatprep.subr.bf16.mxu0 0
      %3964 = vmatpush1.bf16.msra.mxu0 0
      %3965 = vmatprep.subr.bf16.mxu0 0
      %3966 = vmatpush1.bf16.msra.mxu0 0
      %3967 = vmatprep.subr.bf16.mxu0 0
      %3968 = vmatpush1.bf16.msra.mxu0 0
      %3969 = vmatprep.subr.bf16.mxu0 0
      %3970 = vmatpush1.bf16.msra.mxu0 0
      %3971 = vmatprep.subr.bf16.mxu0 0
      %3972 = vmatpush1.bf16.msra.mxu0 0
      %3973 = vmatprep.subr.bf16.mxu0 0
      %3974 = vmatpush1.bf16.msra.mxu0 0
      %3975 = vmatprep.subr.bf16.mxu0 0
      %3976 = vmatpush1.bf16.msra.mxu0 %v3912
      %3977 = vmatprep.subr.bf16.mxu0 0
      %3978 = vmatpush1.bf16.msra.mxu0 %v3911
      %3979 = vmatprep.subr.bf16.mxu0 0
      %3980 = vmatpush2.bf16.msra.mxu0 0
      %3981 = vmatprep.subr.bf16.mxu0 0
      %3982 = vmatpush2.bf16.msra.mxu0 0
      %3983 = vmatprep.subr.bf16.mxu0 0
      %3984 = vmatpush2.bf16.msra.mxu0 0
      %3985 = vmatprep.subr.bf16.mxu0 0
      %3986 = vmatpush2.bf16.msra.mxu0 0
      %3987 = vmatprep.subr.bf16.mxu0 0
      %3988 = vmatpush2.bf16.msra.mxu0 0
      %3989 = vmatprep.subr.bf16.mxu0 0
      %3990 = vmatpush2.bf16.msra.mxu0 0
      %3991 = vmatprep.subr.bf16.mxu0 0
      %3992 = vmatpush2.bf16.msra.mxu0 0
      %3993 = vmatprep.subr.bf16.mxu0 0
      %3994 = vmatpush2.bf16.msra.mxu0 0
      %3995 = vmatprep.mubr.bf16.mxu0 0
      %3996 = vmatmul.mubr.bf16.gmra.mxu0 %v3916
      %v3997 = vpop.f32.mrf.mxu0
      %v3998 = vadd.f32 0.0, %v3997
      %v3999 = vpop.f32.mrf.mxu0
      %v4000 = vpop.f32.mrf.mxu0
      %v4001 = vadd.f32 0.0, %v4000
      %v4002 = vpop.f32.mrf.mxu0
      %4003 = vmatprep.mubr.bf16.mxu0 0
      %4004 = vmatmul.mubr.bf16.gmra.mxu0 %v3919
      %v4005 = vpop.f32.mrf.mxu0
      %v4006 = vadd.f32 0.0, %v4005
      %v4007 = vpop.f32.mrf.mxu0
      %v4008 = vpop.f32.mrf.mxu0
      %v4009 = vadd.f32 0.0, %v4008
      %v4010 = vpop.f32.mrf.mxu0
      %4011 = vmatprep.mubr.bf16.mxu0 0
      %4012 = vmatmul.mubr.bf16.gmra.mxu0 %v3922
      %v4013 = vpop.f32.mrf.mxu0
      %v4014 = vadd.f32 0.0, %v4013
      %v4015 = vpop.f32.mrf.mxu0
      %v4016 = vpop.f32.mrf.mxu0
      %v4017 = vadd.f32 0.0, %v4016
      %v4018 = vpop.f32.mrf.mxu0
      %4019 = vmatprep.mubr.bf16.mxu0 0
      %4020 = vmatmul.mubr.bf16.gmra.mxu0 %v3925
      %v4021 = vpop.f32.mrf.mxu0
      %v4022 = vadd.f32 0.0, %v4021
      %v4023 = vpop.f32.mrf.mxu0
      %v4024 = vpop.f32.mrf.mxu0
      %v4025 = vadd.f32 0.0, %v4024
      %v4026 = vpop.f32.mrf.mxu0
      %4027 = vmatprep.mubr.bf16.mxu0 0
      %4028 = vmatmul.mubr.bf16.gmra.mxu0 %v3928
      %v4029 = vpop.f32.mrf.mxu0
      %v4030 = vadd.f32 0.0, %v4029
      %v4031 = vpop.f32.mrf.mxu0
      %v4032 = vpop.f32.mrf.mxu0
      %v4033 = vadd.f32 0.0, %v4032
      %v4034 = vpop.f32.mrf.mxu0
      %4035 = vmatprep.mubr.bf16.mxu0 0
      %4036 = vmatmul.mubr.bf16.gmra.mxu0 %v3931
      %v4037 = vpop.f32.mrf.mxu0
      %v4038 = vadd.f32 0.0, %v4037
      %v4039 = vpop.f32.mrf.mxu0
      %v4040 = vpop.f32.mrf.mxu0
      %v4041 = vadd.f32 0.0, %v4040
      %v4042 = vpop.f32.mrf.mxu0
      %4043 = vmatprep.mubr.bf16.mxu0 0
      %4044 = vmatmul.mubr.bf16.gmra.mxu0 %v3934
      %v4045 = vpop.f32.mrf.mxu0
      %v4046 = vadd.f32 0.0, %v4045
      %v4047 = vpop.f32.mrf.mxu0
      %v4048 = vpop.f32.mrf.mxu0
      %v4049 = vadd.f32 0.0, %v4048
      %v4050 = vpop.f32.mrf.mxu0
      %4051 = vmatprep.mubr.bf16.mxu0 0
      %4052 = vmatmul.mubr.bf16.gmra.mxu0 %v3937
      %v4053 = vpop.f32.mrf.mxu0
      %v4054 = vadd.f32 0.0, %v4053
      %v4055 = vpop.f32.mrf.mxu0
      %v4056 = vpop.f32.mrf.mxu0
      %v4057 = vadd.f32 0.0, %v4056
      %v4058 = vpop.f32.mrf.mxu0
      %4059 = vmatprep.mubr.bf16.mxu0 0
      %4060 = vmatmul.mubr.bf16.gmra.mxu0 %v3940
      %v4061 = vpop.f32.mrf.mxu0
      %v4062 = vadd.f32 0.0, %v4061
      %v4063 = vpop.f32.mrf.mxu0
      %v4064 = vpop.f32.mrf.mxu0
      %v4065 = vadd.f32 0.0, %v4064
      %v4066 = vpop.f32.mrf.mxu0
      %4067 = vmatprep.mubr.bf16.mxu0 0
      %4068 = vmatmul.mubr.bf16.gmra.mxu0 %v3943
      %v4069 = vpop.f32.mrf.mxu0
      %v4070 = vadd.f32 0.0, %v4069
      %v4071 = vpop.f32.mrf.mxu0
      %v4072 = vpop.f32.mrf.mxu0
      %v4073 = vadd.f32 0.0, %v4072
      %v4074 = vpop.f32.mrf.mxu0
      %4075 = vmatprep.mubr.bf16.mxu0 0
      %4076 = vmatmul.mubr.bf16.gmra.mxu0 %v3946
      %v4077 = vpop.f32.mrf.mxu0
      %v4078 = vadd.f32 0.0, %v4077
      %v4079 = vpop.f32.mrf.mxu0
      %v4080 = vpop.f32.mrf.mxu0
      %v4081 = vadd.f32 0.0, %v4080
      %v4082 = vpop.f32.mrf.mxu0
      %4083 = vmatprep.mubr.bf16.mxu0 0
      %4084 = vmatmul.mubr.bf16.gmra.mxu0 %v3949
      %v4085 = vpop.f32.mrf.mxu0
      %v4086 = vadd.f32 0.0, %v4085
      %v4087 = vpop.f32.mrf.mxu0
      %v4088 = vpop.f32.mrf.mxu0
      %v4089 = vadd.f32 0.0, %v4088
      %v4090 = vpop.f32.mrf.mxu0
      %4091 = vmatprep.mubr.bf16.mxu0 0
      %4092 = vmatmul.mubr.bf16.gmra.mxu0 %v3952
      %v4093 = vpop.f32.mrf.mxu0
      %v4094 = vadd.f32 0.0, %v4093
      %v4095 = vpop.f32.mrf.mxu0
      %v4096 = vpop.f32.mrf.mxu0
      %v4097 = vadd.f32 0.0, %v4096
      %v4098 = vpop.f32.mrf.mxu0
      %4099 = vmatprep.mubr.bf16.mxu0 0
      %4100 = vmatmul.mubr.bf16.gmra.mxu0 %v3955
      %v4101 = vpop.f32.mrf.mxu0
      %v4102 = vadd.f32 0.0, %v4101
      %v4103 = vpop.f32.mrf.mxu0
      %v4104 = vpop.f32.mrf.mxu0
      %v4105 = vadd.f32 0.0, %v4104
      %v4106 = vpop.f32.mrf.mxu0
      %4107 = vmatprep.mubr.bf16.mxu0 0
      %4108 = vmatmul.mubr.bf16.gmra.mxu0 %v3958
      %v4109 = vpop.f32.mrf.mxu0
      %v4110 = vadd.f32 0.0, %v4109
      %v4111 = vpop.f32.mrf.mxu0
      %v4112 = vpop.f32.mrf.mxu0
      %v4113 = vadd.f32 0.0, %v4112
      %v4114 = vpop.f32.mrf.mxu0
      %4115 = vmatprep.mubr.bf16.mxu0 0
      %4116 = vmatmul.mubr.bf16.gmra.mxu0 %v3961
      %v4117 = vpop.f32.mrf.mxu0
      %v4118 = vadd.f32 0.0, %v4117
      %v4119 = vpop.f32.mrf.mxu0
      %v4120 = vpop.f32.mrf.mxu0
      %v4121 = vadd.f32 0.0, %v4120
      %v4122 = vpop.f32.mrf.mxu0
      %4123 = vdwg.mxu0
      %v4124 = vadd.f32 %v3643, %v3998
      %v4125 = vadd.f32 %v3644, %v4001
      %v4126 = vadd.f32 %v3645, %v4006
      %v4127 = vadd.f32 %v3646, %v4009
      %v4128 = vadd.f32 %v3647, %v4014
      %v4129 = vadd.f32 %v3648, %v4017
      %v4130 = vadd.f32 %v3649, %v4022
      %v4131 = vadd.f32 %v3650, %v4025
      %v4132 = vadd.f32 %v3651, %v4030
      %v4133 = vadd.f32 %v3652, %v4033
      %v4134 = vadd.f32 %v3653, %v4038
      %v4135 = vadd.f32 %v3654, %v4041
      %v4136 = vadd.f32 %v3655, %v4046
      %v4137 = vadd.f32 %v3656, %v4049
      %v4138 = vadd.f32 %v3657, %v4054
      %v4139 = vadd.f32 %v3658, %v4057
      %v4140 = vadd.f32 %v3659, %v4062
      %v4141 = vadd.f32 %v3660, %v4065
      %v4142 = vadd.f32 %v3661, %v4070
      %v4143 = vadd.f32 %v3662, %v4073
      %v4144 = vadd.f32 %v3663, %v4078
      %v4145 = vadd.f32 %v3664, %v4081
      %v4146 = vadd.f32 %v3665, %v4086
      %v4147 = vadd.f32 %v3666, %v4089
      %v4148 = vadd.f32 %v3667, %v4094
      %v4149 = vadd.f32 %v3668, %v4097
      %v4150 = vadd.f32 %v3669, %v4102
      %v4151 = vadd.f32 %v3670, %v4105
      %v4152 = vadd.f32 %v3671, %v4110
      %v4153 = vadd.f32 %v3672, %v4113
      %v4154 = vadd.f32 %v3673, %v4118
      %v4155 = vadd.f32 %v3674, %v4121
      %s4156 = scalar_lea.vmem [#allocation2], 24
      %v4157 = vld [vmem:[%s4156] sm:$0xf]
      %v4158 = vld [vmem:[%s4156 + $0x4] sm:$0xf]
      %v4159 = vld [vmem:[%s4156 + $0xc] sm:$0xf]
      %v4160 = vld [vmem:[%s4156 + $0x10] sm:$0xf]
      %v4161 = vld [vmem:[%s4156 + $0x18] sm:$0xf]
      %v4162 = vld [vmem:[%s4156 + $0x1c] sm:$0xf]
      %v4163 = vld [vmem:[%s4156 + $0x24] sm:$0xf]
      %v4164 = vld [vmem:[%s4156 + $0x28] sm:$0xf]
      %v4165 = vld [vmem:[%s4156 + $0x30] sm:$0xf]
      %v4166 = vld [vmem:[%s4156 + $0x34] sm:$0xf]
      %v4167 = vld [vmem:[%s4156 + $0x3c] sm:$0xf]
      %v4168 = vld [vmem:[%s4156 + $0x40] sm:$0xf]
      %v4169 = vld [vmem:[%s4156 + $0x48] sm:$0xf]
      %v4170 = vld [vmem:[%s4156 + $0x4c] sm:$0xf]
      %v4171 = vld [vmem:[%s4156 + $0x54] sm:$0xf]
      %v4172 = vld [vmem:[%s4156 + $0x58] sm:$0xf]
      %v4173 = vld [vmem:[%s4156 + $0x60] sm:$0xf]
      %v4174 = vld [vmem:[%s4156 + $0x64] sm:$0xf]
      %v4175 = vld [vmem:[%s4156 + $0x6c] sm:$0xf]
      %v4176 = vld [vmem:[%s4156 + $0x70] sm:$0xf]
      %v4177 = vld [vmem:[%s4156 + $0x78] sm:$0xf]
      %v4178 = vld [vmem:[%s4156 + $0x7c] sm:$0xf]
      %v4179 = vld [vmem:[%s4156 + $0x84] sm:$0xf]
      %v4180 = vld [vmem:[%s4156 + $0x88] sm:$0xf]
      %v4181 = vld [vmem:[%s4156 + $0x90] sm:$0xf]
      %v4182 = vld [vmem:[%s4156 + $0x94] sm:$0xf]
      %v4183 = vld [vmem:[%s4156 + $0x9c] sm:$0xf]
      %v4184 = vld [vmem:[%s4156 + $0xa0] sm:$0xf]
      %v4185 = vld [vmem:[%s4156 + $0xa8] sm:$0xf]
      %v4186 = vld [vmem:[%s4156 + $0xac] sm:$0xf]
      %v4187 = vld [vmem:[%s4156 + $0xb4] sm:$0xf]
      %v4188 = vld [vmem:[%s4156 + $0xb8] sm:$0xf]
      %v4189 = vld [vmem:[%s3 + $0x60] sm:$0xf]
      %v4190 = vld [vmem:[%s3 + $0x64] sm:$0xf]
      %v4191 = vld [vmem:[%s3 + $0x68] sm:$0xf]
      %v4192 = vld [vmem:[%s3 + $0x6c] sm:$0xf]
      %v4225 = vunpack.c.l.b16 %v4157
      %v4226 = vunpack.c.l.b16 %v4158
      %v4227 = vunpack.c.l.b16 %v4159
      %v4228 = vunpack.c.l.b16 %v4160
      %v4229 = vunpack.c.l.b16 %v4161
      %v4230 = vunpack.c.l.b16 %v4162
      %v4231 = vunpack.c.l.b16 %v4163
      %v4232 = vunpack.c.l.b16 %v4164
      %v4233 = vunpack.c.l.b16 %v4165
      %v4234 = vunpack.c.l.b16 %v4166
      %v4235 = vunpack.c.l.b16 %v4167
      %v4236 = vunpack.c.l.b16 %v4168
      %v4237 = vunpack.c.l.b16 %v4169
      %v4238 = vunpack.c.l.b16 %v4170
      %v4239 = vunpack.c.l.b16 %v4171
      %v4240 = vunpack.c.l.b16 %v4172
      %v4241 = vunpack.c.l.b16 %v4173
      %v4242 = vunpack.c.l.b16 %v4174
      %v4243 = vunpack.c.l.b16 %v4175
      %v4244 = vunpack.c.l.b16 %v4176
      %v4245 = vunpack.c.l.b16 %v4177
      %v4246 = vunpack.c.l.b16 %v4178
      %v4247 = vunpack.c.l.b16 %v4179
      %v4248 = vunpack.c.l.b16 %v4180
      %v4249 = vunpack.c.l.b16 %v4181
      %v4250 = vunpack.c.l.b16 %v4182
      %v4251 = vunpack.c.l.b16 %v4183
      %v4252 = vunpack.c.l.b16 %v4184
      %v4253 = vunpack.c.l.b16 %v4185
      %v4254 = vunpack.c.l.b16 %v4186
      %v4255 = vunpack.c.l.b16 %v4187
      %v4256 = vunpack.c.l.b16 %v4188
      %v4257 = vpack.c.b16 %v4226, %v4225
      %v4258 = vpack.c.b16 %v4228, %v4227
      %v4259 = vpack.c.b16 %v4230, %v4229
      %v4260 = vpack.c.b16 %v4232, %v4231
      %v4261 = vpack.c.b16 %v4234, %v4233
      %v4262 = vpack.c.b16 %v4236, %v4235
      %v4263 = vpack.c.b16 %v4238, %v4237
      %v4264 = vpack.c.b16 %v4240, %v4239
      %v4265 = vpack.c.b16 %v4242, %v4241
      %v4266 = vpack.c.b16 %v4244, %v4243
      %v4267 = vpack.c.b16 %v4246, %v4245
      %v4268 = vpack.c.b16 %v4248, %v4247
      %v4269 = vpack.c.b16 %v4250, %v4249
      %v4270 = vpack.c.b16 %v4252, %v4251
      %v4271 = vpack.c.b16 %v4254, %v4253
      %v4272 = vpack.c.b16 %v4256, %v4255
      %v4277 = vunpack.c.l.b16 %v4189
      %v4278 = vunpack.c.l.b16 %v4190
      %v4279 = vunpack.c.l.b16 %v4191
      %v4280 = vunpack.c.l.b16 %v4192
      %v4281 = vpack.c.b16 %v4278, %v4277
      %v4282 = vpack.c.b16 %v4280, %v4279
      %v4286 = vsel %vm1590, %v4257, 0
      %v4289 = vsel %vm1590, %v4258, 0
      %v4292 = vsel %vm1590, %v4259, 0
      %v4295 = vsel %vm1590, %v4260, 0
      %v4298 = vsel %vm1590, %v4261, 0
      %v4301 = vsel %vm1590, %v4262, 0
      %v4304 = vsel %vm1590, %v4263, 0
      %v4307 = vsel %vm1590, %v4264, 0
      %v4310 = vsel %vm1590, %v4265, 0
      %v4313 = vsel %vm1590, %v4266, 0
      %v4316 = vsel %vm1590, %v4267, 0
      %v4319 = vsel %vm1590, %v4268, 0
      %v4322 = vsel %vm1590, %v4269, 0
      %v4325 = vsel %vm1590, %v4270, 0
      %v4328 = vsel %vm1590, %v4271, 0
      %v4331 = vsel %vm1590, %v4272, 0
      %4333 = vmatprep.subr.bf16.mxu0 0
      %4334 = vmatpush1.bf16.msra.mxu0 0
      %4335 = vmatprep.subr.bf16.mxu0 0
      %4336 = vmatpush1.bf16.msra.mxu0 0
      %4337 = vmatprep.subr.bf16.mxu0 0
      %4338 = vmatpush1.bf16.msra.mxu0 0
      %4339 = vmatprep.subr.bf16.mxu0 0
      %4340 = vmatpush1.bf16.msra.mxu0 0
      %4341 = vmatprep.subr.bf16.mxu0 0
      %4342 = vmatpush1.bf16.msra.mxu0 0
      %4343 = vmatprep.subr.bf16.mxu0 0
      %4344 = vmatpush1.bf16.msra.mxu0 0
      %4345 = vmatprep.subr.bf16.mxu0 0
      %4346 = vmatpush1.bf16.msra.mxu0 %v4282
      %4347 = vmatprep.subr.bf16.mxu0 0
      %4348 = vmatpush1.bf16.msra.mxu0 %v4281
      %4349 = vmatprep.subr.bf16.mxu0 0
      %4350 = vmatpush2.bf16.msra.mxu0 0
      %4351 = vmatprep.subr.bf16.mxu0 0
      %4352 = vmatpush2.bf16.msra.mxu0 0
      %4353 = vmatprep.subr.bf16.mxu0 0
      %4354 = vmatpush2.bf16.msra.mxu0 0
      %4355 = vmatprep.subr.bf16.mxu0 0
      %4356 = vmatpush2.bf16.msra.mxu0 0
      %4357 = vmatprep.subr.bf16.mxu0 0
      %4358 = vmatpush2.bf16.msra.mxu0 0
      %4359 = vmatprep.subr.bf16.mxu0 0
      %4360 = vmatpush2.bf16.msra.mxu0 0
      %4361 = vmatprep.subr.bf16.mxu0 0
      %4362 = vmatpush2.bf16.msra.mxu0 0
      %4363 = vmatprep.subr.bf16.mxu0 0
      %4364 = vmatpush2.bf16.msra.mxu0 0
      %4365 = vmatprep.mubr.bf16.mxu0 0
      %4366 = vmatmul.mubr.bf16.gmra.mxu0 %v4286
      %v4367 = vpop.f32.mrf.mxu0
      %v4368 = vadd.f32 0.0, %v4367
      %v4369 = vpop.f32.mrf.mxu0
      %v4370 = vpop.f32.mrf.mxu0
      %v4371 = vadd.f32 0.0, %v4370
      %v4372 = vpop.f32.mrf.mxu0
      %4373 = vmatprep.mubr.bf16.mxu0 0
      %4374 = vmatmul.mubr.bf16.gmra.mxu0 %v4289
      %v4375 = vpop.f32.mrf.mxu0
      %v4376 = vadd.f32 0.0, %v4375
      %v4377 = vpop.f32.mrf.mxu0
      %v4378 = vpop.f32.mrf.mxu0
      %v4379 = vadd.f32 0.0, %v4378
      %v4380 = vpop.f32.mrf.mxu0
      %4381 = vmatprep.mubr.bf16.mxu0 0
      %4382 = vmatmul.mubr.bf16.gmra.mxu0 %v4292
      %v4383 = vpop.f32.mrf.mxu0
      %v4384 = vadd.f32 0.0, %v4383
      %v4385 = vpop.f32.mrf.mxu0
      %v4386 = vpop.f32.mrf.mxu0
      %v4387 = vadd.f32 0.0, %v4386
      %v4388 = vpop.f32.mrf.mxu0
      %4389 = vmatprep.mubr.bf16.mxu0 0
      %4390 = vmatmul.mubr.bf16.gmra.mxu0 %v4295
      %v4391 = vpop.f32.mrf.mxu0
      %v4392 = vadd.f32 0.0, %v4391
      %v4393 = vpop.f32.mrf.mxu0
      %v4394 = vpop.f32.mrf.mxu0
      %v4395 = vadd.f32 0.0, %v4394
      %v4396 = vpop.f32.mrf.mxu0
      %4397 = vmatprep.mubr.bf16.mxu0 0
      %4398 = vmatmul.mubr.bf16.gmra.mxu0 %v4298
      %v4399 = vpop.f32.mrf.mxu0
      %v4400 = vadd.f32 0.0, %v4399
      %v4401 = vpop.f32.mrf.mxu0
      %v4402 = vpop.f32.mrf.mxu0
      %v4403 = vadd.f32 0.0, %v4402
      %v4404 = vpop.f32.mrf.mxu0
      %4405 = vmatprep.mubr.bf16.mxu0 0
      %4406 = vmatmul.mubr.bf16.gmra.mxu0 %v4301
      %v4407 = vpop.f32.mrf.mxu0
      %v4408 = vadd.f32 0.0, %v4407
      %v4409 = vpop.f32.mrf.mxu0
      %v4410 = vpop.f32.mrf.mxu0
      %v4411 = vadd.f32 0.0, %v4410
      %v4412 = vpop.f32.mrf.mxu0
      %4413 = vmatprep.mubr.bf16.mxu0 0
      %4414 = vmatmul.mubr.bf16.gmra.mxu0 %v4304
      %v4415 = vpop.f32.mrf.mxu0
      %v4416 = vadd.f32 0.0, %v4415
      %v4417 = vpop.f32.mrf.mxu0
      %v4418 = vpop.f32.mrf.mxu0
      %v4419 = vadd.f32 0.0, %v4418
      %v4420 = vpop.f32.mrf.mxu0
      %4421 = vmatprep.mubr.bf16.mxu0 0
      %4422 = vmatmul.mubr.bf16.gmra.mxu0 %v4307
      %v4423 = vpop.f32.mrf.mxu0
      %v4424 = vadd.f32 0.0, %v4423
      %v4425 = vpop.f32.mrf.mxu0
      %v4426 = vpop.f32.mrf.mxu0
      %v4427 = vadd.f32 0.0, %v4426
      %v4428 = vpop.f32.mrf.mxu0
      %4429 = vmatprep.mubr.bf16.mxu0 0
      %4430 = vmatmul.mubr.bf16.gmra.mxu0 %v4310
      %v4431 = vpop.f32.mrf.mxu0
      %v4432 = vadd.f32 0.0, %v4431
      %v4433 = vpop.f32.mrf.mxu0
      %v4434 = vpop.f32.mrf.mxu0
      %v4435 = vadd.f32 0.0, %v4434
      %v4436 = vpop.f32.mrf.mxu0
      %4437 = vmatprep.mubr.bf16.mxu0 0
      %4438 = vmatmul.mubr.bf16.gmra.mxu0 %v4313
      %v4439 = vpop.f32.mrf.mxu0
      %v4440 = vadd.f32 0.0, %v4439
      %v4441 = vpop.f32.mrf.mxu0
      %v4442 = vpop.f32.mrf.mxu0
      %v4443 = vadd.f32 0.0, %v4442
      %v4444 = vpop.f32.mrf.mxu0
      %4445 = vmatprep.mubr.bf16.mxu0 0
      %4446 = vmatmul.mubr.bf16.gmra.mxu0 %v4316
      %v4447 = vpop.f32.mrf.mxu0
      %v4448 = vadd.f32 0.0, %v4447
      %v4449 = vpop.f32.mrf.mxu0
      %v4450 = vpop.f32.mrf.mxu0
      %v4451 = vadd.f32 0.0, %v4450
      %v4452 = vpop.f32.mrf.mxu0
      %4453 = vmatprep.mubr.bf16.mxu0 0
      %4454 = vmatmul.mubr.bf16.gmra.mxu0 %v4319
      %v4455 = vpop.f32.mrf.mxu0
      %v4456 = vadd.f32 0.0, %v4455
      %v4457 = vpop.f32.mrf.mxu0
      %v4458 = vpop.f32.mrf.mxu0
      %v4459 = vadd.f32 0.0, %v4458
      %v4460 = vpop.f32.mrf.mxu0
      %4461 = vmatprep.mubr.bf16.mxu0 0
      %4462 = vmatmul.mubr.bf16.gmra.mxu0 %v4322
      %v4463 = vpop.f32.mrf.mxu0
      %v4464 = vadd.f32 0.0, %v4463
      %v4465 = vpop.f32.mrf.mxu0
      %v4466 = vpop.f32.mrf.mxu0
      %v4467 = vadd.f32 0.0, %v4466
      %v4468 = vpop.f32.mrf.mxu0
      %4469 = vmatprep.mubr.bf16.mxu0 0
      %4470 = vmatmul.mubr.bf16.gmra.mxu0 %v4325
      %v4471 = vpop.f32.mrf.mxu0
      %v4472 = vadd.f32 0.0, %v4471
      %v4473 = vpop.f32.mrf.mxu0
      %v4474 = vpop.f32.mrf.mxu0
      %v4475 = vadd.f32 0.0, %v4474
      %v4476 = vpop.f32.mrf.mxu0
      %4477 = vmatprep.mubr.bf16.mxu0 0
      %4478 = vmatmul.mubr.bf16.gmra.mxu0 %v4328
      %v4479 = vpop.f32.mrf.mxu0
      %v4480 = vadd.f32 0.0, %v4479
      %v4481 = vpop.f32.mrf.mxu0
      %v4482 = vpop.f32.mrf.mxu0
      %v4483 = vadd.f32 0.0, %v4482
      %v4484 = vpop.f32.mrf.mxu0
      %4485 = vmatprep.mubr.bf16.mxu0 0
      %4486 = vmatmul.mubr.bf16.gmra.mxu0 %v4331
      %v4487 = vpop.f32.mrf.mxu0
      %v4488 = vadd.f32 0.0, %v4487
      %v4489 = vpop.f32.mrf.mxu0
      %v4490 = vpop.f32.mrf.mxu0
      %v4491 = vadd.f32 0.0, %v4490
      %v4492 = vpop.f32.mrf.mxu0
      %4493 = vdwg.mxu0
      %v4494 = vadd.f32 %v4124, %v4368
      %v4495 = vadd.f32 %v4125, %v4371
      %v4496 = vadd.f32 %v4126, %v4376
      %v4497 = vadd.f32 %v4127, %v4379
      %v4498 = vadd.f32 %v4128, %v4384
      %v4499 = vadd.f32 %v4129, %v4387
      %v4500 = vadd.f32 %v4130, %v4392
      %v4501 = vadd.f32 %v4131, %v4395
      %v4502 = vadd.f32 %v4132, %v4400
      %v4503 = vadd.f32 %v4133, %v4403
      %v4504 = vadd.f32 %v4134, %v4408
      %v4505 = vadd.f32 %v4135, %v4411
      %v4506 = vadd.f32 %v4136, %v4416
      %v4507 = vadd.f32 %v4137, %v4419
      %v4508 = vadd.f32 %v4138, %v4424
      %v4509 = vadd.f32 %v4139, %v4427
      %v4510 = vadd.f32 %v4140, %v4432
      %v4511 = vadd.f32 %v4141, %v4435
      %v4512 = vadd.f32 %v4142, %v4440
      %v4513 = vadd.f32 %v4143, %v4443
      %v4514 = vadd.f32 %v4144, %v4448
      %v4515 = vadd.f32 %v4145, %v4451
      %v4516 = vadd.f32 %v4146, %v4456
      %v4517 = vadd.f32 %v4147, %v4459
      %v4518 = vadd.f32 %v4148, %v4464
      %v4519 = vadd.f32 %v4149, %v4467
      %v4520 = vadd.f32 %v4150, %v4472
      %v4521 = vadd.f32 %v4151, %v4475
      %v4522 = vadd.f32 %v4152, %v4480
      %v4523 = vadd.f32 %v4153, %v4483
      %v4524 = vadd.f32 %v4154, %v4488
      %v4525 = vadd.f32 %v4155, %v4491
      %v4526 = vld [vmem:[%s4156] sm:$0xf]
      %v4527 = vld [vmem:[%s4156 + $0x4] sm:$0xf]
      %v4528 = vld [vmem:[%s4156 + $0x8] sm:$0x1]
      %v4529 = vld [vmem:[%s4156 + $0xc] sm:$0xf]
      %v4530 = vld [vmem:[%s4156 + $0x10] sm:$0xf]
      %v4531 = vld [vmem:[%s4156 + $0x14] sm:$0x1]
      %v4532 = vld [vmem:[%s4156 + $0x18] sm:$0xf]
      %v4533 = vld [vmem:[%s4156 + $0x1c] sm:$0xf]
      %v4534 = vld [vmem:[%s4156 + $0x20] sm:$0x1]
      %v4535 = vld [vmem:[%s4156 + $0x24] sm:$0xf]
      %v4536 = vld [vmem:[%s4156 + $0x28] sm:$0xf]
      %v4537 = vld [vmem:[%s4156 + $0x2c] sm:$0x1]
      %v4538 = vld [vmem:[%s4156 + $0x30] sm:$0xf]
      %v4539 = vld [vmem:[%s4156 + $0x34] sm:$0xf]
      %v4540 = vld [vmem:[%s4156 + $0x38] sm:$0x1]
      %v4541 = vld [vmem:[%s4156 + $0x3c] sm:$0xf]
      %v4542 = vld [vmem:[%s4156 + $0x40] sm:$0xf]
      %v4543 = vld [vmem:[%s4156 + $0x44] sm:$0x1]
      %v4544 = vld [vmem:[%s4156 + $0x48] sm:$0xf]
      %v4545 = vld [vmem:[%s4156 + $0x4c] sm:$0xf]
      %v4546 = vld [vmem:[%s4156 + $0x50] sm:$0x1]
      %v4547 = vld [vmem:[%s4156 + $0x54] sm:$0xf]
      %v4548 = vld [vmem:[%s4156 + $0x58] sm:$0xf]
      %v4549 = vld [vmem:[%s4156 + $0x5c] sm:$0x1]
      %v4550 = vld [vmem:[%s4156 + $0x60] sm:$0xf]
      %v4551 = vld [vmem:[%s4156 + $0x64] sm:$0xf]
      %v4552 = vld [vmem:[%s4156 + $0x68] sm:$0x1]
      %v4553 = vld [vmem:[%s4156 + $0x6c] sm:$0xf]
      %v4554 = vld [vmem:[%s4156 + $0x70] sm:$0xf]
      %v4555 = vld [vmem:[%s4156 + $0x74] sm:$0x1]
      %v4556 = vld [vmem:[%s4156 + $0x78] sm:$0xf]
      %v4557 = vld [vmem:[%s4156 + $0x7c] sm:$0xf]
      %v4558 = vld [vmem:[%s4156 + $0x80] sm:$0x1]
      %v4559 = vld [vmem:[%s4156 + $0x84] sm:$0xf]
      %v4560 = vld [vmem:[%s4156 + $0x88] sm:$0xf]
      %v4561 = vld [vmem:[%s4156 + $0x8c] sm:$0x1]
      %v4562 = vld [vmem:[%s4156 + $0x90] sm:$0xf]
      %v4563 = vld [vmem:[%s4156 + $0x94] sm:$0xf]
      %v4564 = vld [vmem:[%s4156 + $0x98] sm:$0x1]
      %v4565 = vld [vmem:[%s4156 + $0x9c] sm:$0xf]
      %v4566 = vld [vmem:[%s4156 + $0xa0] sm:$0xf]
      %v4567 = vld [vmem:[%s4156 + $0xa4] sm:$0x1]
      %v4568 = vld [vmem:[%s4156 + $0xa8] sm:$0xf]
      %v4569 = vld [vmem:[%s4156 + $0xac] sm:$0xf]
      %v4570 = vld [vmem:[%s4156 + $0xb0] sm:$0x1]
      %v4571 = vld [vmem:[%s4156 + $0xb4] sm:$0xf]
      %v4572 = vld [vmem:[%s4156 + $0xb8] sm:$0xf]
      %v4573 = vld [vmem:[%s4156 + $0xbc] sm:$0x1]
      %v4575 = vshrl.u32 %v4526, 16
      %v4577 = vrot.slane %v4575, 4
      %v4578 = vshll.u32 %v4526, 16
      %v4580 = vrot.slane %v4578, 5
      %v4581 = vor.u32 %v4577, %v4580
      %v4582 = vrot.slane %v4581, 4
      %v4584 = vshll.u32 %v4527, 16
      %v4586 = vrot.slane %v4584, 5
      %v4587 = vsel %vm1141, %v4582, %v4586
      %v4588 = vshrl.u32 %v4527, 16
      %v4590 = vrot.slane %v4588, 4
      %v4591 = vor.u32 %v4590, %v4586
      %v4592 = vrot.slane %v4591, 4
      %v4594 = vshll.u32 %v4528, 16
      %v4596 = vrot.slane %v4594, 5
      %v4597 = vsel %vm1141, %v4592, %v4596
      %v4599 = vshrl.u32 %v4529, 16
      %v4601 = vrot.slane %v4599, 4
      %v4602 = vshll.u32 %v4529, 16
      %v4604 = vrot.slane %v4602, 5
      %v4605 = vor.u32 %v4601, %v4604
      %v4606 = vrot.slane %v4605, 4
      %v4608 = vshll.u32 %v4530, 16
      %v4610 = vrot.slane %v4608, 5
      %v4611 = vsel %vm1141, %v4606, %v4610
      %v4612 = vshrl.u32 %v4530, 16
      %v4614 = vrot.slane %v4612, 4
      %v4615 = vor.u32 %v4614, %v4610
      %v4616 = vrot.slane %v4615, 4
      %v4618 = vshll.u32 %v4531, 16
      %v4620 = vrot.slane %v4618, 5
      %v4621 = vsel %vm1141, %v4616, %v4620
      %v4623 = vshrl.u32 %v4532, 16
      %v4625 = vrot.slane %v4623, 4
      %v4626 = vshll.u32 %v4532, 16
      %v4628 = vrot.slane %v4626, 5
      %v4629 = vor.u32 %v4625, %v4628
      %v4630 = vrot.slane %v4629, 4
      %v4632 = vshll.u32 %v4533, 16
      %v4634 = vrot.slane %v4632, 5
      %v4635 = vsel %vm1141, %v4630, %v4634
      %v4636 = vshrl.u32 %v4533, 16
      %v4638 = vrot.slane %v4636, 4
      %v4639 = vor.u32 %v4638, %v4634
      %v4640 = vrot.slane %v4639, 4
      %v4642 = vshll.u32 %v4534, 16
      %v4644 = vrot.slane %v4642, 5
      %v4645 = vsel %vm1141, %v4640, %v4644
      %v4647 = vshrl.u32 %v4535, 16
      %v4649 = vrot.slane %v4647, 4
      %v4650 = vshll.u32 %v4535, 16
      %v4652 = vrot.slane %v4650, 5
      %v4653 = vor.u32 %v4649, %v4652
      %v4654 = vrot.slane %v4653, 4
      %v4656 = vshll.u32 %v4536, 16
      %v4658 = vrot.slane %v4656, 5
      %v4659 = vsel %vm1141, %v4654, %v4658
      %v4660 = vshrl.u32 %v4536, 16
      %v4662 = vrot.slane %v4660, 4
      %v4663 = vor.u32 %v4662, %v4658
      %v4664 = vrot.slane %v4663, 4
      %v4666 = vshll.u32 %v4537, 16
      %v4668 = vrot.slane %v4666, 5
      %v4669 = vsel %vm1141, %v4664, %v4668
      %v4671 = vshrl.u32 %v4538, 16
      %v4673 = vrot.slane %v4671, 4
      %v4674 = vshll.u32 %v4538, 16
      %v4676 = vrot.slane %v4674, 5
      %v4677 = vor.u32 %v4673, %v4676
      %v4678 = vrot.slane %v4677, 4
      %v4680 = vshll.u32 %v4539, 16
      %v4682 = vrot.slane %v4680, 5
      %v4683 = vsel %vm1141, %v4678, %v4682
      %v4684 = vshrl.u32 %v4539, 16
      %v4686 = vrot.slane %v4684, 4
      %v4687 = vor.u32 %v4686, %v4682
      %v4688 = vrot.slane %v4687, 4
      %v4690 = vshll.u32 %v4540, 16
      %v4692 = vrot.slane %v4690, 5
      %v4693 = vsel %vm1141, %v4688, %v4692
      %v4695 = vshrl.u32 %v4541, 16
      %v4697 = vrot.slane %v4695, 4
      %v4698 = vshll.u32 %v4541, 16
      %v4700 = vrot.slane %v4698, 5
      %v4701 = vor.u32 %v4697, %v4700
      %v4702 = vrot.slane %v4701, 4
      %v4704 = vshll.u32 %v4542, 16
      %v4706 = vrot.slane %v4704, 5
      %v4707 = vsel %vm1141, %v4702, %v4706
      %v4708 = vshrl.u32 %v4542, 16
      %v4710 = vrot.slane %v4708, 4
      %v4711 = vor.u32 %v4710, %v4706
      %v4712 = vrot.slane %v4711, 4
      %v4714 = vshll.u32 %v4543, 16
      %v4716 = vrot.slane %v4714, 5
      %v4717 = vsel %vm1141, %v4712, %v4716
      %v4719 = vshrl.u32 %v4544, 16
      %v4721 = vrot.slane %v4719, 4
      %v4722 = vshll.u32 %v4544, 16
      %v4724 = vrot.slane %v4722, 5
      %v4725 = vor.u32 %v4721, %v4724
      %v4726 = vrot.slane %v4725, 4
      %v4728 = vshll.u32 %v4545, 16
      %v4730 = vrot.slane %v4728, 5
      %v4731 = vsel %vm1141, %v4726, %v4730
      %v4732 = vshrl.u32 %v4545, 16
      %v4734 = vrot.slane %v4732, 4
      %v4735 = vor.u32 %v4734, %v4730
      %v4736 = vrot.slane %v4735, 4
      %v4738 = vshll.u32 %v4546, 16
      %v4740 = vrot.slane %v4738, 5
      %v4741 = vsel %vm1141, %v4736, %v4740
      %v4743 = vshrl.u32 %v4547, 16
      %v4745 = vrot.slane %v4743, 4
      %v4746 = vshll.u32 %v4547, 16
      %v4748 = vrot.slane %v4746, 5
      %v4749 = vor.u32 %v4745, %v4748
      %v4750 = vrot.slane %v4749, 4
      %v4752 = vshll.u32 %v4548, 16
      %v4754 = vrot.slane %v4752, 5
      %v4755 = vsel %vm1141, %v4750, %v4754
      %v4756 = vshrl.u32 %v4548, 16
      %v4758 = vrot.slane %v4756, 4
      %v4759 = vor.u32 %v4758, %v4754
      %v4760 = vrot.slane %v4759, 4
      %v4762 = vshll.u32 %v4549, 16
      %v4764 = vrot.slane %v4762, 5
      %v4765 = vsel %vm1141, %v4760, %v4764
      %v4767 = vshrl.u32 %v4550, 16
      %v4769 = vrot.slane %v4767, 4
      %v4770 = vshll.u32 %v4550, 16
      %v4772 = vrot.slane %v4770, 5
      %v4773 = vor.u32 %v4769, %v4772
      %v4774 = vrot.slane %v4773, 4
      %v4776 = vshll.u32 %v4551, 16
      %v4778 = vrot.slane %v4776, 5
      %v4779 = vsel %vm1141, %v4774, %v4778
      %v4780 = vshrl.u32 %v4551, 16
      %v4782 = vrot.slane %v4780, 4
      %v4783 = vor.u32 %v4782, %v4778
      %v4784 = vrot.slane %v4783, 4
      %v4786 = vshll.u32 %v4552, 16
      %v4788 = vrot.slane %v4786, 5
      %v4789 = vsel %vm1141, %v4784, %v4788
      %v4791 = vshrl.u32 %v4553, 16
      %v4793 = vrot.slane %v4791, 4
      %v4794 = vshll.u32 %v4553, 16
      %v4796 = vrot.slane %v4794, 5
      %v4797 = vor.u32 %v4793, %v4796
      %v4798 = vrot.slane %v4797, 4
      %v4800 = vshll.u32 %v4554, 16
      %v4802 = vrot.slane %v4800, 5
      %v4803 = vsel %vm1141, %v4798, %v4802
      %v4804 = vshrl.u32 %v4554, 16
      %v4806 = vrot.slane %v4804, 4
      %v4807 = vor.u32 %v4806, %v4802
      %v4808 = vrot.slane %v4807, 4
      %v4810 = vshll.u32 %v4555, 16
      %v4812 = vrot.slane %v4810, 5
      %v4813 = vsel %vm1141, %v4808, %v4812
      %v4815 = vshrl.u32 %v4556, 16
      %v4817 = vrot.slane %v4815, 4
      %v4818 = vshll.u32 %v4556, 16
      %v4820 = vrot.slane %v4818, 5
      %v4821 = vor.u32 %v4817, %v4820
      %v4822 = vrot.slane %v4821, 4
      %v4824 = vshll.u32 %v4557, 16
      %v4826 = vrot.slane %v4824, 5
      %v4827 = vsel %vm1141, %v4822, %v4826
      %v4828 = vshrl.u32 %v4557, 16
      %v4830 = vrot.slane %v4828, 4
      %v4831 = vor.u32 %v4830, %v4826
      %v4832 = vrot.slane %v4831, 4
      %v4834 = vshll.u32 %v4558, 16
      %v4836 = vrot.slane %v4834, 5
      %v4837 = vsel %vm1141, %v4832, %v4836
      %v4839 = vshrl.u32 %v4559, 16
      %v4841 = vrot.slane %v4839, 4
      %v4842 = vshll.u32 %v4559, 16
      %v4844 = vrot.slane %v4842, 5
      %v4845 = vor.u32 %v4841, %v4844
      %v4846 = vrot.slane %v4845, 4
      %v4848 = vshll.u32 %v4560, 16
      %v4850 = vrot.slane %v4848, 5
      %v4851 = vsel %vm1141, %v4846, %v4850
      %v4852 = vshrl.u32 %v4560, 16
      %v4854 = vrot.slane %v4852, 4
      %v4855 = vor.u32 %v4854, %v4850
      %v4856 = vrot.slane %v4855, 4
      %v4858 = vshll.u32 %v4561, 16
      %v4860 = vrot.slane %v4858, 5
      %v4861 = vsel %vm1141, %v4856, %v4860
      %v4863 = vshrl.u32 %v4562, 16
      %v4865 = vrot.slane %v4863, 4
      %v4866 = vshll.u32 %v4562, 16
      %v4868 = vrot.slane %v4866, 5
      %v4869 = vor.u32 %v4865, %v4868
      %v4870 = vrot.slane %v4869, 4
      %v4872 = vshll.u32 %v4563, 16
      %v4874 = vrot.slane %v4872, 5
      %v4875 = vsel %vm1141, %v4870, %v4874
      %v4876 = vshrl.u32 %v4563, 16
      %v4878 = vrot.slane %v4876, 4
      %v4879 = vor.u32 %v4878, %v4874
      %v4880 = vrot.slane %v4879, 4
      %v4882 = vshll.u32 %v4564, 16
      %v4884 = vrot.slane %v4882, 5
      %v4885 = vsel %vm1141, %v4880, %v4884
      %v4887 = vshrl.u32 %v4565, 16
      %v4889 = vrot.slane %v4887, 4
      %v4890 = vshll.u32 %v4565, 16
      %v4892 = vrot.slane %v4890, 5
      %v4893 = vor.u32 %v4889, %v4892
      %v4894 = vrot.slane %v4893, 4
      %v4896 = vshll.u32 %v4566, 16
      %v4898 = vrot.slane %v4896, 5
      %v4899 = vsel %vm1141, %v4894, %v4898
      %v4900 = vshrl.u32 %v4566, 16
      %v4902 = vrot.slane %v4900, 4
      %v4903 = vor.u32 %v4902, %v4898
      %v4904 = vrot.slane %v4903, 4
      %v4906 = vshll.u32 %v4567, 16
      %v4908 = vrot.slane %v4906, 5
      %v4909 = vsel %vm1141, %v4904, %v4908
      %v4911 = vshrl.u32 %v4568, 16
      %v4913 = vrot.slane %v4911, 4
      %v4914 = vshll.u32 %v4568, 16
      %v4916 = vrot.slane %v4914, 5
      %v4917 = vor.u32 %v4913, %v4916
      %v4918 = vrot.slane %v4917, 4
      %v4920 = vshll.u32 %v4569, 16
      %v4922 = vrot.slane %v4920, 5
      %v4923 = vsel %vm1141, %v4918, %v4922
      %v4924 = vshrl.u32 %v4569, 16
      %v4926 = vrot.slane %v4924, 4
      %v4927 = vor.u32 %v4926, %v4922
      %v4928 = vrot.slane %v4927, 4
      %v4930 = vshll.u32 %v4570, 16
      %v4932 = vrot.slane %v4930, 5
      %v4933 = vsel %vm1141, %v4928, %v4932
      %v4935 = vshrl.u32 %v4571, 16
      %v4937 = vrot.slane %v4935, 4
      %v4938 = vshll.u32 %v4571, 16
      %v4940 = vrot.slane %v4938, 5
      %v4941 = vor.u32 %v4937, %v4940
      %v4942 = vrot.slane %v4941, 4
      %v4944 = vshll.u32 %v4572, 16
      %v4946 = vrot.slane %v4944, 5
      %v4947 = vsel %vm1141, %v4942, %v4946
      %v4948 = vshrl.u32 %v4572, 16
      %v4950 = vrot.slane %v4948, 4
      %v4951 = vor.u32 %v4950, %v4946
      %v4952 = vrot.slane %v4951, 4
      %v4954 = vshll.u32 %v4573, 16
      %v4956 = vrot.slane %v4954, 5
      %v4957 = vsel %vm1141, %v4952, %v4956
      %v4958 = vld [vmem:[%s3 + $0x70] sm:$0xf]
      %v4959 = vld [vmem:[%s3 + $0x74] sm:$0xf]
      %v4960 = vld [vmem:[%s3 + $0x78] sm:$0xf]
      %v4961 = vld [vmem:[%s3 + $0x7c] sm:$0xf]
      %v4962 = vunpack.c.l.b16 %v4587
      %v4963 = vunpack.c.l.b16 %v4597
      %v4964 = vunpack.c.l.b16 %v4611
      %v4965 = vunpack.c.l.b16 %v4621
      %v4966 = vunpack.c.l.b16 %v4635
      %v4967 = vunpack.c.l.b16 %v4645
      %v4968 = vunpack.c.l.b16 %v4659
      %v4969 = vunpack.c.l.b16 %v4669
      %v4970 = vunpack.c.l.b16 %v4683
      %v4971 = vunpack.c.l.b16 %v4693
      %v4972 = vunpack.c.l.b16 %v4707
      %v4973 = vunpack.c.l.b16 %v4717
      %v4974 = vunpack.c.l.b16 %v4731
      %v4975 = vunpack.c.l.b16 %v4741
      %v4976 = vunpack.c.l.b16 %v4755
      %v4977 = vunpack.c.l.b16 %v4765
      %v4978 = vunpack.c.l.b16 %v4779
      %v4979 = vunpack.c.l.b16 %v4789
      %v4980 = vunpack.c.l.b16 %v4803
      %v4981 = vunpack.c.l.b16 %v4813
      %v4982 = vunpack.c.l.b16 %v4827
      %v4983 = vunpack.c.l.b16 %v4837
      %v4984 = vunpack.c.l.b16 %v4851
      %v4985 = vunpack.c.l.b16 %v4861
      %v4986 = vunpack.c.l.b16 %v4875
      %v4987 = vunpack.c.l.b16 %v4885
      %v4988 = vunpack.c.l.b16 %v4899
      %v4989 = vunpack.c.l.b16 %v4909
      %v4990 = vunpack.c.l.b16 %v4923
      %v4991 = vunpack.c.l.b16 %v4933
      %v4992 = vunpack.c.l.b16 %v4947
      %v4993 = vunpack.c.l.b16 %v4957
      %v4994 = vpack.c.b16 %v4963, %v4962
      %v4995 = vpack.c.b16 %v4965, %v4964
      %v4996 = vpack.c.b16 %v4967, %v4966
      %v4997 = vpack.c.b16 %v4969, %v4968
      %v4998 = vpack.c.b16 %v4971, %v4970
      %v4999 = vpack.c.b16 %v4973, %v4972
      %v5000 = vpack.c.b16 %v4975, %v4974
      %v5001 = vpack.c.b16 %v4977, %v4976
      %v5002 = vpack.c.b16 %v4979, %v4978
      %v5003 = vpack.c.b16 %v4981, %v4980
      %v5004 = vpack.c.b16 %v4983, %v4982
      %v5005 = vpack.c.b16 %v4985, %v4984
      %v5006 = vpack.c.b16 %v4987, %v4986
      %v5007 = vpack.c.b16 %v4989, %v4988
      %v5008 = vpack.c.b16 %v4991, %v4990
      %v5009 = vpack.c.b16 %v4993, %v4992
      %v5014 = vunpack.c.l.b16 %v4958
      %v5015 = vunpack.c.l.b16 %v4959
      %v5016 = vunpack.c.l.b16 %v4960
      %v5017 = vunpack.c.l.b16 %v4961
      %v5018 = vpack.c.b16 %v5015, %v5014
      %v5019 = vpack.c.b16 %v5017, %v5016
      %v5023 = vsel %vm1590, %v4994, 0
      %v5026 = vsel %vm1590, %v4995, 0
      %v5029 = vsel %vm1590, %v4996, 0
      %v5032 = vsel %vm1590, %v4997, 0
      %v5035 = vsel %vm1590, %v4998, 0
      %v5038 = vsel %vm1590, %v4999, 0
      %v5041 = vsel %vm1590, %v5000, 0
      %v5044 = vsel %vm1590, %v5001, 0
      %v5047 = vsel %vm1590, %v5002, 0
      %v5050 = vsel %vm1590, %v5003, 0
      %v5053 = vsel %vm1590, %v5004, 0
      %v5056 = vsel %vm1590, %v5005, 0
      %v5059 = vsel %vm1590, %v5006, 0
      %v5062 = vsel %vm1590, %v5007, 0
      %v5065 = vsel %vm1590, %v5008, 0
      %v5068 = vsel %vm1590, %v5009, 0
      %5070 = vmatprep.subr.bf16.mxu0 0
      %5071 = vmatpush1.bf16.msra.mxu0 0
      %5072 = vmatprep.subr.bf16.mxu0 0
      %5073 = vmatpush1.bf16.msra.mxu0 0
      %5074 = vmatprep.subr.bf16.mxu0 0
      %5075 = vmatpush1.bf16.msra.mxu0 0
      %5076 = vmatprep.subr.bf16.mxu0 0
      %5077 = vmatpush1.bf16.msra.mxu0 0
      %5078 = vmatprep.subr.bf16.mxu0 0
      %5079 = vmatpush1.bf16.msra.mxu0 0
      %5080 = vmatprep.subr.bf16.mxu0 0
      %5081 = vmatpush1.bf16.msra.mxu0 0
      %5082 = vmatprep.subr.bf16.mxu0 0
      %5083 = vmatpush1.bf16.msra.mxu0 %v5019
      %5084 = vmatprep.subr.bf16.mxu0 0
      %5085 = vmatpush1.bf16.msra.mxu0 %v5018
      %5086 = vmatprep.subr.bf16.mxu0 0
      %5087 = vmatpush2.bf16.msra.mxu0 0
      %5088 = vmatprep.subr.bf16.mxu0 0
      %5089 = vmatpush2.bf16.msra.mxu0 0
      %5090 = vmatprep.subr.bf16.mxu0 0
      %5091 = vmatpush2.bf16.msra.mxu0 0
      %5092 = vmatprep.subr.bf16.mxu0 0
      %5093 = vmatpush2.bf16.msra.mxu0 0
      %5094 = vmatprep.subr.bf16.mxu0 0
      %5095 = vmatpush2.bf16.msra.mxu0 0
      %5096 = vmatprep.subr.bf16.mxu0 0
      %5097 = vmatpush2.bf16.msra.mxu0 0
      %5098 = vmatprep.subr.bf16.mxu0 0
      %5099 = vmatpush2.bf16.msra.mxu0 0
      %5100 = vmatprep.subr.bf16.mxu0 0
      %5101 = vmatpush2.bf16.msra.mxu0 0
      %5102 = vmatprep.mubr.bf16.mxu0 0
      %5103 = vmatmul.mubr.bf16.gmra.mxu0 %v5023
      %v5104 = vpop.f32.mrf.mxu0
      %v5105 = vadd.f32 0.0, %v5104
      %v5106 = vpop.f32.mrf.mxu0
      %v5107 = vpop.f32.mrf.mxu0
      %v5108 = vadd.f32 0.0, %v5107
      %v5109 = vpop.f32.mrf.mxu0
      %5110 = vmatprep.mubr.bf16.mxu0 0
      %5111 = vmatmul.mubr.bf16.gmra.mxu0 %v5026
      %v5112 = vpop.f32.mrf.mxu0
      %v5113 = vadd.f32 0.0, %v5112
      %v5114 = vpop.f32.mrf.mxu0
      %v5115 = vpop.f32.mrf.mxu0
      %v5116 = vadd.f32 0.0, %v5115
      %v5117 = vpop.f32.mrf.mxu0
      %5118 = vmatprep.mubr.bf16.mxu0 0
      %5119 = vmatmul.mubr.bf16.gmra.mxu0 %v5029
      %v5120 = vpop.f32.mrf.mxu0
      %v5121 = vadd.f32 0.0, %v5120
      %v5122 = vpop.f32.mrf.mxu0
      %v5123 = vpop.f32.mrf.mxu0
      %v5124 = vadd.f32 0.0, %v5123
      %v5125 = vpop.f32.mrf.mxu0
      %5126 = vmatprep.mubr.bf16.mxu0 0
      %5127 = vmatmul.mubr.bf16.gmra.mxu0 %v5032
      %v5128 = vpop.f32.mrf.mxu0
      %v5129 = vadd.f32 0.0, %v5128
      %v5130 = vpop.f32.mrf.mxu0
      %v5131 = vpop.f32.mrf.mxu0
      %v5132 = vadd.f32 0.0, %v5131
      %v5133 = vpop.f32.mrf.mxu0
      %5134 = vmatprep.mubr.bf16.mxu0 0
      %5135 = vmatmul.mubr.bf16.gmra.mxu0 %v5035
      %v5136 = vpop.f32.mrf.mxu0
      %v5137 = vadd.f32 0.0, %v5136
      %v5138 = vpop.f32.mrf.mxu0
      %v5139 = vpop.f32.mrf.mxu0
      %v5140 = vadd.f32 0.0, %v5139
      %v5141 = vpop.f32.mrf.mxu0
      %5142 = vmatprep.mubr.bf16.mxu0 0
      %5143 = vmatmul.mubr.bf16.gmra.mxu0 %v5038
      %v5144 = vpop.f32.mrf.mxu0
      %v5145 = vadd.f32 0.0, %v5144
      %v5146 = vpop.f32.mrf.mxu0
      %v5147 = vpop.f32.mrf.mxu0
      %v5148 = vadd.f32 0.0, %v5147
      %v5149 = vpop.f32.mrf.mxu0
      %5150 = vmatprep.mubr.bf16.mxu0 0
      %5151 = vmatmul.mubr.bf16.gmra.mxu0 %v5041
      %v5152 = vpop.f32.mrf.mxu0
      %v5153 = vadd.f32 0.0, %v5152
      %v5154 = vpop.f32.mrf.mxu0
      %v5155 = vpop.f32.mrf.mxu0
      %v5156 = vadd.f32 0.0, %v5155
      %v5157 = vpop.f32.mrf.mxu0
      %5158 = vmatprep.mubr.bf16.mxu0 0
      %5159 = vmatmul.mubr.bf16.gmra.mxu0 %v5044
      %v5160 = vpop.f32.mrf.mxu0
      %v5161 = vadd.f32 0.0, %v5160
      %v5162 = vpop.f32.mrf.mxu0
      %v5163 = vpop.f32.mrf.mxu0
      %v5164 = vadd.f32 0.0, %v5163
      %v5165 = vpop.f32.mrf.mxu0
      %5166 = vmatprep.mubr.bf16.mxu0 0
      %5167 = vmatmul.mubr.bf16.gmra.mxu0 %v5047
      %v5168 = vpop.f32.mrf.mxu0
      %v5169 = vadd.f32 0.0, %v5168
      %v5170 = vpop.f32.mrf.mxu0
      %v5171 = vpop.f32.mrf.mxu0
      %v5172 = vadd.f32 0.0, %v5171
      %v5173 = vpop.f32.mrf.mxu0
      %5174 = vmatprep.mubr.bf16.mxu0 0
      %5175 = vmatmul.mubr.bf16.gmra.mxu0 %v5050
      %v5176 = vpop.f32.mrf.mxu0
      %v5177 = vadd.f32 0.0, %v5176
      %v5178 = vpop.f32.mrf.mxu0
      %v5179 = vpop.f32.mrf.mxu0
      %v5180 = vadd.f32 0.0, %v5179
      %v5181 = vpop.f32.mrf.mxu0
      %5182 = vmatprep.mubr.bf16.mxu0 0
      %5183 = vmatmul.mubr.bf16.gmra.mxu0 %v5053
      %v5184 = vpop.f32.mrf.mxu0
      %v5185 = vadd.f32 0.0, %v5184
      %v5186 = vpop.f32.mrf.mxu0
      %v5187 = vpop.f32.mrf.mxu0
      %v5188 = vadd.f32 0.0, %v5187
      %v5189 = vpop.f32.mrf.mxu0
      %5190 = vmatprep.mubr.bf16.mxu0 0
      %5191 = vmatmul.mubr.bf16.gmra.mxu0 %v5056
      %v5192 = vpop.f32.mrf.mxu0
      %v5193 = vadd.f32 0.0, %v5192
      %v5194 = vpop.f32.mrf.mxu0
      %v5195 = vpop.f32.mrf.mxu0
      %v5196 = vadd.f32 0.0, %v5195
      %v5197 = vpop.f32.mrf.mxu0
      %5198 = vmatprep.mubr.bf16.mxu0 0
      %5199 = vmatmul.mubr.bf16.gmra.mxu0 %v5059
      %v5200 = vpop.f32.mrf.mxu0
      %v5201 = vadd.f32 0.0, %v5200
      %v5202 = vpop.f32.mrf.mxu0
      %v5203 = vpop.f32.mrf.mxu0
      %v5204 = vadd.f32 0.0, %v5203
      %v5205 = vpop.f32.mrf.mxu0
      %5206 = vmatprep.mubr.bf16.mxu0 0
      %5207 = vmatmul.mubr.bf16.gmra.mxu0 %v5062
      %v5208 = vpop.f32.mrf.mxu0
      %v5209 = vadd.f32 0.0, %v5208
      %v5210 = vpop.f32.mrf.mxu0
      %v5211 = vpop.f32.mrf.mxu0
      %v5212 = vadd.f32 0.0, %v5211
      %v5213 = vpop.f32.mrf.mxu0
      %5214 = vmatprep.mubr.bf16.mxu0 0
      %5215 = vmatmul.mubr.bf16.gmra.mxu0 %v5065
      %v5216 = vpop.f32.mrf.mxu0
      %v5217 = vadd.f32 0.0, %v5216
      %v5218 = vpop.f32.mrf.mxu0
      %v5219 = vpop.f32.mrf.mxu0
      %v5220 = vadd.f32 0.0, %v5219
      %v5221 = vpop.f32.mrf.mxu0
      %5222 = vmatprep.mubr.bf16.mxu0 0
      %5223 = vmatmul.mubr.bf16.gmra.mxu0 %v5068
      %v5224 = vpop.f32.mrf.mxu0
      %v5225 = vadd.f32 0.0, %v5224
      %v5226 = vpop.f32.mrf.mxu0
      %v5227 = vpop.f32.mrf.mxu0
      %v5228 = vadd.f32 0.0, %v5227
      %v5229 = vpop.f32.mrf.mxu0
      %5230 = vdwg.mxu0
      %v5231 = vadd.f32 %v4494, %v5105
      %v5232 = vadd.f32 %v4495, %v5108
      %v5233 = vadd.f32 %v4496, %v5113
      %v5234 = vadd.f32 %v4497, %v5116
      %v5235 = vadd.f32 %v4498, %v5121
      %v5236 = vadd.f32 %v4499, %v5124
      %v5237 = vadd.f32 %v4500, %v5129
      %v5238 = vadd.f32 %v4501, %v5132
      %v5239 = vadd.f32 %v4502, %v5137
      %v5240 = vadd.f32 %v4503, %v5140
      %v5241 = vadd.f32 %v4504, %v5145
      %v5242 = vadd.f32 %v4505, %v5148
      %v5243 = vadd.f32 %v4506, %v5153
      %v5244 = vadd.f32 %v4507, %v5156
      %v5245 = vadd.f32 %v4508, %v5161
      %v5246 = vadd.f32 %v4509, %v5164
      %v5247 = vadd.f32 %v4510, %v5169
      %v5248 = vadd.f32 %v4511, %v5172
      %v5249 = vadd.f32 %v4512, %v5177
      %v5250 = vadd.f32 %v4513, %v5180
      %v5251 = vadd.f32 %v4514, %v5185
      %v5252 = vadd.f32 %v4515, %v5188
      %v5253 = vadd.f32 %v4516, %v5193
      %v5254 = vadd.f32 %v4517, %v5196
      %v5255 = vadd.f32 %v4518, %v5201
      %v5256 = vadd.f32 %v4519, %v5204
      %v5257 = vadd.f32 %v4520, %v5209
      %v5258 = vadd.f32 %v4521, %v5212
      %v5259 = vadd.f32 %v4522, %v5217
      %v5260 = vadd.f32 %v4523, %v5220
      %v5261 = vadd.f32 %v4524, %v5225
      %v5262 = vadd.f32 %v4525, %v5228
      %v5263 = vld [vmem:[%s4156] sm:$0xe]
      %v5264 = vld [vmem:[%s4156 + $0xc] sm:$0xe]
      %v5265 = vld [vmem:[%s4156 + $0x18] sm:$0xe]
      %v5266 = vld [vmem:[%s4156 + $0x24] sm:$0xe]
      %v5267 = vld [vmem:[%s4156 + $0x30] sm:$0xe]
      %v5268 = vld [vmem:[%s4156 + $0x3c] sm:$0xe]
      %v5269 = vld [vmem:[%s4156 + $0x48] sm:$0xe]
      %v5270 = vld [vmem:[%s4156 + $0x54] sm:$0xe]
      %v5271 = vld [vmem:[%s4156 + $0x60] sm:$0xe]
      %v5272 = vld [vmem:[%s4156 + $0x6c] sm:$0xe]
      %v5273 = vld [vmem:[%s4156 + $0x78] sm:$0xe]
      %v5274 = vld [vmem:[%s4156 + $0x84] sm:$0xe]
      %v5275 = vld [vmem:[%s4156 + $0x90] sm:$0xe]
      %v5276 = vld [vmem:[%s4156 + $0x9c] sm:$0xe]
      %v5277 = vld [vmem:[%s4156 + $0xa8] sm:$0xe]
      %v5278 = vld [vmem:[%s4156 + $0xb4] sm:$0xe]
      %v5327 = vrot.slane %v5263, 5
      %v5328 = vrot.slane %v5327, 4
      %v5329 = vrot.slane %v4527, 5
      %v5330 = vsel %vm2151, %v5328, %v5329
      %v5331 = vrot.slane %v5329, 4
      %v5332 = vrot.slane %v4528, 5
      %v5333 = vsel %vm2151, %v5331, %v5332
      %v5334 = vrot.slane %v5264, 5
      %v5335 = vrot.slane %v5334, 4
      %v5336 = vrot.slane %v4530, 5
      %v5337 = vsel %vm2151, %v5335, %v5336
      %v5338 = vrot.slane %v5336, 4
      %v5339 = vrot.slane %v4531, 5
      %v5340 = vsel %vm2151, %v5338, %v5339
      %v5341 = vrot.slane %v5265, 5
      %v5342 = vrot.slane %v5341, 4
      %v5343 = vrot.slane %v4533, 5
      %v5344 = vsel %vm2151, %v5342, %v5343
      %v5345 = vrot.slane %v5343, 4
      %v5346 = vrot.slane %v4534, 5
      %v5347 = vsel %vm2151, %v5345, %v5346
      %v5348 = vrot.slane %v5266, 5
      %v5349 = vrot.slane %v5348, 4
      %v5350 = vrot.slane %v4536, 5
      %v5351 = vsel %vm2151, %v5349, %v5350
      %v5352 = vrot.slane %v5350, 4
      %v5353 = vrot.slane %v4537, 5
      %v5354 = vsel %vm2151, %v5352, %v5353
      %v5355 = vrot.slane %v5267, 5
      %v5356 = vrot.slane %v5355, 4
      %v5357 = vrot.slane %v4539, 5
      %v5358 = vsel %vm2151, %v5356, %v5357
      %v5359 = vrot.slane %v5357, 4
      %v5360 = vrot.slane %v4540, 5
      %v5361 = vsel %vm2151, %v5359, %v5360
      %v5362 = vrot.slane %v5268, 5
      %v5363 = vrot.slane %v5362, 4
      %v5364 = vrot.slane %v4542, 5
      %v5365 = vsel %vm2151, %v5363, %v5364
      %v5366 = vrot.slane %v5364, 4
      %v5367 = vrot.slane %v4543, 5
      %v5368 = vsel %vm2151, %v5366, %v5367
      %v5369 = vrot.slane %v5269, 5
      %v5370 = vrot.slane %v5369, 4
      %v5371 = vrot.slane %v4545, 5
      %v5372 = vsel %vm2151, %v5370, %v5371
      %v5373 = vrot.slane %v5371, 4
      %v5374 = vrot.slane %v4546, 5
      %v5375 = vsel %vm2151, %v5373, %v5374
      %v5376 = vrot.slane %v5270, 5
      %v5377 = vrot.slane %v5376, 4
      %v5378 = vrot.slane %v4548, 5
      %v5379 = vsel %vm2151, %v5377, %v5378
      %v5380 = vrot.slane %v5378, 4
      %v5381 = vrot.slane %v4549, 5
      %v5382 = vsel %vm2151, %v5380, %v5381
      %v5383 = vrot.slane %v5271, 5
      %v5384 = vrot.slane %v5383, 4
      %v5385 = vrot.slane %v4551, 5
      %v5386 = vsel %vm2151, %v5384, %v5385
      %v5387 = vrot.slane %v5385, 4
      %v5388 = vrot.slane %v4552, 5
      %v5389 = vsel %vm2151, %v5387, %v5388
      %v5390 = vrot.slane %v5272, 5
      %v5391 = vrot.slane %v5390, 4
      %v5392 = vrot.slane %v4554, 5
      %v5393 = vsel %vm2151, %v5391, %v5392
      %v5394 = vrot.slane %v5392, 4
      %v5395 = vrot.slane %v4555, 5
      %v5396 = vsel %vm2151, %v5394, %v5395
      %v5397 = vrot.slane %v5273, 5
      %v5398 = vrot.slane %v5397, 4
      %v5399 = vrot.slane %v4557, 5
      %v5400 = vsel %vm2151, %v5398, %v5399
      %v5401 = vrot.slane %v5399, 4
      %v5402 = vrot.slane %v4558, 5
      %v5403 = vsel %vm2151, %v5401, %v5402
      %v5404 = vrot.slane %v5274, 5
      %v5405 = vrot.slane %v5404, 4
      %v5406 = vrot.slane %v4560, 5
      %v5407 = vsel %vm2151, %v5405, %v5406
      %v5408 = vrot.slane %v5406, 4
      %v5409 = vrot.slane %v4561, 5
      %v5410 = vsel %vm2151, %v5408, %v5409
      %v5411 = vrot.slane %v5275, 5
      %v5412 = vrot.slane %v5411, 4
      %v5413 = vrot.slane %v4563, 5
      %v5414 = vsel %vm2151, %v5412, %v5413
      %v5415 = vrot.slane %v5413, 4
      %v5416 = vrot.slane %v4564, 5
      %v5417 = vsel %vm2151, %v5415, %v5416
      %v5418 = vrot.slane %v5276, 5
      %v5419 = vrot.slane %v5418, 4
      %v5420 = vrot.slane %v4566, 5
      %v5421 = vsel %vm2151, %v5419, %v5420
      %v5422 = vrot.slane %v5420, 4
      %v5423 = vrot.slane %v4567, 5
      %v5424 = vsel %vm2151, %v5422, %v5423
      %v5425 = vrot.slane %v5277, 5
      %v5426 = vrot.slane %v5425, 4
      %v5427 = vrot.slane %v4569, 5
      %v5428 = vsel %vm2151, %v5426, %v5427
      %v5429 = vrot.slane %v5427, 4
      %v5430 = vrot.slane %v4570, 5
      %v5431 = vsel %vm2151, %v5429, %v5430
      %v5432 = vrot.slane %v5278, 5
      %v5433 = vrot.slane %v5432, 4
      %v5434 = vrot.slane %v4572, 5
      %v5435 = vsel %vm2151, %v5433, %v5434
      %v5436 = vrot.slane %v5434, 4
      %v5437 = vrot.slane %v4573, 5
      %v5438 = vsel %vm2151, %v5436, %v5437
      %v5439 = vld [vmem:[%s3 + $0x80] sm:$0xf]
      %v5440 = vld [vmem:[%s3 + $0x84] sm:$0xf]
      %v5441 = vld [vmem:[%s3 + $0x88] sm:$0xf]
      %v5442 = vld [vmem:[%s3 + $0x8c] sm:$0xf]
      %v5443 = vunpack.c.l.b16 %v5330
      %v5444 = vunpack.c.l.b16 %v5333
      %v5445 = vunpack.c.l.b16 %v5337
      %v5446 = vunpack.c.l.b16 %v5340
      %v5447 = vunpack.c.l.b16 %v5344
      %v5448 = vunpack.c.l.b16 %v5347
      %v5449 = vunpack.c.l.b16 %v5351
      %v5450 = vunpack.c.l.b16 %v5354
      %v5451 = vunpack.c.l.b16 %v5358
      %v5452 = vunpack.c.l.b16 %v5361
      %v5453 = vunpack.c.l.b16 %v5365
      %v5454 = vunpack.c.l.b16 %v5368
      %v5455 = vunpack.c.l.b16 %v5372
      %v5456 = vunpack.c.l.b16 %v5375
      %v5457 = vunpack.c.l.b16 %v5379
      %v5458 = vunpack.c.l.b16 %v5382
      %v5459 = vunpack.c.l.b16 %v5386
      %v5460 = vunpack.c.l.b16 %v5389
      %v5461 = vunpack.c.l.b16 %v5393
      %v5462 = vunpack.c.l.b16 %v5396
      %v5463 = vunpack.c.l.b16 %v5400
      %v5464 = vunpack.c.l.b16 %v5403
      %v5465 = vunpack.c.l.b16 %v5407
      %v5466 = vunpack.c.l.b16 %v5410
      %v5467 = vunpack.c.l.b16 %v5414
      %v5468 = vunpack.c.l.b16 %v5417
      %v5469 = vunpack.c.l.b16 %v5421
      %v5470 = vunpack.c.l.b16 %v5424
      %v5471 = vunpack.c.l.b16 %v5428
      %v5472 = vunpack.c.l.b16 %v5431
      %v5473 = vunpack.c.l.b16 %v5435
      %v5474 = vunpack.c.l.b16 %v5438
      %v5475 = vpack.c.b16 %v5444, %v5443
      %v5476 = vpack.c.b16 %v5446, %v5445
      %v5477 = vpack.c.b16 %v5448, %v5447
      %v5478 = vpack.c.b16 %v5450, %v5449
      %v5479 = vpack.c.b16 %v5452, %v5451
      %v5480 = vpack.c.b16 %v5454, %v5453
      %v5481 = vpack.c.b16 %v5456, %v5455
      %v5482 = vpack.c.b16 %v5458, %v5457
      %v5483 = vpack.c.b16 %v5460, %v5459
      %v5484 = vpack.c.b16 %v5462, %v5461
      %v5485 = vpack.c.b16 %v5464, %v5463
      %v5486 = vpack.c.b16 %v5466, %v5465
      %v5487 = vpack.c.b16 %v5468, %v5467
      %v5488 = vpack.c.b16 %v5470, %v5469
      %v5489 = vpack.c.b16 %v5472, %v5471
      %v5490 = vpack.c.b16 %v5474, %v5473
      %v5495 = vunpack.c.l.b16 %v5439
      %v5496 = vunpack.c.l.b16 %v5440
      %v5497 = vunpack.c.l.b16 %v5441
      %v5498 = vunpack.c.l.b16 %v5442
      %v5499 = vpack.c.b16 %v5496, %v5495
      %v5500 = vpack.c.b16 %v5498, %v5497
      %v5504 = vsel %vm1590, %v5475, 0
      %v5507 = vsel %vm1590, %v5476, 0
      %v5510 = vsel %vm1590, %v5477, 0
      %v5513 = vsel %vm1590, %v5478, 0
      %v5516 = vsel %vm1590, %v5479, 0
      %v5519 = vsel %vm1590, %v5480, 0
      %v5522 = vsel %vm1590, %v5481, 0
      %v5525 = vsel %vm1590, %v5482, 0
      %v5528 = vsel %vm1590, %v5483, 0
      %v5531 = vsel %vm1590, %v5484, 0
      %v5534 = vsel %vm1590, %v5485, 0
      %v5537 = vsel %vm1590, %v5486, 0
      %v5540 = vsel %vm1590, %v5487, 0
      %v5543 = vsel %vm1590, %v5488, 0
      %v5546 = vsel %vm1590, %v5489, 0
      %v5549 = vsel %vm1590, %v5490, 0
      %5551 = vmatprep.subr.bf16.mxu0 0
      %5552 = vmatpush1.bf16.msra.mxu0 0
      %5553 = vmatprep.subr.bf16.mxu0 0
      %5554 = vmatpush1.bf16.msra.mxu0 0
      %5555 = vmatprep.subr.bf16.mxu0 0
      %5556 = vmatpush1.bf16.msra.mxu0 0
      %5557 = vmatprep.subr.bf16.mxu0 0
      %5558 = vmatpush1.bf16.msra.mxu0 0
      %5559 = vmatprep.subr.bf16.mxu0 0
      %5560 = vmatpush1.bf16.msra.mxu0 0
      %5561 = vmatprep.subr.bf16.mxu0 0
      %5562 = vmatpush1.bf16.msra.mxu0 0
      %5563 = vmatprep.subr.bf16.mxu0 0
      %5564 = vmatpush1.bf16.msra.mxu0 %v5500
      %5565 = vmatprep.subr.bf16.mxu0 0
      %5566 = vmatpush1.bf16.msra.mxu0 %v5499
      %5567 = vmatprep.subr.bf16.mxu0 0
      %5568 = vmatpush2.bf16.msra.mxu0 0
      %5569 = vmatprep.subr.bf16.mxu0 0
      %5570 = vmatpush2.bf16.msra.mxu0 0
      %5571 = vmatprep.subr.bf16.mxu0 0
      %5572 = vmatpush2.bf16.msra.mxu0 0
      %5573 = vmatprep.subr.bf16.mxu0 0
      %5574 = vmatpush2.bf16.msra.mxu0 0
      %5575 = vmatprep.subr.bf16.mxu0 0
      %5576 = vmatpush2.bf16.msra.mxu0 0
      %5577 = vmatprep.subr.bf16.mxu0 0
      %5578 = vmatpush2.bf16.msra.mxu0 0
      %5579 = vmatprep.subr.bf16.mxu0 0
      %5580 = vmatpush2.bf16.msra.mxu0 0
      %5581 = vmatprep.subr.bf16.mxu0 0
      %5582 = vmatpush2.bf16.msra.mxu0 0
      %5583 = vmatprep.mubr.bf16.mxu0 0
      %5584 = vmatmul.mubr.bf16.gmra.mxu0 %v5504
      %v5585 = vpop.f32.mrf.mxu0
      %v5586 = vadd.f32 0.0, %v5585
      %v5587 = vpop.f32.mrf.mxu0
      %v5588 = vpop.f32.mrf.mxu0
      %v5589 = vadd.f32 0.0, %v5588
      %v5590 = vpop.f32.mrf.mxu0
      %5591 = vmatprep.mubr.bf16.mxu0 0
      %5592 = vmatmul.mubr.bf16.gmra.mxu0 %v5507
      %v5593 = vpop.f32.mrf.mxu0
      %v5594 = vadd.f32 0.0, %v5593
      %v5595 = vpop.f32.mrf.mxu0
      %v5596 = vpop.f32.mrf.mxu0
      %v5597 = vadd.f32 0.0, %v5596
      %v5598 = vpop.f32.mrf.mxu0
      %5599 = vmatprep.mubr.bf16.mxu0 0
      %5600 = vmatmul.mubr.bf16.gmra.mxu0 %v5510
      %v5601 = vpop.f32.mrf.mxu0
      %v5602 = vadd.f32 0.0, %v5601
      %v5603 = vpop.f32.mrf.mxu0
      %v5604 = vpop.f32.mrf.mxu0
      %v5605 = vadd.f32 0.0, %v5604
      %v5606 = vpop.f32.mrf.mxu0
      %5607 = vmatprep.mubr.bf16.mxu0 0
      %5608 = vmatmul.mubr.bf16.gmra.mxu0 %v5513
      %v5609 = vpop.f32.mrf.mxu0
      %v5610 = vadd.f32 0.0, %v5609
      %v5611 = vpop.f32.mrf.mxu0
      %v5612 = vpop.f32.mrf.mxu0
      %v5613 = vadd.f32 0.0, %v5612
      %v5614 = vpop.f32.mrf.mxu0
      %5615 = vmatprep.mubr.bf16.mxu0 0
      %5616 = vmatmul.mubr.bf16.gmra.mxu0 %v5516
      %v5617 = vpop.f32.mrf.mxu0
      %v5618 = vadd.f32 0.0, %v5617
      %v5619 = vpop.f32.mrf.mxu0
      %v5620 = vpop.f32.mrf.mxu0
      %v5621 = vadd.f32 0.0, %v5620
      %v5622 = vpop.f32.mrf.mxu0
      %5623 = vmatprep.mubr.bf16.mxu0 0
      %5624 = vmatmul.mubr.bf16.gmra.mxu0 %v5519
      %v5625 = vpop.f32.mrf.mxu0
      %v5626 = vadd.f32 0.0, %v5625
      %v5627 = vpop.f32.mrf.mxu0
      %v5628 = vpop.f32.mrf.mxu0
      %v5629 = vadd.f32 0.0, %v5628
      %v5630 = vpop.f32.mrf.mxu0
      %5631 = vmatprep.mubr.bf16.mxu0 0
      %5632 = vmatmul.mubr.bf16.gmra.mxu0 %v5522
      %v5633 = vpop.f32.mrf.mxu0
      %v5634 = vadd.f32 0.0, %v5633
      %v5635 = vpop.f32.mrf.mxu0
      %v5636 = vpop.f32.mrf.mxu0
      %v5637 = vadd.f32 0.0, %v5636
      %v5638 = vpop.f32.mrf.mxu0
      %5639 = vmatprep.mubr.bf16.mxu0 0
      %5640 = vmatmul.mubr.bf16.gmra.mxu0 %v5525
      %v5641 = vpop.f32.mrf.mxu0
      %v5642 = vadd.f32 0.0, %v5641
      %v5643 = vpop.f32.mrf.mxu0
      %v5644 = vpop.f32.mrf.mxu0
      %v5645 = vadd.f32 0.0, %v5644
      %v5646 = vpop.f32.mrf.mxu0
      %5647 = vmatprep.mubr.bf16.mxu0 0
      %5648 = vmatmul.mubr.bf16.gmra.mxu0 %v5528
      %v5649 = vpop.f32.mrf.mxu0
      %v5650 = vadd.f32 0.0, %v5649
      %v5651 = vpop.f32.mrf.mxu0
      %v5652 = vpop.f32.mrf.mxu0
      %v5653 = vadd.f32 0.0, %v5652
      %v5654 = vpop.f32.mrf.mxu0
      %5655 = vmatprep.mubr.bf16.mxu0 0
      %5656 = vmatmul.mubr.bf16.gmra.mxu0 %v5531
      %v5657 = vpop.f32.mrf.mxu0
      %v5658 = vadd.f32 0.0, %v5657
      %v5659 = vpop.f32.mrf.mxu0
      %v5660 = vpop.f32.mrf.mxu0
      %v5661 = vadd.f32 0.0, %v5660
      %v5662 = vpop.f32.mrf.mxu0
      %5663 = vmatprep.mubr.bf16.mxu0 0
      %5664 = vmatmul.mubr.bf16.gmra.mxu0 %v5534
      %v5665 = vpop.f32.mrf.mxu0
      %v5666 = vadd.f32 0.0, %v5665
      %v5667 = vpop.f32.mrf.mxu0
      %v5668 = vpop.f32.mrf.mxu0
      %v5669 = vadd.f32 0.0, %v5668
      %v5670 = vpop.f32.mrf.mxu0
      %5671 = vmatprep.mubr.bf16.mxu0 0
      %5672 = vmatmul.mubr.bf16.gmra.mxu0 %v5537
      %v5673 = vpop.f32.mrf.mxu0
      %v5674 = vadd.f32 0.0, %v5673
      %v5675 = vpop.f32.mrf.mxu0
      %v5676 = vpop.f32.mrf.mxu0
      %v5677 = vadd.f32 0.0, %v5676
      %v5678 = vpop.f32.mrf.mxu0
      %5679 = vmatprep.mubr.bf16.mxu0 0
      %5680 = vmatmul.mubr.bf16.gmra.mxu0 %v5540
      %v5681 = vpop.f32.mrf.mxu0
      %v5682 = vadd.f32 0.0, %v5681
      %v5683 = vpop.f32.mrf.mxu0
      %v5684 = vpop.f32.mrf.mxu0
      %v5685 = vadd.f32 0.0, %v5684
      %v5686 = vpop.f32.mrf.mxu0
      %5687 = vmatprep.mubr.bf16.mxu0 0
      %5688 = vmatmul.mubr.bf16.gmra.mxu0 %v5543
      %v5689 = vpop.f32.mrf.mxu0
      %v5690 = vadd.f32 0.0, %v5689
      %v5691 = vpop.f32.mrf.mxu0
      %v5692 = vpop.f32.mrf.mxu0
      %v5693 = vadd.f32 0.0, %v5692
      %v5694 = vpop.f32.mrf.mxu0
      %5695 = vmatprep.mubr.bf16.mxu0 0
      %5696 = vmatmul.mubr.bf16.gmra.mxu0 %v5546
      %v5697 = vpop.f32.mrf.mxu0
      %v5698 = vadd.f32 0.0, %v5697
      %v5699 = vpop.f32.mrf.mxu0
      %v5700 = vpop.f32.mrf.mxu0
      %v5701 = vadd.f32 0.0, %v5700
      %v5702 = vpop.f32.mrf.mxu0
      %5703 = vmatprep.mubr.bf16.mxu0 0
      %5704 = vmatmul.mubr.bf16.gmra.mxu0 %v5549
      %v5705 = vpop.f32.mrf.mxu0
      %v5706 = vadd.f32 0.0, %v5705
      %v5707 = vpop.f32.mrf.mxu0
      %v5708 = vpop.f32.mrf.mxu0
      %v5709 = vadd.f32 0.0, %v5708
      %v5710 = vpop.f32.mrf.mxu0
      %5711 = vdwg.mxu0
      %v5712 = vadd.f32 %v5231, %v5586
      %v5713 = vadd.f32 %v5232, %v5589
      %v5714 = vadd.f32 %v5233, %v5594
      %v5715 = vadd.f32 %v5234, %v5597
      %v5716 = vadd.f32 %v5235, %v5602
      %v5717 = vadd.f32 %v5236, %v5605
      %v5718 = vadd.f32 %v5237, %v5610
      %v5719 = vadd.f32 %v5238, %v5613
      %v5720 = vadd.f32 %v5239, %v5618
      %v5721 = vadd.f32 %v5240, %v5621
      %v5722 = vadd.f32 %v5241, %v5626
      %v5723 = vadd.f32 %v5242, %v5629
      %v5724 = vadd.f32 %v5243, %v5634
      %v5725 = vadd.f32 %v5244, %v5637
      %v5726 = vadd.f32 %v5245, %v5642
      %v5727 = vadd.f32 %v5246, %v5645
      %v5728 = vadd.f32 %v5247, %v5650
      %v5729 = vadd.f32 %v5248, %v5653
      %v5730 = vadd.f32 %v5249, %v5658
      %v5731 = vadd.f32 %v5250, %v5661
      %v5732 = vadd.f32 %v5251, %v5666
      %v5733 = vadd.f32 %v5252, %v5669
      %v5734 = vadd.f32 %v5253, %v5674
      %v5735 = vadd.f32 %v5254, %v5677
      %v5736 = vadd.f32 %v5255, %v5682
      %v5737 = vadd.f32 %v5256, %v5685
      %v5738 = vadd.f32 %v5257, %v5690
      %v5739 = vadd.f32 %v5258, %v5693
      %v5740 = vadd.f32 %v5259, %v5698
      %v5741 = vadd.f32 %v5260, %v5701
      %v5742 = vadd.f32 %v5261, %v5706
      %v5743 = vadd.f32 %v5262, %v5709
      %v5744 = vpack.c.bf16 %v5713, %v5712
      %v5745 = vpack.c.bf16 %v5715, %v5714
      %v5746 = vpack.c.bf16 %v5717, %v5716
      %v5747 = vpack.c.bf16 %v5719, %v5718
      %v5748 = vpack.c.bf16 %v5721, %v5720
      %v5749 = vpack.c.bf16 %v5723, %v5722
      %v5750 = vpack.c.bf16 %v5725, %v5724
      %v5751 = vpack.c.bf16 %v5727, %v5726
      %v5752 = vpack.c.bf16 %v5729, %v5728
      %v5753 = vpack.c.bf16 %v5731, %v5730
      %v5754 = vpack.c.bf16 %v5733, %v5732
      %v5755 = vpack.c.bf16 %v5735, %v5734
      %v5756 = vpack.c.bf16 %v5737, %v5736
      %v5757 = vpack.c.bf16 %v5739, %v5738
      %v5758 = vpack.c.bf16 %v5741, %v5740
      %v5759 = vpack.c.bf16 %v5743, %v5742
      %v5776 = vunpack.c.l.b16 %v5744
      %v5777 = vunpack.c.h.b16 %v5744
      %v5778 = vunpack.c.l.b16 %v5745
      %v5779 = vunpack.c.h.b16 %v5745
      %v5780 = vunpack.c.l.b16 %v5746
      %v5781 = vunpack.c.h.b16 %v5746
      %v5782 = vunpack.c.l.b16 %v5747
      %v5783 = vunpack.c.h.b16 %v5747
      %v5784 = vunpack.c.l.b16 %v5748
      %v5785 = vunpack.c.h.b16 %v5748
      %v5786 = vunpack.c.l.b16 %v5749
      %v5787 = vunpack.c.h.b16 %v5749
      %v5788 = vunpack.c.l.b16 %v5750
      %v5789 = vunpack.c.h.b16 %v5750
      %v5790 = vunpack.c.l.b16 %v5751
      %v5791 = vunpack.c.h.b16 %v5751
      %v5792 = vunpack.c.l.b16 %v5752
      %v5793 = vunpack.c.h.b16 %v5752
      %v5794 = vunpack.c.l.b16 %v5753
      %v5795 = vunpack.c.h.b16 %v5753
      %v5796 = vunpack.c.l.b16 %v5754
      %v5797 = vunpack.c.h.b16 %v5754
      %v5798 = vunpack.c.l.b16 %v5755
      %v5799 = vunpack.c.h.b16 %v5755
      %v5800 = vunpack.c.l.b16 %v5756
      %v5801 = vunpack.c.h.b16 %v5756
      %v5802 = vunpack.c.l.b16 %v5757
      %v5803 = vunpack.c.h.b16 %v5757
      %v5804 = vunpack.c.l.b16 %v5758
      %v5805 = vunpack.c.h.b16 %v5758
      %v5806 = vunpack.c.l.b16 %v5759
      %v5807 = vunpack.c.h.b16 %v5759
      %v5808 = vpack.c.b16 %v5776, %v5776
      %v5809 = vpack.c.b16 %v5777, %v5777
      %v5810 = vpack.c.b16 %v5778, %v5778
      %v5811 = vpack.c.b16 %v5779, %v5779
      %v5812 = vpack.c.b16 %v5780, %v5780
      %v5813 = vpack.c.b16 %v5781, %v5781
      %v5814 = vpack.c.b16 %v5782, %v5782
      %v5815 = vpack.c.b16 %v5783, %v5783
      %v5816 = vpack.c.b16 %v5784, %v5784
      %v5817 = vpack.c.b16 %v5785, %v5785
      %v5818 = vpack.c.b16 %v5786, %v5786
      %v5819 = vpack.c.b16 %v5787, %v5787
      %v5820 = vpack.c.b16 %v5788, %v5788
      %v5821 = vpack.c.b16 %v5789, %v5789
      %v5822 = vpack.c.b16 %v5790, %v5790
      %v5823 = vpack.c.b16 %v5791, %v5791
      %v5824 = vpack.c.b16 %v5792, %v5792
      %v5825 = vpack.c.b16 %v5793, %v5793
      %v5826 = vpack.c.b16 %v5794, %v5794
      %v5827 = vpack.c.b16 %v5795, %v5795
      %v5828 = vpack.c.b16 %v5796, %v5796
      %v5829 = vpack.c.b16 %v5797, %v5797
      %v5830 = vpack.c.b16 %v5798, %v5798
      %v5831 = vpack.c.b16 %v5799, %v5799
      %v5832 = vpack.c.b16 %v5800, %v5800
      %v5833 = vpack.c.b16 %v5801, %v5801
      %v5834 = vpack.c.b16 %v5802, %v5802
      %v5835 = vpack.c.b16 %v5803, %v5803
      %v5836 = vpack.c.b16 %v5804, %v5804
      %v5837 = vpack.c.b16 %v5805, %v5805
      %v5838 = vpack.c.b16 %v5806, %v5806
      %v5839 = vpack.c.b16 %v5807, %v5807
      %5872 = vst.msk [vmem:[%s262] sm:$0xf] %vm460, %v5808
      %5873 = vst.msk [vmem:[%s262 + $0x4] sm:$0xf] %vm460, %v5809
      %5874 = vst.msk [vmem:[%s262 + $0x8] sm:$0xf] %vm460, %v5810
      %5875 = vst.msk [vmem:[%s262 + $0xc] sm:$0xf] %vm460, %v5811
      %5876 = vst.msk [vmem:[%s262 + $0x10] sm:$0xf] %vm460, %v5812
      %5877 = vst.msk [vmem:[%s262 + $0x14] sm:$0xf] %vm460, %v5813
      %5878 = vst.msk [vmem:[%s262 + $0x18] sm:$0xf] %vm460, %v5814
      %5879 = vst.msk [vmem:[%s262 + $0x1c] sm:$0xf] %vm460, %v5815
      %5880 = vst.msk [vmem:[%s262 + $0x20] sm:$0xf] %vm460, %v5816
      %5881 = vst.msk [vmem:[%s262 + $0x24] sm:$0xf] %vm460, %v5817
      %5882 = vst.msk [vmem:[%s262 + $0x28] sm:$0xf] %vm460, %v5818
      %5883 = vst.msk [vmem:[%s262 + $0x2c] sm:$0xf] %vm460, %v5819
      %5884 = vst.msk [vmem:[%s262 + $0x30] sm:$0xf] %vm460, %v5820
      %5885 = vst.msk [vmem:[%s262 + $0x34] sm:$0xf] %vm460, %v5821
      %5886 = vst.msk [vmem:[%s262 + $0x38] sm:$0xf] %vm460, %v5822
      %5887 = vst.msk [vmem:[%s262 + $0x3c] sm:$0xf] %vm460, %v5823
      %5888 = vst.msk [vmem:[%s262 + $0x40] sm:$0xf] %vm460, %v5824
      %5889 = vst.msk [vmem:[%s262 + $0x44] sm:$0xf] %vm460, %v5825
      %5890 = vst.msk [vmem:[%s262 + $0x48] sm:$0xf] %vm460, %v5826
      %5891 = vst.msk [vmem:[%s262 + $0x4c] sm:$0xf] %vm460, %v5827
      %5892 = vst.msk [vmem:[%s262 + $0x50] sm:$0xf] %vm460, %v5828
      %5893 = vst.msk [vmem:[%s262 + $0x54] sm:$0xf] %vm460, %v5829
      %5894 = vst.msk [vmem:[%s262 + $0x58] sm:$0xf] %vm460, %v5830
      %5895 = vst.msk [vmem:[%s262 + $0x5c] sm:$0xf] %vm460, %v5831
      %5896 = vst.msk [vmem:[%s262 + $0x60] sm:$0xf] %vm460, %v5832
      %5897 = vst.msk [vmem:[%s262 + $0x64] sm:$0xf] %vm460, %v5833
      %5898 = vst.msk [vmem:[%s262 + $0x68] sm:$0xf] %vm460, %v5834
      %5899 = vst.msk [vmem:[%s262 + $0x6c] sm:$0xf] %vm460, %v5835
      %5900 = vst.msk [vmem:[%s262 + $0x70] sm:$0xf] %vm460, %v5836
      %5901 = vst.msk [vmem:[%s262 + $0x74] sm:$0xf] %vm460, %v5837
      %5902 = vst.msk [vmem:[%s262 + $0x78] sm:$0xf] %vm460, %v5838
      %5903 = vst.msk [vmem:[%s262 + $0x7c] sm:$0xf] %vm460, %v5839
      %v5904 = vunpack.c.l.bf16 %v5744
      %v5905 = vunpack.c.h.bf16 %v5744
      %v5906 = vunpack.c.l.bf16 %v5745
      %v5907 = vunpack.c.h.bf16 %v5745
      %v5908 = vunpack.c.l.bf16 %v5746
      %v5909 = vunpack.c.h.bf16 %v5746
      %v5910 = vunpack.c.l.bf16 %v5747
      %v5911 = vunpack.c.h.bf16 %v5747
      %v5912 = vunpack.c.l.bf16 %v5748
      %v5913 = vunpack.c.h.bf16 %v5748
      %v5914 = vunpack.c.l.bf16 %v5749
      %v5915 = vunpack.c.h.bf16 %v5749
      %v5916 = vunpack.c.l.bf16 %v5750
      %v5917 = vunpack.c.h.bf16 %v5750
      %v5918 = vunpack.c.l.bf16 %v5751
      %v5919 = vunpack.c.h.bf16 %v5751
      %v5920 = vunpack.c.l.bf16 %v5752
      %v5921 = vunpack.c.h.bf16 %v5752
      %v5922 = vunpack.c.l.bf16 %v5753
      %v5923 = vunpack.c.h.bf16 %v5753
      %v5924 = vunpack.c.l.bf16 %v5754
      %v5925 = vunpack.c.h.bf16 %v5754
      %v5926 = vunpack.c.l.bf16 %v5755
      %v5927 = vunpack.c.h.bf16 %v5755
      %v5928 = vunpack.c.l.bf16 %v5756
      %v5929 = vunpack.c.h.bf16 %v5756
      %v5930 = vunpack.c.l.bf16 %v5757
      %v5931 = vunpack.c.h.bf16 %v5757
      %v5932 = vunpack.c.l.bf16 %v5758
      %v5933 = vunpack.c.h.bf16 %v5758
      %v5934 = vunpack.c.l.bf16 %v5759
      %v5935 = vunpack.c.h.bf16 %v5759
      %v5936 = vsel %vm1590, %v5904, 0.0
      %v5937 = vsel %vm1590, %v5905, 0.0
      %v5938 = vadd.f32 %v5936, %v5937
      %v5939 = vsel %vm1590, %v5906, 0.0
      %v5940 = vadd.f32 %v5938, %v5939
      %v5941 = vsel %vm1590, %v5907, 0.0
      %v5942 = vadd.f32 %v5940, %v5941
      %v5943 = vsel %vm1590, %v5908, 0.0
      %v5944 = vadd.f32 %v5942, %v5943
      %v5945 = vsel %vm1590, %v5909, 0.0
      %v5946 = vadd.f32 %v5944, %v5945
      %v5947 = vsel %vm1590, %v5910, 0.0
      %v5948 = vadd.f32 %v5946, %v5947
      %v5949 = vsel %vm1590, %v5911, 0.0
      %v5950 = vadd.f32 %v5948, %v5949
      %v5951 = vsel %vm1590, %v5912, 0.0
      %v5952 = vadd.f32 %v5950, %v5951
      %v5953 = vsel %vm1590, %v5913, 0.0
      %v5954 = vadd.f32 %v5952, %v5953
      %v5955 = vsel %vm1590, %v5914, 0.0
      %v5956 = vadd.f32 %v5954, %v5955
      %v5957 = vsel %vm1590, %v5915, 0.0
      %v5958 = vadd.f32 %v5956, %v5957
      %v5959 = vsel %vm1590, %v5916, 0.0
      %v5960 = vadd.f32 %v5958, %v5959
      %v5961 = vsel %vm1590, %v5917, 0.0
      %v5962 = vadd.f32 %v5960, %v5961
      %v5963 = vsel %vm1590, %v5918, 0.0
      %v5964 = vadd.f32 %v5962, %v5963
      %v5965 = vsel %vm1590, %v5919, 0.0
      %v5966 = vadd.f32 %v5964, %v5965
      %v5967 = vsel %vm1590, %v5920, 0.0
      %v5968 = vadd.f32 %v5966, %v5967
      %v5969 = vsel %vm1590, %v5921, 0.0
      %v5970 = vadd.f32 %v5968, %v5969
      %v5971 = vsel %vm1590, %v5922, 0.0
      %v5972 = vadd.f32 %v5970, %v5971
      %v5973 = vsel %vm1590, %v5923, 0.0
      %v5974 = vadd.f32 %v5972, %v5973
      %v5975 = vsel %vm1590, %v5924, 0.0
      %v5976 = vadd.f32 %v5974, %v5975
      %v5977 = vsel %vm1590, %v5925, 0.0
      %v5978 = vadd.f32 %v5976, %v5977
      %v5979 = vsel %vm1590, %v5926, 0.0
      %v5980 = vadd.f32 %v5978, %v5979
      %v5981 = vsel %vm1590, %v5927, 0.0
      %v5982 = vadd.f32 %v5980, %v5981
      %v5983 = vsel %vm1590, %v5928, 0.0
      %v5984 = vadd.f32 %v5982, %v5983
      %v5985 = vsel %vm1590, %v5929, 0.0
      %v5986 = vadd.f32 %v5984, %v5985
      %v5987 = vsel %vm1590, %v5930, 0.0
      %v5988 = vadd.f32 %v5986, %v5987
      %v5989 = vsel %vm1590, %v5931, 0.0
      %v5990 = vadd.f32 %v5988, %v5989
      %v5991 = vsel %vm1590, %v5932, 0.0
      %v5992 = vadd.f32 %v5990, %v5991
      %v5993 = vsel %vm1590, %v5933, 0.0
      %v5994 = vadd.f32 %v5992, %v5993
      %v5995 = vsel %vm1590, %v5934, 0.0
      %v5996 = vadd.f32 %v5994, %v5995
      %v5997 = vsel %vm1590, %v5935, 0.0
      %v5998 = vadd.f32 %v5996, %v5997
      %v5999 = vrot.slane %v5998, 4
      %v6000 = vadd.f32 %v5998, %v5999
      %v6001 = vrot.slane %v6000, 2
      %v6002 = vadd.f32 %v6000, %v6001
      %v6003 = vrot.slane %v6002, 1
      %v6004 = vadd.f32 %v6002, %v6003
      %6005 = vst.msk [vmem:[%s265] sm:$0x1] %vm463, %v6004
      %v6006 = vmul.f32 %v5904, %v5904
      %v6007 = vmul.f32 %v5905, %v5905
      %v6008 = vmul.f32 %v5906, %v5906
      %v6009 = vmul.f32 %v5907, %v5907
      %v6010 = vmul.f32 %v5908, %v5908
      %v6011 = vmul.f32 %v5909, %v5909
      %v6012 = vmul.f32 %v5910, %v5910
      %v6013 = vmul.f32 %v5911, %v5911
      %v6014 = vmul.f32 %v5912, %v5912
      %v6015 = vmul.f32 %v5913, %v5913
      %v6016 = vmul.f32 %v5914, %v5914
      %v6017 = vmul.f32 %v5915, %v5915
      %v6018 = vmul.f32 %v5916, %v5916
      %v6019 = vmul.f32 %v5917, %v5917
      %v6020 = vmul.f32 %v5918, %v5918
      %v6021 = vmul.f32 %v5919, %v5919
      %v6022 = vmul.f32 %v5920, %v5920
      %v6023 = vmul.f32 %v5921, %v5921
      %v6024 = vmul.f32 %v5922, %v5922
      %v6025 = vmul.f32 %v5923, %v5923
      %v6026 = vmul.f32 %v5924, %v5924
      %v6027 = vmul.f32 %v5925, %v5925
      %v6028 = vmul.f32 %v5926, %v5926
      %v6029 = vmul.f32 %v5927, %v5927
      %v6030 = vmul.f32 %v5928, %v5928
      %v6031 = vmul.f32 %v5929, %v5929
      %v6032 = vmul.f32 %v5930, %v5930
      %v6033 = vmul.f32 %v5931, %v5931
      %v6034 = vmul.f32 %v5932, %v5932
      %v6035 = vmul.f32 %v5933, %v5933
      %v6036 = vmul.f32 %v5934, %v5934
      %v6037 = vmul.f32 %v5935, %v5935
      %v6038 = vsel %vm1590, %v6006, 0.0
      %v6039 = vsel %vm1590, %v6007, 0.0
      %v6040 = vadd.f32 %v6038, %v6039
      %v6041 = vsel %vm1590, %v6008, 0.0
      %v6042 = vadd.f32 %v6040, %v6041
      %v6043 = vsel %vm1590, %v6009, 0.0
      %v6044 = vadd.f32 %v6042, %v6043
      %v6045 = vsel %vm1590, %v6010, 0.0
      %v6046 = vadd.f32 %v6044, %v6045
      %v6047 = vsel %vm1590, %v6011, 0.0
      %v6048 = vadd.f32 %v6046, %v6047
      %v6049 = vsel %vm1590, %v6012, 0.0
      %v6050 = vadd.f32 %v6048, %v6049
      %v6051 = vsel %vm1590, %v6013, 0.0
      %v6052 = vadd.f32 %v6050, %v6051
      %v6053 = vsel %vm1590, %v6014, 0.0
      %v6054 = vadd.f32 %v6052, %v6053
      %v6055 = vsel %vm1590, %v6015, 0.0
      %v6056 = vadd.f32 %v6054, %v6055
      %v6057 = vsel %vm1590, %v6016, 0.0
      %v6058 = vadd.f32 %v6056, %v6057
      %v6059 = vsel %vm1590, %v6017, 0.0
      %v6060 = vadd.f32 %v6058, %v6059
      %v6061 = vsel %vm1590, %v6018, 0.0
      %v6062 = vadd.f32 %v6060, %v6061
      %v6063 = vsel %vm1590, %v6019, 0.0
      %v6064 = vadd.f32 %v6062, %v6063
      %v6065 = vsel %vm1590, %v6020, 0.0
      %v6066 = vadd.f32 %v6064, %v6065
      %v6067 = vsel %vm1590, %v6021, 0.0
      %v6068 = vadd.f32 %v6066, %v6067
      %v6069 = vsel %vm1590, %v6022, 0.0
      %v6070 = vadd.f32 %v6068, %v6069
      %v6071 = vsel %vm1590, %v6023, 0.0
      %v6072 = vadd.f32 %v6070, %v6071
      %v6073 = vsel %vm1590, %v6024, 0.0
      %v6074 = vadd.f32 %v6072, %v6073
      %v6075 = vsel %vm1590, %v6025, 0.0
      %v6076 = vadd.f32 %v6074, %v6075
      %v6077 = vsel %vm1590, %v6026, 0.0
      %v6078 = vadd.f32 %v6076, %v6077
      %v6079 = vsel %vm1590, %v6027, 0.0
      %v6080 = vadd.f32 %v6078, %v6079
      %v6081 = vsel %vm1590, %v6028, 0.0
      %v6082 = vadd.f32 %v6080, %v6081
      %v6083 = vsel %vm1590, %v6029, 0.0
      %v6084 = vadd.f32 %v6082, %v6083
      %v6085 = vsel %vm1590, %v6030, 0.0
      %v6086 = vadd.f32 %v6084, %v6085
      %v6087 = vsel %vm1590, %v6031, 0.0
      %v6088 = vadd.f32 %v6086, %v6087
      %v6089 = vsel %vm1590, %v6032, 0.0
      %v6090 = vadd.f32 %v6088, %v6089
      %v6091 = vsel %vm1590, %v6033, 0.0
      %v6092 = vadd.f32 %v6090, %v6091
      %v6093 = vsel %vm1590, %v6034, 0.0
      %v6094 = vadd.f32 %v6092, %v6093
      %v6095 = vsel %vm1590, %v6035, 0.0
      %v6096 = vadd.f32 %v6094, %v6095
      %v6097 = vsel %vm1590, %v6036, 0.0
      %v6098 = vadd.f32 %v6096, %v6097
      %v6099 = vsel %vm1590, %v6037, 0.0
      %v6100 = vadd.f32 %v6098, %v6099
      %v6101 = vrot.slane %v6100, 4
      %v6102 = vadd.f32 %v6100, %v6101
      %v6103 = vrot.slane %v6102, 2
      %v6104 = vadd.f32 %v6102, %v6103
      %v6105 = vrot.slane %v6104, 1
      %v6106 = vadd.f32 %v6104, %v6105
      %6107 = vst.msk [vmem:[%s268] sm:$0x1] %vm463, %v6106
      %p6108 = scmp.lt.s32.totalorder %s18, 1
      %s6109 = scalar_select %p6108, %s18, 1
      %s6110 = smul.addr %s6109, 32
      %s6111 = smul.addr %s6110, 4
      %s6112 = scalar_lea.vmem %s4, %s6111
      %p6113 = scmp.lt.s32.totalorder %s18, 1
      %s6114 = scalar_select %p6113, %s18, 1
      %s6115 = scalar_lea.vmem %s5, %s6114
      %p6116 = scmp.lt.s32.totalorder %s18, 1
      %s6117 = scalar_select %p6116, %s18, 1
      %s6118 = scalar_lea.vmem %s6, %s6117
      // Predicated region
      $region37: #{bottleneck_forward_nhwc.5} parent=35 // pred_check
        %p6119 = pneg %p125
      $region38: #{bottleneck_forward_nhwc.5} parent=35 // pred_check_branch
        %6121 = sbr.rel (%p6119) target = $region40
      $region39: #{bottleneck_forward_nhwc.5} parent=35 // pred_region
        _
      $region40: #{bottleneck_forward_nhwc.5} parent=35 // pred_fallthru
        _
      // Predicated region
      $region41: #{bottleneck_forward_nhwc.5} parent=35 // pred_check
        %p6122 = pneg %p151
      $region42: #{bottleneck_forward_nhwc.5} parent=35 // pred_check_branch
        %6124 = sbr.rel (%p6122) target = $region44
      $region43: #{bottleneck_forward_nhwc.5} parent=35 // pred_region
        _
      $region44: #{bottleneck_forward_nhwc.5} parent=35 // pred_fallthru
        _
      // Predicated region
      $region45: #{bottleneck_forward_nhwc.5} parent=35 // pred_check
        %p6125 = pneg %p177
      $region46: #{bottleneck_forward_nhwc.5} parent=35 // pred_check_branch
        %6127 = sbr.rel (%p6125) target = $region48
      $region47: #{bottleneck_forward_nhwc.5} parent=35 // pred_region
        _
      $region48: #{bottleneck_forward_nhwc.5} parent=35 // pred_fallthru
        _
    $region36: #{bottleneck_forward_nhwc.5} parent=5 // pred_fallthru
      _
    %p6128 = scmp.le.s32.totalorder 2, %s13
    // Predicated region
    $region49: #{bottleneck_forward_nhwc.5} parent=5 // pred_check
      %p6129 = pneg %p6128
    $region50: #{bottleneck_forward_nhwc.5} parent=5 // pred_check_branch
      %6131 = sbr.rel (%p6129) target = $region52
    $region51: #{bottleneck_forward_nhwc.5} parent=5 // pred_region
      %s6132 = ssub.s32 %s13, 2
      // Predicated region
      $region53: #{bottleneck_forward_nhwc.5} parent=51 // pred_check
        %p6133 = pneg %p131
      $region54: #{bottleneck_forward_nhwc.5} parent=51 // pred_check_branch
        %6135 = sbr.rel (%p6133) target = $region56
      $region55: #{bottleneck_forward_nhwc.5} parent=51 // pred_region
        %p6136 = scmp.lt.s32.totalorder %s19, 1
        %s6137 = scalar_select %p6136, %s19, 1
        %s6138 = smul.addr %s6137, 32
        %s6139 = smul.addr %s6138, 4
        %s6140 = scalar_lea.vmem %s4, %s6139
      $region56: #{bottleneck_forward_nhwc.5} parent=51 // pred_fallthru
        _
      // Predicated region
      $region57: #{bottleneck_forward_nhwc.5} parent=51 // pred_check
        %p6141 = pneg %p157
      $region58: #{bottleneck_forward_nhwc.5} parent=51 // pred_check_branch
        %6143 = sbr.rel (%p6141) target = $region60
      $region59: #{bottleneck_forward_nhwc.5} parent=51 // pred_region
        %p6144 = scmp.lt.s32.totalorder %s19, 1
        %s6145 = scalar_select %p6144, %s19, 1
        %s6146 = scalar_lea.vmem %s5, %s6145
      $region60: #{bottleneck_forward_nhwc.5} parent=51 // pred_fallthru
        _
      // Predicated region
      $region61: #{bottleneck_forward_nhwc.5} parent=51 // pred_check
        %p6147 = pneg %p183
      $region62: #{bottleneck_forward_nhwc.5} parent=51 // pred_check_branch
        %6149 = sbr.rel (%p6147) target = $region64
      $region63: #{bottleneck_forward_nhwc.5} parent=51 // pred_region
        %p6150 = scmp.lt.s32.totalorder %s19, 1
        %s6151 = scalar_select %p6150, %s19, 1
        %s6152 = scalar_lea.vmem %s6, %s6151
      $region64: #{bottleneck_forward_nhwc.5} parent=51 // pred_fallthru
        _
    $region52: #{bottleneck_forward_nhwc.5} parent=5 // pred_fallthru
      _
  $region6: #{bottleneck_forward_nhwc.5} parent=0 // loop_footer
    %s17 = sadd.s32 1, %s13
  $region7: #{bottleneck_forward_nhwc.5} parent=0 // loop_footer_branch
    %12 = sbr.rel target = $region3
  $region8: #{bottleneck_forward_nhwc.5} parent=0 // loop_exit
    _

</llo_original>
